<compile_context>
chip_gen: v7x
topology: tpu7x:2x2x1
jax: 0.10.0
libtpu: 0.0.40
codegen_flags: <defaults>
</compile_context>

<pallas_src>
import functools

import jax
import jax.numpy as jnp
from jax import lax
from jax.experimental import pallas as pl
from jax.experimental.pallas import tpu as pltpu

# ---- scaled-down T5 config ----
VOCAB = 64
D_MODEL = 32
D_KV = 16
N_HEADS = 2
INNER = N_HEADS * D_KV
D_FF = 64
N_LAYERS = 2
REL_BUCKETS = 32
REL_MAX_DIST = 128
EPS = 1e-6
NEG = -1e9

_VMEM = pl.BlockSpec(memory_space=pltpu.MemorySpace.VMEM)


def _resident(shape):
    """Full-array block with a constant index map -> loaded into VMEM once per call."""
    zeros = (0,) * len(shape)
    return pl.BlockSpec(shape, lambda i, _z=zeros: _z)


# ----------------------------- in-kernel helpers -----------------------------
def _rms(x, w):
    # T5LayerNorm: no mean subtraction, no bias.
    var = jnp.mean(x * x, axis=-1, keepdims=True)
    return x * lax.rsqrt(var + EPS) * w


def _softmax(s):
    s = s - jnp.max(s, axis=-1, keepdims=True)
    p = jnp.exp(s)
    return p / jnp.sum(p, axis=-1, keepdims=True)  # exact divide (argmax-safe)


# ----------------------------- encoder kernel -----------------------------
def _encoder_kernel(x_ref, bias_ref, lns_ref, wqkv_ref, wo_ref, wi_ref, woff_ref,
                    wkv_ref, kv_ref, *, batch, seq):
    """All encoder layers + final rmsnorm + all decoder layers' cross-K/V projections."""
    x = x_ref[...]                                   # (B*T, D)
    bias = bias_ref[...]                             # (B, H, T, T) rel-pos + padding mask
    for li in range(N_LAYERS):
        # ---- self-attention ----
        h = _rms(x, lns_ref[2 * li:2 * li + 1, :])
        qkv = jnp.dot(h, wqkv_ref[li], preferred_element_type=jnp.float32)   # (B*T, 3*INNER)
        outs = []
        for hd in range(N_HEADS):
            q = qkv[:, hd * D_KV:(hd + 1) * D_KV].reshape(batch, seq, D_KV)
            k = qkv[:, INNER + hd * D_KV:INNER + (hd + 1) * D_KV].reshape(batch, seq, D_KV)
            v = qkv[:, 2 * INNER + hd * D_KV:2 * INNER + (hd + 1) * D_KV].reshape(batch, seq, D_KV)
            # T5 attention: no 1/sqrt(d_k) scaling; bias carries rel-pos + padding mask.
            s = jnp.einsum("bqd,bkd->bqk", q, k, preferred_element_type=jnp.float32)
            p = _softmax(s + bias[:, hd])
            o = jnp.einsum("bqk,bkd->bqd", p, v, preferred_element_type=jnp.float32)
            outs.append(o.reshape(batch * seq, D_KV))
        o_cat = jnp.concatenate(outs, axis=-1)                                # (B*T, INNER)
        x = x + jnp.dot(o_cat, wo_ref[li], preferred_element_type=jnp.float32)
        # ---- feed-forward (ReLU) ----
        h2 = _rms(x, lns_ref[2 * li + 1:2 * li + 2, :])
        ff = jnp.maximum(jnp.dot(h2, wi_ref[li], preferred_element_type=jnp.float32), 0.0)
        x = x + jnp.dot(ff, woff_ref[li], preferred_element_type=jnp.float32)

    # final encoder rmsnorm fused with all decoder layers' cross K/V projections
    hf = _rms(x, lns_ref[2 * N_LAYERS:2 * N_LAYERS + 1, :])
    kv_ref[...] = jnp.dot(hf, wkv_ref[...], preferred_element_type=jnp.float32)  # (B*T, NL*2*INNER)


def encoder_call(x0, enc_bias, pp, batch, seq):
    return pl.pallas_call(
        functools.partial(_encoder_kernel, batch=batch, seq=seq),
        out_shape=jax.ShapeDtypeStruct((batch * seq, N_LAYERS * 2 * INNER), jnp.float32),
        in_specs=[_VMEM] * 8,
        out_specs=_VMEM,
    )(x0, enc_bias, pp["enc_lns"], pp["enc_wqkv"], pp["enc_wo"], pp["enc_wi"],
      pp["enc_wo_ff"], pp["enc_wkv_cross"])


# ----------------------------- fused greedy-decode kernel -----------------------------
def _decode_kernel(embed_ref, embed_t_ref, lns_ref, wqkv_ref, wo_s_ref, wq_c_ref,
                   wo_c_ref, wi_ref, wo_f_ref, sbias_ref, cbias_ref, kx_ref, vx_ref,
                   ids_ref, *scratch, batch, total_len):
    """One grid step == one generated token.  Everything stays VMEM-resident."""
    i = pl.program_id(0)                         # query position of this step
    caches = scratch[:-1]
    cur_ref = scratch[-1]                        # (B, 1) int32: current decoder input token
    kcs = caches[0::2]
    vcs = caches[1::2]

    @pl.when(i == 0)
    def _init():
        ids_ref[...] = jnp.zeros_like(ids_ref)   # decoder_start_token_id = pad = 0
        cur_ref[...] = jnp.zeros_like(cur_ref)
        for li in range(N_LAYERS):
            kcs[li][...] = jnp.zeros_like(kcs[li])
            vcs[li][...] = jnp.zeros_like(vcs[li])

    # ---- embedding lookup via one-hot matmul (no dynamic gather) ----
    onehot = (lax.broadcasted_iota(jnp.int32, (batch, VOCAB), 1)
              == cur_ref[...]).astype(jnp.float32)                        # (B, VOCAB)
    x = jnp.dot(onehot, embed_ref[...], preferred_element_type=jnp.float32)  # (B, D)

    cbias = cbias_ref[...]                                                # (B, T)
    for li in range(N_LAYERS):
        base = 3 * li
        # ---- self-attention with in-VMEM KV cache ----
        h = _rms(x, lns_ref[base:base + 1, :])
        qkv = jnp.dot(h, wqkv_ref[li], preferred_element_type=jnp.float32)  # (B, 3*INNER)
        k_new = qkv[:, INNER:2 * INNER]
        v_new = qkv[:, 2 * INNER:3 * INNER]
        kcs[li][:, pl.ds(i, 1), :] = k_new[:, None, :]
        vcs[li][:, pl.ds(i, 1), :] = v_new[:, None, :]
        kk = kcs[li][...]                                                  # (B, L, INNER)
        vv = vcs[li][...]
        outs = []
        for hd in range(N_HEADS):
            lo, hi = hd * D_KV, (hd + 1) * D_KV
            q = qkv[:, lo:hi]                                              # (B, D_KV)
            s = jnp.sum(q[:, None, :] * kk[:, :, lo:hi], axis=-1)          # (B, L)
            # rel-pos + causal bias row for query position i (also masks unfilled slots).
            s = s + sbias_ref[hd, pl.ds(i, 1), :]
            p = _softmax(s)
            outs.append(jnp.sum(p[:, :, None] * vv[:, :, lo:hi], axis=1))  # (B, D_KV)
        o = jnp.concatenate(outs, axis=-1)                                 # (B, INNER)
        x = x + jnp.dot(o, wo_s_ref[li], preferred_element_type=jnp.float32)

        # ---- cross-attention (K/V precomputed once per generate) ----
        h = _rms(x, lns_ref[base + 1:base + 2, :])
        qc = jnp.dot(h, wq_c_ref[li], preferred_element_type=jnp.float32)  # (B, INNER)
        kx = kx_ref[li]                                                    # (B, T, INNER)
        vx = vx_ref[li]
        outs = []
        for hd in range(N_HEADS):
            lo, hi = hd * D_KV, (hd + 1) * D_KV
            s = jnp.sum(qc[:, None, lo:hi] * kx[:, :, lo:hi], axis=-1) + cbias  # (B, T)
            p = _softmax(s)
            outs.append(jnp.sum(p[:, :, None] * vx[:, :, lo:hi], axis=1))
        o = jnp.concatenate(outs, axis=-1)
        x = x + jnp.dot(o, wo_c_ref[li], preferred_element_type=jnp.float32)

        # ---- feed-forward (ReLU) ----
        h = _rms(x, lns_ref[base + 2:base + 3, :])
        ff = jnp.maximum(jnp.dot(h, wi_ref[li], preferred_element_type=jnp.float32), 0.0)
        x = x + jnp.dot(ff, wo_f_ref[li], preferred_element_type=jnp.float32)

    # ---- final rmsnorm + tied-embedding logit rescale + vocab projection + argmax ----
    hf = _rms(x, lns_ref[3 * N_LAYERS:3 * N_LAYERS + 1, :]) * (D_MODEL ** -0.5)
    logits = jnp.dot(hf, embed_t_ref[...], preferred_element_type=jnp.float32)  # (B, VOCAB)
    m = jnp.max(logits, axis=-1, keepdims=True)
    col = lax.broadcasted_iota(jnp.int32, (batch, VOCAB), 1)
    nxt = jnp.min(jnp.where(logits == m, col, VOCAB), axis=-1, keepdims=True)   # (B, 1) int32

    cur_ref[...] = nxt
    col_l = lax.broadcasted_iota(jnp.int32, (batch, total_len), 1)
    ids_ref[...] = jnp.where(col_l == i + 1, nxt, ids_ref[...])


def decode_call(pp, self_bias, cross_bias, k_cross, v_cross, batch, total_len, steps):
    operands = (pp["embed"], pp["embed_t"], pp["dec_lns"], pp["dec_wqkv"],
                pp["dec_wo_self"], pp["dec_wq_cross"], pp["dec_wo_cross"],
                pp["dec_wi"], pp["dec_wo_ff"], self_bias, cross_bias, k_cross, v_cross)
    return pl.pallas_call(
        functools.partial(_decode_kernel, batch=batch, total_len=total_len),
        grid=(steps,),
        out_shape=jax.ShapeDtypeStruct((batch, total_len), jnp.int32),
        in_specs=[_resident(op.shape) for op in operands],
        out_specs=_resident((batch, total_len)),
        scratch_shapes=(
            [pltpu.VMEM((batch, total_len, INNER), jnp.float32) for _ in range(2 * N_LAYERS)]
            + [pltpu.VMEM((batch, 1), jnp.int32)]),
        compiler_params=pltpu.CompilerParams(dimension_semantics=("arbitrary",)),
    )(*operands)


# ----------------------------- T5 relative position bias (host/XLA, once per call) ----
def _rel_bucket(rel_pos, bidirectional):
    num_buckets = REL_BUCKETS
    ret = jnp.zeros_like(rel_pos)
    if bidirectional:
        num_buckets //= 2
        ret = ret + (rel_pos > 0).astype(jnp.int32) * num_buckets
        rel_pos = jnp.abs(rel_pos)
    else:
        rel_pos = -jnp.minimum(rel_pos, 0)
    max_exact = num_buckets // 2
    is_small = rel_pos < max_exact
    large = max_exact + (
        jnp.log(jnp.maximum(rel_pos, 1).astype(jnp.float32) / max_exact)
        / jnp.log(REL_MAX_DIST / max_exact)
        * (num_buckets - max_exact)
    ).astype(jnp.int32)
    large = jnp.minimum(large, num_buckets - 1)
    return ret + jnp.where(is_small, rel_pos, large)


def position_bias(rel_emb, tq, tk, bidirectional):
    ctx = jnp.arange(tq)[:, None]
    mem = jnp.arange(tk)[None, :]
    buckets = _rel_bucket(mem - ctx, bidirectional)   # (tq, tk)
    bias = rel_emb[buckets]                           # (tq, tk, H)
    return bias.transpose(2, 0, 1)                    # (H, tq, tk)


# ----------------------------- jitted greedy generate -----------------------------
@functools.partial(jax.jit, static_argnames=("max_new_tokens",))
def generate(pp, input_ids, attention_mask, max_new_tokens=15):
    B, T = input_ids.shape
    L = 1 + max_new_tokens
    mask_f = attention_mask.astype(jnp.float32)

    # ---------------- encoder (one fused pallas_call) ----------------
    x0 = pp["embed"][input_ids].reshape(B * T, D_MODEL)
    enc_pos = position_bias(pp["enc_rel"], T, T, True)                   # (H, T, T)
    enc_bias = enc_pos[None] + (1.0 - mask_f)[:, None, None, :] * NEG    # (B, H, T, T)
    kv_slab = encoder_call(x0, enc_bias, pp, B, T)                       # (B*T, NL*2*INNER)

    kv = kv_slab.reshape(B, T, N_LAYERS, 2, INNER)
    k_cross = jnp.transpose(kv[:, :, :, 0, :], (2, 0, 1, 3))             # (NL, B, T, INNER)
    v_cross = jnp.transpose(kv[:, :, :, 1, :], (2, 0, 1, 3))

    # ---------------- hoisted decoder bias tables ----------------
    dec_pos = position_bias(pp["dec_rel"], L, L, False)                  # (H, L, L)
    causal = jnp.where(jnp.arange(L)[None, :] > jnp.arange(L)[:, None], NEG, 0.0)
    self_bias = dec_pos + causal[None]                                   # (H, L, L)
    cross_bias = (1.0 - mask_f) * NEG                                    # (B, T)

    # ---------------- fused decode loop (one pallas_call) ----------------
    # TODO(synk): HF generate() also early-stops on EOS; this fixed-shape loop always
    # emits max_new_tokens greedy tokens.
    return decode_call(pp, self_bias, cross_bias, k_cross, v_cross, B, L, max_new_tokens)


# ----------------------------- parameter init & packing -----------------------------
def init_params(key):
    keys = jax.random.split(key, 256)
    cnt = [0]

    def nrm(shape, scale):
        k = keys[cnt[0]]
        cnt[0] += 1
        return (scale * jax.random.normal(k, shape)).astype(jnp.float32)

    def attn_params():
        return dict(wq=nrm((D_MODEL, INNER), 0.05), wk=nrm((D_MODEL, INNER), 0.05),
                    wv=nrm((D_MODEL, INNER), 0.05), wo=nrm((INNER, D_MODEL), 0.05))

    params = dict(
        embed=nrm((VOCAB, D_MODEL), 1.0),
        enc_rel=nrm((REL_BUCKETS, N_HEADS), 0.05),
        dec_rel=nrm((REL_BUCKETS, N_HEADS), 0.05),
        enc_final_ln=jnp.ones((D_MODEL,), jnp.float32),
        dec_final_ln=jnp.ones((D_MODEL,), jnp.float32),
        enc_layers=[],
        dec_layers=[],
    )
    for _ in range(N_LAYERS):
        params["enc_layers"].append(dict(
            attn=attn_params(),
            ln1=jnp.ones((D_MODEL,), jnp.float32),
            ln2=jnp.ones((D_MODEL,), jnp.float32),
            wi=nrm((D_MODEL, D_FF), 0.05),
            wo=nrm((D_FF, D_MODEL), 0.05)))
    for _ in range(N_LAYERS):
        params["dec_layers"].append(dict(
            self_attn=attn_params(),
            cross_attn=attn_params(),
            ln1=jnp.ones((D_MODEL,), jnp.float32),
            ln2=jnp.ones((D_MODEL,), jnp.float32),
            ln3=jnp.ones((D_MODEL,), jnp.float32),
            wi=nrm((D_MODEL, D_FF), 0.05),
            wo=nrm((D_FF, D_MODEL), 0.05)))
    return params


def pack_params(p):
    """Stack per-layer weights / fuse QKV & cross-K/V once, outside the generation loop."""
    enc_lns, enc_wqkv, enc_wo, enc_wi, enc_wo_ff = [], [], [], [], []
    for lyr in p["enc_layers"]:
        a = lyr["attn"]
        enc_lns += [lyr["ln1"], lyr["ln2"]]
        enc_wqkv.append(jnp.concatenate([a["wq"], a["wk"], a["wv"]], axis=1))
        enc_wo.append(a["wo"])
        enc_wi.append(lyr["wi"])
        enc_wo_ff.append(lyr["wo"])
    enc_lns.append(p["enc_final_ln"])

    dec_lns, dec_wqkv, dec_wo_self = [], [], []
    dec_wq_cross, dec_wo_cross, dec_wi, dec_wo_ff, wkv_cols = [], [], [], [], []
    for lyr in p["dec_layers"]:
        sa, ca = lyr["self_attn"], lyr["cross_attn"]
        dec_lns += [lyr["ln1"], lyr["ln2"], lyr["ln3"]]
        dec_wqkv.append(jnp.concatenate([sa["wq"], sa["wk"], sa["wv"]], axis=1))
        dec_wo_self.append(sa["wo"])
        dec_wq_cross.append(ca["wq"])
        dec_wo_cross.append(ca["wo"])
        wkv_cols.append(jnp.concatenate([ca["wk"], ca["wv"]], axis=1))
        dec_wi.append(lyr["wi"])
        dec_wo_ff.append(lyr["wo"])
    dec_lns.append(p["dec_final_ln"])

    return dict(
        embed=p["embed"], embed_t=p["embed"].T,
        enc_rel=p["enc_rel"], dec_rel=p["dec_rel"],
        enc_lns=jnp.stack(enc_lns),                         # (2*NL+1, D)
        enc_wqkv=jnp.stack(enc_wqkv), enc_wo=jnp.stack(enc_wo),
        enc_wi=jnp.stack(enc_wi), enc_wo_ff=jnp.stack(enc_wo_ff),
        enc_wkv_cross=jnp.concatenate(wkv_cols, axis=1),    # (D, NL*2*INNER) lane-dense 128
        dec_lns=jnp.stack(dec_lns),                         # (3*NL+1, D)
        dec_wqkv=jnp.stack(dec_wqkv), dec_wo_self=jnp.stack(dec_wo_self),
        dec_wq_cross=jnp.stack(dec_wq_cross), dec_wo_cross=jnp.stack(dec_wo_cross),
        dec_wi=jnp.stack(dec_wi), dec_wo_ff=jnp.stack(dec_wo_ff))


if __name__ == "__main__":
    key = jax.random.PRNGKey(0)
    pkey, dkey = jax.random.split(key)
    params = init_params(pkey)
    packed = pack_params(params)

    B, T = 2, 8
    input_ids = jax.random.randint(dkey, (B, T), 2, VOCAB, dtype=jnp.int32)
    attention_mask = jnp.array([[1] * 8, [1] * 6 + [0] * 2], dtype=jnp.int32)

    out_ids = generate(packed, input_ids, attention_mask, max_new_tokens=15)
    jax.block_until_ready(out_ids)
    assert out_ids.shape == (B, 16)  # start token + 15 generated tokens
    print("KERNEL_OK")
</pallas_src>

<mosaic_0001>
module attributes {stable_mosaic.version = 11 : i64} {
  func.func @_encoder_kernel(%arg0: memref<16x32xf32, #tpu.memory_space<vmem>>, %arg1: memref<2x2x8x8xf32, #tpu.memory_space<vmem>>, %arg2: memref<5x32xf32, #tpu.memory_space<vmem>>, %arg3: memref<2x32x96xf32, #tpu.memory_space<vmem>>, %arg4: memref<2x32x32xf32, #tpu.memory_space<vmem>>, %arg5: memref<2x32x64xf32, #tpu.memory_space<vmem>>, %arg6: memref<2x64x32xf32, #tpu.memory_space<vmem>>, %arg7: memref<32x128xf32, #tpu.memory_space<vmem>>, %arg8: memref<16x128xf32, #tpu.memory_space<vmem>>) attributes {dimension_semantics = [], scalar_prefetch = 0 : i64, scratch_operands = 0 : i64, tpu.core_type = #tpu.core_type<tc>} {
    %c0 = arith.constant 0 : index
    %c0_0 = arith.constant 0 : index
    %0 = vector.load %arg0[%c0, %c0_0] : memref<16x32xf32, #tpu.memory_space<vmem>>, vector<16x32xf32>
    %c0_1 = arith.constant 0 : index
    %c0_2 = arith.constant 0 : index
    %c0_3 = arith.constant 0 : index
    %c0_4 = arith.constant 0 : index
    %1 = vector.load %arg1[%c0_1, %c0_2, %c0_3, %c0_4] : memref<2x2x8x8xf32, #tpu.memory_space<vmem>>, vector<2x2x8x8xf32>
    %c0_5 = arith.constant 0 : index
    %c0_6 = arith.constant 0 : index
    %2 = vector.load %arg2[%c0_5, %c0_6] : memref<5x32xf32, #tpu.memory_space<vmem>>, vector<1x32xf32>
    %3 = arith.mulf %0, %0 : vector<16x32xf32>
    %cst = arith.constant dense<0.000000e+00> : vector<16xf32>
    %4 = vector.multi_reduction <add>, %3, %cst [1] : vector<16x32xf32> to vector<16xf32>
    %5 = vector.shape_cast %4 : vector<16xf32> to vector<16x1xf32>
    %cst_7 = arith.constant 3.200000e+01 : f32
    %6 = vector.broadcast %cst_7 : f32 to vector<16x1xf32>
    %7 = arith.divf %5, %6 : vector<16x1xf32>
    %cst_8 = arith.constant 9.99999997E-7 : f32
    %8 = vector.broadcast %cst_8 : f32 to vector<16x1xf32>
    %9 = arith.addf %7, %8 : vector<16x1xf32>
    %10 = math.rsqrt %9 : vector<16x1xf32>
    %11 = vector.broadcast %10 : vector<16x1xf32> to vector<16x32xf32>
    %12 = arith.mulf %0, %11 : vector<16x32xf32>
    %13 = vector.broadcast %2 : vector<1x32xf32> to vector<16x32xf32>
    %14 = arith.mulf %12, %13 : vector<16x32xf32>
    %c0_9 = arith.constant 0 : index
    %c0_10 = arith.constant 0 : index
    %c0_11 = arith.constant 0 : index
    %15 = vector.load %arg3[%c0_9, %c0_10, %c0_11] : memref<2x32x96xf32, #tpu.memory_space<vmem>>, vector<1x32x96xf32>
    %16 = vector.shape_cast %15 : vector<1x32x96xf32> to vector<32x96xf32>
    %cst_12 = arith.constant dense<0.000000e+00> : vector<16x96xf32>
    %17 = tpu.matmul %14, %16, %cst_12 {dimension_numbers = #tpu.dot_dimension_numbers<[1], [0], [0], [1], [0, 0, 1, 1], [], []>} : vector<16x32xf32>, vector<32x96xf32>, vector<16x96xf32> -> vector<16x96xf32>
    %18 = vector.extract_strided_slice %17 {offsets = [0, 0], sizes = [16, 16], strides = [1, 1]} : vector<16x96xf32> to vector<16x16xf32>
    %19 = vector.shape_cast %18 : vector<16x16xf32> to vector<2x8x16xf32>
    %20 = vector.extract_strided_slice %17 {offsets = [0, 32], sizes = [16, 16], strides = [1, 1]} : vector<16x96xf32> to vector<16x16xf32>
    %21 = vector.shape_cast %20 : vector<16x16xf32> to vector<2x8x16xf32>
    %22 = vector.extract_strided_slice %17 {offsets = [0, 64], sizes = [16, 16], strides = [1, 1]} : vector<16x96xf32> to vector<16x16xf32>
    %23 = vector.shape_cast %22 : vector<16x16xf32> to vector<2x8x16xf32>
    "tpu.trace_start"() <{level = 10 : i32, message = "bqd,bkd->bqk"}> : () -> ()
    %cst_13 = arith.constant dense<0.000000e+00> : vector<2x8x8xf32>
    %24 = tpu.matmul %19, %21, %cst_13 {dimension_numbers = #tpu.dot_dimension_numbers<[2], [2], [1], [1], [0, 0, 0, 1, 1, 1], [0], [0]>} : vector<2x8x16xf32>, vector<2x8x16xf32>, vector<2x8x8xf32> -> vector<2x8x8xf32>
    "tpu.trace_stop"() : () -> ()
    %25 = vector.extract_strided_slice %1 {offsets = [0, 0, 0, 0], sizes = [2, 1, 8, 8], strides = [1, 1, 1, 1]} : vector<2x2x8x8xf32> to vector<2x1x8x8xf32>
    %26 = vector.shape_cast %25 : vector<2x1x8x8xf32> to vector<2x8x8xf32>
    %27 = arith.addf %24, %26 : vector<2x8x8xf32>
    %cst_14 = arith.constant dense<0xFF800000> : vector<2x8xf32>
    %28 = vector.multi_reduction <maximumf>, %27, %cst_14 [2] : vector<2x8x8xf32> to vector<2x8xf32>
    %29 = vector.shape_cast %28 : vector<2x8xf32> to vector<2x8x1xf32>
    %30 = vector.broadcast %29 : vector<2x8x1xf32> to vector<2x8x8xf32>
    %31 = arith.subf %27, %30 : vector<2x8x8xf32>
    %32 = math.exp %31 : vector<2x8x8xf32>
    %cst_15 = arith.constant dense<0.000000e+00> : vector<2x8xf32>
    %33 = vector.multi_reduction <add>, %32, %cst_15 [2] : vector<2x8x8xf32> to vector<2x8xf32>
    %34 = vector.shape_cast %33 : vector<2x8xf32> to vector<2x8x1xf32>
    %35 = vector.broadcast %34 : vector<2x8x1xf32> to vector<2x8x8xf32>
    %36 = arith.divf %32, %35 : vector<2x8x8xf32>
    "tpu.trace_start"() <{level = 10 : i32, message = "bqk,bkd->bqd"}> : () -> ()
    %cst_16 = arith.constant dense<0.000000e+00> : vector<2x8x16xf32>
    %37 = tpu.matmul %36, %23, %cst_16 {dimension_numbers = #tpu.dot_dimension_numbers<[2], [1], [1], [2], [0, 0, 0, 1, 1, 2], [0], [0]>} : vector<2x8x8xf32>, vector<2x8x16xf32>, vector<2x8x16xf32> -> vector<2x8x16xf32>
    "tpu.trace_stop"() : () -> ()
    %38 = vector.shape_cast %37 : vector<2x8x16xf32> to vector<16x16xf32>
    %39 = vector.extract_strided_slice %17 {offsets = [0, 16], sizes = [16, 16], strides = [1, 1]} : vector<16x96xf32> to vector<16x16xf32>
    %40 = vector.shape_cast %39 : vector<16x16xf32> to vector<2x8x16xf32>
    %41 = vector.extract_strided_slice %17 {offsets = [0, 48], sizes = [16, 16], strides = [1, 1]} : vector<16x96xf32> to vector<16x16xf32>
    %42 = vector.shape_cast %41 : vector<16x16xf32> to vector<2x8x16xf32>
    %43 = vector.extract_strided_slice %17 {offsets = [0, 80], sizes = [16, 16], strides = [1, 1]} : vector<16x96xf32> to vector<16x16xf32>
    %44 = vector.shape_cast %43 : vector<16x16xf32> to vector<2x8x16xf32>
    "tpu.trace_start"() <{level = 10 : i32, message = "bqd,bkd->bqk"}> : () -> ()
    %cst_17 = arith.constant dense<0.000000e+00> : vector<2x8x8xf32>
    %45 = tpu.matmul %40, %42, %cst_17 {dimension_numbers = #tpu.dot_dimension_numbers<[2], [2], [1], [1], [0, 0, 0, 1, 1, 1], [0], [0]>} : vector<2x8x16xf32>, vector<2x8x16xf32>, vector<2x8x8xf32> -> vector<2x8x8xf32>
    "tpu.trace_stop"() : () -> ()
    %46 = vector.extract_strided_slice %1 {offsets = [0, 1, 0, 0], sizes = [2, 1, 8, 8], strides = [1, 1, 1, 1]} : vector<2x2x8x8xf32> to vector<2x1x8x8xf32>
    %47 = vector.shape_cast %46 : vector<2x1x8x8xf32> to vector<2x8x8xf32>
    %48 = arith.addf %45, %47 : vector<2x8x8xf32>
    %cst_18 = arith.constant dense<0xFF800000> : vector<2x8xf32>
    %49 = vector.multi_reduction <maximumf>, %48, %cst_18 [2] : vector<2x8x8xf32> to vector<2x8xf32>
    %50 = vector.shape_cast %49 : vector<2x8xf32> to vector<2x8x1xf32>
    %51 = vector.broadcast %50 : vector<2x8x1xf32> to vector<2x8x8xf32>
    %52 = arith.subf %48, %51 : vector<2x8x8xf32>
    %53 = math.exp %52 : vector<2x8x8xf32>
    %cst_19 = arith.constant dense<0.000000e+00> : vector<2x8xf32>
    %54 = vector.multi_reduction <add>, %53, %cst_19 [2] : vector<2x8x8xf32> to vector<2x8xf32>
    %55 = vector.shape_cast %54 : vector<2x8xf32> to vector<2x8x1xf32>
    %56 = vector.broadcast %55 : vector<2x8x1xf32> to vector<2x8x8xf32>
    %57 = arith.divf %53, %56 : vector<2x8x8xf32>
    "tpu.trace_start"() <{level = 10 : i32, message = "bqk,bkd->bqd"}> : () -> ()
    %cst_20 = arith.constant dense<0.000000e+00> : vector<2x8x16xf32>
    %58 = tpu.matmul %57, %44, %cst_20 {dimension_numbers = #tpu.dot_dimension_numbers<[2], [1], [1], [2], [0, 0, 0, 1, 1, 2], [0], [0]>} : vector<2x8x8xf32>, vector<2x8x16xf32>, vector<2x8x16xf32> -> vector<2x8x16xf32>
    "tpu.trace_stop"() : () -> ()
    %59 = vector.shape_cast %58 : vector<2x8x16xf32> to vector<16x16xf32>
    %60 = tpu.concatenate %38, %59 in 1 : vector<16x16xf32>, vector<16x16xf32> -> vector<16x32xf32>
    %c0_21 = arith.constant 0 : index
    %c0_22 = arith.constant 0 : index
    %c0_23 = arith.constant 0 : index
    %61 = vector.load %arg4[%c0_21, %c0_22, %c0_23] : memref<2x32x32xf32, #tpu.memory_space<vmem>>, vector<1x32x32xf32>
    %62 = vector.shape_cast %61 : vector<1x32x32xf32> to vector<32x32xf32>
    %cst_24 = arith.constant dense<0.000000e+00> : vector<16x32xf32>
    %63 = tpu.matmul %60, %62, %cst_24 {dimension_numbers = #tpu.dot_dimension_numbers<[1], [0], [0], [1], [0, 0, 1, 1], [], []>} : vector<16x32xf32>, vector<32x32xf32>, vector<16x32xf32> -> vector<16x32xf32>
    %64 = arith.addf %0, %63 : vector<16x32xf32>
    %c1 = arith.constant 1 : index
    %c0_25 = arith.constant 0 : index
    %65 = vector.load %arg2[%c1, %c0_25] : memref<5x32xf32, #tpu.memory_space<vmem>>, vector<1x32xf32>
    %66 = arith.mulf %64, %64 : vector<16x32xf32>
    %cst_26 = arith.constant dense<0.000000e+00> : vector<16xf32>
    %67 = vector.multi_reduction <add>, %66, %cst_26 [1] : vector<16x32xf32> to vector<16xf32>
    %68 = vector.shape_cast %67 : vector<16xf32> to vector<16x1xf32>
    %cst_27 = arith.constant 3.200000e+01 : f32
    %69 = vector.broadcast %cst_27 : f32 to vector<16x1xf32>
    %70 = arith.divf %68, %69 : vector<16x1xf32>
    %cst_28 = arith.constant 9.99999997E-7 : f32
    %71 = vector.broadcast %cst_28 : f32 to vector<16x1xf32>
    %72 = arith.addf %70, %71 : vector<16x1xf32>
    %73 = math.rsqrt %72 : vector<16x1xf32>
    %74 = vector.broadcast %73 : vector<16x1xf32> to vector<16x32xf32>
    %75 = arith.mulf %64, %74 : vector<16x32xf32>
    %76 = vector.broadcast %65 : vector<1x32xf32> to vector<16x32xf32>
    %77 = arith.mulf %75, %76 : vector<16x32xf32>
    %c0_29 = arith.constant 0 : index
    %c0_30 = arith.constant 0 : index
    %c0_31 = arith.constant 0 : index
    %78 = vector.load %arg5[%c0_29, %c0_30, %c0_31] : memref<2x32x64xf32, #tpu.memory_space<vmem>>, vector<1x32x64xf32>
    %79 = vector.shape_cast %78 : vector<1x32x64xf32> to vector<32x64xf32>
    %cst_32 = arith.constant dense<0.000000e+00> : vector<16x64xf32>
    %80 = tpu.matmul %77, %79, %cst_32 {dimension_numbers = #tpu.dot_dimension_numbers<[1], [0], [0], [1], [0, 0, 1, 1], [], []>} : vector<16x32xf32>, vector<32x64xf32>, vector<16x64xf32> -> vector<16x64xf32>
    %cst_33 = arith.constant 0.000000e+00 : f32
    %81 = vector.broadcast %cst_33 : f32 to vector<16x64xf32>
    %82 = arith.maximumf %80, %81 : vector<16x64xf32>
    %c0_34 = arith.constant 0 : index
    %c0_35 = arith.constant 0 : index
    %c0_36 = arith.constant 0 : index
    %83 = vector.load %arg6[%c0_34, %c0_35, %c0_36] : memref<2x64x32xf32, #tpu.memory_space<vmem>>, vector<1x64x32xf32>
    %84 = vector.shape_cast %83 : vector<1x64x32xf32> to vector<64x32xf32>
    %cst_37 = arith.constant dense<0.000000e+00> : vector<16x32xf32>
    %85 = tpu.matmul %82, %84, %cst_37 {dimension_numbers = #tpu.dot_dimension_numbers<[1], [0], [0], [1], [0, 0, 1, 1], [], []>} : vector<16x64xf32>, vector<64x32xf32>, vector<16x32xf32> -> vector<16x32xf32>
    %86 = arith.addf %64, %85 : vector<16x32xf32>
    %c2 = arith.constant 2 : index
    %c0_38 = arith.constant 0 : index
    %87 = vector.load %arg2[%c2, %c0_38] : memref<5x32xf32, #tpu.memory_space<vmem>>, vector<1x32xf32>
    %88 = arith.mulf %86, %86 : vector<16x32xf32>
    %cst_39 = arith.constant dense<0.000000e+00> : vector<16xf32>
    %89 = vector.multi_reduction <add>, %88, %cst_39 [1] : vector<16x32xf32> to vector<16xf32>
    %90 = vector.shape_cast %89 : vector<16xf32> to vector<16x1xf32>
    %cst_40 = arith.constant 3.200000e+01 : f32
    %91 = vector.broadcast %cst_40 : f32 to vector<16x1xf32>
    %92 = arith.divf %90, %91 : vector<16x1xf32>
    %cst_41 = arith.constant 9.99999997E-7 : f32
    %93 = vector.broadcast %cst_41 : f32 to vector<16x1xf32>
    %94 = arith.addf %92, %93 : vector<16x1xf32>
    %95 = math.rsqrt %94 : vector<16x1xf32>
    %96 = vector.broadcast %95 : vector<16x1xf32> to vector<16x32xf32>
    %97 = arith.mulf %86, %96 : vector<16x32xf32>
    %98 = vector.broadcast %87 : vector<1x32xf32> to vector<16x32xf32>
    %99 = arith.mulf %97, %98 : vector<16x32xf32>
    %c1_42 = arith.constant 1 : index
    %c0_43 = arith.constant 0 : index
    %c0_44 = arith.constant 0 : index
    %100 = vector.load %arg3[%c1_42, %c0_43, %c0_44] : memref<2x32x96xf32, #tpu.memory_space<vmem>>, vector<1x32x96xf32>
    %101 = vector.shape_cast %100 : vector<1x32x96xf32> to vector<32x96xf32>
    %cst_45 = arith.constant dense<0.000000e+00> : vector<16x96xf32>
    %102 = tpu.matmul %99, %101, %cst_45 {dimension_numbers = #tpu.dot_dimension_numbers<[1], [0], [0], [1], [0, 0, 1, 1], [], []>} : vector<16x32xf32>, vector<32x96xf32>, vector<16x96xf32> -> vector<16x96xf32>
    %103 = vector.extract_strided_slice %102 {offsets = [0, 0], sizes = [16, 16], strides = [1, 1]} : vector<16x96xf32> to vector<16x16xf32>
    %104 = vector.shape_cast %103 : vector<16x16xf32> to vector<2x8x16xf32>
    %105 = vector.extract_strided_slice %102 {offsets = [0, 32], sizes = [16, 16], strides = [1, 1]} : vector<16x96xf32> to vector<16x16xf32>
    %106 = vector.shape_cast %105 : vector<16x16xf32> to vector<2x8x16xf32>
    %107 = vector.extract_strided_slice %102 {offsets = [0, 64], sizes = [16, 16], strides = [1, 1]} : vector<16x96xf32> to vector<16x16xf32>
    %108 = vector.shape_cast %107 : vector<16x16xf32> to vector<2x8x16xf32>
    "tpu.trace_start"() <{level = 10 : i32, message = "bqd,bkd->bqk"}> : () -> ()
    %cst_46 = arith.constant dense<0.000000e+00> : vector<2x8x8xf32>
    %109 = tpu.matmul %104, %106, %cst_46 {dimension_numbers = #tpu.dot_dimension_numbers<[2], [2], [1], [1], [0, 0, 0, 1, 1, 1], [0], [0]>} : vector<2x8x16xf32>, vector<2x8x16xf32>, vector<2x8x8xf32> -> vector<2x8x8xf32>
    "tpu.trace_stop"() : () -> ()
    %110 = vector.extract_strided_slice %1 {offsets = [0, 0, 0, 0], sizes = [2, 1, 8, 8], strides = [1, 1, 1, 1]} : vector<2x2x8x8xf32> to vector<2x1x8x8xf32>
    %111 = vector.shape_cast %110 : vector<2x1x8x8xf32> to vector<2x8x8xf32>
    %112 = arith.addf %109, %111 : vector<2x8x8xf32>
    %cst_47 = arith.constant dense<0xFF800000> : vector<2x8xf32>
    %113 = vector.multi_reduction <maximumf>, %112, %cst_47 [2] : vector<2x8x8xf32> to vector<2x8xf32>
    %114 = vector.shape_cast %113 : vector<2x8xf32> to vector<2x8x1xf32>
    %115 = vector.broadcast %114 : vector<2x8x1xf32> to vector<2x8x8xf32>
    %116 = arith.subf %112, %115 : vector<2x8x8xf32>
    %117 = math.exp %116 : vector<2x8x8xf32>
    %cst_48 = arith.constant dense<0.000000e+00> : vector<2x8xf32>
    %118 = vector.multi_reduction <add>, %117, %cst_48 [2] : vector<2x8x8xf32> to vector<2x8xf32>
    %119 = vector.shape_cast %118 : vector<2x8xf32> to vector<2x8x1xf32>
    %120 = vector.broadcast %119 : vector<2x8x1xf32> to vector<2x8x8xf32>
    %121 = arith.divf %117, %120 : vector<2x8x8xf32>
    "tpu.trace_start"() <{level = 10 : i32, message = "bqk,bkd->bqd"}> : () -> ()
    %cst_49 = arith.constant dense<0.000000e+00> : vector<2x8x16xf32>
    %122 = tpu.matmul %121, %108, %cst_49 {dimension_numbers = #tpu.dot_dimension_numbers<[2], [1], [1], [2], [0, 0, 0, 1, 1, 2], [0], [0]>} : vector<2x8x8xf32>, vector<2x8x16xf32>, vector<2x8x16xf32> -> vector<2x8x16xf32>
    "tpu.trace_stop"() : () -> ()
    %123 = vector.shape_cast %122 : vector<2x8x16xf32> to vector<16x16xf32>
    %124 = vector.extract_strided_slice %102 {offsets = [0, 16], sizes = [16, 16], strides = [1, 1]} : vector<16x96xf32> to vector<16x16xf32>
    %125 = vector.shape_cast %124 : vector<16x16xf32> to vector<2x8x16xf32>
    %126 = vector.extract_strided_slice %102 {offsets = [0, 48], sizes = [16, 16], strides = [1, 1]} : vector<16x96xf32> to vector<16x16xf32>
    %127 = vector.shape_cast %126 : vector<16x16xf32> to vector<2x8x16xf32>
    %128 = vector.extract_strided_slice %102 {offsets = [0, 80], sizes = [16, 16], strides = [1, 1]} : vector<16x96xf32> to vector<16x16xf32>
    %129 = vector.shape_cast %128 : vector<16x16xf32> to vector<2x8x16xf32>
    "tpu.trace_start"() <{level = 10 : i32, message = "bqd,bkd->bqk"}> : () -> ()
    %cst_50 = arith.constant dense<0.000000e+00> : vector<2x8x8xf32>
    %130 = tpu.matmul %125, %127, %cst_50 {dimension_numbers = #tpu.dot_dimension_numbers<[2], [2], [1], [1], [0, 0, 0, 1, 1, 1], [0], [0]>} : vector<2x8x16xf32>, vector<2x8x16xf32>, vector<2x8x8xf32> -> vector<2x8x8xf32>
    "tpu.trace_stop"() : () -> ()
    %131 = vector.extract_strided_slice %1 {offsets = [0, 1, 0, 0], sizes = [2, 1, 8, 8], strides = [1, 1, 1, 1]} : vector<2x2x8x8xf32> to vector<2x1x8x8xf32>
    %132 = vector.shape_cast %131 : vector<2x1x8x8xf32> to vector<2x8x8xf32>
    %133 = arith.addf %130, %132 : vector<2x8x8xf32>
    %cst_51 = arith.constant dense<0xFF800000> : vector<2x8xf32>
    %134 = vector.multi_reduction <maximumf>, %133, %cst_51 [2] : vector<2x8x8xf32> to vector<2x8xf32>
    %135 = vector.shape_cast %134 : vector<2x8xf32> to vector<2x8x1xf32>
    %136 = vector.broadcast %135 : vector<2x8x1xf32> to vector<2x8x8xf32>
    %137 = arith.subf %133, %136 : vector<2x8x8xf32>
    %138 = math.exp %137 : vector<2x8x8xf32>
    %cst_52 = arith.constant dense<0.000000e+00> : vector<2x8xf32>
    %139 = vector.multi_reduction <add>, %138, %cst_52 [2] : vector<2x8x8xf32> to vector<2x8xf32>
    %140 = vector.shape_cast %139 : vector<2x8xf32> to vector<2x8x1xf32>
    %141 = vector.broadcast %140 : vector<2x8x1xf32> to vector<2x8x8xf32>
    %142 = arith.divf %138, %141 : vector<2x8x8xf32>
    "tpu.trace_start"() <{level = 10 : i32, message = "bqk,bkd->bqd"}> : () -> ()
    %cst_53 = arith.constant dense<0.000000e+00> : vector<2x8x16xf32>
    %143 = tpu.matmul %142, %129, %cst_53 {dimension_numbers = #tpu.dot_dimension_numbers<[2], [1], [1], [2], [0, 0, 0, 1, 1, 2], [0], [0]>} : vector<2x8x8xf32>, vector<2x8x16xf32>, vector<2x8x16xf32> -> vector<2x8x16xf32>
    "tpu.trace_stop"() : () -> ()
    %144 = vector.shape_cast %143 : vector<2x8x16xf32> to vector<16x16xf32>
    %145 = tpu.concatenate %123, %144 in 1 : vector<16x16xf32>, vector<16x16xf32> -> vector<16x32xf32>
    %c1_54 = arith.constant 1 : index
    %c0_55 = arith.constant 0 : index
    %c0_56 = arith.constant 0 : index
    %146 = vector.load %arg4[%c1_54, %c0_55, %c0_56] : memref<2x32x32xf32, #tpu.memory_space<vmem>>, vector<1x32x32xf32>
    %147 = vector.shape_cast %146 : vector<1x32x32xf32> to vector<32x32xf32>
    %cst_57 = arith.constant dense<0.000000e+00> : vector<16x32xf32>
    %148 = tpu.matmul %145, %147, %cst_57 {dimension_numbers = #tpu.dot_dimension_numbers<[1], [0], [0], [1], [0, 0, 1, 1], [], []>} : vector<16x32xf32>, vector<32x32xf32>, vector<16x32xf32> -> vector<16x32xf32>
    %149 = arith.addf %86, %148 : vector<16x32xf32>
    %c3 = arith.constant 3 : index
    %c0_58 = arith.constant 0 : index
    %150 = vector.load %arg2[%c3, %c0_58] : memref<5x32xf32, #tpu.memory_space<vmem>>, vector<1x32xf32>
    %151 = arith.mulf %149, %149 : vector<16x32xf32>
    %cst_59 = arith.constant dense<0.000000e+00> : vector<16xf32>
    %152 = vector.multi_reduction <add>, %151, %cst_59 [1] : vector<16x32xf32> to vector<16xf32>
    %153 = vector.shape_cast %152 : vector<16xf32> to vector<16x1xf32>
    %cst_60 = arith.constant 3.200000e+01 : f32
    %154 = vector.broadcast %cst_60 : f32 to vector<16x1xf32>
    %155 = arith.divf %153, %154 : vector<16x1xf32>
    %cst_61 = arith.constant 9.99999997E-7 : f32
    %156 = vector.broadcast %cst_61 : f32 to vector<16x1xf32>
    %157 = arith.addf %155, %156 : vector<16x1xf32>
    %158 = math.rsqrt %157 : vector<16x1xf32>
    %159 = vector.broadcast %158 : vector<16x1xf32> to vector<16x32xf32>
    %160 = arith.mulf %149, %159 : vector<16x32xf32>
    %161 = vector.broadcast %150 : vector<1x32xf32> to vector<16x32xf32>
    %162 = arith.mulf %160, %161 : vector<16x32xf32>
    %c1_62 = arith.constant 1 : index
    %c0_63 = arith.constant 0 : index
    %c0_64 = arith.constant 0 : index
    %163 = vector.load %arg5[%c1_62, %c0_63, %c0_64] : memref<2x32x64xf32, #tpu.memory_space<vmem>>, vector<1x32x64xf32>
    %164 = vector.shape_cast %163 : vector<1x32x64xf32> to vector<32x64xf32>
    %cst_65 = arith.constant dense<0.000000e+00> : vector<16x64xf32>
    %165 = tpu.matmul %162, %164, %cst_65 {dimension_numbers = #tpu.dot_dimension_numbers<[1], [0], [0], [1], [0, 0, 1, 1], [], []>} : vector<16x32xf32>, vector<32x64xf32>, vector<16x64xf32> -> vector<16x64xf32>
    %cst_66 = arith.constant 0.000000e+00 : f32
    %166 = vector.broadcast %cst_66 : f32 to vector<16x64xf32>
    %167 = arith.maximumf %165, %166 : vector<16x64xf32>
    %c1_67 = arith.constant 1 : index
    %c0_68 = arith.constant 0 : index
    %c0_69 = arith.constant 0 : index
    %168 = vector.load %arg6[%c1_67, %c0_68, %c0_69] : memref<2x64x32xf32, #tpu.memory_space<vmem>>, vector<1x64x32xf32>
    %169 = vector.shape_cast %168 : vector<1x64x32xf32> to vector<64x32xf32>
    %cst_70 = arith.constant dense<0.000000e+00> : vector<16x32xf32>
    %170 = tpu.matmul %167, %169, %cst_70 {dimension_numbers = #tpu.dot_dimension_numbers<[1], [0], [0], [1], [0, 0, 1, 1], [], []>} : vector<16x64xf32>, vector<64x32xf32>, vector<16x32xf32> -> vector<16x32xf32>
    %171 = arith.addf %149, %170 : vector<16x32xf32>
    %c4 = arith.constant 4 : index
    %c0_71 = arith.constant 0 : index
    %172 = vector.load %arg2[%c4, %c0_71] : memref<5x32xf32, #tpu.memory_space<vmem>>, vector<1x32xf32>
    %173 = arith.mulf %171, %171 : vector<16x32xf32>
    %cst_72 = arith.constant dense<0.000000e+00> : vector<16xf32>
    %174 = vector.multi_reduction <add>, %173, %cst_72 [1] : vector<16x32xf32> to vector<16xf32>
    %175 = vector.shape_cast %174 : vector<16xf32> to vector<16x1xf32>
    %cst_73 = arith.constant 3.200000e+01 : f32
    %176 = vector.broadcast %cst_73 : f32 to vector<16x1xf32>
    %177 = arith.divf %175, %176 : vector<16x1xf32>
    %cst_74 = arith.constant 9.99999997E-7 : f32
    %178 = vector.broadcast %cst_74 : f32 to vector<16x1xf32>
    %179 = arith.addf %177, %178 : vector<16x1xf32>
    %180 = math.rsqrt %179 : vector<16x1xf32>
    %181 = vector.broadcast %180 : vector<16x1xf32> to vector<16x32xf32>
    %182 = arith.mulf %171, %181 : vector<16x32xf32>
    %183 = vector.broadcast %172 : vector<1x32xf32> to vector<16x32xf32>
    %184 = arith.mulf %182, %183 : vector<16x32xf32>
    %c0_75 = arith.constant 0 : index
    %c0_76 = arith.constant 0 : index
    %185 = vector.load %arg7[%c0_75, %c0_76] : memref<32x128xf32, #tpu.memory_space<vmem>>, vector<32x128xf32>
    %cst_77 = arith.constant dense<0.000000e+00> : vector<16x128xf32>
    %186 = tpu.matmul %184, %185, %cst_77 {dimension_numbers = #tpu.dot_dimension_numbers<[1], [0], [0], [1], [0, 0, 1, 1], [], []>} : vector<16x32xf32>, vector<32x128xf32>, vector<16x128xf32> -> vector<16x128xf32>
    %c0_78 = arith.constant 0 : index
    %c0_79 = arith.constant 0 : index
    %187 = vector.load %arg8[%c0_78, %c0_79] : memref<16x128xf32, #tpu.memory_space<vmem>>, vector<16x128xf32>
    tpu.vector_store %arg8[%c0_78, %c0_79], %186 {strides = array<i32>} : memref<16x128xf32, #tpu.memory_space<vmem>>, vector<16x128xf32>,
    return
  }
}

module attributes {stable_mosaic.version = 11 : i64} {
  func.func @_decode_kernel(%arg0: i32, %arg1: memref<64x32xf32, #tpu.memory_space<vmem>>, %arg2: memref<32x64xf32, #tpu.memory_space<vmem>>, %arg3: memref<7x32xf32, #tpu.memory_space<vmem>>, %arg4: memref<2x32x96xf32, #tpu.memory_space<vmem>>, %arg5: memref<2x32x32xf32, #tpu.memory_space<vmem>>, %arg6: memref<2x32x32xf32, #tpu.memory_space<vmem>>, %arg7: memref<2x32x32xf32, #tpu.memory_space<vmem>>, %arg8: memref<2x32x64xf32, #tpu.memory_space<vmem>>, %arg9: memref<2x64x32xf32, #tpu.memory_space<vmem>>, %arg10: memref<2x16x16xf32, #tpu.memory_space<vmem>>, %arg11: memref<2x8xf32, #tpu.memory_space<vmem>>, %arg12: memref<2x2x8x32xf32, #tpu.memory_space<vmem>>, %arg13: memref<2x2x8x32xf32, #tpu.memory_space<vmem>>, %arg14: memref<2x16xi32, #tpu.memory_space<vmem>>, %arg15: memref<2x16x32xf32, #tpu.memory_space<vmem>>, %arg16: memref<2x16x32xf32, #tpu.memory_space<vmem>>, %arg17: memref<2x16x32xf32, #tpu.memory_space<vmem>>, %arg18: memref<2x16x32xf32, #tpu.memory_space<vmem>>, %arg19: memref<2x1xi32, #tpu.memory_space<vmem>>) attributes {dimension_semantics = [#tpu.dimension_semantics<arbitrary>], iteration_bounds = array<i64: 15>, scalar_prefetch = 0 : i64, scratch_operands = 5 : i64, tpu.core_type = #tpu.core_type<tc>, window_params = [{pipeline_mode = #tpu.pipeline_mode<synchronous>, transform_indices = @transform_0, window_bounds = array<i64: 64, 32>}, {pipeline_mode = #tpu.pipeline_mode<synchronous>, transform_indices = @transform_1, window_bounds = array<i64: 32, 64>}, {pipeline_mode = #tpu.pipeline_mode<synchronous>, transform_indices = @transform_2, window_bounds = array<i64: 7, 32>}, {pipeline_mode = #tpu.pipeline_mode<synchronous>, transform_indices = @transform_3, window_bounds = array<i64: 2, 32, 96>}, {pipeline_mode = #tpu.pipeline_mode<synchronous>, transform_indices = @transform_4, window_bounds = array<i64: 2, 32, 32>}, {pipeline_mode = #tpu.pipeline_mode<synchronous>, transform_indices = @transform_5, window_bounds = array<i64: 2, 32, 32>}, {pipeline_mode = #tpu.pipeline_mode<synchronous>, transform_indices = @transform_6, window_bounds = array<i64: 2, 32, 32>}, {pipeline_mode = #tpu.pipeline_mode<synchronous>, transform_indices = @transform_7, window_bounds = array<i64: 2, 32, 64>}, {pipeline_mode = #tpu.pipeline_mode<synchronous>, transform_indices = @transform_8, window_bounds = array<i64: 2, 64, 32>}, {pipeline_mode = #tpu.pipeline_mode<synchronous>, transform_indices = @transform_9, window_bounds = array<i64: 2, 16, 16>}, {pipeline_mode = #tpu.pipeline_mode<synchronous>, transform_indices = @transform_10, window_bounds = array<i64: 2, 8>}, {pipeline_mode = #tpu.pipeline_mode<synchronous>, transform_indices = @transform_11, window_bounds = array<i64: 2, 2, 8, 32>}, {pipeline_mode = #tpu.pipeline_mode<synchronous>, transform_indices = @transform_12, window_bounds = array<i64: 2, 2, 8, 32>}, {pipeline_mode = #tpu.pipeline_mode<synchronous>, transform_indices = @transform_13, window_bounds = array<i64: 2, 16>}]} {
    %c0_i32 = arith.constant 0 : i32
    %0 = arith.cmpi eq, %arg0, %c0_i32 : i32
    %1 = arith.extui %0 : i1 to i32
    %c0_i32_0 = arith.constant 0 : i32
    %2 = arith.cmpi ne, %1, %c0_i32_0 : i32
    scf.if %2 {
      %c0_i32_173 = arith.constant 0 : i32
      %388 = vector.broadcast %c0_i32_173 : i32 to vector<2x16xi32>
      %c0_174 = arith.constant 0 : index
      %c0_175 = arith.constant 0 : index
      %389 = vector.load %arg14[%c0_174, %c0_175] : memref<2x16xi32, #tpu.memory_space<vmem>>, vector<2x16xi32>
      tpu.vector_store %arg14[%c0_174, %c0_175], %388 {strides = array<i32>} : memref<2x16xi32, #tpu.memory_space<vmem>>, vector<2x16xi32>,
      %c0_i32_176 = arith.constant 0 : i32
      %390 = vector.broadcast %c0_i32_176 : i32 to vector<2x1xi32>
      %c0_177 = arith.constant 0 : index
      %c0_178 = arith.constant 0 : index
      %391 = vector.load %arg19[%c0_177, %c0_178] : memref<2x1xi32, #tpu.memory_space<vmem>>, vector<2x1xi32>
      tpu.vector_store %arg19[%c0_177, %c0_178], %390 {strides = array<i32>} : memref<2x1xi32, #tpu.memory_space<vmem>>, vector<2x1xi32>,
      %cst_179 = arith.constant 0.000000e+00 : f32
      %392 = vector.broadcast %cst_179 : f32 to vector<2x16x32xf32>
      %c0_180 = arith.constant 0 : index
      %c0_181 = arith.constant 0 : index
      %c0_182 = arith.constant 0 : index
      %393 = vector.load %arg15[%c0_180, %c0_181, %c0_182] : memref<2x16x32xf32, #tpu.memory_space<vmem>>, vector<2x16x32xf32>
      tpu.vector_store %arg15[%c0_180, %c0_181, %c0_182], %392 {strides = array<i32>} : memref<2x16x32xf32, #tpu.memory_space<vmem>>, vector<2x16x32xf32>,
      %cst_183 = arith.constant 0.000000e+00 : f32
      %394 = vector.broadcast %cst_183 : f32 to vector<2x16x32xf32>
      %c0_184 = arith.constant 0 : index
      %c0_185 = arith.constant 0 : index
      %c0_186 = arith.constant 0 : index
      %395 = vector.load %arg16[%c0_184, %c0_185, %c0_186] : memref<2x16x32xf32, #tpu.memory_space<vmem>>, vector<2x16x32xf32>
      tpu.vector_store %arg16[%c0_184, %c0_185, %c0_186], %394 {strides = array<i32>} : memref<2x16x32xf32, #tpu.memory_space<vmem>>, vector<2x16x32xf32>,
      %cst_187 = arith.constant 0.000000e+00 : f32
      %396 = vector.broadcast %cst_187 : f32 to vector<2x16x32xf32>
      %c0_188 = arith.constant 0 : index
      %c0_189 = arith.constant 0 : index
      %c0_190 = arith.constant 0 : index
      %397 = vector.load %arg17[%c0_188, %c0_189, %c0_190] : memref<2x16x32xf32, #tpu.memory_space<vmem>>, vector<2x16x32xf32>
      tpu.vector_store %arg17[%c0_188, %c0_189, %c0_190], %396 {strides = array<i32>} : memref<2x16x32xf32, #tpu.memory_space<vmem>>, vector<2x16x32xf32>,
      %cst_191 = arith.constant 0.000000e+00 : f32
      %398 = vector.broadcast %cst_191 : f32 to vector<2x16x32xf32>
      %c0_192 = arith.constant 0 : index
      %c0_193 = arith.constant 0 : index
      %c0_194 = arith.constant 0 : index
      %399 = vector.load %arg18[%c0_192, %c0_193, %c0_194] : memref<2x16x32xf32, #tpu.memory_space<vmem>>, vector<2x16x32xf32>
      tpu.vector_store %arg18[%c0_192, %c0_193, %c0_194], %398 {strides = array<i32>} : memref<2x16x32xf32, #tpu.memory_space<vmem>>, vector<2x16x32xf32>,
    } else {
    }
    %3 = tpu.iota {dimensions = array<i32: 1>} : vector<2x64xi32>
    %c0 = arith.constant 0 : index
    %c0_1 = arith.constant 0 : index
    %4 = vector.load %arg19[%c0, %c0_1] : memref<2x1xi32, #tpu.memory_space<vmem>>, vector<2x1xi32>
    %5 = vector.broadcast %4 : vector<2x1xi32> to vector<2x64xi32>
    %6 = arith.cmpi eq, %3, %5 : vector<2x64xi32>
    %7 = arith.extui %6 : vector<2x64xi1> to vector<2x64xi32>
    %8 = arith.sitofp %7 : vector<2x64xi32> to vector<2x64xf32>
    %c0_2 = arith.constant 0 : index
    %c0_3 = arith.constant 0 : index
    %9 = vector.load %arg1[%c0_2, %c0_3] : memref<64x32xf32, #tpu.memory_space<vmem>>, vector<64x32xf32>
    %cst = arith.constant dense<0.000000e+00> : vector<2x32xf32>
    %10 = tpu.matmul %8, %9, %cst {dimension_numbers = #tpu.dot_dimension_numbers<[1], [0], [0], [1], [0, 0, 1, 1], [], []>} : vector<2x64xf32>, vector<64x32xf32>, vector<2x32xf32> -> vector<2x32xf32>
    %c0_4 = arith.constant 0 : index
    %c0_5 = arith.constant 0 : index
    %11 = vector.load %arg11[%c0_4, %c0_5] : memref<2x8xf32, #tpu.memory_space<vmem>>, vector<2x8xf32>
    %c0_6 = arith.constant 0 : index
    %c0_7 = arith.constant 0 : index
    %12 = vector.load %arg3[%c0_6, %c0_7] : memref<7x32xf32, #tpu.memory_space<vmem>>, vector<1x32xf32>
    %13 = arith.mulf %10, %10 : vector<2x32xf32>
    %cst_8 = arith.constant dense<0.000000e+00> : vector<2xf32>
    %14 = vector.multi_reduction <add>, %13, %cst_8 [1] : vector<2x32xf32> to vector<2xf32>
    %15 = vector.shape_cast %14 : vector<2xf32> to vector<2x1xf32>
    %cst_9 = arith.constant 3.200000e+01 : f32
    %16 = vector.broadcast %cst_9 : f32 to vector<2x1xf32>
    %17 = arith.divf %15, %16 : vector<2x1xf32>
    %cst_10 = arith.constant 9.99999997E-7 : f32
    %18 = vector.broadcast %cst_10 : f32 to vector<2x1xf32>
    %19 = arith.addf %17, %18 : vector<2x1xf32>
    %20 = math.rsqrt %19 : vector<2x1xf32>
    %21 = vector.broadcast %20 : vector<2x1xf32> to vector<2x32xf32>
    %22 = arith.mulf %10, %21 : vector<2x32xf32>
    %23 = vector.broadcast %12 : vector<1x32xf32> to vector<2x32xf32>
    %24 = arith.mulf %22, %23 : vector<2x32xf32>
    %c0_11 = arith.constant 0 : index
    %c0_12 = arith.constant 0 : index
    %c0_13 = arith.constant 0 : index
    %25 = vector.load %arg4[%c0_11, %c0_12, %c0_13] : memref<2x32x96xf32, #tpu.memory_space<vmem>>, vector<1x32x96xf32>
    %26 = vector.shape_cast %25 : vector<1x32x96xf32> to vector<32x96xf32>
    %cst_14 = arith.constant dense<0.000000e+00> : vector<2x96xf32>
    %27 = tpu.matmul %24, %26, %cst_14 {dimension_numbers = #tpu.dot_dimension_numbers<[1], [0], [0], [1], [0, 0, 1, 1], [], []>} : vector<2x32xf32>, vector<32x96xf32>, vector<2x96xf32> -> vector<2x96xf32>
    %28 = vector.extract_strided_slice %27 {offsets = [0, 32], sizes = [2, 32], strides = [1, 1]} : vector<2x96xf32> to vector<2x32xf32>
    %29 = vector.extract_strided_slice %27 {offsets = [0, 64], sizes = [2, 32], strides = [1, 1]} : vector<2x96xf32> to vector<2x32xf32>
    %30 = vector.shape_cast %28 : vector<2x32xf32> to vector<2x1x32xf32>
    %c0_15 = arith.constant 0 : index
    %31 = arith.index_cast %arg0 : i32 to index
    %c0_16 = arith.constant 0 : index
    %32 = vector.load %arg15[%c0_15, %31, %c0_16] : memref<2x16x32xf32, #tpu.memory_space<vmem>>, vector<2x1x32xf32>
    tpu.vector_store %arg15[%c0_15, %31, %c0_16], %30 {strides = array<i32>} : memref<2x16x32xf32, #tpu.memory_space<vmem>>, vector<2x1x32xf32>,
    %33 = vector.shape_cast %29 : vector<2x32xf32> to vector<2x1x32xf32>
    %c0_17 = arith.constant 0 : index
    %34 = arith.index_cast %arg0 : i32 to index
    %c0_18 = arith.constant 0 : index
    %35 = vector.load %arg16[%c0_17, %34, %c0_18] : memref<2x16x32xf32, #tpu.memory_space<vmem>>, vector<2x1x32xf32>
    tpu.vector_store %arg16[%c0_17, %34, %c0_18], %33 {strides = array<i32>} : memref<2x16x32xf32, #tpu.memory_space<vmem>>, vector<2x1x32xf32>,
    %c0_19 = arith.constant 0 : index
    %c0_20 = arith.constant 0 : index
    %c0_21 = arith.constant 0 : index
    %36 = vector.load %arg15[%c0_19, %c0_20, %c0_21] : memref<2x16x32xf32, #tpu.memory_space<vmem>>, vector<2x16x32xf32>
    %c0_22 = arith.constant 0 : index
    %c0_23 = arith.constant 0 : index
    %c0_24 = arith.constant 0 : index
    %37 = vector.load %arg16[%c0_22, %c0_23, %c0_24] : memref<2x16x32xf32, #tpu.memory_space<vmem>>, vector<2x16x32xf32>
    %38 = vector.extract_strided_slice %27 {offsets = [0, 0], sizes = [2, 16], strides = [1, 1]} : vector<2x96xf32> to vector<2x16xf32>
    %39 = vector.shape_cast %38 : vector<2x16xf32> to vector<2x1x16xf32>
    %40 = vector.extract_strided_slice %36 {offsets = [0, 0, 0], sizes = [2, 16, 16], strides = [1, 1, 1]} : vector<2x16x32xf32> to vector<2x16x16xf32>
    %41 = vector.broadcast %39 : vector<2x1x16xf32> to vector<2x16x16xf32>
    %42 = arith.mulf %41, %40 : vector<2x16x16xf32>
    %cst_25 = arith.constant dense<0.000000e+00> : vector<2x16xf32>
    %43 = vector.multi_reduction <add>, %42, %cst_25 [2] : vector<2x16x16xf32> to vector<2x16xf32>
    %c0_26 = arith.constant 0 : index
    %44 = arith.index_cast %arg0 : i32 to index
    %c0_27 = arith.constant 0 : index
    %45 = vector.load %arg10[%c0_26, %44, %c0_27] : memref<2x16x16xf32, #tpu.memory_space<vmem>>, vector<1x1x16xf32>
    %46 = vector.shape_cast %45 : vector<1x1x16xf32> to vector<1x16xf32>
    %47 = vector.broadcast %46 : vector<1x16xf32> to vector<2x16xf32>
    %48 = arith.addf %43, %47 : vector<2x16xf32>
    %cst_28 = arith.constant dense<0xFF800000> : vector<2xf32>
    %49 = vector.multi_reduction <maximumf>, %48, %cst_28 [1] : vector<2x16xf32> to vector<2xf32>
    %50 = vector.shape_cast %49 : vector<2xf32> to vector<2x1xf32>
    %51 = vector.broadcast %50 : vector<2x1xf32> to vector<2x16xf32>
    %52 = arith.subf %48, %51 : vector<2x16xf32>
    %53 = math.exp %52 : vector<2x16xf32>
    %cst_29 = arith.constant dense<0.000000e+00> : vector<2xf32>
    %54 = vector.multi_reduction <add>, %53, %cst_29 [1] : vector<2x16xf32> to vector<2xf32>
    %55 = vector.shape_cast %54 : vector<2xf32> to vector<2x1xf32>
    %56 = vector.broadcast %55 : vector<2x1xf32> to vector<2x16xf32>
    %57 = arith.divf %53, %56 : vector<2x16xf32>
    %58 = vector.shape_cast %57 : vector<2x16xf32> to vector<2x16x1xf32>
    %59 = vector.extract_strided_slice %37 {offsets = [0, 0, 0], sizes = [2, 16, 16], strides = [1, 1, 1]} : vector<2x16x32xf32> to vector<2x16x16xf32>
    %60 = vector.broadcast %58 : vector<2x16x1xf32> to vector<2x16x16xf32>
    %61 = arith.mulf %60, %59 : vector<2x16x16xf32>
    %cst_30 = arith.constant dense<0.000000e+00> : vector<2x16xf32>
    %62 = vector.multi_reduction <add>, %61, %cst_30 [1] : vector<2x16x16xf32> to vector<2x16xf32>
    %63 = vector.extract_strided_slice %27 {offsets = [0, 16], sizes = [2, 16], strides = [1, 1]} : vector<2x96xf32> to vector<2x16xf32>
    %64 = vector.shape_cast %63 : vector<2x16xf32> to vector<2x1x16xf32>
    %65 = vector.extract_strided_slice %36 {offsets = [0, 0, 16], sizes = [2, 16, 16], strides = [1, 1, 1]} : vector<2x16x32xf32> to vector<2x16x16xf32>
    %66 = vector.broadcast %64 : vector<2x1x16xf32> to vector<2x16x16xf32>
    %67 = arith.mulf %66, %65 : vector<2x16x16xf32>
    %cst_31 = arith.constant dense<0.000000e+00> : vector<2x16xf32>
    %68 = vector.multi_reduction <add>, %67, %cst_31 [2] : vector<2x16x16xf32> to vector<2x16xf32>
    %c1 = arith.constant 1 : index
    %69 = arith.index_cast %arg0 : i32 to index
    %c0_32 = arith.constant 0 : index
    %70 = vector.load %arg10[%c1, %69, %c0_32] : memref<2x16x16xf32, #tpu.memory_space<vmem>>, vector<1x1x16xf32>
    %71 = vector.shape_cast %70 : vector<1x1x16xf32> to vector<1x16xf32>
    %72 = vector.broadcast %71 : vector<1x16xf32> to vector<2x16xf32>
    %73 = arith.addf %68, %72 : vector<2x16xf32>
    %cst_33 = arith.constant dense<0xFF800000> : vector<2xf32>
    %74 = vector.multi_reduction <maximumf>, %73, %cst_33 [1] : vector<2x16xf32> to vector<2xf32>
    %75 = vector.shape_cast %74 : vector<2xf32> to vector<2x1xf32>
    %76 = vector.broadcast %75 : vector<2x1xf32> to vector<2x16xf32>
    %77 = arith.subf %73, %76 : vector<2x16xf32>
    %78 = math.exp %77 : vector<2x16xf32>
    %cst_34 = arith.constant dense<0.000000e+00> : vector<2xf32>
    %79 = vector.multi_reduction <add>, %78, %cst_34 [1] : vector<2x16xf32> to vector<2xf32>
    %80 = vector.shape_cast %79 : vector<2xf32> to vector<2x1xf32>
    %81 = vector.broadcast %80 : vector<2x1xf32> to vector<2x16xf32>
    %82 = arith.divf %78, %81 : vector<2x16xf32>
    %83 = vector.shape_cast %82 : vector<2x16xf32> to vector<2x16x1xf32>
    %84 = vector.extract_strided_slice %37 {offsets = [0, 0, 16], sizes = [2, 16, 16], strides = [1, 1, 1]} : vector<2x16x32xf32> to vector<2x16x16xf32>
    %85 = vector.broadcast %83 : vector<2x16x1xf32> to vector<2x16x16xf32>
    %86 = arith.mulf %85, %84 : vector<2x16x16xf32>
    %cst_35 = arith.constant dense<0.000000e+00> : vector<2x16xf32>
    %87 = vector.multi_reduction <add>, %86, %cst_35 [1] : vector<2x16x16xf32> to vector<2x16xf32>
    %88 = tpu.concatenate %62, %87 in 1 : vector<2x16xf32>, vector<2x16xf32> -> vector<2x32xf32>
    %c0_36 = arith.constant 0 : index
    %c0_37 = arith.constant 0 : index
    %c0_38 = arith.constant 0 : index
    %89 = vector.load %arg5[%c0_36, %c0_37, %c0_38] : memref<2x32x32xf32, #tpu.memory_space<vmem>>, vector<1x32x32xf32>
    %90 = vector.shape_cast %89 : vector<1x32x32xf32> to vector<32x32xf32>
    %cst_39 = arith.constant dense<0.000000e+00> : vector<2x32xf32>
    %91 = tpu.matmul %88, %90, %cst_39 {dimension_numbers = #tpu.dot_dimension_numbers<[1], [0], [0], [1], [0, 0, 1, 1], [], []>} : vector<2x32xf32>, vector<32x32xf32>, vector<2x32xf32> -> vector<2x32xf32>
    %92 = arith.addf %10, %91 : vector<2x32xf32>
    %c1_40 = arith.constant 1 : index
    %c0_41 = arith.constant 0 : index
    %93 = vector.load %arg3[%c1_40, %c0_41] : memref<7x32xf32, #tpu.memory_space<vmem>>, vector<1x32xf32>
    %94 = arith.mulf %92, %92 : vector<2x32xf32>
    %cst_42 = arith.constant dense<0.000000e+00> : vector<2xf32>
    %95 = vector.multi_reduction <add>, %94, %cst_42 [1] : vector<2x32xf32> to vector<2xf32>
    %96 = vector.shape_cast %95 : vector<2xf32> to vector<2x1xf32>
    %cst_43 = arith.constant 3.200000e+01 : f32
    %97 = vector.broadcast %cst_43 : f32 to vector<2x1xf32>
    %98 = arith.divf %96, %97 : vector<2x1xf32>
    %cst_44 = arith.constant 9.99999997E-7 : f32
    %99 = vector.broadcast %cst_44 : f32 to vector<2x1xf32>
    %100 = arith.addf %98, %99 : vector<2x1xf32>
    %101 = math.rsqrt %100 : vector<2x1xf32>
    %102 = vector.broadcast %101 : vector<2x1xf32> to vector<2x32xf32>
    %103 = arith.mulf %92, %102 : vector<2x32xf32>
    %104 = vector.broadcast %93 : vector<1x32xf32> to vector<2x32xf32>
    %105 = arith.mulf %103, %104 : vector<2x32xf32>
    %c0_45 = arith.constant 0 : index
    %c0_46 = arith.constant 0 : index
    %c0_47 = arith.constant 0 : index
    %106 = vector.load %arg6[%c0_45, %c0_46, %c0_47] : memref<2x32x32xf32, #tpu.memory_space<vmem>>, vector<1x32x32xf32>
    %107 = vector.shape_cast %106 : vector<1x32x32xf32> to vector<32x32xf32>
    %cst_48 = arith.constant dense<0.000000e+00> : vector<2x32xf32>
    %108 = tpu.matmul %105, %107, %cst_48 {dimension_numbers = #tpu.dot_dimension_numbers<[1], [0], [0], [1], [0, 0, 1, 1], [], []>} : vector<2x32xf32>, vector<32x32xf32>, vector<2x32xf32> -> vector<2x32xf32>
    %c0_49 = arith.constant 0 : index
    %c0_50 = arith.constant 0 : index
    %c0_51 = arith.constant 0 : index
    %c0_52 = arith.constant 0 : index
    %109 = vector.load %arg12[%c0_49, %c0_50, %c0_51, %c0_52] : memref<2x2x8x32xf32, #tpu.memory_space<vmem>>, vector<1x2x8x32xf32>
    %110 = vector.shape_cast %109 : vector<1x2x8x32xf32> to vector<2x8x32xf32>
    %c0_53 = arith.constant 0 : index
    %c0_54 = arith.constant 0 : index
    %c0_55 = arith.constant 0 : index
    %c0_56 = arith.constant 0 : index
    %111 = vector.load %arg13[%c0_53, %c0_54, %c0_55, %c0_56] : memref<2x2x8x32xf32, #tpu.memory_space<vmem>>, vector<1x2x8x32xf32>
    %112 = vector.shape_cast %111 : vector<1x2x8x32xf32> to vector<2x8x32xf32>
    %113 = vector.extract_strided_slice %108 {offsets = [0, 0], sizes = [2, 16], strides = [1, 1]} : vector<2x32xf32> to vector<2x16xf32>
    %114 = vector.shape_cast %113 : vector<2x16xf32> to vector<2x1x16xf32>
    %115 = vector.extract_strided_slice %110 {offsets = [0, 0, 0], sizes = [2, 8, 16], strides = [1, 1, 1]} : vector<2x8x32xf32> to vector<2x8x16xf32>
    %116 = vector.broadcast %114 : vector<2x1x16xf32> to vector<2x8x16xf32>
    %117 = arith.mulf %116, %115 : vector<2x8x16xf32>
    %cst_57 = arith.constant dense<0.000000e+00> : vector<2x8xf32>
    %118 = vector.multi_reduction <add>, %117, %cst_57 [2] : vector<2x8x16xf32> to vector<2x8xf32>
    %119 = arith.addf %118, %11 : vector<2x8xf32>
    %cst_58 = arith.constant dense<0xFF800000> : vector<2xf32>
    %120 = vector.multi_reduction <maximumf>, %119, %cst_58 [1] : vector<2x8xf32> to vector<2xf32>
    %121 = vector.shape_cast %120 : vector<2xf32> to vector<2x1xf32>
    %122 = vector.broadcast %121 : vector<2x1xf32> to vector<2x8xf32>
    %123 = arith.subf %119, %122 : vector<2x8xf32>
    %124 = math.exp %123 : vector<2x8xf32>
    %cst_59 = arith.constant dense<0.000000e+00> : vector<2xf32>
    %125 = vector.multi_reduction <add>, %124, %cst_59 [1] : vector<2x8xf32> to vector<2xf32>
    %126 = vector.shape_cast %125 : vector<2xf32> to vector<2x1xf32>
    %127 = vector.broadcast %126 : vector<2x1xf32> to vector<2x8xf32>
    %128 = arith.divf %124, %127 : vector<2x8xf32>
    %129 = vector.shape_cast %128 : vector<2x8xf32> to vector<2x8x1xf32>
    %130 = vector.extract_strided_slice %112 {offsets = [0, 0, 0], sizes = [2, 8, 16], strides = [1, 1, 1]} : vector<2x8x32xf32> to vector<2x8x16xf32>
    %131 = vector.broadcast %129 : vector<2x8x1xf32> to vector<2x8x16xf32>
    %132 = arith.mulf %131, %130 : vector<2x8x16xf32>
    %cst_60 = arith.constant dense<0.000000e+00> : vector<2x16xf32>
    %133 = vector.multi_reduction <add>, %132, %cst_60 [1] : vector<2x8x16xf32> to vector<2x16xf32>
    %134 = vector.extract_strided_slice %108 {offsets = [0, 16], sizes = [2, 16], strides = [1, 1]} : vector<2x32xf32> to vector<2x16xf32>
    %135 = vector.shape_cast %134 : vector<2x16xf32> to vector<2x1x16xf32>
    %136 = vector.extract_strided_slice %110 {offsets = [0, 0, 16], sizes = [2, 8, 16], strides = [1, 1, 1]} : vector<2x8x32xf32> to vector<2x8x16xf32>
    %137 = vector.broadcast %135 : vector<2x1x16xf32> to vector<2x8x16xf32>
    %138 = arith.mulf %137, %136 : vector<2x8x16xf32>
    %cst_61 = arith.constant dense<0.000000e+00> : vector<2x8xf32>
    %139 = vector.multi_reduction <add>, %138, %cst_61 [2] : vector<2x8x16xf32> to vector<2x8xf32>
    %140 = arith.addf %139, %11 : vector<2x8xf32>
    %cst_62 = arith.constant dense<0xFF800000> : vector<2xf32>
    %141 = vector.multi_reduction <maximumf>, %140, %cst_62 [1] : vector<2x8xf32> to vector<2xf32>
    %142 = vector.shape_cast %141 : vector<2xf32> to vector<2x1xf32>
    %143 = vector.broadcast %142 : vector<2x1xf32> to vector<2x8xf32>
    %144 = arith.subf %140, %143 : vector<2x8xf32>
    %145 = math.exp %144 : vector<2x8xf32>
    %cst_63 = arith.constant dense<0.000000e+00> : vector<2xf32>
    %146 = vector.multi_reduction <add>, %145, %cst_63 [1] : vector<2x8xf32> to vector<2xf32>
    %147 = vector.shape_cast %146 : vector<2xf32> to vector<2x1xf32>
    %148 = vector.broadcast %147 : vector<2x1xf32> to vector<2x8xf32>
    %149 = arith.divf %145, %148 : vector<2x8xf32>
    %150 = vector.shape_cast %149 : vector<2x8xf32> to vector<2x8x1xf32>
    %151 = vector.extract_strided_slice %112 {offsets = [0, 0, 16], sizes = [2, 8, 16], strides = [1, 1, 1]} : vector<2x8x32xf32> to vector<2x8x16xf32>
    %152 = vector.broadcast %150 : vector<2x8x1xf32> to vector<2x8x16xf32>
    %153 = arith.mulf %152, %151 : vector<2x8x16xf32>
    %cst_64 = arith.constant dense<0.000000e+00> : vector<2x16xf32>
    %154 = vector.multi_reduction <add>, %153, %cst_64 [1] : vector<2x8x16xf32> to vector<2x16xf32>
    %155 = tpu.concatenate %133, %154 in 1 : vector<2x16xf32>, vector<2x16xf32> -> vector<2x32xf32>
    %c0_65 = arith.constant 0 : index
    %c0_66 = arith.constant 0 : index
    %c0_67 = arith.constant 0 : index
    %156 = vector.load %arg7[%c0_65, %c0_66, %c0_67] : memref<2x32x32xf32, #tpu.memory_space<vmem>>, vector<1x32x32xf32>
    %157 = vector.shape_cast %156 : vector<1x32x32xf32> to vector<32x32xf32>
    %cst_68 = arith.constant dense<0.000000e+00> : vector<2x32xf32>
    %158 = tpu.matmul %155, %157, %cst_68 {dimension_numbers = #tpu.dot_dimension_numbers<[1], [0], [0], [1], [0, 0, 1, 1], [], []>} : vector<2x32xf32>, vector<32x32xf32>, vector<2x32xf32> -> vector<2x32xf32>
    %159 = arith.addf %92, %158 : vector<2x32xf32>
    %c2 = arith.constant 2 : index
    %c0_69 = arith.constant 0 : index
    %160 = vector.load %arg3[%c2, %c0_69] : memref<7x32xf32, #tpu.memory_space<vmem>>, vector<1x32xf32>
    %161 = arith.mulf %159, %159 : vector<2x32xf32>
    %cst_70 = arith.constant dense<0.000000e+00> : vector<2xf32>
    %162 = vector.multi_reduction <add>, %161, %cst_70 [1] : vector<2x32xf32> to vector<2xf32>
    %163 = vector.shape_cast %162 : vector<2xf32> to vector<2x1xf32>
    %cst_71 = arith.constant 3.200000e+01 : f32
    %164 = vector.broadcast %cst_71 : f32 to vector<2x1xf32>
    %165 = arith.divf %163, %164 : vector<2x1xf32>
    %cst_72 = arith.constant 9.99999997E-7 : f32
    %166 = vector.broadcast %cst_72 : f32 to vector<2x1xf32>
    %167 = arith.addf %165, %166 : vector<2x1xf32>
    %168 = math.rsqrt %167 : vector<2x1xf32>
    %169 = vector.broadcast %168 : vector<2x1xf32> to vector<2x32xf32>
    %170 = arith.mulf %159, %169 : vector<2x32xf32>
    %171 = vector.broadcast %160 : vector<1x32xf32> to vector<2x32xf32>
    %172 = arith.mulf %170, %171 : vector<2x32xf32>
    %c0_73 = arith.constant 0 : index
    %c0_74 = arith.constant 0 : index
    %c0_75 = arith.constant 0 : index
    %173 = vector.load %arg8[%c0_73, %c0_74, %c0_75] : memref<2x32x64xf32, #tpu.memory_space<vmem>>, vector<1x32x64xf32>
    %174 = vector.shape_cast %173 : vector<1x32x64xf32> to vector<32x64xf32>
    %cst_76 = arith.constant dense<0.000000e+00> : vector<2x64xf32>
    %175 = tpu.matmul %172, %174, %cst_76 {dimension_numbers = #tpu.dot_dimension_numbers<[1], [0], [0], [1], [0, 0, 1, 1], [], []>} : vector<2x32xf32>, vector<32x64xf32>, vector<2x64xf32> -> vector<2x64xf32>
    %cst_77 = arith.constant 0.000000e+00 : f32
    %176 = vector.broadcast %cst_77 : f32 to vector<2x64xf32>
    %177 = arith.maximumf %175, %176 : vector<2x64xf32>
    %c0_78 = arith.constant 0 : index
    %c0_79 = arith.constant 0 : index
    %c0_80 = arith.constant 0 : index
    %178 = vector.load %arg9[%c0_78, %c0_79, %c0_80] : memref<2x64x32xf32, #tpu.memory_space<vmem>>, vector<1x64x32xf32>
    %179 = vector.shape_cast %178 : vector<1x64x32xf32> to vector<64x32xf32>
    %cst_81 = arith.constant dense<0.000000e+00> : vector<2x32xf32>
    %180 = tpu.matmul %177, %179, %cst_81 {dimension_numbers = #tpu.dot_dimension_numbers<[1], [0], [0], [1], [0, 0, 1, 1], [], []>} : vector<2x64xf32>, vector<64x32xf32>, vector<2x32xf32> -> vector<2x32xf32>
    %181 = arith.addf %159, %180 : vector<2x32xf32>
    %c3 = arith.constant 3 : index
    %c0_82 = arith.constant 0 : index
    %182 = vector.load %arg3[%c3, %c0_82] : memref<7x32xf32, #tpu.memory_space<vmem>>, vector<1x32xf32>
    %183 = arith.mulf %181, %181 : vector<2x32xf32>
    %cst_83 = arith.constant dense<0.000000e+00> : vector<2xf32>
    %184 = vector.multi_reduction <add>, %183, %cst_83 [1] : vector<2x32xf32> to vector<2xf32>
    %185 = vector.shape_cast %184 : vector<2xf32> to vector<2x1xf32>
    %cst_84 = arith.constant 3.200000e+01 : f32
    %186 = vector.broadcast %cst_84 : f32 to vector<2x1xf32>
    %187 = arith.divf %185, %186 : vector<2x1xf32>
    %cst_85 = arith.constant 9.99999997E-7 : f32
    %188 = vector.broadcast %cst_85 : f32 to vector<2x1xf32>
    %189 = arith.addf %187, %188 : vector<2x1xf32>
    %190 = math.rsqrt %189 : vector<2x1xf32>
    %191 = vector.broadcast %190 : vector<2x1xf32> to vector<2x32xf32>
    %192 = arith.mulf %181, %191 : vector<2x32xf32>
    %193 = vector.broadcast %182 : vector<1x32xf32> to vector<2x32xf32>
    %194 = arith.mulf %192, %193 : vector<2x32xf32>
    %c1_86 = arith.constant 1 : index
    %c0_87 = arith.constant 0 : index
    %c0_88 = arith.constant 0 : index
    %195 = vector.load %arg4[%c1_86, %c0_87, %c0_88] : memref<2x32x96xf32, #tpu.memory_space<vmem>>, vector<1x32x96xf32>
    %196 = vector.shape_cast %195 : vector<1x32x96xf32> to vector<32x96xf32>
    %cst_89 = arith.constant dense<0.000000e+00> : vector<2x96xf32>
    %197 = tpu.matmul %194, %196, %cst_89 {dimension_numbers = #tpu.dot_dimension_numbers<[1], [0], [0], [1], [0, 0, 1, 1], [], []>} : vector<2x32xf32>, vector<32x96xf32>, vector<2x96xf32> -> vector<2x96xf32>
    %198 = vector.extract_strided_slice %197 {offsets = [0, 32], sizes = [2, 32], strides = [1, 1]} : vector<2x96xf32> to vector<2x32xf32>
    %199 = vector.extract_strided_slice %197 {offsets = [0, 64], sizes = [2, 32], strides = [1, 1]} : vector<2x96xf32> to vector<2x32xf32>
    %200 = vector.shape_cast %198 : vector<2x32xf32> to vector<2x1x32xf32>
    %c0_90 = arith.constant 0 : index
    %201 = arith.index_cast %arg0 : i32 to index
    %c0_91 = arith.constant 0 : index
    %202 = vector.load %arg17[%c0_90, %201, %c0_91] : memref<2x16x32xf32, #tpu.memory_space<vmem>>, vector<2x1x32xf32>
    tpu.vector_store %arg17[%c0_90, %201, %c0_91], %200 {strides = array<i32>} : memref<2x16x32xf32, #tpu.memory_space<vmem>>, vector<2x1x32xf32>,
    %203 = vector.shape_cast %199 : vector<2x32xf32> to vector<2x1x32xf32>
    %c0_92 = arith.constant 0 : index
    %204 = arith.index_cast %arg0 : i32 to index
    %c0_93 = arith.constant 0 : index
    %205 = vector.load %arg18[%c0_92, %204, %c0_93] : memref<2x16x32xf32, #tpu.memory_space<vmem>>, vector<2x1x32xf32>
    tpu.vector_store %arg18[%c0_92, %204, %c0_93], %203 {strides = array<i32>} : memref<2x16x32xf32, #tpu.memory_space<vmem>>, vector<2x1x32xf32>,
    %c0_94 = arith.constant 0 : index
    %c0_95 = arith.constant 0 : index
    %c0_96 = arith.constant 0 : index
    %206 = vector.load %arg17[%c0_94, %c0_95, %c0_96] : memref<2x16x32xf32, #tpu.memory_space<vmem>>, vector<2x16x32xf32>
    %c0_97 = arith.constant 0 : index
    %c0_98 = arith.constant 0 : index
    %c0_99 = arith.constant 0 : index
    %207 = vector.load %arg18[%c0_97, %c0_98, %c0_99] : memref<2x16x32xf32, #tpu.memory_space<vmem>>, vector<2x16x32xf32>
    %208 = vector.extract_strided_slice %197 {offsets = [0, 0], sizes = [2, 16], strides = [1, 1]} : vector<2x96xf32> to vector<2x16xf32>
    %209 = vector.shape_cast %208 : vector<2x16xf32> to vector<2x1x16xf32>
    %210 = vector.extract_strided_slice %206 {offsets = [0, 0, 0], sizes = [2, 16, 16], strides = [1, 1, 1]} : vector<2x16x32xf32> to vector<2x16x16xf32>
    %211 = vector.broadcast %209 : vector<2x1x16xf32> to vector<2x16x16xf32>
    %212 = arith.mulf %211, %210 : vector<2x16x16xf32>
    %cst_100 = arith.constant dense<0.000000e+00> : vector<2x16xf32>
    %213 = vector.multi_reduction <add>, %212, %cst_100 [2] : vector<2x16x16xf32> to vector<2x16xf32>
    %c0_101 = arith.constant 0 : index
    %214 = arith.index_cast %arg0 : i32 to index
    %c0_102 = arith.constant 0 : index
    %215 = vector.load %arg10[%c0_101, %214, %c0_102] : memref<2x16x16xf32, #tpu.memory_space<vmem>>, vector<1x1x16xf32>
    %216 = vector.shape_cast %215 : vector<1x1x16xf32> to vector<1x16xf32>
    %217 = vector.broadcast %216 : vector<1x16xf32> to vector<2x16xf32>
    %218 = arith.addf %213, %217 : vector<2x16xf32>
    %cst_103 = arith.constant dense<0xFF800000> : vector<2xf32>
    %219 = vector.multi_reduction <maximumf>, %218, %cst_103 [1] : vector<2x16xf32> to vector<2xf32>
    %220 = vector.shape_cast %219 : vector<2xf32> to vector<2x1xf32>
    %221 = vector.broadcast %220 : vector<2x1xf32> to vector<2x16xf32>
    %222 = arith.subf %218, %221 : vector<2x16xf32>
    %223 = math.exp %222 : vector<2x16xf32>
    %cst_104 = arith.constant dense<0.000000e+00> : vector<2xf32>
    %224 = vector.multi_reduction <add>, %223, %cst_104 [1] : vector<2x16xf32> to vector<2xf32>
    %225 = vector.shape_cast %224 : vector<2xf32> to vector<2x1xf32>
    %226 = vector.broadcast %225 : vector<2x1xf32> to vector<2x16xf32>
    %227 = arith.divf %223, %226 : vector<2x16xf32>
    %228 = vector.shape_cast %227 : vector<2x16xf32> to vector<2x16x1xf32>
    %229 = vector.extract_strided_slice %207 {offsets = [0, 0, 0], sizes = [2, 16, 16], strides = [1, 1, 1]} : vector<2x16x32xf32> to vector<2x16x16xf32>
    %230 = vector.broadcast %228 : vector<2x16x1xf32> to vector<2x16x16xf32>
    %231 = arith.mulf %230, %229 : vector<2x16x16xf32>
    %cst_105 = arith.constant dense<0.000000e+00> : vector<2x16xf32>
    %232 = vector.multi_reduction <add>, %231, %cst_105 [1] : vector<2x16x16xf32> to vector<2x16xf32>
    %233 = vector.extract_strided_slice %197 {offsets = [0, 16], sizes = [2, 16], strides = [1, 1]} : vector<2x96xf32> to vector<2x16xf32>
    %234 = vector.shape_cast %233 : vector<2x16xf32> to vector<2x1x16xf32>
    %235 = vector.extract_strided_slice %206 {offsets = [0, 0, 16], sizes = [2, 16, 16], strides = [1, 1, 1]} : vector<2x16x32xf32> to vector<2x16x16xf32>
    %236 = vector.broadcast %234 : vector<2x1x16xf32> to vector<2x16x16xf32>
    %237 = arith.mulf %236, %235 : vector<2x16x16xf32>
    %cst_106 = arith.constant dense<0.000000e+00> : vector<2x16xf32>
    %238 = vector.multi_reduction <add>, %237, %cst_106 [2] : vector<2x16x16xf32> to vector<2x16xf32>
    %c1_107 = arith.constant 1 : index
    %239 = arith.index_cast %arg0 : i32 to index
    %c0_108 = arith.constant 0 : index
    %240 = vector.load %arg10[%c1_107, %239, %c0_108] : memref<2x16x16xf32, #tpu.memory_space<vmem>>, vector<1x1x16xf32>
    %241 = vector.shape_cast %240 : vector<1x1x16xf32> to vector<1x16xf32>
    %242 = vector.broadcast %241 : vector<1x16xf32> to vector<2x16xf32>
    %243 = arith.addf %238, %242 : vector<2x16xf32>
    %cst_109 = arith.constant dense<0xFF800000> : vector<2xf32>
    %244 = vector.multi_reduction <maximumf>, %243, %cst_109 [1] : vector<2x16xf32> to vector<2xf32>
    %245 = vector.shape_cast %244 : vector<2xf32> to vector<2x1xf32>
    %246 = vector.broadcast %245 : vector<2x1xf32> to vector<2x16xf32>
    %247 = arith.subf %243, %246 : vector<2x16xf32>
    %248 = math.exp %247 : vector<2x16xf32>
    %cst_110 = arith.constant dense<0.000000e+00> : vector<2xf32>
    %249 = vector.multi_reduction <add>, %248, %cst_110 [1] : vector<2x16xf32> to vector<2xf32>
    %250 = vector.shape_cast %249 : vector<2xf32> to vector<2x1xf32>
    %251 = vector.broadcast %250 : vector<2x1xf32> to vector<2x16xf32>
    %252 = arith.divf %248, %251 : vector<2x16xf32>
    %253 = vector.shape_cast %252 : vector<2x16xf32> to vector<2x16x1xf32>
    %254 = vector.extract_strided_slice %207 {offsets = [0, 0, 16], sizes = [2, 16, 16], strides = [1, 1, 1]} : vector<2x16x32xf32> to vector<2x16x16xf32>
    %255 = vector.broadcast %253 : vector<2x16x1xf32> to vector<2x16x16xf32>
    %256 = arith.mulf %255, %254 : vector<2x16x16xf32>
    %cst_111 = arith.constant dense<0.000000e+00> : vector<2x16xf32>
    %257 = vector.multi_reduction <add>, %256, %cst_111 [1] : vector<2x16x16xf32> to vector<2x16xf32>
    %258 = tpu.concatenate %232, %257 in 1 : vector<2x16xf32>, vector<2x16xf32> -> vector<2x32xf32>
    %c1_112 = arith.constant 1 : index
    %c0_113 = arith.constant 0 : index
    %c0_114 = arith.constant 0 : index
    %259 = vector.load %arg5[%c1_112, %c0_113, %c0_114] : memref<2x32x32xf32, #tpu.memory_space<vmem>>, vector<1x32x32xf32>
    %260 = vector.shape_cast %259 : vector<1x32x32xf32> to vector<32x32xf32>
    %cst_115 = arith.constant dense<0.000000e+00> : vector<2x32xf32>
    %261 = tpu.matmul %258, %260, %cst_115 {dimension_numbers = #tpu.dot_dimension_numbers<[1], [0], [0], [1], [0, 0, 1, 1], [], []>} : vector<2x32xf32>, vector<32x32xf32>, vector<2x32xf32> -> vector<2x32xf32>
    %262 = arith.addf %181, %261 : vector<2x32xf32>
    %c4 = arith.constant 4 : index
    %c0_116 = arith.constant 0 : index
    %263 = vector.load %arg3[%c4, %c0_116] : memref<7x32xf32, #tpu.memory_space<vmem>>, vector<1x32xf32>
    %264 = arith.mulf %262, %262 : vector<2x32xf32>
    %cst_117 = arith.constant dense<0.000000e+00> : vector<2xf32>
    %265 = vector.multi_reduction <add>, %264, %cst_117 [1] : vector<2x32xf32> to vector<2xf32>
    %266 = vector.shape_cast %265 : vector<2xf32> to vector<2x1xf32>
    %cst_118 = arith.constant 3.200000e+01 : f32
    %267 = vector.broadcast %cst_118 : f32 to vector<2x1xf32>
    %268 = arith.divf %266, %267 : vector<2x1xf32>
    %cst_119 = arith.constant 9.99999997E-7 : f32
    %269 = vector.broadcast %cst_119 : f32 to vector<2x1xf32>
    %270 = arith.addf %268, %269 : vector<2x1xf32>
    %271 = math.rsqrt %270 : vector<2x1xf32>
    %272 = vector.broadcast %271 : vector<2x1xf32> to vector<2x32xf32>
    %273 = arith.mulf %262, %272 : vector<2x32xf32>
    %274 = vector.broadcast %263 : vector<1x32xf32> to vector<2x32xf32>
    %275 = arith.mulf %273, %274 : vector<2x32xf32>
    %c1_120 = arith.constant 1 : index
    %c0_121 = arith.constant 0 : index
    %c0_122 = arith.constant 0 : index
    %276 = vector.load %arg6[%c1_120, %c0_121, %c0_122] : memref<2x32x32xf32, #tpu.memory_space<vmem>>, vector<1x32x32xf32>
    %277 = vector.shape_cast %276 : vector<1x32x32xf32> to vector<32x32xf32>
    %cst_123 = arith.constant dense<0.000000e+00> : vector<2x32xf32>
    %278 = tpu.matmul %275, %277, %cst_123 {dimension_numbers = #tpu.dot_dimension_numbers<[1], [0], [0], [1], [0, 0, 1, 1], [], []>} : vector<2x32xf32>, vector<32x32xf32>, vector<2x32xf32> -> vector<2x32xf32>
    %c1_124 = arith.constant 1 : index
    %c0_125 = arith.constant 0 : index
    %c0_126 = arith.constant 0 : index
    %c0_127 = arith.constant 0 : index
    %279 = vector.load %arg12[%c1_124, %c0_125, %c0_126, %c0_127] : memref<2x2x8x32xf32, #tpu.memory_space<vmem>>, vector<1x2x8x32xf32>
    %280 = vector.shape_cast %279 : vector<1x2x8x32xf32> to vector<2x8x32xf32>
    %c1_128 = arith.constant 1 : index
    %c0_129 = arith.constant 0 : index
    %c0_130 = arith.constant 0 : index
    %c0_131 = arith.constant 0 : index
    %281 = vector.load %arg13[%c1_128, %c0_129, %c0_130, %c0_131] : memref<2x2x8x32xf32, #tpu.memory_space<vmem>>, vector<1x2x8x32xf32>
    %282 = vector.shape_cast %281 : vector<1x2x8x32xf32> to vector<2x8x32xf32>
    %283 = vector.extract_strided_slice %278 {offsets = [0, 0], sizes = [2, 16], strides = [1, 1]} : vector<2x32xf32> to vector<2x16xf32>
    %284 = vector.shape_cast %283 : vector<2x16xf32> to vector<2x1x16xf32>
    %285 = vector.extract_strided_slice %280 {offsets = [0, 0, 0], sizes = [2, 8, 16], strides = [1, 1, 1]} : vector<2x8x32xf32> to vector<2x8x16xf32>
    %286 = vector.broadcast %284 : vector<2x1x16xf32> to vector<2x8x16xf32>
    %287 = arith.mulf %286, %285 : vector<2x8x16xf32>
    %cst_132 = arith.constant dense<0.000000e+00> : vector<2x8xf32>
    %288 = vector.multi_reduction <add>, %287, %cst_132 [2] : vector<2x8x16xf32> to vector<2x8xf32>
    %289 = arith.addf %288, %11 : vector<2x8xf32>
    %cst_133 = arith.constant dense<0xFF800000> : vector<2xf32>
    %290 = vector.multi_reduction <maximumf>, %289, %cst_133 [1] : vector<2x8xf32> to vector<2xf32>
    %291 = vector.shape_cast %290 : vector<2xf32> to vector<2x1xf32>
    %292 = vector.broadcast %291 : vector<2x1xf32> to vector<2x8xf32>
    %293 = arith.subf %289, %292 : vector<2x8xf32>
    %294 = math.exp %293 : vector<2x8xf32>
    %cst_134 = arith.constant dense<0.000000e+00> : vector<2xf32>
    %295 = vector.multi_reduction <add>, %294, %cst_134 [1] : vector<2x8xf32> to vector<2xf32>
    %296 = vector.shape_cast %295 : vector<2xf32> to vector<2x1xf32>
    %297 = vector.broadcast %296 : vector<2x1xf32> to vector<2x8xf32>
    %298 = arith.divf %294, %297 : vector<2x8xf32>
    %299 = vector.shape_cast %298 : vector<2x8xf32> to vector<2x8x1xf32>
    %300 = vector.extract_strided_slice %282 {offsets = [0, 0, 0], sizes = [2, 8, 16], strides = [1, 1, 1]} : vector<2x8x32xf32> to vector<2x8x16xf32>
    %301 = vector.broadcast %299 : vector<2x8x1xf32> to vector<2x8x16xf32>
    %302 = arith.mulf %301, %300 : vector<2x8x16xf32>
    %cst_135 = arith.constant dense<0.000000e+00> : vector<2x16xf32>
    %303 = vector.multi_reduction <add>, %302, %cst_135 [1] : vector<2x8x16xf32> to vector<2x16xf32>
    %304 = vector.extract_strided_slice %278 {offsets = [0, 16], sizes = [2, 16], strides = [1, 1]} : vector<2x32xf32> to vector<2x16xf32>
    %305 = vector.shape_cast %304 : vector<2x16xf32> to vector<2x1x16xf32>
    %306 = vector.extract_strided_slice %280 {offsets = [0, 0, 16], sizes = [2, 8, 16], strides = [1, 1, 1]} : vector<2x8x32xf32> to vector<2x8x16xf32>
    %307 = vector.broadcast %305 : vector<2x1x16xf32> to vector<2x8x16xf32>
    %308 = arith.mulf %307, %306 : vector<2x8x16xf32>
    %cst_136 = arith.constant dense<0.000000e+00> : vector<2x8xf32>
    %309 = vector.multi_reduction <add>, %308, %cst_136 [2] : vector<2x8x16xf32> to vector<2x8xf32>
    %310 = arith.addf %309, %11 : vector<2x8xf32>
    %cst_137 = arith.constant dense<0xFF800000> : vector<2xf32>
    %311 = vector.multi_reduction <maximumf>, %310, %cst_137 [1] : vector<2x8xf32> to vector<2xf32>
    %312 = vector.shape_cast %311 : vector<2xf32> to vector<2x1xf32>
    %313 = vector.broadcast %312 : vector<2x1xf32> to vector<2x8xf32>
    %314 = arith.subf %310, %313 : vector<2x8xf32>
    %315 = math.exp %314 : vector<2x8xf32>
    %cst_138 = arith.constant dense<0.000000e+00> : vector<2xf32>
    %316 = vector.multi_reduction <add>, %315, %cst_138 [1] : vector<2x8xf32> to vector<2xf32>
    %317 = vector.shape_cast %316 : vector<2xf32> to vector<2x1xf32>
    %318 = vector.broadcast %317 : vector<2x1xf32> to vector<2x8xf32>
    %319 = arith.divf %315, %318 : vector<2x8xf32>
    %320 = vector.shape_cast %319 : vector<2x8xf32> to vector<2x8x1xf32>
    %321 = vector.extract_strided_slice %282 {offsets = [0, 0, 16], sizes = [2, 8, 16], strides = [1, 1, 1]} : vector<2x8x32xf32> to vector<2x8x16xf32>
    %322 = vector.broadcast %320 : vector<2x8x1xf32> to vector<2x8x16xf32>
    %323 = arith.mulf %322, %321 : vector<2x8x16xf32>
    %cst_139 = arith.constant dense<0.000000e+00> : vector<2x16xf32>
    %324 = vector.multi_reduction <add>, %323, %cst_139 [1] : vector<2x8x16xf32> to vector<2x16xf32>
    %325 = tpu.concatenate %303, %324 in 1 : vector<2x16xf32>, vector<2x16xf32> -> vector<2x32xf32>
    %c1_140 = arith.constant 1 : index
    %c0_141 = arith.constant 0 : index
    %c0_142 = arith.constant 0 : index
    %326 = vector.load %arg7[%c1_140, %c0_141, %c0_142] : memref<2x32x32xf32, #tpu.memory_space<vmem>>, vector<1x32x32xf32>
    %327 = vector.shape_cast %326 : vector<1x32x32xf32> to vector<32x32xf32>
    %cst_143 = arith.constant dense<0.000000e+00> : vector<2x32xf32>
    %328 = tpu.matmul %325, %327, %cst_143 {dimension_numbers = #tpu.dot_dimension_numbers<[1], [0], [0], [1], [0, 0, 1, 1], [], []>} : vector<2x32xf32>, vector<32x32xf32>, vector<2x32xf32> -> vector<2x32xf32>
    %329 = arith.addf %262, %328 : vector<2x32xf32>
    %c5 = arith.constant 5 : index
    %c0_144 = arith.constant 0 : index
    %330 = vector.load %arg3[%c5, %c0_144] : memref<7x32xf32, #tpu.memory_space<vmem>>, vector<1x32xf32>
    %331 = arith.mulf %329, %329 : vector<2x32xf32>
    %cst_145 = arith.constant dense<0.000000e+00> : vector<2xf32>
    %332 = vector.multi_reduction <add>, %331, %cst_145 [1] : vector<2x32xf32> to vector<2xf32>
    %333 = vector.shape_cast %332 : vector<2xf32> to vector<2x1xf32>
    %cst_146 = arith.constant 3.200000e+01 : f32
    %334 = vector.broadcast %cst_146 : f32 to vector<2x1xf32>
    %335 = arith.divf %333, %334 : vector<2x1xf32>
    %cst_147 = arith.constant 9.99999997E-7 : f32
    %336 = vector.broadcast %cst_147 : f32 to vector<2x1xf32>
    %337 = arith.addf %335, %336 : vector<2x1xf32>
    %338 = math.rsqrt %337 : vector<2x1xf32>
    %339 = vector.broadcast %338 : vector<2x1xf32> to vector<2x32xf32>
    %340 = arith.mulf %329, %339 : vector<2x32xf32>
    %341 = vector.broadcast %330 : vector<1x32xf32> to vector<2x32xf32>
    %342 = arith.mulf %340, %341 : vector<2x32xf32>
    %c1_148 = arith.constant 1 : index
    %c0_149 = arith.constant 0 : index
    %c0_150 = arith.constant 0 : index
    %343 = vector.load %arg8[%c1_148, %c0_149, %c0_150] : memref<2x32x64xf32, #tpu.memory_space<vmem>>, vector<1x32x64xf32>
    %344 = vector.shape_cast %343 : vector<1x32x64xf32> to vector<32x64xf32>
    %cst_151 = arith.constant dense<0.000000e+00> : vector<2x64xf32>
    %345 = tpu.matmul %342, %344, %cst_151 {dimension_numbers = #tpu.dot_dimension_numbers<[1], [0], [0], [1], [0, 0, 1, 1], [], []>} : vector<2x32xf32>, vector<32x64xf32>, vector<2x64xf32> -> vector<2x64xf32>
    %cst_152 = arith.constant 0.000000e+00 : f32
    %346 = vector.broadcast %cst_152 : f32 to vector<2x64xf32>
    %347 = arith.maximumf %345, %346 : vector<2x64xf32>
    %c1_153 = arith.constant 1 : index
    %c0_154 = arith.constant 0 : index
    %c0_155 = arith.constant 0 : index
    %348 = vector.load %arg9[%c1_153, %c0_154, %c0_155] : memref<2x64x32xf32, #tpu.memory_space<vmem>>, vector<1x64x32xf32>
    %349 = vector.shape_cast %348 : vector<1x64x32xf32> to vector<64x32xf32>
    %cst_156 = arith.constant dense<0.000000e+00> : vector<2x32xf32>
    %350 = tpu.matmul %347, %349, %cst_156 {dimension_numbers = #tpu.dot_dimension_numbers<[1], [0], [0], [1], [0, 0, 1, 1], [], []>} : vector<2x64xf32>, vector<64x32xf32>, vector<2x32xf32> -> vector<2x32xf32>
    %351 = arith.addf %329, %350 : vector<2x32xf32>
    %c6 = arith.constant 6 : index
    %c0_157 = arith.constant 0 : index
    %352 = vector.load %arg3[%c6, %c0_157] : memref<7x32xf32, #tpu.memory_space<vmem>>, vector<1x32xf32>
    %353 = arith.mulf %351, %351 : vector<2x32xf32>
    %cst_158 = arith.constant dense<0.000000e+00> : vector<2xf32>
    %354 = vector.multi_reduction <add>, %353, %cst_158 [1] : vector<2x32xf32> to vector<2xf32>
    %355 = vector.shape_cast %354 : vector<2xf32> to vector<2x1xf32>
    %cst_159 = arith.constant 3.200000e+01 : f32
    %356 = vector.broadcast %cst_159 : f32 to vector<2x1xf32>
    %357 = arith.divf %355, %356 : vector<2x1xf32>
    %cst_160 = arith.constant 9.99999997E-7 : f32
    %358 = vector.broadcast %cst_160 : f32 to vector<2x1xf32>
    %359 = arith.addf %357, %358 : vector<2x1xf32>
    %360 = math.rsqrt %359 : vector<2x1xf32>
    %361 = vector.broadcast %360 : vector<2x1xf32> to vector<2x32xf32>
    %362 = arith.mulf %351, %361 : vector<2x32xf32>
    %363 = vector.broadcast %352 : vector<1x32xf32> to vector<2x32xf32>
    %364 = arith.mulf %362, %363 : vector<2x32xf32>
    %cst_161 = arith.constant 0.176776692 : f32
    %365 = vector.broadcast %cst_161 : f32 to vector<2x32xf32>
    %366 = arith.mulf %364, %365 : vector<2x32xf32>
    %c0_162 = arith.constant 0 : index
    %c0_163 = arith.constant 0 : index
    %367 = vector.load %arg2[%c0_162, %c0_163] : memref<32x64xf32, #tpu.memory_space<vmem>>, vector<32x64xf32>
    %cst_164 = arith.constant dense<0.000000e+00> : vector<2x64xf32>
    %368 = tpu.matmul %366, %367, %cst_164 {dimension_numbers = #tpu.dot_dimension_numbers<[1], [0], [0], [1], [0, 0, 1, 1], [], []>} : vector<2x32xf32>, vector<32x64xf32>, vector<2x64xf32> -> vector<2x64xf32>
    %cst_165 = arith.constant dense<0xFF800000> : vector<2xf32>
    %369 = vector.multi_reduction <maximumf>, %368, %cst_165 [1] : vector<2x64xf32> to vector<2xf32>
    %370 = vector.shape_cast %369 : vector<2xf32> to vector<2x1xf32>
    %371 = tpu.iota {dimensions = array<i32: 1>} : vector<2x64xi32>
    %372 = vector.broadcast %370 : vector<2x1xf32> to vector<2x64xf32>
    %373 = arith.cmpf oeq, %368, %372 : vector<2x64xf32>
    %c64_i32 = arith.constant 64 : i32
    %374 = vector.broadcast %c64_i32 : i32 to vector<2x64xi32>
    %375 = arith.select %373, %371, %374 : vector<2x64xi1>, vector<2x64xi32>
    %cst_166 = arith.constant dense<2147483647> : vector<2xi32>
    %376 = vector.multi_reduction <minsi>, %375, %cst_166 [1] : vector<2x64xi32> to vector<2xi32>
    %377 = vector.shape_cast %376 : vector<2xi32> to vector<2x1xi32>
    %c0_167 = arith.constant 0 : index
    %c0_168 = arith.constant 0 : index
    %378 = vector.load %arg19[%c0_167, %c0_168] : memref<2x1xi32, #tpu.memory_space<vmem>>, vector<2x1xi32>
    tpu.vector_store %arg19[%c0_167, %c0_168], %377 {strides = array<i32>} : memref<2x1xi32, #tpu.memory_space<vmem>>, vector<2x1xi32>,
    %379 = tpu.iota {dimensions = array<i32: 1>} : vector<2x16xi32>
    %c1_i32 = arith.constant 1 : i32
    %380 = arith.addi %arg0, %c1_i32 : i32
    %381 = vector.broadcast %380 : i32 to vector<2x16xi32>
    %382 = arith.cmpi eq, %379, %381 : vector<2x16xi32>
    %c0_169 = arith.constant 0 : index
    %c0_170 = arith.constant 0 : index
    %383 = vector.load %arg14[%c0_169, %c0_170] : memref<2x16xi32, #tpu.memory_space<vmem>>, vector<2x16xi32>
    %384 = vector.shape_cast %377 : vector<2x1xi32> to vector<2x1xi32>
    %385 = vector.broadcast %384 : vector<2x1xi32> to vector<2x16xi32>
    %386 = arith.select %382, %385, %383 : vector<2x16xi1>, vector<2x16xi32>
    %c0_171 = arith.constant 0 : index
    %c0_172 = arith.constant 0 : index
    %387 = vector.load %arg14[%c0_171, %c0_172] : memref<2x16xi32, #tpu.memory_space<vmem>>, vector<2x16xi32>
    tpu.vector_store %arg14[%c0_171, %c0_172], %386 {strides = array<i32>} : memref<2x16xi32, #tpu.memory_space<vmem>>, vector<2x16xi32>,
    return
  }
  func.func @transform_0(%arg0: i32) -> (i32, i32) {
    %c0_i32 = arith.constant 0 : i32
    %c0_i32_0 = arith.constant 0 : i32
    %c0_i32_1 = arith.constant 0 : i32
    return %c0_i32, %c0_i32_0 : i32, i32
  }
  func.func @transform_1(%arg0: i32) -> (i32, i32) {
    %c0_i32 = arith.constant 0 : i32
    %c0_i32_0 = arith.constant 0 : i32
    %c0_i32_1 = arith.constant 0 : i32
    return %c0_i32, %c0_i32_0 : i32, i32
  }
  func.func @transform_2(%arg0: i32) -> (i32, i32) {
    %c0_i32 = arith.constant 0 : i32
    %c0_i32_0 = arith.constant 0 : i32
    %c0_i32_1 = arith.constant 0 : i32
    return %c0_i32, %c0_i32_0 : i32, i32
  }
  func.func @transform_3(%arg0: i32) -> (i32, i32, i32) {
    %c0_i32 = arith.constant 0 : i32
    %c0_i32_0 = arith.constant 0 : i32
    %c0_i32_1 = arith.constant 0 : i32
    %c0_i32_2 = arith.constant 0 : i32
    return %c0_i32, %c0_i32_0, %c0_i32_1 : i32, i32, i32
  }
  func.func @transform_4(%arg0: i32) -> (i32, i32, i32) {
    %c0_i32 = arith.constant 0 : i32
    %c0_i32_0 = arith.constant 0 : i32
    %c0_i32_1 = arith.constant 0 : i32
    %c0_i32_2 = arith.constant 0 : i32
    return %c0_i32, %c0_i32_0, %c0_i32_1 : i32, i32, i32
  }
  func.func @transform_5(%arg0: i32) -> (i32, i32, i32) {
    %c0_i32 = arith.constant 0 : i32
    %c0_i32_0 = arith.constant 0 : i32
    %c0_i32_1 = arith.constant 0 : i32
    %c0_i32_2 = arith.constant 0 : i32
    return %c0_i32, %c0_i32_0, %c0_i32_1 : i32, i32, i32
  }
  func.func @transform_6(%arg0: i32) -> (i32, i32, i32) {
    %c0_i32 = arith.constant 0 : i32
    %c0_i32_0 = arith.constant 0 : i32
    %c0_i32_1 = arith.constant 0 : i32
    %c0_i32_2 = arith.constant 0 : i32
    return %c0_i32, %c0_i32_0, %c0_i32_1 : i32, i32, i32
  }
  func.func @transform_7(%arg0: i32) -> (i32, i32, i32) {
    %c0_i32 = arith.constant 0 : i32
    %c0_i32_0 = arith.constant 0 : i32
    %c0_i32_1 = arith.constant 0 : i32
    %c0_i32_2 = arith.constant 0 : i32
    return %c0_i32, %c0_i32_0, %c0_i32_1 : i32, i32, i32
  }
  func.func @transform_8(%arg0: i32) -> (i32, i32, i32) {
    %c0_i32 = arith.constant 0 : i32
    %c0_i32_0 = arith.constant 0 : i32
    %c0_i32_1 = arith.constant 0 : i32
    %c0_i32_2 = arith.constant 0 : i32
    return %c0_i32, %c0_i32_0, %c0_i32_1 : i32, i32, i32
  }
  func.func @transform_9(%arg0: i32) -> (i32, i32, i32) {
    %c0_i32 = arith.constant 0 : i32
    %c0_i32_0 = arith.constant 0 : i32
    %c0_i32_1 = arith.constant 0 : i32
    %c0_i32_2 = arith.constant 0 : i32
    return %c0_i32, %c0_i32_0, %c0_i32_1 : i32, i32, i32
  }
  func.func @transform_10(%arg0: i32) -> (i32, i32) {
    %c0_i32 = arith.constant 0 : i32
    %c0_i32_0 = arith.constant 0 : i32
    %c0_i32_1 = arith.constant 0 : i32
    return %c0_i32, %c0_i32_0 : i32, i32
  }
  func.func @transform_11(%arg0: i32) -> (i32, i32, i32, i32) {
    %c0_i32 = arith.constant 0 : i32
    %c0_i32_0 = arith.constant 0 : i32
    %c0_i32_1 = arith.constant 0 : i32
    %c0_i32_2 = arith.constant 0 : i32
    %c0_i32_3 = arith.constant 0 : i32
    return %c0_i32, %c0_i32_0, %c0_i32_1, %c0_i32_2 : i32, i32, i32, i32
  }
  func.func @transform_12(%arg0: i32) -> (i32, i32, i32, i32) {
    %c0_i32 = arith.constant 0 : i32
    %c0_i32_0 = arith.constant 0 : i32
    %c0_i32_1 = arith.constant 0 : i32
    %c0_i32_2 = arith.constant 0 : i32
    %c0_i32_3 = arith.constant 0 : i32
    return %c0_i32, %c0_i32_0, %c0_i32_1, %c0_i32_2 : i32, i32, i32, i32
  }
  func.func @transform_13(%arg0: i32) -> (i32, i32) {
    %c0_i32 = arith.constant 0 : i32
    %c0_i32_0 = arith.constant 0 : i32
    %c0_i32_1 = arith.constant 0 : i32
    return %c0_i32, %c0_i32_0 : i32, i32
  }
}

</mosaic_0001>

<llo_original>
// kernel: generate.2
$region0: #{generate.2}
  #allocation0 [shape = 'u32[]', space=smem, size = 0x4, offset = 0x4, fixed_abs, tag = 'smem constant byte address 0x4 - core index']
  #allocation1 [shape = 'u32[144,128]{1,0:T(1,128)}', space=vmem, size = 0x12000, scoped, tag = 'internal scratch']
  %s0 = inlined_call_operand.vmem [shape: f32[16,32], index: 0, kind: input, shape index: {}]
  %s1 = inlined_call_operand.vmem [shape: f32[2,2,8,8], index: 1, kind: input, shape index: {}]
  %s2 = inlined_call_operand.vmem [shape: f32[5,32], index: 2, kind: input, shape index: {}]
  %s3 = inlined_call_operand.vmem [shape: f32[2,32,96], index: 3, kind: input, shape index: {}]
  %s4 = inlined_call_operand.vmem [shape: f32[2,32,32], index: 4, kind: input, shape index: {}]
  %s5 = inlined_call_operand.vmem [shape: f32[2,32,64], index: 5, kind: input, shape index: {}]
  %s6 = inlined_call_operand.vmem [shape: f32[2,64,32], index: 6, kind: input, shape index: {}]
  %s7 = inlined_call_operand.vmem [shape: f32[32,128], index: 7, kind: input, shape index: {}]
  %s8 = inlined_call_operand.vmem [shape: f32[16,128], index: 8, kind: output, shape index: {}]
  %s9 = sld [smem:[#allocation0]]
  $region42: #{generate.2} parent=0
    _
  %s11 = ssub.s32 1, %s9
  %s12 = scalar_select 0, %s11, %s9
  // Predicated region
  $region2: #{generate.2} parent=0 // pred_check
    _
  $region3: #{generate.2} parent=0 // pred_check_branch
    %14 = sbr.rel (0) target = $region5
  $region4: #{generate.2} parent=0 // pred_region
    _
  $region5: #{generate.2} parent=0 // pred_fallthru
    _
  // Predicated region
  $region6: #{generate.2} parent=0 // pred_check
    _
  $region7: #{generate.2} parent=0 // pred_check_branch
    %16 = sbr.rel (0) target = $region9
  $region8: #{generate.2} parent=0 // pred_region
    _
  $region9: #{generate.2} parent=0 // pred_fallthru
    _
  // Predicated region
  $region10: #{generate.2} parent=0 // pred_check
    _
  $region11: #{generate.2} parent=0 // pred_check_branch
    %18 = sbr.rel (0) target = $region13
  $region12: #{generate.2} parent=0 // pred_region
    _
  $region13: #{generate.2} parent=0 // pred_fallthru
    _
  // Predicated region
  $region14: #{generate.2} parent=0 // pred_check
    _
  $region15: #{generate.2} parent=0 // pred_check_branch
    %20 = sbr.rel (0) target = $region17
  $region16: #{generate.2} parent=0 // pred_region
    _
  $region17: #{generate.2} parent=0 // pred_fallthru
    _
  // Predicated region
  $region18: #{generate.2} parent=0 // pred_check
    _
  $region19: #{generate.2} parent=0 // pred_check_branch
    %22 = sbr.rel (0) target = $region21
  $region20: #{generate.2} parent=0 // pred_region
    _
  $region21: #{generate.2} parent=0 // pred_fallthru
    _
  // Predicated region
  $region22: #{generate.2} parent=0 // pred_check
    _
  $region23: #{generate.2} parent=0 // pred_check_branch
    %24 = sbr.rel (0) target = $region25
  $region24: #{generate.2} parent=0 // pred_region
    _
  $region25: #{generate.2} parent=0 // pred_fallthru
    _
  // Predicated region
  $region26: #{generate.2} parent=0 // pred_check
    _
  $region27: #{generate.2} parent=0 // pred_check_branch
    %26 = sbr.rel (0) target = $region29
  $region28: #{generate.2} parent=0 // pred_region
    _
  $region29: #{generate.2} parent=0 // pred_fallthru
    _
  // Predicated region
  $region30: #{generate.2} parent=0 // pred_check
    _
  $region31: #{generate.2} parent=0 // pred_check_branch
    %28 = sbr.rel (0) target = $region33
  $region32: #{generate.2} parent=0 // pred_region
    _
  $region33: #{generate.2} parent=0 // pred_fallthru
    _
  %v29 = vld [vmem:[%s0] sm:$0xff]
  %v30 = vld [vmem:[%s0 + $0x8] sm:$0xff]
  %v31 = vld [vmem:[%s1] sm:$0xff]
  %v32 = vld [vmem:[%s1 + $0x8] sm:$0xff]
  %v33 = vld [vmem:[%s1 + $0x10] sm:$0xff]
  %v34 = vld [vmem:[%s1 + $0x18] sm:$0xff]
  %v35 = vld [vmem:[%s2] sm:$0x1]
  %v36 = vmul.f32 %v29, %v29
  %v37 = vmul.f32 %v30, %v30
  %vm38 = vcmask 261120
  %v39 = vsel %vm38, %v36, 0.0
  %40 = vadd.xlane.f32.xlu0 %v39
  %v41 = vpop.xlane.xlu0 %40
  %v42 = vsel %vm38, %v37, 0.0
  %43 = vadd.xlane.f32.xlu0 %v42
  %v44 = vpop.xlane.xlu0 %43
  %v45 = vrcp.pop 32.0
  %v46 = vmul.f32 %v41, %v45
  %v47 = vmul.f32 %v44, %v45
  %v48 = vadd.f32 %v46, 1e-06
  %v49 = vadd.f32 %v47, 1e-06
  %v50 = vrsqrt.pop %v48
  %v51 = vrsqrt.pop %v49
  %v52 = vmul.f32 %v29, %v50
  %v53 = vmul.f32 %v30, %v51
  %v54 = vlaneseq
  %v55 = vshrl.u32 %v54, 7
  %v56 = vsub.s32 0, %v55
  %v57 = vrot.slane %v35, %v56
  %v58 = vmul.f32 %v52, %v57
  %v59 = vmul.f32 %v53, %v57
  %v60 = vld [vmem:[%s3] sm:$0xff]
  %v61 = vld [vmem:[%s3 + $0x8] sm:$0xff]
  %v62 = vld [vmem:[%s3 + $0x10] sm:$0xff]
  %v63 = vld [vmem:[%s3 + $0x18] sm:$0xff]
  %v65 = vsel %vm38, %v58, 0
  %v68 = vsel %vm38, %v59, 0
  %70 = vmatprep.subr.mxu0 0.0
  %71 = vmatpush1.msra.mxu0 %v60
  %72 = vmatprep.subr.mxu0 0.0
  %73 = vmatpush1.msra.mxu0 %v61
  %74 = vmatprep.subr.mxu0 0.0
  %75 = vmatpush1.msra.mxu0 %v62
  %76 = vmatprep.subr.mxu0 0.0
  %77 = vmatpush1.msra.mxu0 %v63
  %78 = vmatprep.subr.mxu0 0.0
  %79 = vmatpush1.msra.mxu0 0.0
  %80 = vmatprep.subr.mxu0 0.0
  %81 = vmatpush1.msra.mxu0 0.0
  %82 = vmatprep.subr.mxu0 0.0
  %83 = vmatpush1.msra.mxu0 0.0
  %84 = vmatprep.subr.mxu0 0.0
  %85 = vmatpush1.msra.mxu0 0.0
  %86 = vmatprep.subr.mxu0 0.0
  %87 = vmatpush1.msra.mxu0 0.0
  %88 = vmatprep.subr.mxu0 0.0
  %89 = vmatpush1.msra.mxu0 0.0
  %90 = vmatprep.subr.mxu0 0.0
  %91 = vmatpush1.msra.mxu0 0.0
  %92 = vmatprep.subr.mxu0 0.0
  %93 = vmatpush1.msra.mxu0 0.0
  %94 = vmatprep.subr.mxu0 0.0
  %95 = vmatpush1.msra.mxu0 0.0
  %96 = vmatprep.subr.mxu0 0.0
  %97 = vmatpush1.msra.mxu0 0.0
  %98 = vmatprep.subr.mxu0 0.0
  %99 = vmatpush1.msra.mxu0 0.0
  %100 = vmatprep.subr.mxu0 0.0
  %101 = vmatpush1.msra.mxu0 0.0
  %102 = vmatprep.subr.mxu0 0.0
  %103 = vmatpush1.msra.mxu0 0.0
  %104 = vmatprep.subr.mxu0 0.0
  %105 = vmatpush1.msra.mxu0 0.0
  %106 = vmatprep.subr.mxu0 0.0
  %107 = vmatpush1.msra.mxu0 0.0
  %108 = vmatprep.subr.mxu0 0.0
  %109 = vmatpush1.msra.mxu0 0.0
  %110 = vmatprep.subr.mxu0 0.0
  %111 = vmatpush1.msra.mxu0 0.0
  %112 = vmatprep.subr.mxu0 0.0
  %113 = vmatpush1.msra.mxu0 0.0
  %114 = vmatprep.subr.mxu0 0.0
  %115 = vmatpush1.msra.mxu0 0.0
  %116 = vmatprep.subr.mxu0 0.0
  %117 = vmatpush1.msra.mxu0 0.0
  %118 = vmatprep.subr.mxu0 0.0
  %119 = vmatpush1.msra.mxu0 0.0
  %120 = vmatprep.subr.mxu0 0.0
  %121 = vmatpush1.msra.mxu0 0.0
  %122 = vmatprep.subr.mxu0 0.0
  %123 = vmatpush1.msra.mxu0 0.0
  %124 = vmatprep.subr.mxu0 0.0
  %125 = vmatpush1.msra.mxu0 0.0
  %126 = vmatprep.subr.mxu0 0.0
  %127 = vmatpush1.msra.mxu0 0.0
  %128 = vmatprep.subr.mxu0 0.0
  %129 = vmatpush1.msra.mxu0 0.0
  %130 = vmatprep.subr.mxu0 0.0
  %131 = vmatpush1.msra.mxu0 0.0
  %132 = vmatprep.subr.mxu0 0.0
  %133 = vmatpush1.msra.mxu0 0.0
  %134 = vmatprep.mubr.f32.mxu0 0.0
  %135 = vmatmul.mubr.f32.gmra.mrb[0].mxu0 %v65
  %v136 = vpop.f32.mrb[0].mxu0
  %v137 = vadd.f32 0.0, %v136
  %v138 = vpop.f32.mrb[0].mxu0
  %139 = vmatprep.mubr.f32.mxu0 0.0
  %140 = vmatmul.mubr.f32.gmra.mrb[0].mxu0 %v68
  %v141 = vpop.f32.mrb[0].mxu0
  %v142 = vadd.f32 0.0, %v141
  %v143 = vpop.f32.mrb[0].mxu0
  %144 = vdwg.mxu0
  %146 = vrot.lane.b32.xlu0 %v137, 96
  %v147 = vpop.permute.xlu0 %146
  %vm148 = vcmask 130048
  %v149 = vsel %vm148, %v137, 0
  %v151 = vsel %vm148, %v147, 0
  %153 = vmatprep.subr.mxu0 0.0
  %154 = vmatpush1.xpose.msra.mxu0 %v151
  %155 = vmatprep.subr.mxu0 0.0
  %156 = vmatpush1.xpose.msra.mxu0 0.0
  %157 = vmatprep.subr.mxu0 0.0
  %158 = vmatpush1.xpose.msra.mxu0 0.0
  %159 = vmatprep.subr.mxu0 0.0
  %160 = vmatpush1.xpose.msra.mxu0 0.0
  %161 = vmatprep.subr.mxu0 0.0
  %162 = vmatpush1.xpose.msra.mxu0 0.0
  %163 = vmatprep.subr.mxu0 0.0
  %164 = vmatpush1.xpose.msra.mxu0 0.0
  %165 = vmatprep.subr.mxu0 0.0
  %166 = vmatpush1.xpose.msra.mxu0 0.0
  %167 = vmatprep.subr.mxu0 0.0
  %168 = vmatpush1.xpose.msra.mxu0 0.0
  %169 = vmatprep.subr.mxu0 0.0
  %170 = vmatpush1.xpose.msra.mxu0 0.0
  %171 = vmatprep.subr.mxu0 0.0
  %172 = vmatpush1.xpose.msra.mxu0 0.0
  %173 = vmatprep.subr.mxu0 0.0
  %174 = vmatpush1.xpose.msra.mxu0 0.0
  %175 = vmatprep.subr.mxu0 0.0
  %176 = vmatpush1.xpose.msra.mxu0 0.0
  %177 = vmatprep.subr.mxu0 0.0
  %178 = vmatpush1.xpose.msra.mxu0 0.0
  %179 = vmatprep.subr.mxu0 0.0
  %180 = vmatpush1.xpose.msra.mxu0 0.0
  %181 = vmatprep.subr.mxu0 0.0
  %182 = vmatpush1.xpose.msra.mxu0 0.0
  %183 = vmatprep.subr.mxu0 0.0
  %184 = vmatpush1.xpose.msra.mxu0 0.0
  %185 = vmatprep.subr.mxu0 0.0
  %186 = vmatpush1.xpose.msra.mxu0 0.0
  %187 = vmatprep.subr.mxu0 0.0
  %188 = vmatpush1.xpose.msra.mxu0 0.0
  %189 = vmatprep.subr.mxu0 0.0
  %190 = vmatpush1.xpose.msra.mxu0 0.0
  %191 = vmatprep.subr.mxu0 0.0
  %192 = vmatpush1.xpose.msra.mxu0 0.0
  %193 = vmatprep.subr.mxu0 0.0
  %194 = vmatpush1.xpose.msra.mxu0 0.0
  %195 = vmatprep.subr.mxu0 0.0
  %196 = vmatpush1.xpose.msra.mxu0 0.0
  %197 = vmatprep.subr.mxu0 0.0
  %198 = vmatpush1.xpose.msra.mxu0 0.0
  %199 = vmatprep.subr.mxu0 0.0
  %200 = vmatpush1.xpose.msra.mxu0 0.0
  %201 = vmatprep.subr.mxu0 0.0
  %202 = vmatpush1.xpose.msra.mxu0 0.0
  %203 = vmatprep.subr.mxu0 0.0
  %204 = vmatpush1.xpose.msra.mxu0 0.0
  %205 = vmatprep.subr.mxu0 0.0
  %206 = vmatpush1.xpose.msra.mxu0 0.0
  %207 = vmatprep.subr.mxu0 0.0
  %208 = vmatpush1.xpose.msra.mxu0 0.0
  %209 = vmatprep.subr.mxu0 0.0
  %210 = vmatpush1.xpose.msra.mxu0 0.0
  %211 = vmatprep.subr.mxu0 0.0
  %212 = vmatpush1.xpose.msra.mxu0 0.0
  %213 = vmatprep.subr.mxu0 0.0
  %214 = vmatpush1.xpose.msra.mxu0 0.0
  %215 = vmatprep.subr.mxu0 0.0
  %216 = vmatpush1.xpose.msra.mxu0 0.0
  %217 = vmatprep.mubr.f32.mxu0 0.0
  %218 = vmatmul.mubr.f32.gmra.mrb[0].mxu0 %v149
  %v219 = vpop.f32.mrb[0].mxu0
  %v220 = vadd.f32 %v31, %v219
  %v221 = vpop.f32.mrb[0].mxu0
  %222 = vdwg.mxu0
  %224 = vrot.lane.b32.xlu0 %v142, 96
  %v225 = vpop.permute.xlu0 %224
  %v226 = vsel %vm148, %v142, 0
  %v228 = vsel %vm148, %v225, 0
  %230 = vmatprep.subr.mxu0 0.0
  %231 = vmatpush1.xpose.msra.mxu0 %v228
  %232 = vmatprep.subr.mxu0 0.0
  %233 = vmatpush1.xpose.msra.mxu0 0.0
  %234 = vmatprep.subr.mxu0 0.0
  %235 = vmatpush1.xpose.msra.mxu0 0.0
  %236 = vmatprep.subr.mxu0 0.0
  %237 = vmatpush1.xpose.msra.mxu0 0.0
  %238 = vmatprep.subr.mxu0 0.0
  %239 = vmatpush1.xpose.msra.mxu0 0.0
  %240 = vmatprep.subr.mxu0 0.0
  %241 = vmatpush1.xpose.msra.mxu0 0.0
  %242 = vmatprep.subr.mxu0 0.0
  %243 = vmatpush1.xpose.msra.mxu0 0.0
  %244 = vmatprep.subr.mxu0 0.0
  %245 = vmatpush1.xpose.msra.mxu0 0.0
  %246 = vmatprep.subr.mxu0 0.0
  %247 = vmatpush1.xpose.msra.mxu0 0.0
  %248 = vmatprep.subr.mxu0 0.0
  %249 = vmatpush1.xpose.msra.mxu0 0.0
  %250 = vmatprep.subr.mxu0 0.0
  %251 = vmatpush1.xpose.msra.mxu0 0.0
  %252 = vmatprep.subr.mxu0 0.0
  %253 = vmatpush1.xpose.msra.mxu0 0.0
  %254 = vmatprep.subr.mxu0 0.0
  %255 = vmatpush1.xpose.msra.mxu0 0.0
  %256 = vmatprep.subr.mxu0 0.0
  %257 = vmatpush1.xpose.msra.mxu0 0.0
  %258 = vmatprep.subr.mxu0 0.0
  %259 = vmatpush1.xpose.msra.mxu0 0.0
  %260 = vmatprep.subr.mxu0 0.0
  %261 = vmatpush1.xpose.msra.mxu0 0.0
  %262 = vmatprep.subr.mxu0 0.0
  %263 = vmatpush1.xpose.msra.mxu0 0.0
  %264 = vmatprep.subr.mxu0 0.0
  %265 = vmatpush1.xpose.msra.mxu0 0.0
  %266 = vmatprep.subr.mxu0 0.0
  %267 = vmatpush1.xpose.msra.mxu0 0.0
  %268 = vmatprep.subr.mxu0 0.0
  %269 = vmatpush1.xpose.msra.mxu0 0.0
  %270 = vmatprep.subr.mxu0 0.0
  %271 = vmatpush1.xpose.msra.mxu0 0.0
  %272 = vmatprep.subr.mxu0 0.0
  %273 = vmatpush1.xpose.msra.mxu0 0.0
  %274 = vmatprep.subr.mxu0 0.0
  %275 = vmatpush1.xpose.msra.mxu0 0.0
  %276 = vmatprep.subr.mxu0 0.0
  %277 = vmatpush1.xpose.msra.mxu0 0.0
  %278 = vmatprep.subr.mxu0 0.0
  %279 = vmatpush1.xpose.msra.mxu0 0.0
  %280 = vmatprep.subr.mxu0 0.0
  %281 = vmatpush1.xpose.msra.mxu0 0.0
  %282 = vmatprep.subr.mxu0 0.0
  %283 = vmatpush1.xpose.msra.mxu0 0.0
  %284 = vmatprep.subr.mxu0 0.0
  %285 = vmatpush1.xpose.msra.mxu0 0.0
  %286 = vmatprep.subr.mxu0 0.0
  %287 = vmatpush1.xpose.msra.mxu0 0.0
  %288 = vmatprep.subr.mxu0 0.0
  %289 = vmatpush1.xpose.msra.mxu0 0.0
  %290 = vmatprep.subr.mxu0 0.0
  %291 = vmatpush1.xpose.msra.mxu0 0.0
  %292 = vmatprep.subr.mxu0 0.0
  %293 = vmatpush1.xpose.msra.mxu0 0.0
  %294 = vmatprep.mubr.f32.mxu0 0.0
  %295 = vmatmul.mubr.f32.gmra.mrb[0].mxu0 %v226
  %v296 = vpop.f32.mrb[0].mxu0
  %v297 = vadd.f32 %v33, %v296
  %v298 = vpop.f32.mrb[0].mxu0
  %299 = vdwg.mxu0
  %vm300 = vcmask 64512
  %v301 = vsel %vm300, %v220, -inf
  %302 = vmax.xlane.f32.xlu0 %v301
  %v303 = vpop.xlane.xlu0 %302
  %v304 = vsel %vm300, %v297, -inf
  %305 = vmax.xlane.f32.xlu0 %v304
  %v306 = vpop.xlane.xlu0 %305
  %v307 = vsub.f32 %v220, %v303
  %v308 = vsub.f32 %v297, %v306
  %v309 = vmul.f32 %v307, 1.442695
  %v310 = vpow.pop %v309
  %v311 = vmul.f32 %v308, 1.442695
  %v312 = vpow.pop %v311
  %v313 = vsel %vm300, %v310, 0.0
  %314 = vadd.xlane.f32.xlu0 %v313
  %v315 = vpop.xlane.xlu0 %314
  %v316 = vsel %vm300, %v312, 0.0
  %317 = vadd.xlane.f32.xlu0 %v316
  %v318 = vpop.xlane.xlu0 %317
  %v319 = vrcp.pop %v315
  %v320 = vmul.f32 %v310, %v319
  %v321 = vrcp.pop %v318
  %v322 = vmul.f32 %v312, %v321
  %323 = vrot.lane.b32.xlu0 %v137, 64
  %v324 = vpop.permute.xlu0 %323
  %v327 = vsel %vm300, %v320, 0
  %329 = vmatprep.subr.mxu0 0.0
  %330 = vmatpush1.msra.mxu0 %v324
  %331 = vmatprep.subr.mxu0 0.0
  %332 = vmatpush1.msra.mxu0 0.0
  %333 = vmatprep.subr.mxu0 0.0
  %334 = vmatpush1.msra.mxu0 0.0
  %335 = vmatprep.subr.mxu0 0.0
  %336 = vmatpush1.msra.mxu0 0.0
  %337 = vmatprep.subr.mxu0 0.0
  %338 = vmatpush1.msra.mxu0 0.0
  %339 = vmatprep.subr.mxu0 0.0
  %340 = vmatpush1.msra.mxu0 0.0
  %341 = vmatprep.subr.mxu0 0.0
  %342 = vmatpush1.msra.mxu0 0.0
  %343 = vmatprep.subr.mxu0 0.0
  %344 = vmatpush1.msra.mxu0 0.0
  %345 = vmatprep.subr.mxu0 0.0
  %346 = vmatpush1.msra.mxu0 0.0
  %347 = vmatprep.subr.mxu0 0.0
  %348 = vmatpush1.msra.mxu0 0.0
  %349 = vmatprep.subr.mxu0 0.0
  %350 = vmatpush1.msra.mxu0 0.0
  %351 = vmatprep.subr.mxu0 0.0
  %352 = vmatpush1.msra.mxu0 0.0
  %353 = vmatprep.subr.mxu0 0.0
  %354 = vmatpush1.msra.mxu0 0.0
  %355 = vmatprep.subr.mxu0 0.0
  %356 = vmatpush1.msra.mxu0 0.0
  %357 = vmatprep.subr.mxu0 0.0
  %358 = vmatpush1.msra.mxu0 0.0
  %359 = vmatprep.subr.mxu0 0.0
  %360 = vmatpush1.msra.mxu0 0.0
  %361 = vmatprep.subr.mxu0 0.0
  %362 = vmatpush1.msra.mxu0 0.0
  %363 = vmatprep.subr.mxu0 0.0
  %364 = vmatpush1.msra.mxu0 0.0
  %365 = vmatprep.subr.mxu0 0.0
  %366 = vmatpush1.msra.mxu0 0.0
  %367 = vmatprep.subr.mxu0 0.0
  %368 = vmatpush1.msra.mxu0 0.0
  %369 = vmatprep.subr.mxu0 0.0
  %370 = vmatpush1.msra.mxu0 0.0
  %371 = vmatprep.subr.mxu0 0.0
  %372 = vmatpush1.msra.mxu0 0.0
  %373 = vmatprep.subr.mxu0 0.0
  %374 = vmatpush1.msra.mxu0 0.0
  %375 = vmatprep.subr.mxu0 0.0
  %376 = vmatpush1.msra.mxu0 0.0
  %377 = vmatprep.subr.mxu0 0.0
  %378 = vmatpush1.msra.mxu0 0.0
  %379 = vmatprep.subr.mxu0 0.0
  %380 = vmatpush1.msra.mxu0 0.0
  %381 = vmatprep.subr.mxu0 0.0
  %382 = vmatpush1.msra.mxu0 0.0
  %383 = vmatprep.subr.mxu0 0.0
  %384 = vmatpush1.msra.mxu0 0.0
  %385 = vmatprep.subr.mxu0 0.0
  %386 = vmatpush1.msra.mxu0 0.0
  %387 = vmatprep.subr.mxu0 0.0
  %388 = vmatpush1.msra.mxu0 0.0
  %389 = vmatprep.subr.mxu0 0.0
  %390 = vmatpush1.msra.mxu0 0.0
  %391 = vmatprep.subr.mxu0 0.0
  %392 = vmatpush1.msra.mxu0 0.0
  %393 = vmatprep.mubr.f32.mxu0 0.0
  %394 = vmatmul.mubr.f32.gmra.mrb[0].mxu0 %v327
  %v395 = vpop.f32.mrb[0].mxu0
  %v396 = vadd.f32 0.0, %v395
  %v397 = vpop.f32.mrb[0].mxu0
  %398 = vdwg.mxu0
  %399 = vrot.lane.b32.xlu0 %v142, 64
  %v400 = vpop.permute.xlu0 %399
  %v403 = vsel %vm300, %v322, 0
  %405 = vmatprep.subr.mxu0 0.0
  %406 = vmatpush1.msra.mxu0 %v400
  %407 = vmatprep.subr.mxu0 0.0
  %408 = vmatpush1.msra.mxu0 0.0
  %409 = vmatprep.subr.mxu0 0.0
  %410 = vmatpush1.msra.mxu0 0.0
  %411 = vmatprep.subr.mxu0 0.0
  %412 = vmatpush1.msra.mxu0 0.0
  %413 = vmatprep.subr.mxu0 0.0
  %414 = vmatpush1.msra.mxu0 0.0
  %415 = vmatprep.subr.mxu0 0.0
  %416 = vmatpush1.msra.mxu0 0.0
  %417 = vmatprep.subr.mxu0 0.0
  %418 = vmatpush1.msra.mxu0 0.0
  %419 = vmatprep.subr.mxu0 0.0
  %420 = vmatpush1.msra.mxu0 0.0
  %421 = vmatprep.subr.mxu0 0.0
  %422 = vmatpush1.msra.mxu0 0.0
  %423 = vmatprep.subr.mxu0 0.0
  %424 = vmatpush1.msra.mxu0 0.0
  %425 = vmatprep.subr.mxu0 0.0
  %426 = vmatpush1.msra.mxu0 0.0
  %427 = vmatprep.subr.mxu0 0.0
  %428 = vmatpush1.msra.mxu0 0.0
  %429 = vmatprep.subr.mxu0 0.0
  %430 = vmatpush1.msra.mxu0 0.0
  %431 = vmatprep.subr.mxu0 0.0
  %432 = vmatpush1.msra.mxu0 0.0
  %433 = vmatprep.subr.mxu0 0.0
  %434 = vmatpush1.msra.mxu0 0.0
  %435 = vmatprep.subr.mxu0 0.0
  %436 = vmatpush1.msra.mxu0 0.0
  %437 = vmatprep.subr.mxu0 0.0
  %438 = vmatpush1.msra.mxu0 0.0
  %439 = vmatprep.subr.mxu0 0.0
  %440 = vmatpush1.msra.mxu0 0.0
  %441 = vmatprep.subr.mxu0 0.0
  %442 = vmatpush1.msra.mxu0 0.0
  %443 = vmatprep.subr.mxu0 0.0
  %444 = vmatpush1.msra.mxu0 0.0
  %445 = vmatprep.subr.mxu0 0.0
  %446 = vmatpush1.msra.mxu0 0.0
  %447 = vmatprep.subr.mxu0 0.0
  %448 = vmatpush1.msra.mxu0 0.0
  %449 = vmatprep.subr.mxu0 0.0
  %450 = vmatpush1.msra.mxu0 0.0
  %451 = vmatprep.subr.mxu0 0.0
  %452 = vmatpush1.msra.mxu0 0.0
  %453 = vmatprep.subr.mxu0 0.0
  %454 = vmatpush1.msra.mxu0 0.0
  %455 = vmatprep.subr.mxu0 0.0
  %456 = vmatpush1.msra.mxu0 0.0
  %457 = vmatprep.subr.mxu0 0.0
  %458 = vmatpush1.msra.mxu0 0.0
  %459 = vmatprep.subr.mxu0 0.0
  %460 = vmatpush1.msra.mxu0 0.0
  %461 = vmatprep.subr.mxu0 0.0
  %462 = vmatpush1.msra.mxu0 0.0
  %463 = vmatprep.subr.mxu0 0.0
  %464 = vmatpush1.msra.mxu0 0.0
  %465 = vmatprep.subr.mxu0 0.0
  %466 = vmatpush1.msra.mxu0 0.0
  %467 = vmatprep.subr.mxu0 0.0
  %468 = vmatpush1.msra.mxu0 0.0
  %469 = vmatprep.mubr.f32.mxu0 0.0
  %470 = vmatmul.mubr.f32.gmra.mrb[0].mxu0 %v403
  %v471 = vpop.f32.mrb[0].mxu0
  %v472 = vadd.f32 0.0, %v471
  %v473 = vpop.f32.mrb[0].mxu0
  %474 = vdwg.mxu0
  %475 = vrot.lane.b32.xlu0 %v137, 112
  %v476 = vpop.permute.xlu0 %475
  %477 = vrot.lane.b32.xlu0 %v137, 80
  %v478 = vpop.permute.xlu0 %477
  %v479 = vsel %vm148, %v476, 0
  %v481 = vsel %vm148, %v478, 0
  %483 = vmatprep.subr.mxu0 0.0
  %484 = vmatpush1.xpose.msra.mxu0 %v481
  %485 = vmatprep.subr.mxu0 0.0
  %486 = vmatpush1.xpose.msra.mxu0 0.0
  %487 = vmatprep.subr.mxu0 0.0
  %488 = vmatpush1.xpose.msra.mxu0 0.0
  %489 = vmatprep.subr.mxu0 0.0
  %490 = vmatpush1.xpose.msra.mxu0 0.0
  %491 = vmatprep.subr.mxu0 0.0
  %492 = vmatpush1.xpose.msra.mxu0 0.0
  %493 = vmatprep.subr.mxu0 0.0
  %494 = vmatpush1.xpose.msra.mxu0 0.0
  %495 = vmatprep.subr.mxu0 0.0
  %496 = vmatpush1.xpose.msra.mxu0 0.0
  %497 = vmatprep.subr.mxu0 0.0
  %498 = vmatpush1.xpose.msra.mxu0 0.0
  %499 = vmatprep.subr.mxu0 0.0
  %500 = vmatpush1.xpose.msra.mxu0 0.0
  %501 = vmatprep.subr.mxu0 0.0
  %502 = vmatpush1.xpose.msra.mxu0 0.0
  %503 = vmatprep.subr.mxu0 0.0
  %504 = vmatpush1.xpose.msra.mxu0 0.0
  %505 = vmatprep.subr.mxu0 0.0
  %506 = vmatpush1.xpose.msra.mxu0 0.0
  %507 = vmatprep.subr.mxu0 0.0
  %508 = vmatpush1.xpose.msra.mxu0 0.0
  %509 = vmatprep.subr.mxu0 0.0
  %510 = vmatpush1.xpose.msra.mxu0 0.0
  %511 = vmatprep.subr.mxu0 0.0
  %512 = vmatpush1.xpose.msra.mxu0 0.0
  %513 = vmatprep.subr.mxu0 0.0
  %514 = vmatpush1.xpose.msra.mxu0 0.0
  %515 = vmatprep.subr.mxu0 0.0
  %516 = vmatpush1.xpose.msra.mxu0 0.0
  %517 = vmatprep.subr.mxu0 0.0
  %518 = vmatpush1.xpose.msra.mxu0 0.0
  %519 = vmatprep.subr.mxu0 0.0
  %520 = vmatpush1.xpose.msra.mxu0 0.0
  %521 = vmatprep.subr.mxu0 0.0
  %522 = vmatpush1.xpose.msra.mxu0 0.0
  %523 = vmatprep.subr.mxu0 0.0
  %524 = vmatpush1.xpose.msra.mxu0 0.0
  %525 = vmatprep.subr.mxu0 0.0
  %526 = vmatpush1.xpose.msra.mxu0 0.0
  %527 = vmatprep.subr.mxu0 0.0
  %528 = vmatpush1.xpose.msra.mxu0 0.0
  %529 = vmatprep.subr.mxu0 0.0
  %530 = vmatpush1.xpose.msra.mxu0 0.0
  %531 = vmatprep.subr.mxu0 0.0
  %532 = vmatpush1.xpose.msra.mxu0 0.0
  %533 = vmatprep.subr.mxu0 0.0
  %534 = vmatpush1.xpose.msra.mxu0 0.0
  %535 = vmatprep.subr.mxu0 0.0
  %536 = vmatpush1.xpose.msra.mxu0 0.0
  %537 = vmatprep.subr.mxu0 0.0
  %538 = vmatpush1.xpose.msra.mxu0 0.0
  %539 = vmatprep.subr.mxu0 0.0
  %540 = vmatpush1.xpose.msra.mxu0 0.0
  %541 = vmatprep.subr.mxu0 0.0
  %542 = vmatpush1.xpose.msra.mxu0 0.0
  %543 = vmatprep.subr.mxu0 0.0
  %544 = vmatpush1.xpose.msra.mxu0 0.0
  %545 = vmatprep.subr.mxu0 0.0
  %546 = vmatpush1.xpose.msra.mxu0 0.0
  %547 = vmatprep.mubr.f32.mxu0 0.0
  %548 = vmatmul.mubr.f32.gmra.mrb[0].mxu0 %v479
  %v549 = vpop.f32.mrb[0].mxu0
  %v550 = vadd.f32 %v32, %v549
  %v551 = vpop.f32.mrb[0].mxu0
  %552 = vdwg.mxu0
  %553 = vrot.lane.b32.xlu0 %v142, 112
  %v554 = vpop.permute.xlu0 %553
  %555 = vrot.lane.b32.xlu0 %v142, 80
  %v556 = vpop.permute.xlu0 %555
  %v557 = vsel %vm148, %v554, 0
  %v559 = vsel %vm148, %v556, 0
  %561 = vmatprep.subr.mxu0 0.0
  %562 = vmatpush1.xpose.msra.mxu0 %v559
  %563 = vmatprep.subr.mxu0 0.0
  %564 = vmatpush1.xpose.msra.mxu0 0.0
  %565 = vmatprep.subr.mxu0 0.0
  %566 = vmatpush1.xpose.msra.mxu0 0.0
  %567 = vmatprep.subr.mxu0 0.0
  %568 = vmatpush1.xpose.msra.mxu0 0.0
  %569 = vmatprep.subr.mxu0 0.0
  %570 = vmatpush1.xpose.msra.mxu0 0.0
  %571 = vmatprep.subr.mxu0 0.0
  %572 = vmatpush1.xpose.msra.mxu0 0.0
  %573 = vmatprep.subr.mxu0 0.0
  %574 = vmatpush1.xpose.msra.mxu0 0.0
  %575 = vmatprep.subr.mxu0 0.0
  %576 = vmatpush1.xpose.msra.mxu0 0.0
  %577 = vmatprep.subr.mxu0 0.0
  %578 = vmatpush1.xpose.msra.mxu0 0.0
  %579 = vmatprep.subr.mxu0 0.0
  %580 = vmatpush1.xpose.msra.mxu0 0.0
  %581 = vmatprep.subr.mxu0 0.0
  %582 = vmatpush1.xpose.msra.mxu0 0.0
  %583 = vmatprep.subr.mxu0 0.0
  %584 = vmatpush1.xpose.msra.mxu0 0.0
  %585 = vmatprep.subr.mxu0 0.0
  %586 = vmatpush1.xpose.msra.mxu0 0.0
  %587 = vmatprep.subr.mxu0 0.0
  %588 = vmatpush1.xpose.msra.mxu0 0.0
  %589 = vmatprep.subr.mxu0 0.0
  %590 = vmatpush1.xpose.msra.mxu0 0.0
  %591 = vmatprep.subr.mxu0 0.0
  %592 = vmatpush1.xpose.msra.mxu0 0.0
  %593 = vmatprep.subr.mxu0 0.0
  %594 = vmatpush1.xpose.msra.mxu0 0.0
  %595 = vmatprep.subr.mxu0 0.0
  %596 = vmatpush1.xpose.msra.mxu0 0.0
  %597 = vmatprep.subr.mxu0 0.0
  %598 = vmatpush1.xpose.msra.mxu0 0.0
  %599 = vmatprep.subr.mxu0 0.0
  %600 = vmatpush1.xpose.msra.mxu0 0.0
  %601 = vmatprep.subr.mxu0 0.0
  %602 = vmatpush1.xpose.msra.mxu0 0.0
  %603 = vmatprep.subr.mxu0 0.0
  %604 = vmatpush1.xpose.msra.mxu0 0.0
  %605 = vmatprep.subr.mxu0 0.0
  %606 = vmatpush1.xpose.msra.mxu0 0.0
  %607 = vmatprep.subr.mxu0 0.0
  %608 = vmatpush1.xpose.msra.mxu0 0.0
  %609 = vmatprep.subr.mxu0 0.0
  %610 = vmatpush1.xpose.msra.mxu0 0.0
  %611 = vmatprep.subr.mxu0 0.0
  %612 = vmatpush1.xpose.msra.mxu0 0.0
  %613 = vmatprep.subr.mxu0 0.0
  %614 = vmatpush1.xpose.msra.mxu0 0.0
  %615 = vmatprep.subr.mxu0 0.0
  %616 = vmatpush1.xpose.msra.mxu0 0.0
  %617 = vmatprep.subr.mxu0 0.0
  %618 = vmatpush1.xpose.msra.mxu0 0.0
  %619 = vmatprep.subr.mxu0 0.0
  %620 = vmatpush1.xpose.msra.mxu0 0.0
  %621 = vmatprep.subr.mxu0 0.0
  %622 = vmatpush1.xpose.msra.mxu0 0.0
  %623 = vmatprep.subr.mxu0 0.0
  %624 = vmatpush1.xpose.msra.mxu0 0.0
  %625 = vmatprep.mubr.f32.mxu0 0.0
  %626 = vmatmul.mubr.f32.gmra.mrb[0].mxu0 %v557
  %v627 = vpop.f32.mrb[0].mxu0
  %v628 = vadd.f32 %v34, %v627
  %v629 = vpop.f32.mrb[0].mxu0
  %630 = vdwg.mxu0
  %v631 = vsel %vm300, %v550, -inf
  %632 = vmax.xlane.f32.xlu0 %v631
  %v633 = vpop.xlane.xlu0 %632
  %v634 = vsel %vm300, %v628, -inf
  %635 = vmax.xlane.f32.xlu0 %v634
  %v636 = vpop.xlane.xlu0 %635
  %v637 = vsub.f32 %v550, %v633
  %v638 = vsub.f32 %v628, %v636
  %v639 = vmul.f32 %v637, 1.442695
  %v640 = vpow.pop %v639
  %v641 = vmul.f32 %v638, 1.442695
  %v642 = vpow.pop %v641
  %v643 = vsel %vm300, %v640, 0.0
  %644 = vadd.xlane.f32.xlu0 %v643
  %v645 = vpop.xlane.xlu0 %644
  %v646 = vsel %vm300, %v642, 0.0
  %647 = vadd.xlane.f32.xlu0 %v646
  %v648 = vpop.xlane.xlu0 %647
  %v649 = vrcp.pop %v645
  %v650 = vmul.f32 %v640, %v649
  %v651 = vrcp.pop %v648
  %v652 = vmul.f32 %v642, %v651
  %653 = vrot.lane.b32.xlu0 %v137, 48
  %v654 = vpop.permute.xlu0 %653
  %v657 = vsel %vm300, %v650, 0
  %659 = vmatprep.subr.mxu0 0.0
  %660 = vmatpush1.msra.mxu0 %v654
  %661 = vmatprep.subr.mxu0 0.0
  %662 = vmatpush1.msra.mxu0 0.0
  %663 = vmatprep.subr.mxu0 0.0
  %664 = vmatpush1.msra.mxu0 0.0
  %665 = vmatprep.subr.mxu0 0.0
  %666 = vmatpush1.msra.mxu0 0.0
  %667 = vmatprep.subr.mxu0 0.0
  %668 = vmatpush1.msra.mxu0 0.0
  %669 = vmatprep.subr.mxu0 0.0
  %670 = vmatpush1.msra.mxu0 0.0
  %671 = vmatprep.subr.mxu0 0.0
  %672 = vmatpush1.msra.mxu0 0.0
  %673 = vmatprep.subr.mxu0 0.0
  %674 = vmatpush1.msra.mxu0 0.0
  %675 = vmatprep.subr.mxu0 0.0
  %676 = vmatpush1.msra.mxu0 0.0
  %677 = vmatprep.subr.mxu0 0.0
  %678 = vmatpush1.msra.mxu0 0.0
  %679 = vmatprep.subr.mxu0 0.0
  %680 = vmatpush1.msra.mxu0 0.0
  %681 = vmatprep.subr.mxu0 0.0
  %682 = vmatpush1.msra.mxu0 0.0
  %683 = vmatprep.subr.mxu0 0.0
  %684 = vmatpush1.msra.mxu0 0.0
  %685 = vmatprep.subr.mxu0 0.0
  %686 = vmatpush1.msra.mxu0 0.0
  %687 = vmatprep.subr.mxu0 0.0
  %688 = vmatpush1.msra.mxu0 0.0
  %689 = vmatprep.subr.mxu0 0.0
  %690 = vmatpush1.msra.mxu0 0.0
  %691 = vmatprep.subr.mxu0 0.0
  %692 = vmatpush1.msra.mxu0 0.0
  %693 = vmatprep.subr.mxu0 0.0
  %694 = vmatpush1.msra.mxu0 0.0
  %695 = vmatprep.subr.mxu0 0.0
  %696 = vmatpush1.msra.mxu0 0.0
  %697 = vmatprep.subr.mxu0 0.0
  %698 = vmatpush1.msra.mxu0 0.0
  %699 = vmatprep.subr.mxu0 0.0
  %700 = vmatpush1.msra.mxu0 0.0
  %701 = vmatprep.subr.mxu0 0.0
  %702 = vmatpush1.msra.mxu0 0.0
  %703 = vmatprep.subr.mxu0 0.0
  %704 = vmatpush1.msra.mxu0 0.0
  %705 = vmatprep.subr.mxu0 0.0
  %706 = vmatpush1.msra.mxu0 0.0
  %707 = vmatprep.subr.mxu0 0.0
  %708 = vmatpush1.msra.mxu0 0.0
  %709 = vmatprep.subr.mxu0 0.0
  %710 = vmatpush1.msra.mxu0 0.0
  %711 = vmatprep.subr.mxu0 0.0
  %712 = vmatpush1.msra.mxu0 0.0
  %713 = vmatprep.subr.mxu0 0.0
  %714 = vmatpush1.msra.mxu0 0.0
  %715 = vmatprep.subr.mxu0 0.0
  %716 = vmatpush1.msra.mxu0 0.0
  %717 = vmatprep.subr.mxu0 0.0
  %718 = vmatpush1.msra.mxu0 0.0
  %719 = vmatprep.subr.mxu0 0.0
  %720 = vmatpush1.msra.mxu0 0.0
  %721 = vmatprep.subr.mxu0 0.0
  %722 = vmatpush1.msra.mxu0 0.0
  %723 = vmatprep.mubr.f32.mxu0 0.0
  %724 = vmatmul.mubr.f32.gmra.mrb[0].mxu0 %v657
  %v725 = vpop.f32.mrb[0].mxu0
  %v726 = vadd.f32 0.0, %v725
  %v727 = vpop.f32.mrb[0].mxu0
  %728 = vdwg.mxu0
  %729 = vrot.lane.b32.xlu0 %v142, 48
  %v730 = vpop.permute.xlu0 %729
  %v733 = vsel %vm300, %v652, 0
  %735 = vmatprep.subr.mxu0 0.0
  %736 = vmatpush1.msra.mxu0 %v730
  %737 = vmatprep.subr.mxu0 0.0
  %738 = vmatpush1.msra.mxu0 0.0
  %739 = vmatprep.subr.mxu0 0.0
  %740 = vmatpush1.msra.mxu0 0.0
  %741 = vmatprep.subr.mxu0 0.0
  %742 = vmatpush1.msra.mxu0 0.0
  %743 = vmatprep.subr.mxu0 0.0
  %744 = vmatpush1.msra.mxu0 0.0
  %745 = vmatprep.subr.mxu0 0.0
  %746 = vmatpush1.msra.mxu0 0.0
  %747 = vmatprep.subr.mxu0 0.0
  %748 = vmatpush1.msra.mxu0 0.0
  %749 = vmatprep.subr.mxu0 0.0
  %750 = vmatpush1.msra.mxu0 0.0
  %751 = vmatprep.subr.mxu0 0.0
  %752 = vmatpush1.msra.mxu0 0.0
  %753 = vmatprep.subr.mxu0 0.0
  %754 = vmatpush1.msra.mxu0 0.0
  %755 = vmatprep.subr.mxu0 0.0
  %756 = vmatpush1.msra.mxu0 0.0
  %757 = vmatprep.subr.mxu0 0.0
  %758 = vmatpush1.msra.mxu0 0.0
  %759 = vmatprep.subr.mxu0 0.0
  %760 = vmatpush1.msra.mxu0 0.0
  %761 = vmatprep.subr.mxu0 0.0
  %762 = vmatpush1.msra.mxu0 0.0
  %763 = vmatprep.subr.mxu0 0.0
  %764 = vmatpush1.msra.mxu0 0.0
  %765 = vmatprep.subr.mxu0 0.0
  %766 = vmatpush1.msra.mxu0 0.0
  %767 = vmatprep.subr.mxu0 0.0
  %768 = vmatpush1.msra.mxu0 0.0
  %769 = vmatprep.subr.mxu0 0.0
  %770 = vmatpush1.msra.mxu0 0.0
  %771 = vmatprep.subr.mxu0 0.0
  %772 = vmatpush1.msra.mxu0 0.0
  %773 = vmatprep.subr.mxu0 0.0
  %774 = vmatpush1.msra.mxu0 0.0
  %775 = vmatprep.subr.mxu0 0.0
  %776 = vmatpush1.msra.mxu0 0.0
  %777 = vmatprep.subr.mxu0 0.0
  %778 = vmatpush1.msra.mxu0 0.0
  %779 = vmatprep.subr.mxu0 0.0
  %780 = vmatpush1.msra.mxu0 0.0
  %781 = vmatprep.subr.mxu0 0.0
  %782 = vmatpush1.msra.mxu0 0.0
  %783 = vmatprep.subr.mxu0 0.0
  %784 = vmatpush1.msra.mxu0 0.0
  %785 = vmatprep.subr.mxu0 0.0
  %786 = vmatpush1.msra.mxu0 0.0
  %787 = vmatprep.subr.mxu0 0.0
  %788 = vmatpush1.msra.mxu0 0.0
  %789 = vmatprep.subr.mxu0 0.0
  %790 = vmatpush1.msra.mxu0 0.0
  %791 = vmatprep.subr.mxu0 0.0
  %792 = vmatpush1.msra.mxu0 0.0
  %793 = vmatprep.subr.mxu0 0.0
  %794 = vmatpush1.msra.mxu0 0.0
  %795 = vmatprep.subr.mxu0 0.0
  %796 = vmatpush1.msra.mxu0 0.0
  %797 = vmatprep.subr.mxu0 0.0
  %798 = vmatpush1.msra.mxu0 0.0
  %799 = vmatprep.mubr.f32.mxu0 0.0
  %800 = vmatmul.mubr.f32.gmra.mrb[0].mxu0 %v733
  %v801 = vpop.f32.mrb[0].mxu0
  %v802 = vadd.f32 0.0, %v801
  %v803 = vpop.f32.mrb[0].mxu0
  %804 = vdwg.mxu0
  %807 = vrot.lane.b32.xlu0 %v726, 16
  %v808 = vpop.permute.xlu0 %807
  %809 = vrot.lane.b32.xlu0 %v802, 16
  %v810 = vpop.permute.xlu0 %809
  %v813 = vsel %vm148, %v396, %v808
  %v814 = vsel %vm148, %v472, %v810
  %v815 = vld [vmem:[%s4] sm:$0xff]
  %v816 = vld [vmem:[%s4 + $0x8] sm:$0xff]
  %v817 = vld [vmem:[%s4 + $0x10] sm:$0xff]
  %v818 = vld [vmem:[%s4 + $0x18] sm:$0xff]
  %v820 = vsel %vm38, %v813, 0
  %v823 = vsel %vm38, %v814, 0
  %825 = vmatprep.subr.mxu0 0.0
  %826 = vmatpush1.msra.mxu0 %v815
  %827 = vmatprep.subr.mxu0 0.0
  %828 = vmatpush1.msra.mxu0 %v816
  %829 = vmatprep.subr.mxu0 0.0
  %830 = vmatpush1.msra.mxu0 %v817
  %831 = vmatprep.subr.mxu0 0.0
  %832 = vmatpush1.msra.mxu0 %v818
  %833 = vmatprep.subr.mxu0 0.0
  %834 = vmatpush1.msra.mxu0 0.0
  %835 = vmatprep.subr.mxu0 0.0
  %836 = vmatpush1.msra.mxu0 0.0
  %837 = vmatprep.subr.mxu0 0.0
  %838 = vmatpush1.msra.mxu0 0.0
  %839 = vmatprep.subr.mxu0 0.0
  %840 = vmatpush1.msra.mxu0 0.0
  %841 = vmatprep.subr.mxu0 0.0
  %842 = vmatpush1.msra.mxu0 0.0
  %843 = vmatprep.subr.mxu0 0.0
  %844 = vmatpush1.msra.mxu0 0.0
  %845 = vmatprep.subr.mxu0 0.0
  %846 = vmatpush1.msra.mxu0 0.0
  %847 = vmatprep.subr.mxu0 0.0
  %848 = vmatpush1.msra.mxu0 0.0
  %849 = vmatprep.subr.mxu0 0.0
  %850 = vmatpush1.msra.mxu0 0.0
  %851 = vmatprep.subr.mxu0 0.0
  %852 = vmatpush1.msra.mxu0 0.0
  %853 = vmatprep.subr.mxu0 0.0
  %854 = vmatpush1.msra.mxu0 0.0
  %855 = vmatprep.subr.mxu0 0.0
  %856 = vmatpush1.msra.mxu0 0.0
  %857 = vmatprep.subr.mxu0 0.0
  %858 = vmatpush1.msra.mxu0 0.0
  %859 = vmatprep.subr.mxu0 0.0
  %860 = vmatpush1.msra.mxu0 0.0
  %861 = vmatprep.subr.mxu0 0.0
  %862 = vmatpush1.msra.mxu0 0.0
  %863 = vmatprep.subr.mxu0 0.0
  %864 = vmatpush1.msra.mxu0 0.0
  %865 = vmatprep.subr.mxu0 0.0
  %866 = vmatpush1.msra.mxu0 0.0
  %867 = vmatprep.subr.mxu0 0.0
  %868 = vmatpush1.msra.mxu0 0.0
  %869 = vmatprep.subr.mxu0 0.0
  %870 = vmatpush1.msra.mxu0 0.0
  %871 = vmatprep.subr.mxu0 0.0
  %872 = vmatpush1.msra.mxu0 0.0
  %873 = vmatprep.subr.mxu0 0.0
  %874 = vmatpush1.msra.mxu0 0.0
  %875 = vmatprep.subr.mxu0 0.0
  %876 = vmatpush1.msra.mxu0 0.0
  %877 = vmatprep.subr.mxu0 0.0
  %878 = vmatpush1.msra.mxu0 0.0
  %879 = vmatprep.subr.mxu0 0.0
  %880 = vmatpush1.msra.mxu0 0.0
  %881 = vmatprep.subr.mxu0 0.0
  %882 = vmatpush1.msra.mxu0 0.0
  %883 = vmatprep.subr.mxu0 0.0
  %884 = vmatpush1.msra.mxu0 0.0
  %885 = vmatprep.subr.mxu0 0.0
  %886 = vmatpush1.msra.mxu0 0.0
  %887 = vmatprep.subr.mxu0 0.0
  %888 = vmatpush1.msra.mxu0 0.0
  %889 = vmatprep.mubr.f32.mxu0 0.0
  %890 = vmatmul.mubr.f32.gmra.mrb[0].mxu0 %v820
  %v891 = vpop.f32.mrb[0].mxu0
  %v892 = vadd.f32 0.0, %v891
  %v893 = vpop.f32.mrb[0].mxu0
  %894 = vmatprep.mubr.f32.mxu0 0.0
  %895 = vmatmul.mubr.f32.gmra.mrb[0].mxu0 %v823
  %v896 = vpop.f32.mrb[0].mxu0
  %v897 = vadd.f32 0.0, %v896
  %v898 = vpop.f32.mrb[0].mxu0
  %899 = vdwg.mxu0
  %v900 = vadd.f32 %v29, %v892
  %v901 = vadd.f32 %v30, %v897
  %v902 = vld [vmem:[%s2 + $0x1] sm:$0x1]
  %v903 = vmul.f32 %v900, %v900
  %v904 = vmul.f32 %v901, %v901
  %v905 = vsel %vm38, %v903, 0.0
  %906 = vadd.xlane.f32.xlu0 %v905
  %v907 = vpop.xlane.xlu0 %906
  %v908 = vsel %vm38, %v904, 0.0
  %909 = vadd.xlane.f32.xlu0 %v908
  %v910 = vpop.xlane.xlu0 %909
  %v911 = vmul.f32 %v907, %v45
  %v912 = vmul.f32 %v910, %v45
  %v913 = vadd.f32 %v911, 1e-06
  %v914 = vadd.f32 %v912, 1e-06
  %v915 = vrsqrt.pop %v913
  %v916 = vrsqrt.pop %v914
  %v917 = vmul.f32 %v900, %v915
  %v918 = vmul.f32 %v901, %v916
  %v919 = vlaneseq
  %v920 = vshrl.u32 %v919, 7
  %v921 = vsub.s32 0, %v920
  %v922 = vrot.slane %v902, %v921
  %v923 = vmul.f32 %v917, %v922
  %v924 = vmul.f32 %v918, %v922
  %v925 = vld [vmem:[%s5] sm:$0xff]
  %v926 = vld [vmem:[%s5 + $0x8] sm:$0xff]
  %v927 = vld [vmem:[%s5 + $0x10] sm:$0xff]
  %v928 = vld [vmem:[%s5 + $0x18] sm:$0xff]
  %v930 = vsel %vm38, %v923, 0
  %v933 = vsel %vm38, %v924, 0
  %935 = vmatprep.subr.mxu0 0.0
  %936 = vmatpush1.msra.mxu0 %v925
  %937 = vmatprep.subr.mxu0 0.0
  %938 = vmatpush1.msra.mxu0 %v926
  %939 = vmatprep.subr.mxu0 0.0
  %940 = vmatpush1.msra.mxu0 %v927
  %941 = vmatprep.subr.mxu0 0.0
  %942 = vmatpush1.msra.mxu0 %v928
  %943 = vmatprep.subr.mxu0 0.0
  %944 = vmatpush1.msra.mxu0 0.0
  %945 = vmatprep.subr.mxu0 0.0
  %946 = vmatpush1.msra.mxu0 0.0
  %947 = vmatprep.subr.mxu0 0.0
  %948 = vmatpush1.msra.mxu0 0.0
  %949 = vmatprep.subr.mxu0 0.0
  %950 = vmatpush1.msra.mxu0 0.0
  %951 = vmatprep.subr.mxu0 0.0
  %952 = vmatpush1.msra.mxu0 0.0
  %953 = vmatprep.subr.mxu0 0.0
  %954 = vmatpush1.msra.mxu0 0.0
  %955 = vmatprep.subr.mxu0 0.0
  %956 = vmatpush1.msra.mxu0 0.0
  %957 = vmatprep.subr.mxu0 0.0
  %958 = vmatpush1.msra.mxu0 0.0
  %959 = vmatprep.subr.mxu0 0.0
  %960 = vmatpush1.msra.mxu0 0.0
  %961 = vmatprep.subr.mxu0 0.0
  %962 = vmatpush1.msra.mxu0 0.0
  %963 = vmatprep.subr.mxu0 0.0
  %964 = vmatpush1.msra.mxu0 0.0
  %965 = vmatprep.subr.mxu0 0.0
  %966 = vmatpush1.msra.mxu0 0.0
  %967 = vmatprep.subr.mxu0 0.0
  %968 = vmatpush1.msra.mxu0 0.0
  %969 = vmatprep.subr.mxu0 0.0
  %970 = vmatpush1.msra.mxu0 0.0
  %971 = vmatprep.subr.mxu0 0.0
  %972 = vmatpush1.msra.mxu0 0.0
  %973 = vmatprep.subr.mxu0 0.0
  %974 = vmatpush1.msra.mxu0 0.0
  %975 = vmatprep.subr.mxu0 0.0
  %976 = vmatpush1.msra.mxu0 0.0
  %977 = vmatprep.subr.mxu0 0.0
  %978 = vmatpush1.msra.mxu0 0.0
  %979 = vmatprep.subr.mxu0 0.0
  %980 = vmatpush1.msra.mxu0 0.0
  %981 = vmatprep.subr.mxu0 0.0
  %982 = vmatpush1.msra.mxu0 0.0
  %983 = vmatprep.subr.mxu0 0.0
  %984 = vmatpush1.msra.mxu0 0.0
  %985 = vmatprep.subr.mxu0 0.0
  %986 = vmatpush1.msra.mxu0 0.0
  %987 = vmatprep.subr.mxu0 0.0
  %988 = vmatpush1.msra.mxu0 0.0
  %989 = vmatprep.subr.mxu0 0.0
  %990 = vmatpush1.msra.mxu0 0.0
  %991 = vmatprep.subr.mxu0 0.0
  %992 = vmatpush1.msra.mxu0 0.0
  %993 = vmatprep.subr.mxu0 0.0
  %994 = vmatpush1.msra.mxu0 0.0
  %995 = vmatprep.subr.mxu0 0.0
  %996 = vmatpush1.msra.mxu0 0.0
  %997 = vmatprep.subr.mxu0 0.0
  %998 = vmatpush1.msra.mxu0 0.0
  %999 = vmatprep.mubr.f32.mxu0 0.0
  %1000 = vmatmul.mubr.f32.gmra.mrb[0].mxu0 %v930
  %v1001 = vpop.f32.mrb[0].mxu0
  %v1002 = vadd.f32 0.0, %v1001
  %v1003 = vpop.f32.mrb[0].mxu0
  %1004 = vmatprep.mubr.f32.mxu0 0.0
  %1005 = vmatmul.mubr.f32.gmra.mrb[0].mxu0 %v933
  %v1006 = vpop.f32.mrb[0].mxu0
  %v1007 = vadd.f32 0.0, %v1006
  %v1008 = vpop.f32.mrb[0].mxu0
  %1009 = vdwg.mxu0
  %v1010 = vmax.f32 %v1002, 0.0
  %v1011 = vmax.f32 %v1007, 0.0
  %v1012 = vld [vmem:[%s6] sm:$0xff]
  %v1013 = vld [vmem:[%s6 + $0x8] sm:$0xff]
  %v1014 = vld [vmem:[%s6 + $0x10] sm:$0xff]
  %v1015 = vld [vmem:[%s6 + $0x18] sm:$0xff]
  %v1016 = vld [vmem:[%s6 + $0x20] sm:$0xff]
  %v1017 = vld [vmem:[%s6 + $0x28] sm:$0xff]
  %v1018 = vld [vmem:[%s6 + $0x30] sm:$0xff]
  %v1019 = vld [vmem:[%s6 + $0x38] sm:$0xff]
  %vm1020 = vcmask 523264
  %v1022 = vsel %vm1020, %v1010, 0
  %v1025 = vsel %vm1020, %v1011, 0
  %1027 = vmatprep.subr.mxu0 0.0
  %1028 = vmatpush1.msra.mxu0 %v1012
  %1029 = vmatprep.subr.mxu0 0.0
  %1030 = vmatpush1.msra.mxu0 %v1013
  %1031 = vmatprep.subr.mxu0 0.0
  %1032 = vmatpush1.msra.mxu0 %v1014
  %1033 = vmatprep.subr.mxu0 0.0
  %1034 = vmatpush1.msra.mxu0 %v1015
  %1035 = vmatprep.subr.mxu0 0.0
  %1036 = vmatpush1.msra.mxu0 %v1016
  %1037 = vmatprep.subr.mxu0 0.0
  %1038 = vmatpush1.msra.mxu0 %v1017
  %1039 = vmatprep.subr.mxu0 0.0
  %1040 = vmatpush1.msra.mxu0 %v1018
  %1041 = vmatprep.subr.mxu0 0.0
  %1042 = vmatpush1.msra.mxu0 %v1019
  %1043 = vmatprep.subr.mxu0 0.0
  %1044 = vmatpush1.msra.mxu0 0.0
  %1045 = vmatprep.subr.mxu0 0.0
  %1046 = vmatpush1.msra.mxu0 0.0
  %1047 = vmatprep.subr.mxu0 0.0
  %1048 = vmatpush1.msra.mxu0 0.0
  %1049 = vmatprep.subr.mxu0 0.0
  %1050 = vmatpush1.msra.mxu0 0.0
  %1051 = vmatprep.subr.mxu0 0.0
  %1052 = vmatpush1.msra.mxu0 0.0
  %1053 = vmatprep.subr.mxu0 0.0
  %1054 = vmatpush1.msra.mxu0 0.0
  %1055 = vmatprep.subr.mxu0 0.0
  %1056 = vmatpush1.msra.mxu0 0.0
  %1057 = vmatprep.subr.mxu0 0.0
  %1058 = vmatpush1.msra.mxu0 0.0
  %1059 = vmatprep.subr.mxu0 0.0
  %1060 = vmatpush1.msra.mxu0 0.0
  %1061 = vmatprep.subr.mxu0 0.0
  %1062 = vmatpush1.msra.mxu0 0.0
  %1063 = vmatprep.subr.mxu0 0.0
  %1064 = vmatpush1.msra.mxu0 0.0
  %1065 = vmatprep.subr.mxu0 0.0
  %1066 = vmatpush1.msra.mxu0 0.0
  %1067 = vmatprep.subr.mxu0 0.0
  %1068 = vmatpush1.msra.mxu0 0.0
  %1069 = vmatprep.subr.mxu0 0.0
  %1070 = vmatpush1.msra.mxu0 0.0
  %1071 = vmatprep.subr.mxu0 0.0
  %1072 = vmatpush1.msra.mxu0 0.0
  %1073 = vmatprep.subr.mxu0 0.0
  %1074 = vmatpush1.msra.mxu0 0.0
  %1075 = vmatprep.subr.mxu0 0.0
  %1076 = vmatpush1.msra.mxu0 0.0
  %1077 = vmatprep.subr.mxu0 0.0
  %1078 = vmatpush1.msra.mxu0 0.0
  %1079 = vmatprep.subr.mxu0 0.0
  %1080 = vmatpush1.msra.mxu0 0.0
  %1081 = vmatprep.subr.mxu0 0.0
  %1082 = vmatpush1.msra.mxu0 0.0
  %1083 = vmatprep.subr.mxu0 0.0
  %1084 = vmatpush1.msra.mxu0 0.0
  %1085 = vmatprep.subr.mxu0 0.0
  %1086 = vmatpush1.msra.mxu0 0.0
  %1087 = vmatprep.subr.mxu0 0.0
  %1088 = vmatpush1.msra.mxu0 0.0
  %1089 = vmatprep.subr.mxu0 0.0
  %1090 = vmatpush1.msra.mxu0 0.0
  %1091 = vmatprep.mubr.f32.mxu0 0.0
  %1092 = vmatmul.mubr.f32.gmra.mrb[0].mxu0 %v1022
  %v1093 = vpop.f32.mrb[0].mxu0
  %v1094 = vadd.f32 0.0, %v1093
  %v1095 = vpop.f32.mrb[0].mxu0
  %1096 = vmatprep.mubr.f32.mxu0 0.0
  %1097 = vmatmul.mubr.f32.gmra.mrb[0].mxu0 %v1025
  %v1098 = vpop.f32.mrb[0].mxu0
  %v1099 = vadd.f32 0.0, %v1098
  %v1100 = vpop.f32.mrb[0].mxu0
  %1101 = vdwg.mxu0
  %v1102 = vadd.f32 %v900, %v1094
  %v1103 = vadd.f32 %v901, %v1099
  %v1104 = vld [vmem:[%s2 + $0x2] sm:$0x1]
  %v1105 = vmul.f32 %v1102, %v1102
  %v1106 = vmul.f32 %v1103, %v1103
  %v1107 = vsel %vm38, %v1105, 0.0
  %1108 = vadd.xlane.f32.xlu0 %v1107
  %v1109 = vpop.xlane.xlu0 %1108
  %v1110 = vsel %vm38, %v1106, 0.0
  %1111 = vadd.xlane.f32.xlu0 %v1110
  %v1112 = vpop.xlane.xlu0 %1111
  %v1113 = vmul.f32 %v1109, %v45
  %v1114 = vmul.f32 %v1112, %v45
  %v1115 = vadd.f32 %v1113, 1e-06
  %v1116 = vadd.f32 %v1114, 1e-06
  %v1117 = vrsqrt.pop %v1115
  %v1118 = vrsqrt.pop %v1116
  %v1119 = vmul.f32 %v1102, %v1117
  %v1120 = vmul.f32 %v1103, %v1118
  %v1121 = vlaneseq
  %v1122 = vshrl.u32 %v1121, 7
  %v1123 = vsub.s32 0, %v1122
  %v1124 = vrot.slane %v1104, %v1123
  %v1125 = vmul.f32 %v1119, %v1124
  %v1126 = vmul.f32 %v1120, %v1124
  %s1127 = scalar_lea.vmem %s3, 32
  %v1128 = vld [vmem:[%s1127] sm:$0xff]
  %v1129 = vld [vmem:[%s1127 + $0x8] sm:$0xff]
  %v1130 = vld [vmem:[%s1127 + $0x10] sm:$0xff]
  %v1131 = vld [vmem:[%s1127 + $0x18] sm:$0xff]
  %v1133 = vsel %vm38, %v1125, 0
  %v1136 = vsel %vm38, %v1126, 0
  %1138 = vmatprep.subr.mxu0 0.0
  %1139 = vmatpush1.msra.mxu0 %v1128
  %1140 = vmatprep.subr.mxu0 0.0
  %1141 = vmatpush1.msra.mxu0 %v1129
  %1142 = vmatprep.subr.mxu0 0.0
  %1143 = vmatpush1.msra.mxu0 %v1130
  %1144 = vmatprep.subr.mxu0 0.0
  %1145 = vmatpush1.msra.mxu0 %v1131
  %1146 = vmatprep.subr.mxu0 0.0
  %1147 = vmatpush1.msra.mxu0 0.0
  %1148 = vmatprep.subr.mxu0 0.0
  %1149 = vmatpush1.msra.mxu0 0.0
  %1150 = vmatprep.subr.mxu0 0.0
  %1151 = vmatpush1.msra.mxu0 0.0
  %1152 = vmatprep.subr.mxu0 0.0
  %1153 = vmatpush1.msra.mxu0 0.0
  %1154 = vmatprep.subr.mxu0 0.0
  %1155 = vmatpush1.msra.mxu0 0.0
  %1156 = vmatprep.subr.mxu0 0.0
  %1157 = vmatpush1.msra.mxu0 0.0
  %1158 = vmatprep.subr.mxu0 0.0
  %1159 = vmatpush1.msra.mxu0 0.0
  %1160 = vmatprep.subr.mxu0 0.0
  %1161 = vmatpush1.msra.mxu0 0.0
  %1162 = vmatprep.subr.mxu0 0.0
  %1163 = vmatpush1.msra.mxu0 0.0
  %1164 = vmatprep.subr.mxu0 0.0
  %1165 = vmatpush1.msra.mxu0 0.0
  %1166 = vmatprep.subr.mxu0 0.0
  %1167 = vmatpush1.msra.mxu0 0.0
  %1168 = vmatprep.subr.mxu0 0.0
  %1169 = vmatpush1.msra.mxu0 0.0
  %1170 = vmatprep.subr.mxu0 0.0
  %1171 = vmatpush1.msra.mxu0 0.0
  %1172 = vmatprep.subr.mxu0 0.0
  %1173 = vmatpush1.msra.mxu0 0.0
  %1174 = vmatprep.subr.mxu0 0.0
  %1175 = vmatpush1.msra.mxu0 0.0
  %1176 = vmatprep.subr.mxu0 0.0
  %1177 = vmatpush1.msra.mxu0 0.0
  %1178 = vmatprep.subr.mxu0 0.0
  %1179 = vmatpush1.msra.mxu0 0.0
  %1180 = vmatprep.subr.mxu0 0.0
  %1181 = vmatpush1.msra.mxu0 0.0
  %1182 = vmatprep.subr.mxu0 0.0
  %1183 = vmatpush1.msra.mxu0 0.0
  %1184 = vmatprep.subr.mxu0 0.0
  %1185 = vmatpush1.msra.mxu0 0.0
  %1186 = vmatprep.subr.mxu0 0.0
  %1187 = vmatpush1.msra.mxu0 0.0
  %1188 = vmatprep.subr.mxu0 0.0
  %1189 = vmatpush1.msra.mxu0 0.0
  %1190 = vmatprep.subr.mxu0 0.0
  %1191 = vmatpush1.msra.mxu0 0.0
  %1192 = vmatprep.subr.mxu0 0.0
  %1193 = vmatpush1.msra.mxu0 0.0
  %1194 = vmatprep.subr.mxu0 0.0
  %1195 = vmatpush1.msra.mxu0 0.0
  %1196 = vmatprep.subr.mxu0 0.0
  %1197 = vmatpush1.msra.mxu0 0.0
  %1198 = vmatprep.subr.mxu0 0.0
  %1199 = vmatpush1.msra.mxu0 0.0
  %1200 = vmatprep.subr.mxu0 0.0
  %1201 = vmatpush1.msra.mxu0 0.0
  %1202 = vmatprep.mubr.f32.mxu0 0.0
  %1203 = vmatmul.mubr.f32.gmra.mrb[0].mxu0 %v1133
  %v1204 = vpop.f32.mrb[0].mxu0
  %v1205 = vadd.f32 0.0, %v1204
  %v1206 = vpop.f32.mrb[0].mxu0
  %1207 = vmatprep.mubr.f32.mxu0 0.0
  %1208 = vmatmul.mubr.f32.gmra.mrb[0].mxu0 %v1136
  %v1209 = vpop.f32.mrb[0].mxu0
  %v1210 = vadd.f32 0.0, %v1209
  %v1211 = vpop.f32.mrb[0].mxu0
  %1212 = vdwg.mxu0
  %1214 = vrot.lane.b32.xlu0 %v1205, 96
  %v1215 = vpop.permute.xlu0 %1214
  %v1216 = vsel %vm148, %v1205, 0
  %v1218 = vsel %vm148, %v1215, 0
  %1220 = vmatprep.subr.mxu0 0.0
  %1221 = vmatpush1.xpose.msra.mxu0 %v1218
  %1222 = vmatprep.subr.mxu0 0.0
  %1223 = vmatpush1.xpose.msra.mxu0 0.0
  %1224 = vmatprep.subr.mxu0 0.0
  %1225 = vmatpush1.xpose.msra.mxu0 0.0
  %1226 = vmatprep.subr.mxu0 0.0
  %1227 = vmatpush1.xpose.msra.mxu0 0.0
  %1228 = vmatprep.subr.mxu0 0.0
  %1229 = vmatpush1.xpose.msra.mxu0 0.0
  %1230 = vmatprep.subr.mxu0 0.0
  %1231 = vmatpush1.xpose.msra.mxu0 0.0
  %1232 = vmatprep.subr.mxu0 0.0
  %1233 = vmatpush1.xpose.msra.mxu0 0.0
  %1234 = vmatprep.subr.mxu0 0.0
  %1235 = vmatpush1.xpose.msra.mxu0 0.0
  %1236 = vmatprep.subr.mxu0 0.0
  %1237 = vmatpush1.xpose.msra.mxu0 0.0
  %1238 = vmatprep.subr.mxu0 0.0
  %1239 = vmatpush1.xpose.msra.mxu0 0.0
  %1240 = vmatprep.subr.mxu0 0.0
  %1241 = vmatpush1.xpose.msra.mxu0 0.0
  %1242 = vmatprep.subr.mxu0 0.0
  %1243 = vmatpush1.xpose.msra.mxu0 0.0
  %1244 = vmatprep.subr.mxu0 0.0
  %1245 = vmatpush1.xpose.msra.mxu0 0.0
  %1246 = vmatprep.subr.mxu0 0.0
  %1247 = vmatpush1.xpose.msra.mxu0 0.0
  %1248 = vmatprep.subr.mxu0 0.0
  %1249 = vmatpush1.xpose.msra.mxu0 0.0
  %1250 = vmatprep.subr.mxu0 0.0
  %1251 = vmatpush1.xpose.msra.mxu0 0.0
  %1252 = vmatprep.subr.mxu0 0.0
  %1253 = vmatpush1.xpose.msra.mxu0 0.0
  %1254 = vmatprep.subr.mxu0 0.0
  %1255 = vmatpush1.xpose.msra.mxu0 0.0
  %1256 = vmatprep.subr.mxu0 0.0
  %1257 = vmatpush1.xpose.msra.mxu0 0.0
  %1258 = vmatprep.subr.mxu0 0.0
  %1259 = vmatpush1.xpose.msra.mxu0 0.0
  %1260 = vmatprep.subr.mxu0 0.0
  %1261 = vmatpush1.xpose.msra.mxu0 0.0
  %1262 = vmatprep.subr.mxu0 0.0
  %1263 = vmatpush1.xpose.msra.mxu0 0.0
  %1264 = vmatprep.subr.mxu0 0.0
  %1265 = vmatpush1.xpose.msra.mxu0 0.0
  %1266 = vmatprep.subr.mxu0 0.0
  %1267 = vmatpush1.xpose.msra.mxu0 0.0
  %1268 = vmatprep.subr.mxu0 0.0
  %1269 = vmatpush1.xpose.msra.mxu0 0.0
  %1270 = vmatprep.subr.mxu0 0.0
  %1271 = vmatpush1.xpose.msra.mxu0 0.0
  %1272 = vmatprep.subr.mxu0 0.0
  %1273 = vmatpush1.xpose.msra.mxu0 0.0
  %1274 = vmatprep.subr.mxu0 0.0
  %1275 = vmatpush1.xpose.msra.mxu0 0.0
  %1276 = vmatprep.subr.mxu0 0.0
  %1277 = vmatpush1.xpose.msra.mxu0 0.0
  %1278 = vmatprep.subr.mxu0 0.0
  %1279 = vmatpush1.xpose.msra.mxu0 0.0
  %1280 = vmatprep.subr.mxu0 0.0
  %1281 = vmatpush1.xpose.msra.mxu0 0.0
  %1282 = vmatprep.subr.mxu0 0.0
  %1283 = vmatpush1.xpose.msra.mxu0 0.0
  %1284 = vmatprep.mubr.f32.mxu0 0.0
  %1285 = vmatmul.mubr.f32.gmra.mrb[0].mxu0 %v1216
  %v1286 = vpop.f32.mrb[0].mxu0
  %v1287 = vadd.f32 %v31, %v1286
  %v1288 = vpop.f32.mrb[0].mxu0
  %1289 = vdwg.mxu0
  %1291 = vrot.lane.b32.xlu0 %v1210, 96
  %v1292 = vpop.permute.xlu0 %1291
  %v1293 = vsel %vm148, %v1210, 0
  %v1295 = vsel %vm148, %v1292, 0
  %1297 = vmatprep.subr.mxu0 0.0
  %1298 = vmatpush1.xpose.msra.mxu0 %v1295
  %1299 = vmatprep.subr.mxu0 0.0
  %1300 = vmatpush1.xpose.msra.mxu0 0.0
  %1301 = vmatprep.subr.mxu0 0.0
  %1302 = vmatpush1.xpose.msra.mxu0 0.0
  %1303 = vmatprep.subr.mxu0 0.0
  %1304 = vmatpush1.xpose.msra.mxu0 0.0
  %1305 = vmatprep.subr.mxu0 0.0
  %1306 = vmatpush1.xpose.msra.mxu0 0.0
  %1307 = vmatprep.subr.mxu0 0.0
  %1308 = vmatpush1.xpose.msra.mxu0 0.0
  %1309 = vmatprep.subr.mxu0 0.0
  %1310 = vmatpush1.xpose.msra.mxu0 0.0
  %1311 = vmatprep.subr.mxu0 0.0
  %1312 = vmatpush1.xpose.msra.mxu0 0.0
  %1313 = vmatprep.subr.mxu0 0.0
  %1314 = vmatpush1.xpose.msra.mxu0 0.0
  %1315 = vmatprep.subr.mxu0 0.0
  %1316 = vmatpush1.xpose.msra.mxu0 0.0
  %1317 = vmatprep.subr.mxu0 0.0
  %1318 = vmatpush1.xpose.msra.mxu0 0.0
  %1319 = vmatprep.subr.mxu0 0.0
  %1320 = vmatpush1.xpose.msra.mxu0 0.0
  %1321 = vmatprep.subr.mxu0 0.0
  %1322 = vmatpush1.xpose.msra.mxu0 0.0
  %1323 = vmatprep.subr.mxu0 0.0
  %1324 = vmatpush1.xpose.msra.mxu0 0.0
  %1325 = vmatprep.subr.mxu0 0.0
  %1326 = vmatpush1.xpose.msra.mxu0 0.0
  %1327 = vmatprep.subr.mxu0 0.0
  %1328 = vmatpush1.xpose.msra.mxu0 0.0
  %1329 = vmatprep.subr.mxu0 0.0
  %1330 = vmatpush1.xpose.msra.mxu0 0.0
  %1331 = vmatprep.subr.mxu0 0.0
  %1332 = vmatpush1.xpose.msra.mxu0 0.0
  %1333 = vmatprep.subr.mxu0 0.0
  %1334 = vmatpush1.xpose.msra.mxu0 0.0
  %1335 = vmatprep.subr.mxu0 0.0
  %1336 = vmatpush1.xpose.msra.mxu0 0.0
  %1337 = vmatprep.subr.mxu0 0.0
  %1338 = vmatpush1.xpose.msra.mxu0 0.0
  %1339 = vmatprep.subr.mxu0 0.0
  %1340 = vmatpush1.xpose.msra.mxu0 0.0
  %1341 = vmatprep.subr.mxu0 0.0
  %1342 = vmatpush1.xpose.msra.mxu0 0.0
  %1343 = vmatprep.subr.mxu0 0.0
  %1344 = vmatpush1.xpose.msra.mxu0 0.0
  %1345 = vmatprep.subr.mxu0 0.0
  %1346 = vmatpush1.xpose.msra.mxu0 0.0
  %1347 = vmatprep.subr.mxu0 0.0
  %1348 = vmatpush1.xpose.msra.mxu0 0.0
  %1349 = vmatprep.subr.mxu0 0.0
  %1350 = vmatpush1.xpose.msra.mxu0 0.0
  %1351 = vmatprep.subr.mxu0 0.0
  %1352 = vmatpush1.xpose.msra.mxu0 0.0
  %1353 = vmatprep.subr.mxu0 0.0
  %1354 = vmatpush1.xpose.msra.mxu0 0.0
  %1355 = vmatprep.subr.mxu0 0.0
  %1356 = vmatpush1.xpose.msra.mxu0 0.0
  %1357 = vmatprep.subr.mxu0 0.0
  %1358 = vmatpush1.xpose.msra.mxu0 0.0
  %1359 = vmatprep.subr.mxu0 0.0
  %1360 = vmatpush1.xpose.msra.mxu0 0.0
  %1361 = vmatprep.mubr.f32.mxu0 0.0
  %1362 = vmatmul.mubr.f32.gmra.mrb[0].mxu0 %v1293
  %v1363 = vpop.f32.mrb[0].mxu0
  %v1364 = vadd.f32 %v33, %v1363
  %v1365 = vpop.f32.mrb[0].mxu0
  %1366 = vdwg.mxu0
  %v1367 = vsel %vm300, %v1287, -inf
  %1368 = vmax.xlane.f32.xlu0 %v1367
  %v1369 = vpop.xlane.xlu0 %1368
  %v1370 = vsel %vm300, %v1364, -inf
  %1371 = vmax.xlane.f32.xlu0 %v1370
  %v1372 = vpop.xlane.xlu0 %1371
  %v1373 = vsub.f32 %v1287, %v1369
  %v1374 = vsub.f32 %v1364, %v1372
  %v1375 = vmul.f32 %v1373, 1.442695
  %v1376 = vpow.pop %v1375
  %v1377 = vmul.f32 %v1374, 1.442695
  %v1378 = vpow.pop %v1377
  %v1379 = vsel %vm300, %v1376, 0.0
  %1380 = vadd.xlane.f32.xlu0 %v1379
  %v1381 = vpop.xlane.xlu0 %1380
  %v1382 = vsel %vm300, %v1378, 0.0
  %1383 = vadd.xlane.f32.xlu0 %v1382
  %v1384 = vpop.xlane.xlu0 %1383
  %v1385 = vrcp.pop %v1381
  %v1386 = vmul.f32 %v1376, %v1385
  %v1387 = vrcp.pop %v1384
  %v1388 = vmul.f32 %v1378, %v1387
  %1389 = vrot.lane.b32.xlu0 %v1205, 64
  %v1390 = vpop.permute.xlu0 %1389
  %v1393 = vsel %vm300, %v1386, 0
  %1395 = vmatprep.subr.mxu0 0.0
  %1396 = vmatpush1.msra.mxu0 %v1390
  %1397 = vmatprep.subr.mxu0 0.0
  %1398 = vmatpush1.msra.mxu0 0.0
  %1399 = vmatprep.subr.mxu0 0.0
  %1400 = vmatpush1.msra.mxu0 0.0
  %1401 = vmatprep.subr.mxu0 0.0
  %1402 = vmatpush1.msra.mxu0 0.0
  %1403 = vmatprep.subr.mxu0 0.0
  %1404 = vmatpush1.msra.mxu0 0.0
  %1405 = vmatprep.subr.mxu0 0.0
  %1406 = vmatpush1.msra.mxu0 0.0
  %1407 = vmatprep.subr.mxu0 0.0
  %1408 = vmatpush1.msra.mxu0 0.0
  %1409 = vmatprep.subr.mxu0 0.0
  %1410 = vmatpush1.msra.mxu0 0.0
  %1411 = vmatprep.subr.mxu0 0.0
  %1412 = vmatpush1.msra.mxu0 0.0
  %1413 = vmatprep.subr.mxu0 0.0
  %1414 = vmatpush1.msra.mxu0 0.0
  %1415 = vmatprep.subr.mxu0 0.0
  %1416 = vmatpush1.msra.mxu0 0.0
  %1417 = vmatprep.subr.mxu0 0.0
  %1418 = vmatpush1.msra.mxu0 0.0
  %1419 = vmatprep.subr.mxu0 0.0
  %1420 = vmatpush1.msra.mxu0 0.0
  %1421 = vmatprep.subr.mxu0 0.0
  %1422 = vmatpush1.msra.mxu0 0.0
  %1423 = vmatprep.subr.mxu0 0.0
  %1424 = vmatpush1.msra.mxu0 0.0
  %1425 = vmatprep.subr.mxu0 0.0
  %1426 = vmatpush1.msra.mxu0 0.0
  %1427 = vmatprep.subr.mxu0 0.0
  %1428 = vmatpush1.msra.mxu0 0.0
  %1429 = vmatprep.subr.mxu0 0.0
  %1430 = vmatpush1.msra.mxu0 0.0
  %1431 = vmatprep.subr.mxu0 0.0
  %1432 = vmatpush1.msra.mxu0 0.0
  %1433 = vmatprep.subr.mxu0 0.0
  %1434 = vmatpush1.msra.mxu0 0.0
  %1435 = vmatprep.subr.mxu0 0.0
  %1436 = vmatpush1.msra.mxu0 0.0
  %1437 = vmatprep.subr.mxu0 0.0
  %1438 = vmatpush1.msra.mxu0 0.0
  %1439 = vmatprep.subr.mxu0 0.0
  %1440 = vmatpush1.msra.mxu0 0.0
  %1441 = vmatprep.subr.mxu0 0.0
  %1442 = vmatpush1.msra.mxu0 0.0
  %1443 = vmatprep.subr.mxu0 0.0
  %1444 = vmatpush1.msra.mxu0 0.0
  %1445 = vmatprep.subr.mxu0 0.0
  %1446 = vmatpush1.msra.mxu0 0.0
  %1447 = vmatprep.subr.mxu0 0.0
  %1448 = vmatpush1.msra.mxu0 0.0
  %1449 = vmatprep.subr.mxu0 0.0
  %1450 = vmatpush1.msra.mxu0 0.0
  %1451 = vmatprep.subr.mxu0 0.0
  %1452 = vmatpush1.msra.mxu0 0.0
  %1453 = vmatprep.subr.mxu0 0.0
  %1454 = vmatpush1.msra.mxu0 0.0
  %1455 = vmatprep.subr.mxu0 0.0
  %1456 = vmatpush1.msra.mxu0 0.0
  %1457 = vmatprep.subr.mxu0 0.0
  %1458 = vmatpush1.msra.mxu0 0.0
  %1459 = vmatprep.mubr.f32.mxu0 0.0
  %1460 = vmatmul.mubr.f32.gmra.mrb[0].mxu0 %v1393
  %v1461 = vpop.f32.mrb[0].mxu0
  %v1462 = vadd.f32 0.0, %v1461
  %v1463 = vpop.f32.mrb[0].mxu0
  %1464 = vdwg.mxu0
  %1465 = vrot.lane.b32.xlu0 %v1210, 64
  %v1466 = vpop.permute.xlu0 %1465
  %v1469 = vsel %vm300, %v1388, 0
  %1471 = vmatprep.subr.mxu0 0.0
  %1472 = vmatpush1.msra.mxu0 %v1466
  %1473 = vmatprep.subr.mxu0 0.0
  %1474 = vmatpush1.msra.mxu0 0.0
  %1475 = vmatprep.subr.mxu0 0.0
  %1476 = vmatpush1.msra.mxu0 0.0
  %1477 = vmatprep.subr.mxu0 0.0
  %1478 = vmatpush1.msra.mxu0 0.0
  %1479 = vmatprep.subr.mxu0 0.0
  %1480 = vmatpush1.msra.mxu0 0.0
  %1481 = vmatprep.subr.mxu0 0.0
  %1482 = vmatpush1.msra.mxu0 0.0
  %1483 = vmatprep.subr.mxu0 0.0
  %1484 = vmatpush1.msra.mxu0 0.0
  %1485 = vmatprep.subr.mxu0 0.0
  %1486 = vmatpush1.msra.mxu0 0.0
  %1487 = vmatprep.subr.mxu0 0.0
  %1488 = vmatpush1.msra.mxu0 0.0
  %1489 = vmatprep.subr.mxu0 0.0
  %1490 = vmatpush1.msra.mxu0 0.0
  %1491 = vmatprep.subr.mxu0 0.0
  %1492 = vmatpush1.msra.mxu0 0.0
  %1493 = vmatprep.subr.mxu0 0.0
  %1494 = vmatpush1.msra.mxu0 0.0
  %1495 = vmatprep.subr.mxu0 0.0
  %1496 = vmatpush1.msra.mxu0 0.0
  %1497 = vmatprep.subr.mxu0 0.0
  %1498 = vmatpush1.msra.mxu0 0.0
  %1499 = vmatprep.subr.mxu0 0.0
  %1500 = vmatpush1.msra.mxu0 0.0
  %1501 = vmatprep.subr.mxu0 0.0
  %1502 = vmatpush1.msra.mxu0 0.0
  %1503 = vmatprep.subr.mxu0 0.0
  %1504 = vmatpush1.msra.mxu0 0.0
  %1505 = vmatprep.subr.mxu0 0.0
  %1506 = vmatpush1.msra.mxu0 0.0
  %1507 = vmatprep.subr.mxu0 0.0
  %1508 = vmatpush1.msra.mxu0 0.0
  %1509 = vmatprep.subr.mxu0 0.0
  %1510 = vmatpush1.msra.mxu0 0.0
  %1511 = vmatprep.subr.mxu0 0.0
  %1512 = vmatpush1.msra.mxu0 0.0
  %1513 = vmatprep.subr.mxu0 0.0
  %1514 = vmatpush1.msra.mxu0 0.0
  %1515 = vmatprep.subr.mxu0 0.0
  %1516 = vmatpush1.msra.mxu0 0.0
  %1517 = vmatprep.subr.mxu0 0.0
  %1518 = vmatpush1.msra.mxu0 0.0
  %1519 = vmatprep.subr.mxu0 0.0
  %1520 = vmatpush1.msra.mxu0 0.0
  %1521 = vmatprep.subr.mxu0 0.0
  %1522 = vmatpush1.msra.mxu0 0.0
  %1523 = vmatprep.subr.mxu0 0.0
  %1524 = vmatpush1.msra.mxu0 0.0
  %1525 = vmatprep.subr.mxu0 0.0
  %1526 = vmatpush1.msra.mxu0 0.0
  %1527 = vmatprep.subr.mxu0 0.0
  %1528 = vmatpush1.msra.mxu0 0.0
  %1529 = vmatprep.subr.mxu0 0.0
  %1530 = vmatpush1.msra.mxu0 0.0
  %1531 = vmatprep.subr.mxu0 0.0
  %1532 = vmatpush1.msra.mxu0 0.0
  %1533 = vmatprep.subr.mxu0 0.0
  %1534 = vmatpush1.msra.mxu0 0.0
  %1535 = vmatprep.mubr.f32.mxu0 0.0
  %1536 = vmatmul.mubr.f32.gmra.mrb[0].mxu0 %v1469
  %v1537 = vpop.f32.mrb[0].mxu0
  %v1538 = vadd.f32 0.0, %v1537
  %v1539 = vpop.f32.mrb[0].mxu0
  %1540 = vdwg.mxu0
  %1541 = vrot.lane.b32.xlu0 %v1205, 112
  %v1542 = vpop.permute.xlu0 %1541
  %1543 = vrot.lane.b32.xlu0 %v1205, 80
  %v1544 = vpop.permute.xlu0 %1543
  %v1545 = vsel %vm148, %v1542, 0
  %v1547 = vsel %vm148, %v1544, 0
  %1549 = vmatprep.subr.mxu0 0.0
  %1550 = vmatpush1.xpose.msra.mxu0 %v1547
  %1551 = vmatprep.subr.mxu0 0.0
  %1552 = vmatpush1.xpose.msra.mxu0 0.0
  %1553 = vmatprep.subr.mxu0 0.0
  %1554 = vmatpush1.xpose.msra.mxu0 0.0
  %1555 = vmatprep.subr.mxu0 0.0
  %1556 = vmatpush1.xpose.msra.mxu0 0.0
  %1557 = vmatprep.subr.mxu0 0.0
  %1558 = vmatpush1.xpose.msra.mxu0 0.0
  %1559 = vmatprep.subr.mxu0 0.0
  %1560 = vmatpush1.xpose.msra.mxu0 0.0
  %1561 = vmatprep.subr.mxu0 0.0
  %1562 = vmatpush1.xpose.msra.mxu0 0.0
  %1563 = vmatprep.subr.mxu0 0.0
  %1564 = vmatpush1.xpose.msra.mxu0 0.0
  %1565 = vmatprep.subr.mxu0 0.0
  %1566 = vmatpush1.xpose.msra.mxu0 0.0
  %1567 = vmatprep.subr.mxu0 0.0
  %1568 = vmatpush1.xpose.msra.mxu0 0.0
  %1569 = vmatprep.subr.mxu0 0.0
  %1570 = vmatpush1.xpose.msra.mxu0 0.0
  %1571 = vmatprep.subr.mxu0 0.0
  %1572 = vmatpush1.xpose.msra.mxu0 0.0
  %1573 = vmatprep.subr.mxu0 0.0
  %1574 = vmatpush1.xpose.msra.mxu0 0.0
  %1575 = vmatprep.subr.mxu0 0.0
  %1576 = vmatpush1.xpose.msra.mxu0 0.0
  %1577 = vmatprep.subr.mxu0 0.0
  %1578 = vmatpush1.xpose.msra.mxu0 0.0
  %1579 = vmatprep.subr.mxu0 0.0
  %1580 = vmatpush1.xpose.msra.mxu0 0.0
  %1581 = vmatprep.subr.mxu0 0.0
  %1582 = vmatpush1.xpose.msra.mxu0 0.0
  %1583 = vmatprep.subr.mxu0 0.0
  %1584 = vmatpush1.xpose.msra.mxu0 0.0
  %1585 = vmatprep.subr.mxu0 0.0
  %1586 = vmatpush1.xpose.msra.mxu0 0.0
  %1587 = vmatprep.subr.mxu0 0.0
  %1588 = vmatpush1.xpose.msra.mxu0 0.0
  %1589 = vmatprep.subr.mxu0 0.0
  %1590 = vmatpush1.xpose.msra.mxu0 0.0
  %1591 = vmatprep.subr.mxu0 0.0
  %1592 = vmatpush1.xpose.msra.mxu0 0.0
  %1593 = vmatprep.subr.mxu0 0.0
  %1594 = vmatpush1.xpose.msra.mxu0 0.0
  %1595 = vmatprep.subr.mxu0 0.0
  %1596 = vmatpush1.xpose.msra.mxu0 0.0
  %1597 = vmatprep.subr.mxu0 0.0
  %1598 = vmatpush1.xpose.msra.mxu0 0.0
  %1599 = vmatprep.subr.mxu0 0.0
  %1600 = vmatpush1.xpose.msra.mxu0 0.0
  %1601 = vmatprep.subr.mxu0 0.0
  %1602 = vmatpush1.xpose.msra.mxu0 0.0
  %1603 = vmatprep.subr.mxu0 0.0
  %1604 = vmatpush1.xpose.msra.mxu0 0.0
  %1605 = vmatprep.subr.mxu0 0.0
  %1606 = vmatpush1.xpose.msra.mxu0 0.0
  %1607 = vmatprep.subr.mxu0 0.0
  %1608 = vmatpush1.xpose.msra.mxu0 0.0
  %1609 = vmatprep.subr.mxu0 0.0
  %1610 = vmatpush1.xpose.msra.mxu0 0.0
  %1611 = vmatprep.subr.mxu0 0.0
  %1612 = vmatpush1.xpose.msra.mxu0 0.0
  %1613 = vmatprep.mubr.f32.mxu0 0.0
  %1614 = vmatmul.mubr.f32.gmra.mrb[0].mxu0 %v1545
  %v1615 = vpop.f32.mrb[0].mxu0
  %v1616 = vadd.f32 %v32, %v1615
  %v1617 = vpop.f32.mrb[0].mxu0
  %1618 = vdwg.mxu0
  %1619 = vrot.lane.b32.xlu0 %v1210, 112
  %v1620 = vpop.permute.xlu0 %1619
  %1621 = vrot.lane.b32.xlu0 %v1210, 80
  %v1622 = vpop.permute.xlu0 %1621
  %v1623 = vsel %vm148, %v1620, 0
  %v1625 = vsel %vm148, %v1622, 0
  %1627 = vmatprep.subr.mxu0 0.0
  %1628 = vmatpush1.xpose.msra.mxu0 %v1625
  %1629 = vmatprep.subr.mxu0 0.0
  %1630 = vmatpush1.xpose.msra.mxu0 0.0
  %1631 = vmatprep.subr.mxu0 0.0
  %1632 = vmatpush1.xpose.msra.mxu0 0.0
  %1633 = vmatprep.subr.mxu0 0.0
  %1634 = vmatpush1.xpose.msra.mxu0 0.0
  %1635 = vmatprep.subr.mxu0 0.0
  %1636 = vmatpush1.xpose.msra.mxu0 0.0
  %1637 = vmatprep.subr.mxu0 0.0
  %1638 = vmatpush1.xpose.msra.mxu0 0.0
  %1639 = vmatprep.subr.mxu0 0.0
  %1640 = vmatpush1.xpose.msra.mxu0 0.0
  %1641 = vmatprep.subr.mxu0 0.0
  %1642 = vmatpush1.xpose.msra.mxu0 0.0
  %1643 = vmatprep.subr.mxu0 0.0
  %1644 = vmatpush1.xpose.msra.mxu0 0.0
  %1645 = vmatprep.subr.mxu0 0.0
  %1646 = vmatpush1.xpose.msra.mxu0 0.0
  %1647 = vmatprep.subr.mxu0 0.0
  %1648 = vmatpush1.xpose.msra.mxu0 0.0
  %1649 = vmatprep.subr.mxu0 0.0
  %1650 = vmatpush1.xpose.msra.mxu0 0.0
  %1651 = vmatprep.subr.mxu0 0.0
  %1652 = vmatpush1.xpose.msra.mxu0 0.0
  %1653 = vmatprep.subr.mxu0 0.0
  %1654 = vmatpush1.xpose.msra.mxu0 0.0
  %1655 = vmatprep.subr.mxu0 0.0
  %1656 = vmatpush1.xpose.msra.mxu0 0.0
  %1657 = vmatprep.subr.mxu0 0.0
  %1658 = vmatpush1.xpose.msra.mxu0 0.0
  %1659 = vmatprep.subr.mxu0 0.0
  %1660 = vmatpush1.xpose.msra.mxu0 0.0
  %1661 = vmatprep.subr.mxu0 0.0
  %1662 = vmatpush1.xpose.msra.mxu0 0.0
  %1663 = vmatprep.subr.mxu0 0.0
  %1664 = vmatpush1.xpose.msra.mxu0 0.0
  %1665 = vmatprep.subr.mxu0 0.0
  %1666 = vmatpush1.xpose.msra.mxu0 0.0
  %1667 = vmatprep.subr.mxu0 0.0
  %1668 = vmatpush1.xpose.msra.mxu0 0.0
  %1669 = vmatprep.subr.mxu0 0.0
  %1670 = vmatpush1.xpose.msra.mxu0 0.0
  %1671 = vmatprep.subr.mxu0 0.0
  %1672 = vmatpush1.xpose.msra.mxu0 0.0
  %1673 = vmatprep.subr.mxu0 0.0
  %1674 = vmatpush1.xpose.msra.mxu0 0.0
  %1675 = vmatprep.subr.mxu0 0.0
  %1676 = vmatpush1.xpose.msra.mxu0 0.0
  %1677 = vmatprep.subr.mxu0 0.0
  %1678 = vmatpush1.xpose.msra.mxu0 0.0
  %1679 = vmatprep.subr.mxu0 0.0
  %1680 = vmatpush1.xpose.msra.mxu0 0.0
  %1681 = vmatprep.subr.mxu0 0.0
  %1682 = vmatpush1.xpose.msra.mxu0 0.0
  %1683 = vmatprep.subr.mxu0 0.0
  %1684 = vmatpush1.xpose.msra.mxu0 0.0
  %1685 = vmatprep.subr.mxu0 0.0
  %1686 = vmatpush1.xpose.msra.mxu0 0.0
  %1687 = vmatprep.subr.mxu0 0.0
  %1688 = vmatpush1.xpose.msra.mxu0 0.0
  %1689 = vmatprep.subr.mxu0 0.0
  %1690 = vmatpush1.xpose.msra.mxu0 0.0
  %1691 = vmatprep.mubr.f32.mxu0 0.0
  %1692 = vmatmul.mubr.f32.gmra.mrb[0].mxu0 %v1623
  %v1693 = vpop.f32.mrb[0].mxu0
  %v1694 = vadd.f32 %v34, %v1693
  %v1695 = vpop.f32.mrb[0].mxu0
  %1696 = vdwg.mxu0
  %v1697 = vsel %vm300, %v1616, -inf
  %1698 = vmax.xlane.f32.xlu0 %v1697
  %v1699 = vpop.xlane.xlu0 %1698
  %v1700 = vsel %vm300, %v1694, -inf
  %1701 = vmax.xlane.f32.xlu0 %v1700
  %v1702 = vpop.xlane.xlu0 %1701
  %v1703 = vsub.f32 %v1616, %v1699
  %v1704 = vsub.f32 %v1694, %v1702
  %v1705 = vmul.f32 %v1703, 1.442695
  %v1706 = vpow.pop %v1705
  %v1707 = vmul.f32 %v1704, 1.442695
  %v1708 = vpow.pop %v1707
  %v1709 = vsel %vm300, %v1706, 0.0
  %1710 = vadd.xlane.f32.xlu0 %v1709
  %v1711 = vpop.xlane.xlu0 %1710
  %v1712 = vsel %vm300, %v1708, 0.0
  %1713 = vadd.xlane.f32.xlu0 %v1712
  %v1714 = vpop.xlane.xlu0 %1713
  %v1715 = vrcp.pop %v1711
  %v1716 = vmul.f32 %v1706, %v1715
  %v1717 = vrcp.pop %v1714
  %v1718 = vmul.f32 %v1708, %v1717
  %1719 = vrot.lane.b32.xlu0 %v1205, 48
  %v1720 = vpop.permute.xlu0 %1719
  %v1723 = vsel %vm300, %v1716, 0
  %1725 = vmatprep.subr.mxu0 0.0
  %1726 = vmatpush1.msra.mxu0 %v1720
  %1727 = vmatprep.subr.mxu0 0.0
  %1728 = vmatpush1.msra.mxu0 0.0
  %1729 = vmatprep.subr.mxu0 0.0
  %1730 = vmatpush1.msra.mxu0 0.0
  %1731 = vmatprep.subr.mxu0 0.0
  %1732 = vmatpush1.msra.mxu0 0.0
  %1733 = vmatprep.subr.mxu0 0.0
  %1734 = vmatpush1.msra.mxu0 0.0
  %1735 = vmatprep.subr.mxu0 0.0
  %1736 = vmatpush1.msra.mxu0 0.0
  %1737 = vmatprep.subr.mxu0 0.0
  %1738 = vmatpush1.msra.mxu0 0.0
  %1739 = vmatprep.subr.mxu0 0.0
  %1740 = vmatpush1.msra.mxu0 0.0
  %1741 = vmatprep.subr.mxu0 0.0
  %1742 = vmatpush1.msra.mxu0 0.0
  %1743 = vmatprep.subr.mxu0 0.0
  %1744 = vmatpush1.msra.mxu0 0.0
  %1745 = vmatprep.subr.mxu0 0.0
  %1746 = vmatpush1.msra.mxu0 0.0
  %1747 = vmatprep.subr.mxu0 0.0
  %1748 = vmatpush1.msra.mxu0 0.0
  %1749 = vmatprep.subr.mxu0 0.0
  %1750 = vmatpush1.msra.mxu0 0.0
  %1751 = vmatprep.subr.mxu0 0.0
  %1752 = vmatpush1.msra.mxu0 0.0
  %1753 = vmatprep.subr.mxu0 0.0
  %1754 = vmatpush1.msra.mxu0 0.0
  %1755 = vmatprep.subr.mxu0 0.0
  %1756 = vmatpush1.msra.mxu0 0.0
  %1757 = vmatprep.subr.mxu0 0.0
  %1758 = vmatpush1.msra.mxu0 0.0
  %1759 = vmatprep.subr.mxu0 0.0
  %1760 = vmatpush1.msra.mxu0 0.0
  %1761 = vmatprep.subr.mxu0 0.0
  %1762 = vmatpush1.msra.mxu0 0.0
  %1763 = vmatprep.subr.mxu0 0.0
  %1764 = vmatpush1.msra.mxu0 0.0
  %1765 = vmatprep.subr.mxu0 0.0
  %1766 = vmatpush1.msra.mxu0 0.0
  %1767 = vmatprep.subr.mxu0 0.0
  %1768 = vmatpush1.msra.mxu0 0.0
  %1769 = vmatprep.subr.mxu0 0.0
  %1770 = vmatpush1.msra.mxu0 0.0
  %1771 = vmatprep.subr.mxu0 0.0
  %1772 = vmatpush1.msra.mxu0 0.0
  %1773 = vmatprep.subr.mxu0 0.0
  %1774 = vmatpush1.msra.mxu0 0.0
  %1775 = vmatprep.subr.mxu0 0.0
  %1776 = vmatpush1.msra.mxu0 0.0
  %1777 = vmatprep.subr.mxu0 0.0
  %1778 = vmatpush1.msra.mxu0 0.0
  %1779 = vmatprep.subr.mxu0 0.0
  %1780 = vmatpush1.msra.mxu0 0.0
  %1781 = vmatprep.subr.mxu0 0.0
  %1782 = vmatpush1.msra.mxu0 0.0
  %1783 = vmatprep.subr.mxu0 0.0
  %1784 = vmatpush1.msra.mxu0 0.0
  %1785 = vmatprep.subr.mxu0 0.0
  %1786 = vmatpush1.msra.mxu0 0.0
  %1787 = vmatprep.subr.mxu0 0.0
  %1788 = vmatpush1.msra.mxu0 0.0
  %1789 = vmatprep.mubr.f32.mxu0 0.0
  %1790 = vmatmul.mubr.f32.gmra.mrb[0].mxu0 %v1723
  %v1791 = vpop.f32.mrb[0].mxu0
  %v1792 = vadd.f32 0.0, %v1791
  %v1793 = vpop.f32.mrb[0].mxu0
  %1794 = vdwg.mxu0
  %1795 = vrot.lane.b32.xlu0 %v1210, 48
  %v1796 = vpop.permute.xlu0 %1795
  %v1799 = vsel %vm300, %v1718, 0
  %1801 = vmatprep.subr.mxu0 0.0
  %1802 = vmatpush1.msra.mxu0 %v1796
  %1803 = vmatprep.subr.mxu0 0.0
  %1804 = vmatpush1.msra.mxu0 0.0
  %1805 = vmatprep.subr.mxu0 0.0
  %1806 = vmatpush1.msra.mxu0 0.0
  %1807 = vmatprep.subr.mxu0 0.0
  %1808 = vmatpush1.msra.mxu0 0.0
  %1809 = vmatprep.subr.mxu0 0.0
  %1810 = vmatpush1.msra.mxu0 0.0
  %1811 = vmatprep.subr.mxu0 0.0
  %1812 = vmatpush1.msra.mxu0 0.0
  %1813 = vmatprep.subr.mxu0 0.0
  %1814 = vmatpush1.msra.mxu0 0.0
  %1815 = vmatprep.subr.mxu0 0.0
  %1816 = vmatpush1.msra.mxu0 0.0
  %1817 = vmatprep.subr.mxu0 0.0
  %1818 = vmatpush1.msra.mxu0 0.0
  %1819 = vmatprep.subr.mxu0 0.0
  %1820 = vmatpush1.msra.mxu0 0.0
  %1821 = vmatprep.subr.mxu0 0.0
  %1822 = vmatpush1.msra.mxu0 0.0
  %1823 = vmatprep.subr.mxu0 0.0
  %1824 = vmatpush1.msra.mxu0 0.0
  %1825 = vmatprep.subr.mxu0 0.0
  %1826 = vmatpush1.msra.mxu0 0.0
  %1827 = vmatprep.subr.mxu0 0.0
  %1828 = vmatpush1.msra.mxu0 0.0
  %1829 = vmatprep.subr.mxu0 0.0
  %1830 = vmatpush1.msra.mxu0 0.0
  %1831 = vmatprep.subr.mxu0 0.0
  %1832 = vmatpush1.msra.mxu0 0.0
  %1833 = vmatprep.subr.mxu0 0.0
  %1834 = vmatpush1.msra.mxu0 0.0
  %1835 = vmatprep.subr.mxu0 0.0
  %1836 = vmatpush1.msra.mxu0 0.0
  %1837 = vmatprep.subr.mxu0 0.0
  %1838 = vmatpush1.msra.mxu0 0.0
  %1839 = vmatprep.subr.mxu0 0.0
  %1840 = vmatpush1.msra.mxu0 0.0
  %1841 = vmatprep.subr.mxu0 0.0
  %1842 = vmatpush1.msra.mxu0 0.0
  %1843 = vmatprep.subr.mxu0 0.0
  %1844 = vmatpush1.msra.mxu0 0.0
  %1845 = vmatprep.subr.mxu0 0.0
  %1846 = vmatpush1.msra.mxu0 0.0
  %1847 = vmatprep.subr.mxu0 0.0
  %1848 = vmatpush1.msra.mxu0 0.0
  %1849 = vmatprep.subr.mxu0 0.0
  %1850 = vmatpush1.msra.mxu0 0.0
  %1851 = vmatprep.subr.mxu0 0.0
  %1852 = vmatpush1.msra.mxu0 0.0
  %1853 = vmatprep.subr.mxu0 0.0
  %1854 = vmatpush1.msra.mxu0 0.0
  %1855 = vmatprep.subr.mxu0 0.0
  %1856 = vmatpush1.msra.mxu0 0.0
  %1857 = vmatprep.subr.mxu0 0.0
  %1858 = vmatpush1.msra.mxu0 0.0
  %1859 = vmatprep.subr.mxu0 0.0
  %1860 = vmatpush1.msra.mxu0 0.0
  %1861 = vmatprep.subr.mxu0 0.0
  %1862 = vmatpush1.msra.mxu0 0.0
  %1863 = vmatprep.subr.mxu0 0.0
  %1864 = vmatpush1.msra.mxu0 0.0
  %1865 = vmatprep.mubr.f32.mxu0 0.0
  %1866 = vmatmul.mubr.f32.gmra.mrb[0].mxu0 %v1799
  %v1867 = vpop.f32.mrb[0].mxu0
  %v1868 = vadd.f32 0.0, %v1867
  %v1869 = vpop.f32.mrb[0].mxu0
  %1870 = vdwg.mxu0
  %1873 = vrot.lane.b32.xlu0 %v1792, 16
  %v1874 = vpop.permute.xlu0 %1873
  %1875 = vrot.lane.b32.xlu0 %v1868, 16
  %v1876 = vpop.permute.xlu0 %1875
  %v1879 = vsel %vm148, %v1462, %v1874
  %v1880 = vsel %vm148, %v1538, %v1876
  %s1881 = scalar_lea.vmem %s4, 32
  %v1882 = vld [vmem:[%s1881] sm:$0xff]
  %v1883 = vld [vmem:[%s1881 + $0x8] sm:$0xff]
  %v1884 = vld [vmem:[%s1881 + $0x10] sm:$0xff]
  %v1885 = vld [vmem:[%s1881 + $0x18] sm:$0xff]
  %v1887 = vsel %vm38, %v1879, 0
  %v1890 = vsel %vm38, %v1880, 0
  %1892 = vmatprep.subr.mxu0 0.0
  %1893 = vmatpush1.msra.mxu0 %v1882
  %1894 = vmatprep.subr.mxu0 0.0
  %1895 = vmatpush1.msra.mxu0 %v1883
  %1896 = vmatprep.subr.mxu0 0.0
  %1897 = vmatpush1.msra.mxu0 %v1884
  %1898 = vmatprep.subr.mxu0 0.0
  %1899 = vmatpush1.msra.mxu0 %v1885
  %1900 = vmatprep.subr.mxu0 0.0
  %1901 = vmatpush1.msra.mxu0 0.0
  %1902 = vmatprep.subr.mxu0 0.0
  %1903 = vmatpush1.msra.mxu0 0.0
  %1904 = vmatprep.subr.mxu0 0.0
  %1905 = vmatpush1.msra.mxu0 0.0
  %1906 = vmatprep.subr.mxu0 0.0
  %1907 = vmatpush1.msra.mxu0 0.0
  %1908 = vmatprep.subr.mxu0 0.0
  %1909 = vmatpush1.msra.mxu0 0.0
  %1910 = vmatprep.subr.mxu0 0.0
  %1911 = vmatpush1.msra.mxu0 0.0
  %1912 = vmatprep.subr.mxu0 0.0
  %1913 = vmatpush1.msra.mxu0 0.0
  %1914 = vmatprep.subr.mxu0 0.0
  %1915 = vmatpush1.msra.mxu0 0.0
  %1916 = vmatprep.subr.mxu0 0.0
  %1917 = vmatpush1.msra.mxu0 0.0
  %1918 = vmatprep.subr.mxu0 0.0
  %1919 = vmatpush1.msra.mxu0 0.0
  %1920 = vmatprep.subr.mxu0 0.0
  %1921 = vmatpush1.msra.mxu0 0.0
  %1922 = vmatprep.subr.mxu0 0.0
  %1923 = vmatpush1.msra.mxu0 0.0
  %1924 = vmatprep.subr.mxu0 0.0
  %1925 = vmatpush1.msra.mxu0 0.0
  %1926 = vmatprep.subr.mxu0 0.0
  %1927 = vmatpush1.msra.mxu0 0.0
  %1928 = vmatprep.subr.mxu0 0.0
  %1929 = vmatpush1.msra.mxu0 0.0
  %1930 = vmatprep.subr.mxu0 0.0
  %1931 = vmatpush1.msra.mxu0 0.0
  %1932 = vmatprep.subr.mxu0 0.0
  %1933 = vmatpush1.msra.mxu0 0.0
  %1934 = vmatprep.subr.mxu0 0.0
  %1935 = vmatpush1.msra.mxu0 0.0
  %1936 = vmatprep.subr.mxu0 0.0
  %1937 = vmatpush1.msra.mxu0 0.0
  %1938 = vmatprep.subr.mxu0 0.0
  %1939 = vmatpush1.msra.mxu0 0.0
  %1940 = vmatprep.subr.mxu0 0.0
  %1941 = vmatpush1.msra.mxu0 0.0
  %1942 = vmatprep.subr.mxu0 0.0
  %1943 = vmatpush1.msra.mxu0 0.0
  %1944 = vmatprep.subr.mxu0 0.0
  %1945 = vmatpush1.msra.mxu0 0.0
  %1946 = vmatprep.subr.mxu0 0.0
  %1947 = vmatpush1.msra.mxu0 0.0
  %1948 = vmatprep.subr.mxu0 0.0
  %1949 = vmatpush1.msra.mxu0 0.0
  %1950 = vmatprep.subr.mxu0 0.0
  %1951 = vmatpush1.msra.mxu0 0.0
  %1952 = vmatprep.subr.mxu0 0.0
  %1953 = vmatpush1.msra.mxu0 0.0
  %1954 = vmatprep.subr.mxu0 0.0
  %1955 = vmatpush1.msra.mxu0 0.0
  %1956 = vmatprep.mubr.f32.mxu0 0.0
  %1957 = vmatmul.mubr.f32.gmra.mrb[0].mxu0 %v1887
  %v1958 = vpop.f32.mrb[0].mxu0
  %v1959 = vadd.f32 0.0, %v1958
  %v1960 = vpop.f32.mrb[0].mxu0
  %1961 = vmatprep.mubr.f32.mxu0 0.0
  %1962 = vmatmul.mubr.f32.gmra.mrb[0].mxu0 %v1890
  %v1963 = vpop.f32.mrb[0].mxu0
  %v1964 = vadd.f32 0.0, %v1963
  %v1965 = vpop.f32.mrb[0].mxu0
  %1966 = vdwg.mxu0
  %v1967 = vadd.f32 %v1102, %v1959
  %v1968 = vadd.f32 %v1103, %v1964
  %v1969 = vld [vmem:[%s2 + $0x3] sm:$0x1]
  %v1970 = vmul.f32 %v1967, %v1967
  %v1971 = vmul.f32 %v1968, %v1968
  %v1972 = vsel %vm38, %v1970, 0.0
  %1973 = vadd.xlane.f32.xlu0 %v1972
  %v1974 = vpop.xlane.xlu0 %1973
  %v1975 = vsel %vm38, %v1971, 0.0
  %1976 = vadd.xlane.f32.xlu0 %v1975
  %v1977 = vpop.xlane.xlu0 %1976
  %v1978 = vmul.f32 %v1974, %v45
  %v1979 = vmul.f32 %v1977, %v45
  %v1980 = vadd.f32 %v1978, 1e-06
  %v1981 = vadd.f32 %v1979, 1e-06
  %v1982 = vrsqrt.pop %v1980
  %v1983 = vrsqrt.pop %v1981
  %v1984 = vmul.f32 %v1967, %v1982
  %v1985 = vmul.f32 %v1968, %v1983
  %v1986 = vlaneseq
  %v1987 = vshrl.u32 %v1986, 7
  %v1988 = vsub.s32 0, %v1987
  %v1989 = vrot.slane %v1969, %v1988
  %v1990 = vmul.f32 %v1984, %v1989
  %v1991 = vmul.f32 %v1985, %v1989
  %s1992 = scalar_lea.vmem %s5, 32
  %v1993 = vld [vmem:[%s1992] sm:$0xff]
  %v1994 = vld [vmem:[%s1992 + $0x8] sm:$0xff]
  %v1995 = vld [vmem:[%s1992 + $0x10] sm:$0xff]
  %v1996 = vld [vmem:[%s1992 + $0x18] sm:$0xff]
  %v1998 = vsel %vm38, %v1990, 0
  %v2001 = vsel %vm38, %v1991, 0
  %2003 = vmatprep.subr.mxu0 0.0
  %2004 = vmatpush1.msra.mxu0 %v1993
  %2005 = vmatprep.subr.mxu0 0.0
  %2006 = vmatpush1.msra.mxu0 %v1994
  %2007 = vmatprep.subr.mxu0 0.0
  %2008 = vmatpush1.msra.mxu0 %v1995
  %2009 = vmatprep.subr.mxu0 0.0
  %2010 = vmatpush1.msra.mxu0 %v1996
  %2011 = vmatprep.subr.mxu0 0.0
  %2012 = vmatpush1.msra.mxu0 0.0
  %2013 = vmatprep.subr.mxu0 0.0
  %2014 = vmatpush1.msra.mxu0 0.0
  %2015 = vmatprep.subr.mxu0 0.0
  %2016 = vmatpush1.msra.mxu0 0.0
  %2017 = vmatprep.subr.mxu0 0.0
  %2018 = vmatpush1.msra.mxu0 0.0
  %2019 = vmatprep.subr.mxu0 0.0
  %2020 = vmatpush1.msra.mxu0 0.0
  %2021 = vmatprep.subr.mxu0 0.0
  %2022 = vmatpush1.msra.mxu0 0.0
  %2023 = vmatprep.subr.mxu0 0.0
  %2024 = vmatpush1.msra.mxu0 0.0
  %2025 = vmatprep.subr.mxu0 0.0
  %2026 = vmatpush1.msra.mxu0 0.0
  %2027 = vmatprep.subr.mxu0 0.0
  %2028 = vmatpush1.msra.mxu0 0.0
  %2029 = vmatprep.subr.mxu0 0.0
  %2030 = vmatpush1.msra.mxu0 0.0
  %2031 = vmatprep.subr.mxu0 0.0
  %2032 = vmatpush1.msra.mxu0 0.0
  %2033 = vmatprep.subr.mxu0 0.0
  %2034 = vmatpush1.msra.mxu0 0.0
  %2035 = vmatprep.subr.mxu0 0.0
  %2036 = vmatpush1.msra.mxu0 0.0
  %2037 = vmatprep.subr.mxu0 0.0
  %2038 = vmatpush1.msra.mxu0 0.0
  %2039 = vmatprep.subr.mxu0 0.0
  %2040 = vmatpush1.msra.mxu0 0.0
  %2041 = vmatprep.subr.mxu0 0.0
  %2042 = vmatpush1.msra.mxu0 0.0
  %2043 = vmatprep.subr.mxu0 0.0
  %2044 = vmatpush1.msra.mxu0 0.0
  %2045 = vmatprep.subr.mxu0 0.0
  %2046 = vmatpush1.msra.mxu0 0.0
  %2047 = vmatprep.subr.mxu0 0.0
  %2048 = vmatpush1.msra.mxu0 0.0
  %2049 = vmatprep.subr.mxu0 0.0
  %2050 = vmatpush1.msra.mxu0 0.0
  %2051 = vmatprep.subr.mxu0 0.0
  %2052 = vmatpush1.msra.mxu0 0.0
  %2053 = vmatprep.subr.mxu0 0.0
  %2054 = vmatpush1.msra.mxu0 0.0
  %2055 = vmatprep.subr.mxu0 0.0
  %2056 = vmatpush1.msra.mxu0 0.0
  %2057 = vmatprep.subr.mxu0 0.0
  %2058 = vmatpush1.msra.mxu0 0.0
  %2059 = vmatprep.subr.mxu0 0.0
  %2060 = vmatpush1.msra.mxu0 0.0
  %2061 = vmatprep.subr.mxu0 0.0
  %2062 = vmatpush1.msra.mxu0 0.0
  %2063 = vmatprep.subr.mxu0 0.0
  %2064 = vmatpush1.msra.mxu0 0.0
  %2065 = vmatprep.subr.mxu0 0.0
  %2066 = vmatpush1.msra.mxu0 0.0
  %2067 = vmatprep.mubr.f32.mxu0 0.0
  %2068 = vmatmul.mubr.f32.gmra.mrb[0].mxu0 %v1998
  %v2069 = vpop.f32.mrb[0].mxu0
  %v2070 = vadd.f32 0.0, %v2069
  %v2071 = vpop.f32.mrb[0].mxu0
  %2072 = vmatprep.mubr.f32.mxu0 0.0
  %2073 = vmatmul.mubr.f32.gmra.mrb[0].mxu0 %v2001
  %v2074 = vpop.f32.mrb[0].mxu0
  %v2075 = vadd.f32 0.0, %v2074
  %v2076 = vpop.f32.mrb[0].mxu0
  %2077 = vdwg.mxu0
  %v2078 = vmax.f32 %v2070, 0.0
  %v2079 = vmax.f32 %v2075, 0.0
  %s2080 = scalar_lea.vmem %s6, 64
  %v2081 = vld [vmem:[%s2080] sm:$0xff]
  %v2082 = vld [vmem:[%s2080 + $0x8] sm:$0xff]
  %v2083 = vld [vmem:[%s2080 + $0x10] sm:$0xff]
  %v2084 = vld [vmem:[%s2080 + $0x18] sm:$0xff]
  %v2085 = vld [vmem:[%s2080 + $0x20] sm:$0xff]
  %v2086 = vld [vmem:[%s2080 + $0x28] sm:$0xff]
  %v2087 = vld [vmem:[%s2080 + $0x30] sm:$0xff]
  %v2088 = vld [vmem:[%s2080 + $0x38] sm:$0xff]
  %v2090 = vsel %vm1020, %v2078, 0
  %v2093 = vsel %vm1020, %v2079, 0
  %2095 = vmatprep.subr.mxu0 0.0
  %2096 = vmatpush1.msra.mxu0 %v2081
  %2097 = vmatprep.subr.mxu0 0.0
  %2098 = vmatpush1.msra.mxu0 %v2082
  %2099 = vmatprep.subr.mxu0 0.0
  %2100 = vmatpush1.msra.mxu0 %v2083
  %2101 = vmatprep.subr.mxu0 0.0
  %2102 = vmatpush1.msra.mxu0 %v2084
  %2103 = vmatprep.subr.mxu0 0.0
  %2104 = vmatpush1.msra.mxu0 %v2085
  %2105 = vmatprep.subr.mxu0 0.0
  %2106 = vmatpush1.msra.mxu0 %v2086
  %2107 = vmatprep.subr.mxu0 0.0
  %2108 = vmatpush1.msra.mxu0 %v2087
  %2109 = vmatprep.subr.mxu0 0.0
  %2110 = vmatpush1.msra.mxu0 %v2088
  %2111 = vmatprep.subr.mxu0 0.0
  %2112 = vmatpush1.msra.mxu0 0.0
  %2113 = vmatprep.subr.mxu0 0.0
  %2114 = vmatpush1.msra.mxu0 0.0
  %2115 = vmatprep.subr.mxu0 0.0
  %2116 = vmatpush1.msra.mxu0 0.0
  %2117 = vmatprep.subr.mxu0 0.0
  %2118 = vmatpush1.msra.mxu0 0.0
  %2119 = vmatprep.subr.mxu0 0.0
  %2120 = vmatpush1.msra.mxu0 0.0
  %2121 = vmatprep.subr.mxu0 0.0
  %2122 = vmatpush1.msra.mxu0 0.0
  %2123 = vmatprep.subr.mxu0 0.0
  %2124 = vmatpush1.msra.mxu0 0.0
  %2125 = vmatprep.subr.mxu0 0.0
  %2126 = vmatpush1.msra.mxu0 0.0
  %2127 = vmatprep.subr.mxu0 0.0
  %2128 = vmatpush1.msra.mxu0 0.0
  %2129 = vmatprep.subr.mxu0 0.0
  %2130 = vmatpush1.msra.mxu0 0.0
  %2131 = vmatprep.subr.mxu0 0.0
  %2132 = vmatpush1.msra.mxu0 0.0
  %2133 = vmatprep.subr.mxu0 0.0
  %2134 = vmatpush1.msra.mxu0 0.0
  %2135 = vmatprep.subr.mxu0 0.0
  %2136 = vmatpush1.msra.mxu0 0.0
  %2137 = vmatprep.subr.mxu0 0.0
  %2138 = vmatpush1.msra.mxu0 0.0
  %2139 = vmatprep.subr.mxu0 0.0
  %2140 = vmatpush1.msra.mxu0 0.0
  %2141 = vmatprep.subr.mxu0 0.0
  %2142 = vmatpush1.msra.mxu0 0.0
  %2143 = vmatprep.subr.mxu0 0.0
  %2144 = vmatpush1.msra.mxu0 0.0
  %2145 = vmatprep.subr.mxu0 0.0
  %2146 = vmatpush1.msra.mxu0 0.0
  %2147 = vmatprep.subr.mxu0 0.0
  %2148 = vmatpush1.msra.mxu0 0.0
  %2149 = vmatprep.subr.mxu0 0.0
  %2150 = vmatpush1.msra.mxu0 0.0
  %2151 = vmatprep.subr.mxu0 0.0
  %2152 = vmatpush1.msra.mxu0 0.0
  %2153 = vmatprep.subr.mxu0 0.0
  %2154 = vmatpush1.msra.mxu0 0.0
  %2155 = vmatprep.subr.mxu0 0.0
  %2156 = vmatpush1.msra.mxu0 0.0
  %2157 = vmatprep.subr.mxu0 0.0
  %2158 = vmatpush1.msra.mxu0 0.0
  %2159 = vmatprep.mubr.f32.mxu0 0.0
  %2160 = vmatmul.mubr.f32.gmra.mrb[0].mxu0 %v2090
  %v2161 = vpop.f32.mrb[0].mxu0
  %v2162 = vadd.f32 0.0, %v2161
  %v2163 = vpop.f32.mrb[0].mxu0
  %2164 = vmatprep.mubr.f32.mxu0 0.0
  %2165 = vmatmul.mubr.f32.gmra.mrb[0].mxu0 %v2093
  %v2166 = vpop.f32.mrb[0].mxu0
  %v2167 = vadd.f32 0.0, %v2166
  %v2168 = vpop.f32.mrb[0].mxu0
  %2169 = vdwg.mxu0
  %v2170 = vadd.f32 %v1967, %v2162
  %v2171 = vadd.f32 %v1968, %v2167
  %v2172 = vld [vmem:[%s2 + $0x4] sm:$0x1]
  %v2173 = vmul.f32 %v2170, %v2170
  %v2174 = vmul.f32 %v2171, %v2171
  %v2175 = vsel %vm38, %v2173, 0.0
  %2176 = vadd.xlane.f32.xlu0 %v2175
  %v2177 = vpop.xlane.xlu0 %2176
  %v2178 = vsel %vm38, %v2174, 0.0
  %2179 = vadd.xlane.f32.xlu0 %v2178
  %v2180 = vpop.xlane.xlu0 %2179
  %v2181 = vmul.f32 %v2177, %v45
  %v2182 = vmul.f32 %v2180, %v45
  %v2183 = vadd.f32 %v2181, 1e-06
  %v2184 = vadd.f32 %v2182, 1e-06
  %v2185 = vrsqrt.pop %v2183
  %v2186 = vrsqrt.pop %v2184
  %v2187 = vmul.f32 %v2170, %v2185
  %v2188 = vmul.f32 %v2171, %v2186
  %v2189 = vlaneseq
  %v2190 = vshrl.u32 %v2189, 7
  %v2191 = vsub.s32 0, %v2190
  %v2192 = vrot.slane %v2172, %v2191
  %v2193 = vmul.f32 %v2187, %v2192
  %v2194 = vmul.f32 %v2188, %v2192
  %v2195 = vld [vmem:[%s7] sm:$0xff]
  %v2196 = vld [vmem:[%s7 + $0x8] sm:$0xff]
  %v2197 = vld [vmem:[%s7 + $0x10] sm:$0xff]
  %v2198 = vld [vmem:[%s7 + $0x18] sm:$0xff]
  %v2200 = vsel %vm38, %v2193, 0
  %v2203 = vsel %vm38, %v2194, 0
  %2205 = vmatprep.subr.mxu0 0.0
  %2206 = vmatpush1.msra.mxu0 %v2195
  %2207 = vmatprep.subr.mxu0 0.0
  %2208 = vmatpush1.msra.mxu0 %v2196
  %2209 = vmatprep.subr.mxu0 0.0
  %2210 = vmatpush1.msra.mxu0 %v2197
  %2211 = vmatprep.subr.mxu0 0.0
  %2212 = vmatpush1.msra.mxu0 %v2198
  %2213 = vmatprep.subr.mxu0 0.0
  %2214 = vmatpush1.msra.mxu0 0.0
  %2215 = vmatprep.subr.mxu0 0.0
  %2216 = vmatpush1.msra.mxu0 0.0
  %2217 = vmatprep.subr.mxu0 0.0
  %2218 = vmatpush1.msra.mxu0 0.0
  %2219 = vmatprep.subr.mxu0 0.0
  %2220 = vmatpush1.msra.mxu0 0.0
  %2221 = vmatprep.subr.mxu0 0.0
  %2222 = vmatpush1.msra.mxu0 0.0
  %2223 = vmatprep.subr.mxu0 0.0
  %2224 = vmatpush1.msra.mxu0 0.0
  %2225 = vmatprep.subr.mxu0 0.0
  %2226 = vmatpush1.msra.mxu0 0.0
  %2227 = vmatprep.subr.mxu0 0.0
  %2228 = vmatpush1.msra.mxu0 0.0
  %2229 = vmatprep.subr.mxu0 0.0
  %2230 = vmatpush1.msra.mxu0 0.0
  %2231 = vmatprep.subr.mxu0 0.0
  %2232 = vmatpush1.msra.mxu0 0.0
  %2233 = vmatprep.subr.mxu0 0.0
  %2234 = vmatpush1.msra.mxu0 0.0
  %2235 = vmatprep.subr.mxu0 0.0
  %2236 = vmatpush1.msra.mxu0 0.0
  %2237 = vmatprep.subr.mxu0 0.0
  %2238 = vmatpush1.msra.mxu0 0.0
  %2239 = vmatprep.subr.mxu0 0.0
  %2240 = vmatpush1.msra.mxu0 0.0
  %2241 = vmatprep.subr.mxu0 0.0
  %2242 = vmatpush1.msra.mxu0 0.0
  %2243 = vmatprep.subr.mxu0 0.0
  %2244 = vmatpush1.msra.mxu0 0.0
  %2245 = vmatprep.subr.mxu0 0.0
  %2246 = vmatpush1.msra.mxu0 0.0
  %2247 = vmatprep.subr.mxu0 0.0
  %2248 = vmatpush1.msra.mxu0 0.0
  %2249 = vmatprep.subr.mxu0 0.0
  %2250 = vmatpush1.msra.mxu0 0.0
  %2251 = vmatprep.subr.mxu0 0.0
  %2252 = vmatpush1.msra.mxu0 0.0
  %2253 = vmatprep.subr.mxu0 0.0
  %2254 = vmatpush1.msra.mxu0 0.0
  %2255 = vmatprep.subr.mxu0 0.0
  %2256 = vmatpush1.msra.mxu0 0.0
  %2257 = vmatprep.subr.mxu0 0.0
  %2258 = vmatpush1.msra.mxu0 0.0
  %2259 = vmatprep.subr.mxu0 0.0
  %2260 = vmatpush1.msra.mxu0 0.0
  %2261 = vmatprep.subr.mxu0 0.0
  %2262 = vmatpush1.msra.mxu0 0.0
  %2263 = vmatprep.subr.mxu0 0.0
  %2264 = vmatpush1.msra.mxu0 0.0
  %2265 = vmatprep.subr.mxu0 0.0
  %2266 = vmatpush1.msra.mxu0 0.0
  %2267 = vmatprep.subr.mxu0 0.0
  %2268 = vmatpush1.msra.mxu0 0.0
  %2269 = vmatprep.mubr.f32.mxu0 0.0
  %2270 = vmatmul.mubr.f32.gmra.mrb[0].mxu0 %v2200
  %v2271 = vpop.f32.mrb[0].mxu0
  %v2272 = vadd.f32 0.0, %v2271
  %v2273 = vpop.f32.mrb[0].mxu0
  %2274 = vmatprep.mubr.f32.mxu0 0.0
  %2275 = vmatmul.mubr.f32.gmra.mrb[0].mxu0 %v2203
  %v2276 = vpop.f32.mrb[0].mxu0
  %v2277 = vadd.f32 0.0, %v2276
  %v2278 = vpop.f32.mrb[0].mxu0
  %2279 = vdwg.mxu0
  %2280 = vst [vmem:[%s8] sm:$0xff] %v2272
  %2281 = vst [vmem:[%s8 + $0x8] sm:$0xff] %v2277
  // Predicated region
  $region34: #{generate.2} parent=0 // pred_check
    _
  $region35: #{generate.2} parent=0 // pred_check_branch
    %2283 = sbr.rel (0) target = $region37
  $region36: #{generate.2} parent=0 // pred_region
    _
  $region37: #{generate.2} parent=0 // pred_fallthru
    _
  // Predicated region
  $region38: #{generate.2} parent=0 // pred_check
    _
  $region39: #{generate.2} parent=0 // pred_check_branch
    %2285 = sbr.rel (0) target = $region41
  $region40: #{generate.2} parent=0 // pred_region
    _
  $region41: #{generate.2} parent=0 // pred_fallthru
    _

// kernel: generate.3
$region0: #{generate.3}
  #allocation0 [shape = 'u32[]', space=smem, size = 0x4, offset = 0x4, fixed_abs, tag = 'smem constant byte address 0x4 - core index']
  #allocation1 [shape = 'u32[144,128]{1,0:T(1,128)}', space=vmem, size = 0x12000, scoped, tag = 'internal scratch']
  #allocation2 [shape = 'f32[2,16,32]{2,1,0:T(8,128)}', space=vmem, size = 0x4000, scoped, tag = 'scratch operand']
  #allocation3 [shape = 'f32[2,16,32]{2,1,0:T(8,128)}', space=vmem, size = 0x4000, scoped, tag = 'scratch operand']
  #allocation4 [shape = 'f32[2,16,32]{2,1,0:T(8,128)}', space=vmem, size = 0x4000, scoped, tag = 'scratch operand']
  #allocation5 [shape = 'f32[2,16,32]{2,1,0:T(8,128)}', space=vmem, size = 0x4000, scoped, tag = 'scratch operand']
  #allocation6 [shape = 's32[2,1]{1,0:T(2,128)}', space=vmem, size = 0x400, scoped, tag = 'scratch operand']
  %s0 = inlined_call_operand.vmem [shape: f32[64,32], index: 0, kind: input, shape index: {}]
  %s1 = inlined_call_operand.vmem [shape: f32[32,64], index: 1, kind: input, shape index: {}]
  %s2 = inlined_call_operand.vmem [shape: f32[7,32], index: 2, kind: input, shape index: {}]
  %s3 = inlined_call_operand.vmem [shape: f32[2,32,96], index: 3, kind: input, shape index: {}]
  %s4 = inlined_call_operand.vmem [shape: f32[2,32,32], index: 4, kind: input, shape index: {}]
  %s5 = inlined_call_operand.vmem [shape: f32[2,32,32], index: 5, kind: input, shape index: {}]
  %s6 = inlined_call_operand.vmem [shape: f32[2,32,32], index: 6, kind: input, shape index: {}]
  %s7 = inlined_call_operand.vmem [shape: f32[2,32,64], index: 7, kind: input, shape index: {}]
  %s8 = inlined_call_operand.vmem [shape: f32[2,64,32], index: 8, kind: input, shape index: {}]
  %s9 = inlined_call_operand.vmem [shape: f32[2,16,16], index: 9, kind: input, shape index: {}]
  %s10 = inlined_call_operand.vmem [shape: f32[2,8], index: 10, kind: input, shape index: {}]
  %s11 = inlined_call_operand.vmem [shape: f32[2,2,8,32], index: 11, kind: input, shape index: {}]
  %s12 = inlined_call_operand.vmem [shape: f32[2,2,8,32], index: 12, kind: input, shape index: {}]
  %s13 = inlined_call_operand.hbm [shape: s32[2,16], index: 13, kind: output, shape index: {}]
  %s14 = sld [smem:[#allocation0]]
  $region89: #{generate.3} parent=0
    _
  %s16 = ssub.s32 1, %s14
  %s17 = scalar_select 0, %s16, %s14
  $region1: #{generate.3} parent=0
    #allocation7 [shape = 'u8[1024]{0}', space=vmem, size = 0x400, scoped, tag = 'output window, operand 0, single buffered']
    #allocation8 [shape = 's32[2]{0}', space=sflag, size = 0x8, scoped, tag = 'scoped memory for generate.3']
    %18 = vsyncpa [#allocation8], 0
    loop: start=0, step=1, limit=17
    $region2: #{generate.3} parent=1 // loop_pre_header
      _
    $region3: #{generate.3} parent=1 // loop_header
      %s20 = sphi 0, %s24
      %p21 = scmp.ge.s32.totalorder %s20, 17
      %s28 = sphi 0, %s28
      %s30 = sphi 0, %s28
      %s31 = sphi 0, %s30
      %s45 = sphi 0, %s31
      %s49 = sphi 0, %s49
      %s51 = sphi 0, %s49
      %s52 = sphi 0, %s51
      %s66 = sphi 0, %s52
      %s70 = sphi 0, %s70
      %s72 = sphi 0, %s70
      %s73 = sphi 0, %s72
      %s87 = sphi 0, %s73
      %s91 = sphi 0, %s91
      %s93 = sphi 0, %s91
      %s94 = sphi 0, %s93
      %s108 = sphi 0, %s94
      %s112 = sphi 0, %s112
      %s114 = sphi 0, %s112
      %s115 = sphi 0, %s114
      %s129 = sphi 0, %s115
      %s133 = sphi 0, %s133
      %s135 = sphi 0, %s133
      %s136 = sphi 0, %s135
      %s150 = sphi 0, %s136
      %s154 = sphi 0, %s154
      %s156 = sphi 0, %s154
      %s157 = sphi 0, %s156
      %s171 = sphi 0, %s157
      %s175 = sphi 0, %s175
      %s177 = sphi 0, %s175
      %s178 = sphi 0, %s177
      %s192 = sphi 0, %s178
      %s196 = sphi 0, %s196
      %s198 = sphi 0, %s196
      %s199 = sphi 0, %s198
      %s213 = sphi 0, %s199
      %s217 = sphi 0, %s217
      %s219 = sphi 0, %s217
      %s220 = sphi 0, %s219
      %s234 = sphi 0, %s220
      %s238 = sphi 0, %s238
      %s240 = sphi 0, %s238
      %s241 = sphi 0, %s240
      %s255 = sphi 0, %s241
      %s259 = sphi 0, %s259
      %s261 = sphi 0, %s259
      %s262 = sphi 0, %s261
      %s276 = sphi 0, %s262
      %s280 = sphi 0, %s280
      %s282 = sphi 0, %s280
      %s283 = sphi 0, %s282
      %s297 = sphi 0, %s283
      %s301 = sphi 0, %s301
      %s303 = sphi 0, %s301
      %s304 = sphi 0, %s303
      %s318 = sphi 0, %s304
    $region4: #{generate.3} parent=1 // loop_header_branch
      %23 = sbr.rel (%p21) target = $region8
    $region5: #{generate.3} parent=1 // loop_body
      %s25 = ssub.s32 %s20, 1
      %s26 = ssub.s32 %s20, 2
      %s27 = sadd.s32 %s20, 1
      %s29 = sadd.s32 %s28, 1
      %p32 = scmp.eq.s32.totalorder %s20, 14
      %p33 = scmp.ne.s32.totalorder %s28, %s30
      %p34 = scmp.eq.s32.totalorder %s20, 0
      %p35 = por %p33, %p34
      %p36 = scmp.ne.s32.totalorder %s28, %s30
      %p37 = scmp.eq.s32.totalorder %s25, 14
      %p38 = por %p36, %p37
      %p39 = scmp.ne.s32.totalorder %s30, %s31
      %p40 = scmp.eq.s32.totalorder %s25, 0
      %p41 = por %p39, %p40
      %p42 = scmp.ne.s32.totalorder %s30, %s31
      %p43 = scmp.eq.s32.totalorder %s26, 14
      %p44 = por %p42, %p43
      %p46 = scmp.ne.s32.totalorder %s31, %s45
      %p47 = scmp.eq.s32.totalorder %s26, 0
      %p48 = por %p46, %p47
      %s50 = sadd.s32 %s49, 1
      %p53 = scmp.eq.s32.totalorder %s20, 14
      %p54 = scmp.ne.s32.totalorder %s49, %s51
      %p55 = scmp.eq.s32.totalorder %s20, 0
      %p56 = por %p54, %p55
      %p57 = scmp.ne.s32.totalorder %s49, %s51
      %p58 = scmp.eq.s32.totalorder %s25, 14
      %p59 = por %p57, %p58
      %p60 = scmp.ne.s32.totalorder %s51, %s52
      %p61 = scmp.eq.s32.totalorder %s25, 0
      %p62 = por %p60, %p61
      %p63 = scmp.ne.s32.totalorder %s51, %s52
      %p64 = scmp.eq.s32.totalorder %s26, 14
      %p65 = por %p63, %p64
      %p67 = scmp.ne.s32.totalorder %s52, %s66
      %p68 = scmp.eq.s32.totalorder %s26, 0
      %p69 = por %p67, %p68
      %s71 = sadd.s32 %s70, 1
      %p74 = scmp.eq.s32.totalorder %s20, 14
      %p75 = scmp.ne.s32.totalorder %s70, %s72
      %p76 = scmp.eq.s32.totalorder %s20, 0
      %p77 = por %p75, %p76
      %p78 = scmp.ne.s32.totalorder %s70, %s72
      %p79 = scmp.eq.s32.totalorder %s25, 14
      %p80 = por %p78, %p79
      %p81 = scmp.ne.s32.totalorder %s72, %s73
      %p82 = scmp.eq.s32.totalorder %s25, 0
      %p83 = por %p81, %p82
      %p84 = scmp.ne.s32.totalorder %s72, %s73
      %p85 = scmp.eq.s32.totalorder %s26, 14
      %p86 = por %p84, %p85
      %p88 = scmp.ne.s32.totalorder %s73, %s87
      %p89 = scmp.eq.s32.totalorder %s26, 0
      %p90 = por %p88, %p89
      %s92 = sadd.s32 %s91, 1
      %p95 = scmp.eq.s32.totalorder %s20, 14
      %p96 = scmp.ne.s32.totalorder %s91, %s93
      %p97 = scmp.eq.s32.totalorder %s20, 0
      %p98 = por %p96, %p97
      %p99 = scmp.ne.s32.totalorder %s91, %s93
      %p100 = scmp.eq.s32.totalorder %s25, 14
      %p101 = por %p99, %p100
      %p102 = scmp.ne.s32.totalorder %s93, %s94
      %p103 = scmp.eq.s32.totalorder %s25, 0
      %p104 = por %p102, %p103
      %p105 = scmp.ne.s32.totalorder %s93, %s94
      %p106 = scmp.eq.s32.totalorder %s26, 14
      %p107 = por %p105, %p106
      %p109 = scmp.ne.s32.totalorder %s94, %s108
      %p110 = scmp.eq.s32.totalorder %s26, 0
      %p111 = por %p109, %p110
      %s113 = sadd.s32 %s112, 1
      %p116 = scmp.eq.s32.totalorder %s20, 14
      %p117 = scmp.ne.s32.totalorder %s112, %s114
      %p118 = scmp.eq.s32.totalorder %s20, 0
      %p119 = por %p117, %p118
      %p120 = scmp.ne.s32.totalorder %s112, %s114
      %p121 = scmp.eq.s32.totalorder %s25, 14
      %p122 = por %p120, %p121
      %p123 = scmp.ne.s32.totalorder %s114, %s115
      %p124 = scmp.eq.s32.totalorder %s25, 0
      %p125 = por %p123, %p124
      %p126 = scmp.ne.s32.totalorder %s114, %s115
      %p127 = scmp.eq.s32.totalorder %s26, 14
      %p128 = por %p126, %p127
      %p130 = scmp.ne.s32.totalorder %s115, %s129
      %p131 = scmp.eq.s32.totalorder %s26, 0
      %p132 = por %p130, %p131
      %s134 = sadd.s32 %s133, 1
      %p137 = scmp.eq.s32.totalorder %s20, 14
      %p138 = scmp.ne.s32.totalorder %s133, %s135
      %p139 = scmp.eq.s32.totalorder %s20, 0
      %p140 = por %p138, %p139
      %p141 = scmp.ne.s32.totalorder %s133, %s135
      %p142 = scmp.eq.s32.totalorder %s25, 14
      %p143 = por %p141, %p142
      %p144 = scmp.ne.s32.totalorder %s135, %s136
      %p145 = scmp.eq.s32.totalorder %s25, 0
      %p146 = por %p144, %p145
      %p147 = scmp.ne.s32.totalorder %s135, %s136
      %p148 = scmp.eq.s32.totalorder %s26, 14
      %p149 = por %p147, %p148
      %p151 = scmp.ne.s32.totalorder %s136, %s150
      %p152 = scmp.eq.s32.totalorder %s26, 0
      %p153 = por %p151, %p152
      %s155 = sadd.s32 %s154, 1
      %p158 = scmp.eq.s32.totalorder %s20, 14
      %p159 = scmp.ne.s32.totalorder %s154, %s156
      %p160 = scmp.eq.s32.totalorder %s20, 0
      %p161 = por %p159, %p160
      %p162 = scmp.ne.s32.totalorder %s154, %s156
      %p163 = scmp.eq.s32.totalorder %s25, 14
      %p164 = por %p162, %p163
      %p165 = scmp.ne.s32.totalorder %s156, %s157
      %p166 = scmp.eq.s32.totalorder %s25, 0
      %p167 = por %p165, %p166
      %p168 = scmp.ne.s32.totalorder %s156, %s157
      %p169 = scmp.eq.s32.totalorder %s26, 14
      %p170 = por %p168, %p169
      %p172 = scmp.ne.s32.totalorder %s157, %s171
      %p173 = scmp.eq.s32.totalorder %s26, 0
      %p174 = por %p172, %p173
      %s176 = sadd.s32 %s175, 1
      %p179 = scmp.eq.s32.totalorder %s20, 14
      %p180 = scmp.ne.s32.totalorder %s175, %s177
      %p181 = scmp.eq.s32.totalorder %s20, 0
      %p182 = por %p180, %p181
      %p183 = scmp.ne.s32.totalorder %s175, %s177
      %p184 = scmp.eq.s32.totalorder %s25, 14
      %p185 = por %p183, %p184
      %p186 = scmp.ne.s32.totalorder %s177, %s178
      %p187 = scmp.eq.s32.totalorder %s25, 0
      %p188 = por %p186, %p187
      %p189 = scmp.ne.s32.totalorder %s177, %s178
      %p190 = scmp.eq.s32.totalorder %s26, 14
      %p191 = por %p189, %p190
      %p193 = scmp.ne.s32.totalorder %s178, %s192
      %p194 = scmp.eq.s32.totalorder %s26, 0
      %p195 = por %p193, %p194
      %s197 = sadd.s32 %s196, 1
      %p200 = scmp.eq.s32.totalorder %s20, 14
      %p201 = scmp.ne.s32.totalorder %s196, %s198
      %p202 = scmp.eq.s32.totalorder %s20, 0
      %p203 = por %p201, %p202
      %p204 = scmp.ne.s32.totalorder %s196, %s198
      %p205 = scmp.eq.s32.totalorder %s25, 14
      %p206 = por %p204, %p205
      %p207 = scmp.ne.s32.totalorder %s198, %s199
      %p208 = scmp.eq.s32.totalorder %s25, 0
      %p209 = por %p207, %p208
      %p210 = scmp.ne.s32.totalorder %s198, %s199
      %p211 = scmp.eq.s32.totalorder %s26, 14
      %p212 = por %p210, %p211
      %p214 = scmp.ne.s32.totalorder %s199, %s213
      %p215 = scmp.eq.s32.totalorder %s26, 0
      %p216 = por %p214, %p215
      %s218 = sadd.s32 %s217, 1
      %p221 = scmp.eq.s32.totalorder %s20, 14
      %p222 = scmp.ne.s32.totalorder %s217, %s219
      %p223 = scmp.eq.s32.totalorder %s20, 0
      %p224 = por %p222, %p223
      %p225 = scmp.ne.s32.totalorder %s217, %s219
      %p226 = scmp.eq.s32.totalorder %s25, 14
      %p227 = por %p225, %p226
      %p228 = scmp.ne.s32.totalorder %s219, %s220
      %p229 = scmp.eq.s32.totalorder %s25, 0
      %p230 = por %p228, %p229
      %p231 = scmp.ne.s32.totalorder %s219, %s220
      %p232 = scmp.eq.s32.totalorder %s26, 14
      %p233 = por %p231, %p232
      %p235 = scmp.ne.s32.totalorder %s220, %s234
      %p236 = scmp.eq.s32.totalorder %s26, 0
      %p237 = por %p235, %p236
      %s239 = sadd.s32 %s238, 1
      %p242 = scmp.eq.s32.totalorder %s20, 14
      %p243 = scmp.ne.s32.totalorder %s238, %s240
      %p244 = scmp.eq.s32.totalorder %s20, 0
      %p245 = por %p243, %p244
      %p246 = scmp.ne.s32.totalorder %s238, %s240
      %p247 = scmp.eq.s32.totalorder %s25, 14
      %p248 = por %p246, %p247
      %p249 = scmp.ne.s32.totalorder %s240, %s241
      %p250 = scmp.eq.s32.totalorder %s25, 0
      %p251 = por %p249, %p250
      %p252 = scmp.ne.s32.totalorder %s240, %s241
      %p253 = scmp.eq.s32.totalorder %s26, 14
      %p254 = por %p252, %p253
      %p256 = scmp.ne.s32.totalorder %s241, %s255
      %p257 = scmp.eq.s32.totalorder %s26, 0
      %p258 = por %p256, %p257
      %s260 = sadd.s32 %s259, 1
      %p263 = scmp.eq.s32.totalorder %s20, 14
      %p264 = scmp.ne.s32.totalorder %s259, %s261
      %p265 = scmp.eq.s32.totalorder %s20, 0
      %p266 = por %p264, %p265
      %p267 = scmp.ne.s32.totalorder %s259, %s261
      %p268 = scmp.eq.s32.totalorder %s25, 14
      %p269 = por %p267, %p268
      %p270 = scmp.ne.s32.totalorder %s261, %s262
      %p271 = scmp.eq.s32.totalorder %s25, 0
      %p272 = por %p270, %p271
      %p273 = scmp.ne.s32.totalorder %s261, %s262
      %p274 = scmp.eq.s32.totalorder %s26, 14
      %p275 = por %p273, %p274
      %p277 = scmp.ne.s32.totalorder %s262, %s276
      %p278 = scmp.eq.s32.totalorder %s26, 0
      %p279 = por %p277, %p278
      %s281 = sadd.s32 %s280, 1
      %p284 = scmp.eq.s32.totalorder %s20, 14
      %p285 = scmp.ne.s32.totalorder %s280, %s282
      %p286 = scmp.eq.s32.totalorder %s20, 0
      %p287 = por %p285, %p286
      %p288 = scmp.ne.s32.totalorder %s280, %s282
      %p289 = scmp.eq.s32.totalorder %s25, 14
      %p290 = por %p288, %p289
      %p291 = scmp.ne.s32.totalorder %s282, %s283
      %p292 = scmp.eq.s32.totalorder %s25, 0
      %p293 = por %p291, %p292
      %p294 = scmp.ne.s32.totalorder %s282, %s283
      %p295 = scmp.eq.s32.totalorder %s26, 14
      %p296 = por %p294, %p295
      %p298 = scmp.ne.s32.totalorder %s283, %s297
      %p299 = scmp.eq.s32.totalorder %s26, 0
      %p300 = por %p298, %p299
      %s302 = sadd.s32 %s301, 1
      %p305 = scmp.eq.s32.totalorder %s20, 14
      %p306 = scmp.ne.s32.totalorder %s301, %s303
      %p307 = scmp.eq.s32.totalorder %s20, 0
      %p308 = por %p306, %p307
      %p309 = scmp.ne.s32.totalorder %s301, %s303
      %p310 = scmp.eq.s32.totalorder %s25, 14
      %p311 = por %p309, %p310
      %p312 = scmp.ne.s32.totalorder %s303, %s304
      %p313 = scmp.eq.s32.totalorder %s25, 0
      %p314 = por %p312, %p313
      %p315 = scmp.ne.s32.totalorder %s303, %s304
      %p316 = scmp.eq.s32.totalorder %s26, 14
      %p317 = por %p315, %p316
      %p319 = scmp.ne.s32.totalorder %s304, %s318
      %p320 = scmp.eq.s32.totalorder %s26, 0
      %p321 = por %p319, %p320
      %p322 = scmp.le.s32.totalorder 1, %s20
      %p323 = scmp.lt.s32.totalorder %s20, 16
      %p324 = pnand %p322, %p323
      %p325 = pneg %p324
      // Predicated region
      $region9: #{generate.3} parent=5 // pred_check
        _
      $region10: #{generate.3} parent=5 // pred_check_branch
        %327 = sbr.rel (%p324) target = $region12
      $region11: #{generate.3} parent=5 // pred_region
        %s328 = ssub.s32 %s20, 1
        // Predicated region
        $region13: #{generate.3} parent=11 // pred_check
          %p329 = pneg %p41
        $region14: #{generate.3} parent=11 // pred_check_branch
          %331 = sbr.rel (%p329) target = $region16
        $region15: #{generate.3} parent=11 // pred_region
          _
        $region16: #{generate.3} parent=11 // pred_fallthru
          _
        // Predicated region
        $region17: #{generate.3} parent=11 // pred_check
          %p332 = pneg %p62
        $region18: #{generate.3} parent=11 // pred_check_branch
          %334 = sbr.rel (%p332) target = $region20
        $region19: #{generate.3} parent=11 // pred_region
          _
        $region20: #{generate.3} parent=11 // pred_fallthru
          _
        // Predicated region
        $region21: #{generate.3} parent=11 // pred_check
          %p335 = pneg %p83
        $region22: #{generate.3} parent=11 // pred_check_branch
          %337 = sbr.rel (%p335) target = $region24
        $region23: #{generate.3} parent=11 // pred_region
          _
        $region24: #{generate.3} parent=11 // pred_fallthru
          _
        // Predicated region
        $region25: #{generate.3} parent=11 // pred_check
          %p338 = pneg %p104
        $region26: #{generate.3} parent=11 // pred_check_branch
          %340 = sbr.rel (%p338) target = $region28
        $region27: #{generate.3} parent=11 // pred_region
          _
        $region28: #{generate.3} parent=11 // pred_fallthru
          _
        // Predicated region
        $region29: #{generate.3} parent=11 // pred_check
          %p341 = pneg %p125
        $region30: #{generate.3} parent=11 // pred_check_branch
          %343 = sbr.rel (%p341) target = $region32
        $region31: #{generate.3} parent=11 // pred_region
          _
        $region32: #{generate.3} parent=11 // pred_fallthru
          _
        // Predicated region
        $region33: #{generate.3} parent=11 // pred_check
          %p344 = pneg %p146
        $region34: #{generate.3} parent=11 // pred_check_branch
          %346 = sbr.rel (%p344) target = $region36
        $region35: #{generate.3} parent=11 // pred_region
          _
        $region36: #{generate.3} parent=11 // pred_fallthru
          _
        // Predicated region
        $region37: #{generate.3} parent=11 // pred_check
          %p347 = pneg %p167
        $region38: #{generate.3} parent=11 // pred_check_branch
          %349 = sbr.rel (%p347) target = $region40
        $region39: #{generate.3} parent=11 // pred_region
          _
        $region40: #{generate.3} parent=11 // pred_fallthru
          _
        // Predicated region
        $region41: #{generate.3} parent=11 // pred_check
          %p350 = pneg %p188
        $region42: #{generate.3} parent=11 // pred_check_branch
          %352 = sbr.rel (%p350) target = $region44
        $region43: #{generate.3} parent=11 // pred_region
          _
        $region44: #{generate.3} parent=11 // pred_fallthru
          _
        // Predicated region
        $region45: #{generate.3} parent=11 // pred_check
          %p353 = pneg %p209
        $region46: #{generate.3} parent=11 // pred_check_branch
          %355 = sbr.rel (%p353) target = $region48
        $region47: #{generate.3} parent=11 // pred_region
          _
        $region48: #{generate.3} parent=11 // pred_fallthru
          _
        // Predicated region
        $region49: #{generate.3} parent=11 // pred_check
          %p356 = pneg %p230
        $region50: #{generate.3} parent=11 // pred_check_branch
          %358 = sbr.rel (%p356) target = $region52
        $region51: #{generate.3} parent=11 // pred_region
          _
        $region52: #{generate.3} parent=11 // pred_fallthru
          _
        // Predicated region
        $region53: #{generate.3} parent=11 // pred_check
          %p359 = pneg %p251
        $region54: #{generate.3} parent=11 // pred_check_branch
          %361 = sbr.rel (%p359) target = $region56
        $region55: #{generate.3} parent=11 // pred_region
          _
        $region56: #{generate.3} parent=11 // pred_fallthru
          _
        // Predicated region
        $region57: #{generate.3} parent=11 // pred_check
          %p362 = pneg %p272
        $region58: #{generate.3} parent=11 // pred_check_branch
          %364 = sbr.rel (%p362) target = $region60
        $region59: #{generate.3} parent=11 // pred_region
          _
        $region60: #{generate.3} parent=11 // pred_fallthru
          _
        // Predicated region
        $region61: #{generate.3} parent=11 // pred_check
          %p365 = pneg %p293
        $region62: #{generate.3} parent=11 // pred_check_branch
          %367 = sbr.rel (%p365) target = $region64
        $region63: #{generate.3} parent=11 // pred_region
          _
        $region64: #{generate.3} parent=11 // pred_fallthru
          _
      $region12: #{generate.3} parent=5 // pred_fallthru
        _
      %p368 = scmp.lt.s32.totalorder %s20, 15
      // Predicated region
      $region65: #{generate.3} parent=5 // pred_check
        %p369 = pneg %p368
      $region66: #{generate.3} parent=5 // pred_check_branch
        %371 = sbr.rel (%p369) target = $region68
      $region67: #{generate.3} parent=5 // pred_region
        _
      $region68: #{generate.3} parent=5 // pred_fallthru
        _
      %p372 = scmp.le.s32.totalorder 1, %s20
      %p373 = scmp.lt.s32.totalorder %s20, 16
      %p374 = pnand %p372, %p373
      %p375 = pneg %p374
      // Predicated region
      $region69: #{generate.3} parent=5 // pred_check
        _
      $region70: #{generate.3} parent=5 // pred_check_branch
        %377 = sbr.rel (%p374) target = $region72
      $region71: #{generate.3} parent=5 // pred_region
        %s378 = ssub.s32 %s20, 1
        %p379 = pneg %p41
        %p380 = pneg %p38
        %p381 = pneg %p62
        %p382 = pneg %p59
        %p383 = pneg %p83
        %p384 = pneg %p80
        %p385 = pneg %p104
        %p386 = pneg %p101
        %p387 = pneg %p125
        %p388 = pneg %p122
        %p389 = pneg %p146
        %p390 = pneg %p143
        %p391 = pneg %p167
        %p392 = pneg %p164
        %p393 = pneg %p188
        %p394 = pneg %p185
        %p395 = pneg %p209
        %p396 = pneg %p206
        %p397 = pneg %p230
        %p398 = pneg %p227
        %p399 = pneg %p251
        %p400 = pneg %p248
        %p401 = pneg %p272
        %p402 = pneg %p269
        %p403 = pneg %p293
        %p404 = pneg %p290
        %p405 = pneg %p314
        %p406 = pneg %p311
        %p407 = scmp.eq.s32.totalorder %s25, 0
        // Predicated region
        $region73: #{generate.3} parent=71 // pred_check
          %p408 = pneg %p407
        $region74: #{generate.3} parent=71 // pred_check_branch
          %410 = sbr.rel (%p408) target = $region76
        $region75: #{generate.3} parent=71 // pred_region
          %vm411 = vcmask 123904
          %412 = vst.msk [vmem:[#allocation7] sm:$0x3] %vm411, 0
          %vm413 = vcmask 1024
          %414 = vst.msk [vmem:[#allocation6] sm:$0x3] %vm413, 0
          %vm415 = vcmask 261120
          %416 = vst.msk [vmem:[#allocation2] sm:$0xff] %vm415, 0.0
          %417 = vst.msk [vmem:[#allocation2 + $0x8] sm:$0xff] %vm415, 0.0
          %418 = vst.msk [vmem:[#allocation2 + $0x10] sm:$0xff] %vm415, 0.0
          %419 = vst.msk [vmem:[#allocation2 + $0x18] sm:$0xff] %vm415, 0.0
          %420 = vst.msk [vmem:[#allocation3] sm:$0xff] %vm415, 0.0
          %421 = vst.msk [vmem:[#allocation3 + $0x8] sm:$0xff] %vm415, 0.0
          %422 = vst.msk [vmem:[#allocation3 + $0x10] sm:$0xff] %vm415, 0.0
          %423 = vst.msk [vmem:[#allocation3 + $0x18] sm:$0xff] %vm415, 0.0
          %424 = vst.msk [vmem:[#allocation4] sm:$0xff] %vm415, 0.0
          %425 = vst.msk [vmem:[#allocation4 + $0x8] sm:$0xff] %vm415, 0.0
          %426 = vst.msk [vmem:[#allocation4 + $0x10] sm:$0xff] %vm415, 0.0
          %427 = vst.msk [vmem:[#allocation4 + $0x18] sm:$0xff] %vm415, 0.0
          %428 = vst.msk [vmem:[#allocation5] sm:$0xff] %vm415, 0.0
          %429 = vst.msk [vmem:[#allocation5 + $0x8] sm:$0xff] %vm415, 0.0
          %430 = vst.msk [vmem:[#allocation5 + $0x10] sm:$0xff] %vm415, 0.0
          %431 = vst.msk [vmem:[#allocation5 + $0x18] sm:$0xff] %vm415, 0.0
        $region76: #{generate.3} parent=71 // pred_fallthru
          _
        %v432 = vlaneseq
        %v433 = vand.u32 %v432, 127
        %v434 = vld [vmem:[#allocation6] sm:$0x3]
        %435 = vset.pattern.permute.xlu0 0
        %436 = vperm.xlu0 %435, %v434
        %v437 = vpop.permute.xlu0 %436
        %vm438 = vcmp.eq.s32.totalorder %v433, %v437
        %v439 = vsel %vm438, 1, 0
        %v440 = vcvt.s32.f32 %v439
        %v441 = vld [vmem:[%s0] sm:$0xff]
        %v442 = vld [vmem:[%s0 + $0x8] sm:$0xff]
        %v443 = vld [vmem:[%s0 + $0x10] sm:$0xff]
        %v444 = vld [vmem:[%s0 + $0x18] sm:$0xff]
        %v445 = vld [vmem:[%s0 + $0x20] sm:$0xff]
        %v446 = vld [vmem:[%s0 + $0x28] sm:$0xff]
        %v447 = vld [vmem:[%s0 + $0x30] sm:$0xff]
        %v448 = vld [vmem:[%s0 + $0x38] sm:$0xff]
        %vm449 = vcmask 523264
        %v451 = vsel %vm449, %v440, 0
        %453 = vmatprep.subr.mxu0 0.0
        %454 = vmatpush1.msra.mxu0 %v441
        %455 = vmatprep.subr.mxu0 0.0
        %456 = vmatpush1.msra.mxu0 %v442
        %457 = vmatprep.subr.mxu0 0.0
        %458 = vmatpush1.msra.mxu0 %v443
        %459 = vmatprep.subr.mxu0 0.0
        %460 = vmatpush1.msra.mxu0 %v444
        %461 = vmatprep.subr.mxu0 0.0
        %462 = vmatpush1.msra.mxu0 %v445
        %463 = vmatprep.subr.mxu0 0.0
        %464 = vmatpush1.msra.mxu0 %v446
        %465 = vmatprep.subr.mxu0 0.0
        %466 = vmatpush1.msra.mxu0 %v447
        %467 = vmatprep.subr.mxu0 0.0
        %468 = vmatpush1.msra.mxu0 %v448
        %469 = vmatprep.subr.mxu0 0.0
        %470 = vmatpush1.msra.mxu0 0.0
        %471 = vmatprep.subr.mxu0 0.0
        %472 = vmatpush1.msra.mxu0 0.0
        %473 = vmatprep.subr.mxu0 0.0
        %474 = vmatpush1.msra.mxu0 0.0
        %475 = vmatprep.subr.mxu0 0.0
        %476 = vmatpush1.msra.mxu0 0.0
        %477 = vmatprep.subr.mxu0 0.0
        %478 = vmatpush1.msra.mxu0 0.0
        %479 = vmatprep.subr.mxu0 0.0
        %480 = vmatpush1.msra.mxu0 0.0
        %481 = vmatprep.subr.mxu0 0.0
        %482 = vmatpush1.msra.mxu0 0.0
        %483 = vmatprep.subr.mxu0 0.0
        %484 = vmatpush1.msra.mxu0 0.0
        %485 = vmatprep.subr.mxu0 0.0
        %486 = vmatpush1.msra.mxu0 0.0
        %487 = vmatprep.subr.mxu0 0.0
        %488 = vmatpush1.msra.mxu0 0.0
        %489 = vmatprep.subr.mxu0 0.0
        %490 = vmatpush1.msra.mxu0 0.0
        %491 = vmatprep.subr.mxu0 0.0
        %492 = vmatpush1.msra.mxu0 0.0
        %493 = vmatprep.subr.mxu0 0.0
        %494 = vmatpush1.msra.mxu0 0.0
        %495 = vmatprep.subr.mxu0 0.0
        %496 = vmatpush1.msra.mxu0 0.0
        %497 = vmatprep.subr.mxu0 0.0
        %498 = vmatpush1.msra.mxu0 0.0
        %499 = vmatprep.subr.mxu0 0.0
        %500 = vmatpush1.msra.mxu0 0.0
        %501 = vmatprep.subr.mxu0 0.0
        %502 = vmatpush1.msra.mxu0 0.0
        %503 = vmatprep.subr.mxu0 0.0
        %504 = vmatpush1.msra.mxu0 0.0
        %505 = vmatprep.subr.mxu0 0.0
        %506 = vmatpush1.msra.mxu0 0.0
        %507 = vmatprep.subr.mxu0 0.0
        %508 = vmatpush1.msra.mxu0 0.0
        %509 = vmatprep.subr.mxu0 0.0
        %510 = vmatpush1.msra.mxu0 0.0
        %511 = vmatprep.subr.mxu0 0.0
        %512 = vmatpush1.msra.mxu0 0.0
        %513 = vmatprep.subr.mxu0 0.0
        %514 = vmatpush1.msra.mxu0 0.0
        %515 = vmatprep.subr.mxu0 0.0
        %516 = vmatpush1.msra.mxu0 0.0
        %517 = vmatprep.mubr.f32.mxu0 0.0
        %518 = vmatmul.mubr.f32.gmra.mrb[0].mxu0 %v451
        %v519 = vpop.f32.mrb[0].mxu0
        %v520 = vadd.f32 0.0, %v519
        %v521 = vpop.f32.mrb[0].mxu0
        %522 = vdwg.mxu0
        %v523 = vld [vmem:[%s10] sm:$0x3]
        %v524 = vld [vmem:[%s2] sm:$0x1]
        %v525 = vmul.f32 %v520, %v520
        %vm526 = vcmask 254976
        %v527 = vsel %vm526, %v525, 0.0
        %528 = vadd.xlane.f32.xlu0 %v527
        %v529 = vpop.xlane.xlu0 %528
        %v530 = vrcp.pop 32.0
        %v531 = vmul.f32 %v529, %v530
        %v532 = vadd.f32 %v531, 1e-06
        %v533 = vrsqrt.pop %v532
        %v534 = vmul.f32 %v520, %v533
        %v535 = vlaneseq
        %v536 = vshrl.u32 %v535, 7
        %v537 = vsub.s32 0, %v536
        %v538 = vrot.slane %v524, %v537
        %v539 = vmul.f32 %v534, %v538
        %v540 = vld [vmem:[%s3] sm:$0xff]
        %v541 = vld [vmem:[%s3 + $0x8] sm:$0xff]
        %v542 = vld [vmem:[%s3 + $0x10] sm:$0xff]
        %v543 = vld [vmem:[%s3 + $0x18] sm:$0xff]
        %vm544 = vcmask 261120
        %v546 = vsel %vm544, %v539, 0
        %548 = vmatprep.subr.mxu0 0.0
        %549 = vmatpush1.msra.mxu0 %v540
        %550 = vmatprep.subr.mxu0 0.0
        %551 = vmatpush1.msra.mxu0 %v541
        %552 = vmatprep.subr.mxu0 0.0
        %553 = vmatpush1.msra.mxu0 %v542
        %554 = vmatprep.subr.mxu0 0.0
        %555 = vmatpush1.msra.mxu0 %v543
        %556 = vmatprep.subr.mxu0 0.0
        %557 = vmatpush1.msra.mxu0 0.0
        %558 = vmatprep.subr.mxu0 0.0
        %559 = vmatpush1.msra.mxu0 0.0
        %560 = vmatprep.subr.mxu0 0.0
        %561 = vmatpush1.msra.mxu0 0.0
        %562 = vmatprep.subr.mxu0 0.0
        %563 = vmatpush1.msra.mxu0 0.0
        %564 = vmatprep.subr.mxu0 0.0
        %565 = vmatpush1.msra.mxu0 0.0
        %566 = vmatprep.subr.mxu0 0.0
        %567 = vmatpush1.msra.mxu0 0.0
        %568 = vmatprep.subr.mxu0 0.0
        %569 = vmatpush1.msra.mxu0 0.0
        %570 = vmatprep.subr.mxu0 0.0
        %571 = vmatpush1.msra.mxu0 0.0
        %572 = vmatprep.subr.mxu0 0.0
        %573 = vmatpush1.msra.mxu0 0.0
        %574 = vmatprep.subr.mxu0 0.0
        %575 = vmatpush1.msra.mxu0 0.0
        %576 = vmatprep.subr.mxu0 0.0
        %577 = vmatpush1.msra.mxu0 0.0
        %578 = vmatprep.subr.mxu0 0.0
        %579 = vmatpush1.msra.mxu0 0.0
        %580 = vmatprep.subr.mxu0 0.0
        %581 = vmatpush1.msra.mxu0 0.0
        %582 = vmatprep.subr.mxu0 0.0
        %583 = vmatpush1.msra.mxu0 0.0
        %584 = vmatprep.subr.mxu0 0.0
        %585 = vmatpush1.msra.mxu0 0.0
        %586 = vmatprep.subr.mxu0 0.0
        %587 = vmatpush1.msra.mxu0 0.0
        %588 = vmatprep.subr.mxu0 0.0
        %589 = vmatpush1.msra.mxu0 0.0
        %590 = vmatprep.subr.mxu0 0.0
        %591 = vmatpush1.msra.mxu0 0.0
        %592 = vmatprep.subr.mxu0 0.0
        %593 = vmatpush1.msra.mxu0 0.0
        %594 = vmatprep.subr.mxu0 0.0
        %595 = vmatpush1.msra.mxu0 0.0
        %596 = vmatprep.subr.mxu0 0.0
        %597 = vmatpush1.msra.mxu0 0.0
        %598 = vmatprep.subr.mxu0 0.0
        %599 = vmatpush1.msra.mxu0 0.0
        %600 = vmatprep.subr.mxu0 0.0
        %601 = vmatpush1.msra.mxu0 0.0
        %602 = vmatprep.subr.mxu0 0.0
        %603 = vmatpush1.msra.mxu0 0.0
        %604 = vmatprep.subr.mxu0 0.0
        %605 = vmatpush1.msra.mxu0 0.0
        %606 = vmatprep.subr.mxu0 0.0
        %607 = vmatpush1.msra.mxu0 0.0
        %608 = vmatprep.subr.mxu0 0.0
        %609 = vmatpush1.msra.mxu0 0.0
        %610 = vmatprep.subr.mxu0 0.0
        %611 = vmatpush1.msra.mxu0 0.0
        %612 = vmatprep.mubr.f32.mxu0 0.0
        %613 = vmatmul.mubr.f32.gmra.mrb[0].mxu0 %v546
        %v614 = vpop.f32.mrb[0].mxu0
        %v615 = vadd.f32 0.0, %v614
        %v616 = vpop.f32.mrb[0].mxu0
        %617 = vdwg.mxu0
        %v620 = vunpack.c.l.s4 1966171168
        %v621 = vunpack.c.0.s8 %v620
        %v622 = vlaneseq
        %v623 = vshrl.u32 %v622, 7
        %v624 = vsub.s32 %v621, %v623
        %v625 = vrot.slane %v615, %v624
        %v626 = vcombine.high %v625, %v625
        %v628 = vunpack.c.l.s4 1966171168
        %v629 = vunpack.c.0.s8 %v628
        %v630 = vlaneseq
        %v631 = vshrl.u32 %v630, 7
        %v632 = vsub.s32 %v629, %v631
        %v633 = vrot.slane %v625, %v632
        %v635 = vunpack.c.l.s4 1966171168
        %v636 = vunpack.c.0.s8 %v635
        %v637 = vlaneseq
        %v638 = vshrl.u32 %v637, 7
        %v639 = vsub.s32 %v636, %v638
        %v640 = vrot.slane %v626, %v639
        %v641 = vlaneseq
        %v642 = vshrl.u32 %v641, 7
        %v643 = vsub.s32 0, %v642
        %v644 = vrot.slane %v633, %v643
        %v645 = vlaneseq
        %v646 = vshrl.u32 %v645, 7
        %v647 = vsub.s32 0, %v646
        %v648 = vrot.slane %v640, %v647
        %649 = vrot.lane.b32.xlu0 %v644, 96
        %v650 = vpop.permute.xlu0 %649
        %651 = vrot.lane.b32.xlu0 %v648, 96
        %v652 = vpop.permute.xlu0 %651
        %s655 = scalar_lea.vmem [#allocation2], %s25
        %vm656 = vcmask 253952
        %657 = vst.msk [vmem:[%s655] sm:$0x1] %vm656, %v650
        %658 = vst.msk [vmem:[%s655 + $0x10] sm:$0x1] %vm656, %v652
        %659 = vrot.lane.b32.xlu0 %v644, 64
        %v660 = vpop.permute.xlu0 %659
        %661 = vrot.lane.b32.xlu0 %v648, 64
        %v662 = vpop.permute.xlu0 %661
        %s665 = scalar_lea.vmem [#allocation3], %s25
        %666 = vst.msk [vmem:[%s665] sm:$0x1] %vm656, %v660
        %667 = vst.msk [vmem:[%s665 + $0x10] sm:$0x1] %vm656, %v662
        %v668 = vld [vmem:[#allocation2] sm:$0xff]
        %v669 = vld [vmem:[#allocation2 + $0x8] sm:$0xff]
        %v670 = vld [vmem:[#allocation2 + $0x10] sm:$0xff]
        %v671 = vld [vmem:[#allocation2 + $0x18] sm:$0xff]
        %v672 = vld [vmem:[#allocation3] sm:$0xff]
        %v673 = vld [vmem:[#allocation3 + $0x8] sm:$0xff]
        %v674 = vld [vmem:[#allocation3 + $0x10] sm:$0xff]
        %v675 = vld [vmem:[#allocation3 + $0x18] sm:$0xff]
        %v678 = vmul.f32 %v644, %v668
        %v679 = vmul.f32 %v644, %v669
        %v680 = vmul.f32 %v648, %v670
        %v681 = vmul.f32 %v648, %v671
        %vm682 = vcmask 130048
        %v683 = vsel %vm682, %v678, 0.0
        %684 = vadd.xlane.f32.xlu0 %v683
        %v685 = vpop.xlane.xlu0 %684
        %v686 = vsel %vm682, %v679, 0.0
        %687 = vadd.xlane.f32.xlu0 %v686
        %v688 = vpop.xlane.xlu0 %687
        %v689 = vsel %vm682, %v680, 0.0
        %690 = vadd.xlane.f32.xlu0 %v689
        %v691 = vpop.xlane.xlu0 %690
        %v692 = vsel %vm682, %v681, 0.0
        %693 = vadd.xlane.f32.xlu0 %v692
        %v694 = vpop.xlane.xlu0 %693
        %s695 = scalar_lea.vmem %s9, %s25
        %v696 = vld [vmem:[%s695] sm:$0x1]
        %v697 = vlaneseq
        %v698 = vshrl.u32 %v697, 7
        %v699 = vsub.s32 0, %v698
        %v700 = vrot.slane %v696, %v699
        %703 = vbcast.lane.b32.xlu0 %v700, 256
        %v704 = vpop.permute.xlu0 %703
        %s706 = sor.u32 256, 8
        %707 = vbcast.lane.b32.xlu0 %v700, %s706
        %v708 = vpop.permute.xlu0 %707
        %v711 = vadd.f32 %v685, %v704
        %v712 = vadd.f32 %v688, %v708
        %v713 = vadd.f32 %v691, %v704
        %v714 = vadd.f32 %v694, %v708
        %719 = vset.pattern.permute.xlu0 0
        %720 = vperm.xlu0 %719, %v711
        %v721 = vpop.permute.xlu0 %720
        %722 = vset.pattern.permute.xlu0 0
        %723 = vperm.xlu0 %722, %v712
        %v724 = vpop.permute.xlu0 %723
        %725 = vset.pattern.permute.xlu0 0
        %726 = vperm.xlu0 %725, %v713
        %v727 = vpop.permute.xlu0 %726
        %728 = vset.pattern.permute.xlu0 0
        %729 = vperm.xlu0 %728, %v714
        %v730 = vpop.permute.xlu0 %729
        %v731 = vlaneseq
        %v732 = vshrl.u32 %v731, 7
        %v733 = vsub.s32 %v433, %v732
        %v734 = vrot.slane %v721, %v733
        %v735 = vadd.s32 %v433, 4294967288
        %v736 = vlaneseq
        %v737 = vshrl.u32 %v736, 7
        %v738 = vsub.s32 %v735, %v737
        %v739 = vrot.slane %v724, %v738
        %vm740 = vcmask 130112
        %v741 = vsel %vm740, %v739, %v734
        %v742 = vlaneseq
        %v743 = vshrl.u32 %v742, 7
        %v744 = vsub.s32 %v433, %v743
        %v745 = vrot.slane %v727, %v744
        %v746 = vlaneseq
        %v747 = vshrl.u32 %v746, 7
        %v748 = vsub.s32 %v735, %v747
        %v749 = vrot.slane %v730, %v748
        %v750 = vsel %vm740, %v749, %v745
        %vm751 = vcmask 1041409
        %v752 = vsel %vm751, %v750, %v741
        %vm754 = vcmask 123904
        %v755 = vsel %vm754, %v752, -inf
        %756 = vmax.xlane.f32.xlu0 %v755
        %v757 = vpop.xlane.xlu0 %756
        %v759 = vlaneseq
        %v760 = vshrl.u32 %v759, 7
        %v761 = vsub.s32 0, %v760
        %v762 = vrot.slane %v757, %v761
        %v763 = vlaneseq
        %v764 = vshrl.u32 %v763, 7
        %v765 = vsub.s32 1, %v764
        %v766 = vrot.slane %v757, %v765
        %v769 = vsub.f32 %v711, %v762
        %v770 = vsub.f32 %v712, %v762
        %v771 = vsub.f32 %v713, %v766
        %v772 = vsub.f32 %v714, %v766
        %v773 = vmul.f32 %v769, 1.442695
        %v774 = vpow.pop %v773
        %v775 = vmul.f32 %v770, 1.442695
        %v776 = vpow.pop %v775
        %v777 = vmul.f32 %v771, 1.442695
        %v778 = vpow.pop %v777
        %v779 = vmul.f32 %v772, 1.442695
        %v780 = vpow.pop %v779
        %785 = vset.pattern.permute.xlu0 0
        %786 = vperm.xlu0 %785, %v774
        %v787 = vpop.permute.xlu0 %786
        %788 = vset.pattern.permute.xlu0 0
        %789 = vperm.xlu0 %788, %v776
        %v790 = vpop.permute.xlu0 %789
        %791 = vset.pattern.permute.xlu0 0
        %792 = vperm.xlu0 %791, %v778
        %v793 = vpop.permute.xlu0 %792
        %794 = vset.pattern.permute.xlu0 0
        %795 = vperm.xlu0 %794, %v780
        %v796 = vpop.permute.xlu0 %795
        %v797 = vlaneseq
        %v798 = vshrl.u32 %v797, 7
        %v799 = vsub.s32 %v433, %v798
        %v800 = vrot.slane %v787, %v799
        %v801 = vlaneseq
        %v802 = vshrl.u32 %v801, 7
        %v803 = vsub.s32 %v735, %v802
        %v804 = vrot.slane %v790, %v803
        %v805 = vsel %vm740, %v804, %v800
        %v806 = vlaneseq
        %v807 = vshrl.u32 %v806, 7
        %v808 = vsub.s32 %v433, %v807
        %v809 = vrot.slane %v793, %v808
        %v810 = vlaneseq
        %v811 = vshrl.u32 %v810, 7
        %v812 = vsub.s32 %v735, %v811
        %v813 = vrot.slane %v796, %v812
        %v814 = vsel %vm740, %v813, %v809
        %v815 = vsel %vm751, %v814, %v805
        %v817 = vsel %vm754, %v815, 0.0
        %818 = vadd.xlane.f32.xlu0 %v817
        %v819 = vpop.xlane.xlu0 %818
        %v821 = vlaneseq
        %v822 = vshrl.u32 %v821, 7
        %v823 = vsub.s32 0, %v822
        %v824 = vrot.slane %v819, %v823
        %v825 = vlaneseq
        %v826 = vshrl.u32 %v825, 7
        %v827 = vsub.s32 1, %v826
        %v828 = vrot.slane %v819, %v827
        %v831 = vrcp.pop %v824
        %v832 = vmul.f32 %v774, %v831
        %v833 = vmul.f32 %v776, %v831
        %v834 = vrcp.pop %v828
        %v835 = vmul.f32 %v778, %v834
        %v836 = vmul.f32 %v780, %v834
        %838 = vset.pattern.permute.xlu0 0
        %839 = vperm.xlu0 %838, %v832
        %v840 = vpop.permute.xlu0 %839
        %843 = vset.pattern.permute.xlu0 0
        %844 = vperm.xlu0 %843, %v833
        %v845 = vpop.permute.xlu0 %844
        %848 = vset.pattern.permute.xlu0 0
        %849 = vperm.xlu0 %848, %v835
        %v850 = vpop.permute.xlu0 %849
        %853 = vset.pattern.permute.xlu0 0
        %854 = vperm.xlu0 %853, %v836
        %v855 = vpop.permute.xlu0 %854
        %v857 = vmul.f32 %v840, %v672
        %v858 = vmul.f32 %v845, %v673
        %v859 = vmul.f32 %v850, %v674
        %v860 = vmul.f32 %v855, %v675
        %v861 = vsel %vm682, %v857, 0.0
        %v862 = vsel %vm682, %v858, 0.0
        %v863 = vadd.f32 %v861, %v862
        %v864 = vrot.slane %v863, 4
        %v865 = vadd.f32 %v863, %v864
        %v866 = vrot.slane %v865, 2
        %v867 = vadd.f32 %v865, %v866
        %v868 = vrot.slane %v867, 1
        %v869 = vadd.f32 %v867, %v868
        %v870 = vsel %vm682, %v859, 0.0
        %v871 = vsel %vm682, %v860, 0.0
        %v872 = vadd.f32 %v870, %v871
        %v873 = vrot.slane %v872, 4
        %v874 = vadd.f32 %v872, %v873
        %v875 = vrot.slane %v874, 2
        %v876 = vadd.f32 %v874, %v875
        %v877 = vrot.slane %v876, 1
        %v878 = vadd.f32 %v876, %v877
        %883 = vrot.lane.b32.xlu0 %v678, 112
        %v884 = vpop.permute.xlu0 %883
        %885 = vrot.lane.b32.xlu0 %v679, 112
        %v886 = vpop.permute.xlu0 %885
        %887 = vrot.lane.b32.xlu0 %v680, 112
        %v888 = vpop.permute.xlu0 %887
        %889 = vrot.lane.b32.xlu0 %v681, 112
        %v890 = vpop.permute.xlu0 %889
        %v895 = vsel %vm682, %v884, 0.0
        %896 = vadd.xlane.f32.xlu0 %v895
        %v897 = vpop.xlane.xlu0 %896
        %v898 = vsel %vm682, %v886, 0.0
        %899 = vadd.xlane.f32.xlu0 %v898
        %v900 = vpop.xlane.xlu0 %899
        %v901 = vsel %vm682, %v888, 0.0
        %902 = vadd.xlane.f32.xlu0 %v901
        %v903 = vpop.xlane.xlu0 %902
        %v904 = vsel %vm682, %v890, 0.0
        %905 = vadd.xlane.f32.xlu0 %v904
        %v906 = vpop.xlane.xlu0 %905
        %s907 = sadd.s32 %s25, 16
        %s908 = scalar_lea.vmem %s9, %s907
        %v909 = vld [vmem:[%s908] sm:$0x1]
        %v910 = vlaneseq
        %v911 = vshrl.u32 %v910, 7
        %v912 = vsub.s32 0, %v911
        %v913 = vrot.slane %v909, %v912
        %916 = vbcast.lane.b32.xlu0 %v913, 256
        %v917 = vpop.permute.xlu0 %916
        %s919 = sor.u32 256, 8
        %920 = vbcast.lane.b32.xlu0 %v913, %s919
        %v921 = vpop.permute.xlu0 %920
        %v924 = vadd.f32 %v897, %v917
        %v925 = vadd.f32 %v900, %v921
        %v926 = vadd.f32 %v903, %v917
        %v927 = vadd.f32 %v906, %v921
        %932 = vset.pattern.permute.xlu0 0
        %933 = vperm.xlu0 %932, %v924
        %v934 = vpop.permute.xlu0 %933
        %935 = vset.pattern.permute.xlu0 0
        %936 = vperm.xlu0 %935, %v925
        %v937 = vpop.permute.xlu0 %936
        %938 = vset.pattern.permute.xlu0 0
        %939 = vperm.xlu0 %938, %v926
        %v940 = vpop.permute.xlu0 %939
        %941 = vset.pattern.permute.xlu0 0
        %942 = vperm.xlu0 %941, %v927
        %v943 = vpop.permute.xlu0 %942
        %v944 = vlaneseq
        %v945 = vshrl.u32 %v944, 7
        %v946 = vsub.s32 %v433, %v945
        %v947 = vrot.slane %v934, %v946
        %v948 = vlaneseq
        %v949 = vshrl.u32 %v948, 7
        %v950 = vsub.s32 %v735, %v949
        %v951 = vrot.slane %v937, %v950
        %v952 = vsel %vm740, %v951, %v947
        %v953 = vlaneseq
        %v954 = vshrl.u32 %v953, 7
        %v955 = vsub.s32 %v433, %v954
        %v956 = vrot.slane %v940, %v955
        %v957 = vlaneseq
        %v958 = vshrl.u32 %v957, 7
        %v959 = vsub.s32 %v735, %v958
        %v960 = vrot.slane %v943, %v959
        %v961 = vsel %vm740, %v960, %v956
        %v962 = vsel %vm751, %v961, %v952
        %v964 = vsel %vm754, %v962, -inf
        %965 = vmax.xlane.f32.xlu0 %v964
        %v966 = vpop.xlane.xlu0 %965
        %v968 = vlaneseq
        %v969 = vshrl.u32 %v968, 7
        %v970 = vsub.s32 0, %v969
        %v971 = vrot.slane %v966, %v970
        %v972 = vlaneseq
        %v973 = vshrl.u32 %v972, 7
        %v974 = vsub.s32 1, %v973
        %v975 = vrot.slane %v966, %v974
        %v978 = vsub.f32 %v924, %v971
        %v979 = vsub.f32 %v925, %v971
        %v980 = vsub.f32 %v926, %v975
        %v981 = vsub.f32 %v927, %v975
        %v982 = vmul.f32 %v978, 1.442695
        %v983 = vpow.pop %v982
        %v984 = vmul.f32 %v979, 1.442695
        %v985 = vpow.pop %v984
        %v986 = vmul.f32 %v980, 1.442695
        %v987 = vpow.pop %v986
        %v988 = vmul.f32 %v981, 1.442695
        %v989 = vpow.pop %v988
        %994 = vset.pattern.permute.xlu0 0
        %995 = vperm.xlu0 %994, %v983
        %v996 = vpop.permute.xlu0 %995
        %997 = vset.pattern.permute.xlu0 0
        %998 = vperm.xlu0 %997, %v985
        %v999 = vpop.permute.xlu0 %998
        %1000 = vset.pattern.permute.xlu0 0
        %1001 = vperm.xlu0 %1000, %v987
        %v1002 = vpop.permute.xlu0 %1001
        %1003 = vset.pattern.permute.xlu0 0
        %1004 = vperm.xlu0 %1003, %v989
        %v1005 = vpop.permute.xlu0 %1004
        %v1006 = vlaneseq
        %v1007 = vshrl.u32 %v1006, 7
        %v1008 = vsub.s32 %v433, %v1007
        %v1009 = vrot.slane %v996, %v1008
        %v1010 = vlaneseq
        %v1011 = vshrl.u32 %v1010, 7
        %v1012 = vsub.s32 %v735, %v1011
        %v1013 = vrot.slane %v999, %v1012
        %v1014 = vsel %vm740, %v1013, %v1009
        %v1015 = vlaneseq
        %v1016 = vshrl.u32 %v1015, 7
        %v1017 = vsub.s32 %v433, %v1016
        %v1018 = vrot.slane %v1002, %v1017
        %v1019 = vlaneseq
        %v1020 = vshrl.u32 %v1019, 7
        %v1021 = vsub.s32 %v735, %v1020
        %v1022 = vrot.slane %v1005, %v1021
        %v1023 = vsel %vm740, %v1022, %v1018
        %v1024 = vsel %vm751, %v1023, %v1014
        %v1026 = vsel %vm754, %v1024, 0.0
        %1027 = vadd.xlane.f32.xlu0 %v1026
        %v1028 = vpop.xlane.xlu0 %1027
        %v1030 = vlaneseq
        %v1031 = vshrl.u32 %v1030, 7
        %v1032 = vsub.s32 0, %v1031
        %v1033 = vrot.slane %v1028, %v1032
        %v1034 = vlaneseq
        %v1035 = vshrl.u32 %v1034, 7
        %v1036 = vsub.s32 1, %v1035
        %v1037 = vrot.slane %v1028, %v1036
        %v1040 = vrcp.pop %v1033
        %v1041 = vmul.f32 %v983, %v1040
        %v1042 = vmul.f32 %v985, %v1040
        %v1043 = vrcp.pop %v1037
        %v1044 = vmul.f32 %v987, %v1043
        %v1045 = vmul.f32 %v989, %v1043
        %1047 = vset.pattern.permute.xlu0 0
        %1048 = vperm.xlu0 %1047, %v1041
        %v1049 = vpop.permute.xlu0 %1048
        %1052 = vset.pattern.permute.xlu0 0
        %1053 = vperm.xlu0 %1052, %v1042
        %v1054 = vpop.permute.xlu0 %1053
        %1057 = vset.pattern.permute.xlu0 0
        %1058 = vperm.xlu0 %1057, %v1044
        %v1059 = vpop.permute.xlu0 %1058
        %1062 = vset.pattern.permute.xlu0 0
        %1063 = vperm.xlu0 %1062, %v1045
        %v1064 = vpop.permute.xlu0 %1063
        %v1066 = vmul.f32 %v1049, %v672
        %v1067 = vmul.f32 %v1054, %v673
        %v1068 = vmul.f32 %v1059, %v674
        %v1069 = vmul.f32 %v1064, %v675
        %vm1070 = vcmask 261248
        %v1071 = vsel %vm1070, %v1066, 0.0
        %v1072 = vsel %vm1070, %v1067, 0.0
        %v1073 = vadd.f32 %v1071, %v1072
        %v1074 = vrot.slane %v1073, 4
        %v1075 = vadd.f32 %v1073, %v1074
        %v1076 = vrot.slane %v1075, 2
        %v1077 = vadd.f32 %v1075, %v1076
        %v1078 = vrot.slane %v1077, 1
        %v1079 = vadd.f32 %v1077, %v1078
        %v1080 = vsel %vm1070, %v1068, 0.0
        %v1081 = vsel %vm1070, %v1069, 0.0
        %v1082 = vadd.f32 %v1080, %v1081
        %v1083 = vrot.slane %v1082, 4
        %v1084 = vadd.f32 %v1082, %v1083
        %v1085 = vrot.slane %v1084, 2
        %v1086 = vadd.f32 %v1084, %v1085
        %v1087 = vrot.slane %v1086, 1
        %v1088 = vadd.f32 %v1086, %v1087
        %v1091 = vsel %vm751, %v878, %v869
        %v1095 = vsel %vm751, %v1088, %v1079
        %v1097 = vsel %vm682, %v1091, %v1095
        %v1098 = vld [vmem:[%s4] sm:$0xff]
        %v1099 = vld [vmem:[%s4 + $0x8] sm:$0xff]
        %v1100 = vld [vmem:[%s4 + $0x10] sm:$0xff]
        %v1101 = vld [vmem:[%s4 + $0x18] sm:$0xff]
        %v1103 = vsel %vm544, %v1097, 0
        %1105 = vmatprep.subr.mxu0 0.0
        %1106 = vmatpush1.msra.mxu0 %v1098
        %1107 = vmatprep.subr.mxu0 0.0
        %1108 = vmatpush1.msra.mxu0 %v1099
        %1109 = vmatprep.subr.mxu0 0.0
        %1110 = vmatpush1.msra.mxu0 %v1100
        %1111 = vmatprep.subr.mxu0 0.0
        %1112 = vmatpush1.msra.mxu0 %v1101
        %1113 = vmatprep.subr.mxu0 0.0
        %1114 = vmatpush1.msra.mxu0 0.0
        %1115 = vmatprep.subr.mxu0 0.0
        %1116 = vmatpush1.msra.mxu0 0.0
        %1117 = vmatprep.subr.mxu0 0.0
        %1118 = vmatpush1.msra.mxu0 0.0
        %1119 = vmatprep.subr.mxu0 0.0
        %1120 = vmatpush1.msra.mxu0 0.0
        %1121 = vmatprep.subr.mxu0 0.0
        %1122 = vmatpush1.msra.mxu0 0.0
        %1123 = vmatprep.subr.mxu0 0.0
        %1124 = vmatpush1.msra.mxu0 0.0
        %1125 = vmatprep.subr.mxu0 0.0
        %1126 = vmatpush1.msra.mxu0 0.0
        %1127 = vmatprep.subr.mxu0 0.0
        %1128 = vmatpush1.msra.mxu0 0.0
        %1129 = vmatprep.subr.mxu0 0.0
        %1130 = vmatpush1.msra.mxu0 0.0
        %1131 = vmatprep.subr.mxu0 0.0
        %1132 = vmatpush1.msra.mxu0 0.0
        %1133 = vmatprep.subr.mxu0 0.0
        %1134 = vmatpush1.msra.mxu0 0.0
        %1135 = vmatprep.subr.mxu0 0.0
        %1136 = vmatpush1.msra.mxu0 0.0
        %1137 = vmatprep.subr.mxu0 0.0
        %1138 = vmatpush1.msra.mxu0 0.0
        %1139 = vmatprep.subr.mxu0 0.0
        %1140 = vmatpush1.msra.mxu0 0.0
        %1141 = vmatprep.subr.mxu0 0.0
        %1142 = vmatpush1.msra.mxu0 0.0
        %1143 = vmatprep.subr.mxu0 0.0
        %1144 = vmatpush1.msra.mxu0 0.0
        %1145 = vmatprep.subr.mxu0 0.0
        %1146 = vmatpush1.msra.mxu0 0.0
        %1147 = vmatprep.subr.mxu0 0.0
        %1148 = vmatpush1.msra.mxu0 0.0
        %1149 = vmatprep.subr.mxu0 0.0
        %1150 = vmatpush1.msra.mxu0 0.0
        %1151 = vmatprep.subr.mxu0 0.0
        %1152 = vmatpush1.msra.mxu0 0.0
        %1153 = vmatprep.subr.mxu0 0.0
        %1154 = vmatpush1.msra.mxu0 0.0
        %1155 = vmatprep.subr.mxu0 0.0
        %1156 = vmatpush1.msra.mxu0 0.0
        %1157 = vmatprep.subr.mxu0 0.0
        %1158 = vmatpush1.msra.mxu0 0.0
        %1159 = vmatprep.subr.mxu0 0.0
        %1160 = vmatpush1.msra.mxu0 0.0
        %1161 = vmatprep.subr.mxu0 0.0
        %1162 = vmatpush1.msra.mxu0 0.0
        %1163 = vmatprep.subr.mxu0 0.0
        %1164 = vmatpush1.msra.mxu0 0.0
        %1165 = vmatprep.subr.mxu0 0.0
        %1166 = vmatpush1.msra.mxu0 0.0
        %1167 = vmatprep.subr.mxu0 0.0
        %1168 = vmatpush1.msra.mxu0 0.0
        %1169 = vmatprep.mubr.f32.mxu0 0.0
        %1170 = vmatmul.mubr.f32.gmra.mrb[0].mxu0 %v1103
        %v1171 = vpop.f32.mrb[0].mxu0
        %v1172 = vadd.f32 0.0, %v1171
        %v1173 = vpop.f32.mrb[0].mxu0
        %1174 = vdwg.mxu0
        %v1175 = vadd.f32 %v520, %v1172
        %v1176 = vld [vmem:[%s2 + $0x1] sm:$0x1]
        %v1177 = vmul.f32 %v1175, %v1175
        %v1178 = vsel %vm526, %v1177, 0.0
        %1179 = vadd.xlane.f32.xlu0 %v1178
        %v1180 = vpop.xlane.xlu0 %1179
        %v1181 = vmul.f32 %v1180, %v530
        %v1182 = vadd.f32 %v1181, 1e-06
        %v1183 = vrsqrt.pop %v1182
        %v1184 = vmul.f32 %v1175, %v1183
        %v1185 = vlaneseq
        %v1186 = vshrl.u32 %v1185, 7
        %v1187 = vsub.s32 0, %v1186
        %v1188 = vrot.slane %v1176, %v1187
        %v1189 = vmul.f32 %v1184, %v1188
        %v1190 = vld [vmem:[%s5] sm:$0xff]
        %v1191 = vld [vmem:[%s5 + $0x8] sm:$0xff]
        %v1192 = vld [vmem:[%s5 + $0x10] sm:$0xff]
        %v1193 = vld [vmem:[%s5 + $0x18] sm:$0xff]
        %v1195 = vsel %vm544, %v1189, 0
        %1197 = vmatprep.subr.mxu0 0.0
        %1198 = vmatpush1.msra.mxu0 %v1190
        %1199 = vmatprep.subr.mxu0 0.0
        %1200 = vmatpush1.msra.mxu0 %v1191
        %1201 = vmatprep.subr.mxu0 0.0
        %1202 = vmatpush1.msra.mxu0 %v1192
        %1203 = vmatprep.subr.mxu0 0.0
        %1204 = vmatpush1.msra.mxu0 %v1193
        %1205 = vmatprep.subr.mxu0 0.0
        %1206 = vmatpush1.msra.mxu0 0.0
        %1207 = vmatprep.subr.mxu0 0.0
        %1208 = vmatpush1.msra.mxu0 0.0
        %1209 = vmatprep.subr.mxu0 0.0
        %1210 = vmatpush1.msra.mxu0 0.0
        %1211 = vmatprep.subr.mxu0 0.0
        %1212 = vmatpush1.msra.mxu0 0.0
        %1213 = vmatprep.subr.mxu0 0.0
        %1214 = vmatpush1.msra.mxu0 0.0
        %1215 = vmatprep.subr.mxu0 0.0
        %1216 = vmatpush1.msra.mxu0 0.0
        %1217 = vmatprep.subr.mxu0 0.0
        %1218 = vmatpush1.msra.mxu0 0.0
        %1219 = vmatprep.subr.mxu0 0.0
        %1220 = vmatpush1.msra.mxu0 0.0
        %1221 = vmatprep.subr.mxu0 0.0
        %1222 = vmatpush1.msra.mxu0 0.0
        %1223 = vmatprep.subr.mxu0 0.0
        %1224 = vmatpush1.msra.mxu0 0.0
        %1225 = vmatprep.subr.mxu0 0.0
        %1226 = vmatpush1.msra.mxu0 0.0
        %1227 = vmatprep.subr.mxu0 0.0
        %1228 = vmatpush1.msra.mxu0 0.0
        %1229 = vmatprep.subr.mxu0 0.0
        %1230 = vmatpush1.msra.mxu0 0.0
        %1231 = vmatprep.subr.mxu0 0.0
        %1232 = vmatpush1.msra.mxu0 0.0
        %1233 = vmatprep.subr.mxu0 0.0
        %1234 = vmatpush1.msra.mxu0 0.0
        %1235 = vmatprep.subr.mxu0 0.0
        %1236 = vmatpush1.msra.mxu0 0.0
        %1237 = vmatprep.subr.mxu0 0.0
        %1238 = vmatpush1.msra.mxu0 0.0
        %1239 = vmatprep.subr.mxu0 0.0
        %1240 = vmatpush1.msra.mxu0 0.0
        %1241 = vmatprep.subr.mxu0 0.0
        %1242 = vmatpush1.msra.mxu0 0.0
        %1243 = vmatprep.subr.mxu0 0.0
        %1244 = vmatpush1.msra.mxu0 0.0
        %1245 = vmatprep.subr.mxu0 0.0
        %1246 = vmatpush1.msra.mxu0 0.0
        %1247 = vmatprep.subr.mxu0 0.0
        %1248 = vmatpush1.msra.mxu0 0.0
        %1249 = vmatprep.subr.mxu0 0.0
        %1250 = vmatpush1.msra.mxu0 0.0
        %1251 = vmatprep.subr.mxu0 0.0
        %1252 = vmatpush1.msra.mxu0 0.0
        %1253 = vmatprep.subr.mxu0 0.0
        %1254 = vmatpush1.msra.mxu0 0.0
        %1255 = vmatprep.subr.mxu0 0.0
        %1256 = vmatpush1.msra.mxu0 0.0
        %1257 = vmatprep.subr.mxu0 0.0
        %1258 = vmatpush1.msra.mxu0 0.0
        %1259 = vmatprep.subr.mxu0 0.0
        %1260 = vmatpush1.msra.mxu0 0.0
        %1261 = vmatprep.mubr.f32.mxu0 0.0
        %1262 = vmatmul.mubr.f32.gmra.mrb[0].mxu0 %v1195
        %v1263 = vpop.f32.mrb[0].mxu0
        %v1264 = vadd.f32 0.0, %v1263
        %v1265 = vpop.f32.mrb[0].mxu0
        %1266 = vdwg.mxu0
        %v1267 = vld [vmem:[%s11] sm:$0xff]
        %v1268 = vld [vmem:[%s11 + $0x8] sm:$0xff]
        %v1269 = vld [vmem:[%s12] sm:$0xff]
        %v1270 = vld [vmem:[%s12 + $0x8] sm:$0xff]
        %v1273 = vunpack.c.l.s4 1966171168
        %v1274 = vunpack.c.0.s8 %v1273
        %v1275 = vlaneseq
        %v1276 = vshrl.u32 %v1275, 7
        %v1277 = vsub.s32 %v1274, %v1276
        %v1278 = vrot.slane %v1264, %v1277
        %v1279 = vcombine.high %v1278, %v1278
        %v1281 = vunpack.c.l.s4 1966171168
        %v1282 = vunpack.c.0.s8 %v1281
        %v1283 = vlaneseq
        %v1284 = vshrl.u32 %v1283, 7
        %v1285 = vsub.s32 %v1282, %v1284
        %v1286 = vrot.slane %v1278, %v1285
        %v1288 = vunpack.c.l.s4 1966171168
        %v1289 = vunpack.c.0.s8 %v1288
        %v1290 = vlaneseq
        %v1291 = vshrl.u32 %v1290, 7
        %v1292 = vsub.s32 %v1289, %v1291
        %v1293 = vrot.slane %v1279, %v1292
        %v1294 = vlaneseq
        %v1295 = vshrl.u32 %v1294, 7
        %v1296 = vsub.s32 0, %v1295
        %v1297 = vrot.slane %v1286, %v1296
        %v1298 = vlaneseq
        %v1299 = vshrl.u32 %v1298, 7
        %v1300 = vsub.s32 0, %v1299
        %v1301 = vrot.slane %v1293, %v1300
        %v1304 = vmul.f32 %v1297, %v1267
        %v1305 = vmul.f32 %v1301, %v1268
        %v1306 = vsel %vm682, %v1304, 0.0
        %1307 = vadd.xlane.f32.xlu0 %v1306
        %v1308 = vpop.xlane.xlu0 %1307
        %v1309 = vsel %vm682, %v1305, 0.0
        %1310 = vadd.xlane.f32.xlu0 %v1309
        %v1311 = vpop.xlane.xlu0 %1310
        %v1313 = vlaneseq
        %v1314 = vshrl.u32 %v1313, 7
        %v1315 = vsub.s32 0, %v1314
        %v1316 = vrot.slane %v523, %v1315
        %1318 = vbcast.lane.b32.xlu0 %v1316, 256
        %v1319 = vpop.permute.xlu0 %1318
        %v1320 = vlaneseq
        %v1321 = vshrl.u32 %v1320, 7
        %v1322 = vsub.s32 1, %v1321
        %v1323 = vrot.slane %v523, %v1322
        %1325 = vbcast.lane.b32.xlu0 %v1323, 256
        %v1326 = vpop.permute.xlu0 %1325
        %v1329 = vadd.f32 %v1308, %v1319
        %v1330 = vadd.f32 %v1311, %v1326
        %1333 = vset.pattern.permute.xlu0 0
        %1334 = vperm.xlu0 %1333, %v1329
        %v1335 = vpop.permute.xlu0 %1334
        %1336 = vset.pattern.permute.xlu0 0
        %1337 = vperm.xlu0 %1336, %v1330
        %v1338 = vpop.permute.xlu0 %1337
        %v1339 = vlaneseq
        %v1340 = vshrl.u32 %v1339, 7
        %v1341 = vsub.s32 %v433, %v1340
        %v1342 = vrot.slane %v1335, %v1341
        %v1343 = vlaneseq
        %v1344 = vshrl.u32 %v1343, 7
        %v1345 = vsub.s32 %v433, %v1344
        %v1346 = vrot.slane %v1338, %v1345
        %v1347 = vsel %vm751, %v1346, %v1342
        %vm1349 = vcmask 58368
        %v1350 = vsel %vm1349, %v1347, -inf
        %1351 = vmax.xlane.f32.xlu0 %v1350
        %v1352 = vpop.xlane.xlu0 %1351
        %v1354 = vlaneseq
        %v1355 = vshrl.u32 %v1354, 7
        %v1356 = vsub.s32 0, %v1355
        %v1357 = vrot.slane %v1352, %v1356
        %v1358 = vlaneseq
        %v1359 = vshrl.u32 %v1358, 7
        %v1360 = vsub.s32 1, %v1359
        %v1361 = vrot.slane %v1352, %v1360
        %v1364 = vsub.f32 %v1329, %v1357
        %v1365 = vsub.f32 %v1330, %v1361
        %v1366 = vmul.f32 %v1364, 1.442695
        %v1367 = vpow.pop %v1366
        %v1368 = vmul.f32 %v1365, 1.442695
        %v1369 = vpow.pop %v1368
        %1372 = vset.pattern.permute.xlu0 0
        %1373 = vperm.xlu0 %1372, %v1367
        %v1374 = vpop.permute.xlu0 %1373
        %1375 = vset.pattern.permute.xlu0 0
        %1376 = vperm.xlu0 %1375, %v1369
        %v1377 = vpop.permute.xlu0 %1376
        %v1378 = vlaneseq
        %v1379 = vshrl.u32 %v1378, 7
        %v1380 = vsub.s32 %v433, %v1379
        %v1381 = vrot.slane %v1374, %v1380
        %v1382 = vlaneseq
        %v1383 = vshrl.u32 %v1382, 7
        %v1384 = vsub.s32 %v433, %v1383
        %v1385 = vrot.slane %v1377, %v1384
        %v1386 = vsel %vm751, %v1385, %v1381
        %v1388 = vsel %vm1349, %v1386, 0.0
        %1389 = vadd.xlane.f32.xlu0 %v1388
        %v1390 = vpop.xlane.xlu0 %1389
        %v1392 = vlaneseq
        %v1393 = vshrl.u32 %v1392, 7
        %v1394 = vsub.s32 0, %v1393
        %v1395 = vrot.slane %v1390, %v1394
        %v1396 = vlaneseq
        %v1397 = vshrl.u32 %v1396, 7
        %v1398 = vsub.s32 1, %v1397
        %v1399 = vrot.slane %v1390, %v1398
        %v1402 = vrcp.pop %v1395
        %v1403 = vmul.f32 %v1367, %v1402
        %v1404 = vrcp.pop %v1399
        %v1405 = vmul.f32 %v1369, %v1404
        %1407 = vset.pattern.permute.xlu0 0
        %1408 = vperm.xlu0 %1407, %v1403
        %v1409 = vpop.permute.xlu0 %1408
        %1412 = vset.pattern.permute.xlu0 0
        %1413 = vperm.xlu0 %1412, %v1405
        %v1414 = vpop.permute.xlu0 %1413
        %v1416 = vmul.f32 %v1409, %v1269
        %v1417 = vmul.f32 %v1414, %v1270
        %v1418 = vsel %vm682, %v1416, 0.0
        %v1419 = vrot.slane %v1418, 4
        %v1420 = vadd.f32 %v1418, %v1419
        %v1421 = vrot.slane %v1420, 2
        %v1422 = vadd.f32 %v1420, %v1421
        %v1423 = vrot.slane %v1422, 1
        %v1424 = vadd.f32 %v1422, %v1423
        %v1425 = vsel %vm682, %v1417, 0.0
        %v1426 = vrot.slane %v1425, 4
        %v1427 = vadd.f32 %v1425, %v1426
        %v1428 = vrot.slane %v1427, 2
        %v1429 = vadd.f32 %v1427, %v1428
        %v1430 = vrot.slane %v1429, 1
        %v1431 = vadd.f32 %v1429, %v1430
        %1434 = vrot.lane.b32.xlu0 %v1304, 112
        %v1435 = vpop.permute.xlu0 %1434
        %1436 = vrot.lane.b32.xlu0 %v1305, 112
        %v1437 = vpop.permute.xlu0 %1436
        %v1440 = vsel %vm682, %v1435, 0.0
        %1441 = vadd.xlane.f32.xlu0 %v1440
        %v1442 = vpop.xlane.xlu0 %1441
        %v1443 = vsel %vm682, %v1437, 0.0
        %1444 = vadd.xlane.f32.xlu0 %v1443
        %v1445 = vpop.xlane.xlu0 %1444
        %v1446 = vadd.f32 %v1442, %v1319
        %v1447 = vadd.f32 %v1445, %v1326
        %1450 = vset.pattern.permute.xlu0 0
        %1451 = vperm.xlu0 %1450, %v1446
        %v1452 = vpop.permute.xlu0 %1451
        %1453 = vset.pattern.permute.xlu0 0
        %1454 = vperm.xlu0 %1453, %v1447
        %v1455 = vpop.permute.xlu0 %1454
        %v1456 = vlaneseq
        %v1457 = vshrl.u32 %v1456, 7
        %v1458 = vsub.s32 %v433, %v1457
        %v1459 = vrot.slane %v1452, %v1458
        %v1460 = vlaneseq
        %v1461 = vshrl.u32 %v1460, 7
        %v1462 = vsub.s32 %v433, %v1461
        %v1463 = vrot.slane %v1455, %v1462
        %v1464 = vsel %vm751, %v1463, %v1459
        %v1466 = vsel %vm1349, %v1464, -inf
        %1467 = vmax.xlane.f32.xlu0 %v1466
        %v1468 = vpop.xlane.xlu0 %1467
        %v1470 = vlaneseq
        %v1471 = vshrl.u32 %v1470, 7
        %v1472 = vsub.s32 0, %v1471
        %v1473 = vrot.slane %v1468, %v1472
        %v1474 = vlaneseq
        %v1475 = vshrl.u32 %v1474, 7
        %v1476 = vsub.s32 1, %v1475
        %v1477 = vrot.slane %v1468, %v1476
        %v1480 = vsub.f32 %v1446, %v1473
        %v1481 = vsub.f32 %v1447, %v1477
        %v1482 = vmul.f32 %v1480, 1.442695
        %v1483 = vpow.pop %v1482
        %v1484 = vmul.f32 %v1481, 1.442695
        %v1485 = vpow.pop %v1484
        %1488 = vset.pattern.permute.xlu0 0
        %1489 = vperm.xlu0 %1488, %v1483
        %v1490 = vpop.permute.xlu0 %1489
        %1491 = vset.pattern.permute.xlu0 0
        %1492 = vperm.xlu0 %1491, %v1485
        %v1493 = vpop.permute.xlu0 %1492
        %v1494 = vlaneseq
        %v1495 = vshrl.u32 %v1494, 7
        %v1496 = vsub.s32 %v433, %v1495
        %v1497 = vrot.slane %v1490, %v1496
        %v1498 = vlaneseq
        %v1499 = vshrl.u32 %v1498, 7
        %v1500 = vsub.s32 %v433, %v1499
        %v1501 = vrot.slane %v1493, %v1500
        %v1502 = vsel %vm751, %v1501, %v1497
        %v1504 = vsel %vm1349, %v1502, 0.0
        %1505 = vadd.xlane.f32.xlu0 %v1504
        %v1506 = vpop.xlane.xlu0 %1505
        %v1508 = vlaneseq
        %v1509 = vshrl.u32 %v1508, 7
        %v1510 = vsub.s32 0, %v1509
        %v1511 = vrot.slane %v1506, %v1510
        %v1512 = vlaneseq
        %v1513 = vshrl.u32 %v1512, 7
        %v1514 = vsub.s32 1, %v1513
        %v1515 = vrot.slane %v1506, %v1514
        %v1518 = vrcp.pop %v1511
        %v1519 = vmul.f32 %v1483, %v1518
        %v1520 = vrcp.pop %v1515
        %v1521 = vmul.f32 %v1485, %v1520
        %1523 = vset.pattern.permute.xlu0 0
        %1524 = vperm.xlu0 %1523, %v1519
        %v1525 = vpop.permute.xlu0 %1524
        %1528 = vset.pattern.permute.xlu0 0
        %1529 = vperm.xlu0 %1528, %v1521
        %v1530 = vpop.permute.xlu0 %1529
        %v1532 = vmul.f32 %v1525, %v1269
        %v1533 = vmul.f32 %v1530, %v1270
        %v1534 = vsel %vm1070, %v1532, 0.0
        %v1535 = vrot.slane %v1534, 4
        %v1536 = vadd.f32 %v1534, %v1535
        %v1537 = vrot.slane %v1536, 2
        %v1538 = vadd.f32 %v1536, %v1537
        %v1539 = vrot.slane %v1538, 1
        %v1540 = vadd.f32 %v1538, %v1539
        %v1541 = vsel %vm1070, %v1533, 0.0
        %v1542 = vrot.slane %v1541, 4
        %v1543 = vadd.f32 %v1541, %v1542
        %v1544 = vrot.slane %v1543, 2
        %v1545 = vadd.f32 %v1543, %v1544
        %v1546 = vrot.slane %v1545, 1
        %v1547 = vadd.f32 %v1545, %v1546
        %v1550 = vsel %vm751, %v1431, %v1424
        %v1554 = vsel %vm751, %v1547, %v1540
        %v1556 = vsel %vm682, %v1550, %v1554
        %v1557 = vld [vmem:[%s6] sm:$0xff]
        %v1558 = vld [vmem:[%s6 + $0x8] sm:$0xff]
        %v1559 = vld [vmem:[%s6 + $0x10] sm:$0xff]
        %v1560 = vld [vmem:[%s6 + $0x18] sm:$0xff]
        %v1562 = vsel %vm544, %v1556, 0
        %1564 = vmatprep.subr.mxu0 0.0
        %1565 = vmatpush1.msra.mxu0 %v1557
        %1566 = vmatprep.subr.mxu0 0.0
        %1567 = vmatpush1.msra.mxu0 %v1558
        %1568 = vmatprep.subr.mxu0 0.0
        %1569 = vmatpush1.msra.mxu0 %v1559
        %1570 = vmatprep.subr.mxu0 0.0
        %1571 = vmatpush1.msra.mxu0 %v1560
        %1572 = vmatprep.subr.mxu0 0.0
        %1573 = vmatpush1.msra.mxu0 0.0
        %1574 = vmatprep.subr.mxu0 0.0
        %1575 = vmatpush1.msra.mxu0 0.0
        %1576 = vmatprep.subr.mxu0 0.0
        %1577 = vmatpush1.msra.mxu0 0.0
        %1578 = vmatprep.subr.mxu0 0.0
        %1579 = vmatpush1.msra.mxu0 0.0
        %1580 = vmatprep.subr.mxu0 0.0
        %1581 = vmatpush1.msra.mxu0 0.0
        %1582 = vmatprep.subr.mxu0 0.0
        %1583 = vmatpush1.msra.mxu0 0.0
        %1584 = vmatprep.subr.mxu0 0.0
        %1585 = vmatpush1.msra.mxu0 0.0
        %1586 = vmatprep.subr.mxu0 0.0
        %1587 = vmatpush1.msra.mxu0 0.0
        %1588 = vmatprep.subr.mxu0 0.0
        %1589 = vmatpush1.msra.mxu0 0.0
        %1590 = vmatprep.subr.mxu0 0.0
        %1591 = vmatpush1.msra.mxu0 0.0
        %1592 = vmatprep.subr.mxu0 0.0
        %1593 = vmatpush1.msra.mxu0 0.0
        %1594 = vmatprep.subr.mxu0 0.0
        %1595 = vmatpush1.msra.mxu0 0.0
        %1596 = vmatprep.subr.mxu0 0.0
        %1597 = vmatpush1.msra.mxu0 0.0
        %1598 = vmatprep.subr.mxu0 0.0
        %1599 = vmatpush1.msra.mxu0 0.0
        %1600 = vmatprep.subr.mxu0 0.0
        %1601 = vmatpush1.msra.mxu0 0.0
        %1602 = vmatprep.subr.mxu0 0.0
        %1603 = vmatpush1.msra.mxu0 0.0
        %1604 = vmatprep.subr.mxu0 0.0
        %1605 = vmatpush1.msra.mxu0 0.0
        %1606 = vmatprep.subr.mxu0 0.0
        %1607 = vmatpush1.msra.mxu0 0.0
        %1608 = vmatprep.subr.mxu0 0.0
        %1609 = vmatpush1.msra.mxu0 0.0
        %1610 = vmatprep.subr.mxu0 0.0
        %1611 = vmatpush1.msra.mxu0 0.0
        %1612 = vmatprep.subr.mxu0 0.0
        %1613 = vmatpush1.msra.mxu0 0.0
        %1614 = vmatprep.subr.mxu0 0.0
        %1615 = vmatpush1.msra.mxu0 0.0
        %1616 = vmatprep.subr.mxu0 0.0
        %1617 = vmatpush1.msra.mxu0 0.0
        %1618 = vmatprep.subr.mxu0 0.0
        %1619 = vmatpush1.msra.mxu0 0.0
        %1620 = vmatprep.subr.mxu0 0.0
        %1621 = vmatpush1.msra.mxu0 0.0
        %1622 = vmatprep.subr.mxu0 0.0
        %1623 = vmatpush1.msra.mxu0 0.0
        %1624 = vmatprep.subr.mxu0 0.0
        %1625 = vmatpush1.msra.mxu0 0.0
        %1626 = vmatprep.subr.mxu0 0.0
        %1627 = vmatpush1.msra.mxu0 0.0
        %1628 = vmatprep.mubr.f32.mxu0 0.0
        %1629 = vmatmul.mubr.f32.gmra.mrb[0].mxu0 %v1562
        %v1630 = vpop.f32.mrb[0].mxu0
        %v1631 = vadd.f32 0.0, %v1630
        %v1632 = vpop.f32.mrb[0].mxu0
        %1633 = vdwg.mxu0
        %v1634 = vadd.f32 %v1175, %v1631
        %v1635 = vld [vmem:[%s2 + $0x2] sm:$0x1]
        %v1636 = vmul.f32 %v1634, %v1634
        %v1637 = vsel %vm526, %v1636, 0.0
        %1638 = vadd.xlane.f32.xlu0 %v1637
        %v1639 = vpop.xlane.xlu0 %1638
        %v1640 = vmul.f32 %v1639, %v530
        %v1641 = vadd.f32 %v1640, 1e-06
        %v1642 = vrsqrt.pop %v1641
        %v1643 = vmul.f32 %v1634, %v1642
        %v1644 = vlaneseq
        %v1645 = vshrl.u32 %v1644, 7
        %v1646 = vsub.s32 0, %v1645
        %v1647 = vrot.slane %v1635, %v1646
        %v1648 = vmul.f32 %v1643, %v1647
        %v1649 = vld [vmem:[%s7] sm:$0xff]
        %v1650 = vld [vmem:[%s7 + $0x8] sm:$0xff]
        %v1651 = vld [vmem:[%s7 + $0x10] sm:$0xff]
        %v1652 = vld [vmem:[%s7 + $0x18] sm:$0xff]
        %v1654 = vsel %vm544, %v1648, 0
        %1656 = vmatprep.subr.mxu0 0.0
        %1657 = vmatpush1.msra.mxu0 %v1649
        %1658 = vmatprep.subr.mxu0 0.0
        %1659 = vmatpush1.msra.mxu0 %v1650
        %1660 = vmatprep.subr.mxu0 0.0
        %1661 = vmatpush1.msra.mxu0 %v1651
        %1662 = vmatprep.subr.mxu0 0.0
        %1663 = vmatpush1.msra.mxu0 %v1652
        %1664 = vmatprep.subr.mxu0 0.0
        %1665 = vmatpush1.msra.mxu0 0.0
        %1666 = vmatprep.subr.mxu0 0.0
        %1667 = vmatpush1.msra.mxu0 0.0
        %1668 = vmatprep.subr.mxu0 0.0
        %1669 = vmatpush1.msra.mxu0 0.0
        %1670 = vmatprep.subr.mxu0 0.0
        %1671 = vmatpush1.msra.mxu0 0.0
        %1672 = vmatprep.subr.mxu0 0.0
        %1673 = vmatpush1.msra.mxu0 0.0
        %1674 = vmatprep.subr.mxu0 0.0
        %1675 = vmatpush1.msra.mxu0 0.0
        %1676 = vmatprep.subr.mxu0 0.0
        %1677 = vmatpush1.msra.mxu0 0.0
        %1678 = vmatprep.subr.mxu0 0.0
        %1679 = vmatpush1.msra.mxu0 0.0
        %1680 = vmatprep.subr.mxu0 0.0
        %1681 = vmatpush1.msra.mxu0 0.0
        %1682 = vmatprep.subr.mxu0 0.0
        %1683 = vmatpush1.msra.mxu0 0.0
        %1684 = vmatprep.subr.mxu0 0.0
        %1685 = vmatpush1.msra.mxu0 0.0
        %1686 = vmatprep.subr.mxu0 0.0
        %1687 = vmatpush1.msra.mxu0 0.0
        %1688 = vmatprep.subr.mxu0 0.0
        %1689 = vmatpush1.msra.mxu0 0.0
        %1690 = vmatprep.subr.mxu0 0.0
        %1691 = vmatpush1.msra.mxu0 0.0
        %1692 = vmatprep.subr.mxu0 0.0
        %1693 = vmatpush1.msra.mxu0 0.0
        %1694 = vmatprep.subr.mxu0 0.0
        %1695 = vmatpush1.msra.mxu0 0.0
        %1696 = vmatprep.subr.mxu0 0.0
        %1697 = vmatpush1.msra.mxu0 0.0
        %1698 = vmatprep.subr.mxu0 0.0
        %1699 = vmatpush1.msra.mxu0 0.0
        %1700 = vmatprep.subr.mxu0 0.0
        %1701 = vmatpush1.msra.mxu0 0.0
        %1702 = vmatprep.subr.mxu0 0.0
        %1703 = vmatpush1.msra.mxu0 0.0
        %1704 = vmatprep.subr.mxu0 0.0
        %1705 = vmatpush1.msra.mxu0 0.0
        %1706 = vmatprep.subr.mxu0 0.0
        %1707 = vmatpush1.msra.mxu0 0.0
        %1708 = vmatprep.subr.mxu0 0.0
        %1709 = vmatpush1.msra.mxu0 0.0
        %1710 = vmatprep.subr.mxu0 0.0
        %1711 = vmatpush1.msra.mxu0 0.0
        %1712 = vmatprep.subr.mxu0 0.0
        %1713 = vmatpush1.msra.mxu0 0.0
        %1714 = vmatprep.subr.mxu0 0.0
        %1715 = vmatpush1.msra.mxu0 0.0
        %1716 = vmatprep.subr.mxu0 0.0
        %1717 = vmatpush1.msra.mxu0 0.0
        %1718 = vmatprep.subr.mxu0 0.0
        %1719 = vmatpush1.msra.mxu0 0.0
        %1720 = vmatprep.mubr.f32.mxu0 0.0
        %1721 = vmatmul.mubr.f32.gmra.mrb[0].mxu0 %v1654
        %v1722 = vpop.f32.mrb[0].mxu0
        %v1723 = vadd.f32 0.0, %v1722
        %v1724 = vpop.f32.mrb[0].mxu0
        %1725 = vdwg.mxu0
        %v1726 = vmax.f32 %v1723, 0.0
        %v1727 = vld [vmem:[%s8] sm:$0xff]
        %v1728 = vld [vmem:[%s8 + $0x8] sm:$0xff]
        %v1729 = vld [vmem:[%s8 + $0x10] sm:$0xff]
        %v1730 = vld [vmem:[%s8 + $0x18] sm:$0xff]
        %v1731 = vld [vmem:[%s8 + $0x20] sm:$0xff]
        %v1732 = vld [vmem:[%s8 + $0x28] sm:$0xff]
        %v1733 = vld [vmem:[%s8 + $0x30] sm:$0xff]
        %v1734 = vld [vmem:[%s8 + $0x38] sm:$0xff]
        %v1736 = vsel %vm449, %v1726, 0
        %1738 = vmatprep.subr.mxu0 0.0
        %1739 = vmatpush1.msra.mxu0 %v1727
        %1740 = vmatprep.subr.mxu0 0.0
        %1741 = vmatpush1.msra.mxu0 %v1728
        %1742 = vmatprep.subr.mxu0 0.0
        %1743 = vmatpush1.msra.mxu0 %v1729
        %1744 = vmatprep.subr.mxu0 0.0
        %1745 = vmatpush1.msra.mxu0 %v1730
        %1746 = vmatprep.subr.mxu0 0.0
        %1747 = vmatpush1.msra.mxu0 %v1731
        %1748 = vmatprep.subr.mxu0 0.0
        %1749 = vmatpush1.msra.mxu0 %v1732
        %1750 = vmatprep.subr.mxu0 0.0
        %1751 = vmatpush1.msra.mxu0 %v1733
        %1752 = vmatprep.subr.mxu0 0.0
        %1753 = vmatpush1.msra.mxu0 %v1734
        %1754 = vmatprep.subr.mxu0 0.0
        %1755 = vmatpush1.msra.mxu0 0.0
        %1756 = vmatprep.subr.mxu0 0.0
        %1757 = vmatpush1.msra.mxu0 0.0
        %1758 = vmatprep.subr.mxu0 0.0
        %1759 = vmatpush1.msra.mxu0 0.0
        %1760 = vmatprep.subr.mxu0 0.0
        %1761 = vmatpush1.msra.mxu0 0.0
        %1762 = vmatprep.subr.mxu0 0.0
        %1763 = vmatpush1.msra.mxu0 0.0
        %1764 = vmatprep.subr.mxu0 0.0
        %1765 = vmatpush1.msra.mxu0 0.0
        %1766 = vmatprep.subr.mxu0 0.0
        %1767 = vmatpush1.msra.mxu0 0.0
        %1768 = vmatprep.subr.mxu0 0.0
        %1769 = vmatpush1.msra.mxu0 0.0
        %1770 = vmatprep.subr.mxu0 0.0
        %1771 = vmatpush1.msra.mxu0 0.0
        %1772 = vmatprep.subr.mxu0 0.0
        %1773 = vmatpush1.msra.mxu0 0.0
        %1774 = vmatprep.subr.mxu0 0.0
        %1775 = vmatpush1.msra.mxu0 0.0
        %1776 = vmatprep.subr.mxu0 0.0
        %1777 = vmatpush1.msra.mxu0 0.0
        %1778 = vmatprep.subr.mxu0 0.0
        %1779 = vmatpush1.msra.mxu0 0.0
        %1780 = vmatprep.subr.mxu0 0.0
        %1781 = vmatpush1.msra.mxu0 0.0
        %1782 = vmatprep.subr.mxu0 0.0
        %1783 = vmatpush1.msra.mxu0 0.0
        %1784 = vmatprep.subr.mxu0 0.0
        %1785 = vmatpush1.msra.mxu0 0.0
        %1786 = vmatprep.subr.mxu0 0.0
        %1787 = vmatpush1.msra.mxu0 0.0
        %1788 = vmatprep.subr.mxu0 0.0
        %1789 = vmatpush1.msra.mxu0 0.0
        %1790 = vmatprep.subr.mxu0 0.0
        %1791 = vmatpush1.msra.mxu0 0.0
        %1792 = vmatprep.subr.mxu0 0.0
        %1793 = vmatpush1.msra.mxu0 0.0
        %1794 = vmatprep.subr.mxu0 0.0
        %1795 = vmatpush1.msra.mxu0 0.0
        %1796 = vmatprep.subr.mxu0 0.0
        %1797 = vmatpush1.msra.mxu0 0.0
        %1798 = vmatprep.subr.mxu0 0.0
        %1799 = vmatpush1.msra.mxu0 0.0
        %1800 = vmatprep.subr.mxu0 0.0
        %1801 = vmatpush1.msra.mxu0 0.0
        %1802 = vmatprep.mubr.f32.mxu0 0.0
        %1803 = vmatmul.mubr.f32.gmra.mrb[0].mxu0 %v1736
        %v1804 = vpop.f32.mrb[0].mxu0
        %v1805 = vadd.f32 0.0, %v1804
        %v1806 = vpop.f32.mrb[0].mxu0
        %1807 = vdwg.mxu0
        %v1808 = vadd.f32 %v1634, %v1805
        %v1809 = vld [vmem:[%s2 + $0x3] sm:$0x1]
        %v1810 = vmul.f32 %v1808, %v1808
        %v1811 = vsel %vm526, %v1810, 0.0
        %1812 = vadd.xlane.f32.xlu0 %v1811
        %v1813 = vpop.xlane.xlu0 %1812
        %v1814 = vmul.f32 %v1813, %v530
        %v1815 = vadd.f32 %v1814, 1e-06
        %v1816 = vrsqrt.pop %v1815
        %v1817 = vmul.f32 %v1808, %v1816
        %v1818 = vlaneseq
        %v1819 = vshrl.u32 %v1818, 7
        %v1820 = vsub.s32 0, %v1819
        %v1821 = vrot.slane %v1809, %v1820
        %v1822 = vmul.f32 %v1817, %v1821
        %s1823 = scalar_lea.vmem %s3, 32
        %v1824 = vld [vmem:[%s1823] sm:$0xff]
        %v1825 = vld [vmem:[%s1823 + $0x8] sm:$0xff]
        %v1826 = vld [vmem:[%s1823 + $0x10] sm:$0xff]
        %v1827 = vld [vmem:[%s1823 + $0x18] sm:$0xff]
        %v1829 = vsel %vm544, %v1822, 0
        %1831 = vmatprep.subr.mxu0 0.0
        %1832 = vmatpush1.msra.mxu0 %v1824
        %1833 = vmatprep.subr.mxu0 0.0
        %1834 = vmatpush1.msra.mxu0 %v1825
        %1835 = vmatprep.subr.mxu0 0.0
        %1836 = vmatpush1.msra.mxu0 %v1826
        %1837 = vmatprep.subr.mxu0 0.0
        %1838 = vmatpush1.msra.mxu0 %v1827
        %1839 = vmatprep.subr.mxu0 0.0
        %1840 = vmatpush1.msra.mxu0 0.0
        %1841 = vmatprep.subr.mxu0 0.0
        %1842 = vmatpush1.msra.mxu0 0.0
        %1843 = vmatprep.subr.mxu0 0.0
        %1844 = vmatpush1.msra.mxu0 0.0
        %1845 = vmatprep.subr.mxu0 0.0
        %1846 = vmatpush1.msra.mxu0 0.0
        %1847 = vmatprep.subr.mxu0 0.0
        %1848 = vmatpush1.msra.mxu0 0.0
        %1849 = vmatprep.subr.mxu0 0.0
        %1850 = vmatpush1.msra.mxu0 0.0
        %1851 = vmatprep.subr.mxu0 0.0
        %1852 = vmatpush1.msra.mxu0 0.0
        %1853 = vmatprep.subr.mxu0 0.0
        %1854 = vmatpush1.msra.mxu0 0.0
        %1855 = vmatprep.subr.mxu0 0.0
        %1856 = vmatpush1.msra.mxu0 0.0
        %1857 = vmatprep.subr.mxu0 0.0
        %1858 = vmatpush1.msra.mxu0 0.0
        %1859 = vmatprep.subr.mxu0 0.0
        %1860 = vmatpush1.msra.mxu0 0.0
        %1861 = vmatprep.subr.mxu0 0.0
        %1862 = vmatpush1.msra.mxu0 0.0
        %1863 = vmatprep.subr.mxu0 0.0
        %1864 = vmatpush1.msra.mxu0 0.0
        %1865 = vmatprep.subr.mxu0 0.0
        %1866 = vmatpush1.msra.mxu0 0.0
        %1867 = vmatprep.subr.mxu0 0.0
        %1868 = vmatpush1.msra.mxu0 0.0
        %1869 = vmatprep.subr.mxu0 0.0
        %1870 = vmatpush1.msra.mxu0 0.0
        %1871 = vmatprep.subr.mxu0 0.0
        %1872 = vmatpush1.msra.mxu0 0.0
        %1873 = vmatprep.subr.mxu0 0.0
        %1874 = vmatpush1.msra.mxu0 0.0
        %1875 = vmatprep.subr.mxu0 0.0
        %1876 = vmatpush1.msra.mxu0 0.0
        %1877 = vmatprep.subr.mxu0 0.0
        %1878 = vmatpush1.msra.mxu0 0.0
        %1879 = vmatprep.subr.mxu0 0.0
        %1880 = vmatpush1.msra.mxu0 0.0
        %1881 = vmatprep.subr.mxu0 0.0
        %1882 = vmatpush1.msra.mxu0 0.0
        %1883 = vmatprep.subr.mxu0 0.0
        %1884 = vmatpush1.msra.mxu0 0.0
        %1885 = vmatprep.subr.mxu0 0.0
        %1886 = vmatpush1.msra.mxu0 0.0
        %1887 = vmatprep.subr.mxu0 0.0
        %1888 = vmatpush1.msra.mxu0 0.0
        %1889 = vmatprep.subr.mxu0 0.0
        %1890 = vmatpush1.msra.mxu0 0.0
        %1891 = vmatprep.subr.mxu0 0.0
        %1892 = vmatpush1.msra.mxu0 0.0
        %1893 = vmatprep.subr.mxu0 0.0
        %1894 = vmatpush1.msra.mxu0 0.0
        %1895 = vmatprep.mubr.f32.mxu0 0.0
        %1896 = vmatmul.mubr.f32.gmra.mrb[0].mxu0 %v1829
        %v1897 = vpop.f32.mrb[0].mxu0
        %v1898 = vadd.f32 0.0, %v1897
        %v1899 = vpop.f32.mrb[0].mxu0
        %1900 = vdwg.mxu0
        %v1903 = vunpack.c.l.s4 1966171168
        %v1904 = vunpack.c.0.s8 %v1903
        %v1905 = vlaneseq
        %v1906 = vshrl.u32 %v1905, 7
        %v1907 = vsub.s32 %v1904, %v1906
        %v1908 = vrot.slane %v1898, %v1907
        %v1909 = vcombine.high %v1908, %v1908
        %v1911 = vunpack.c.l.s4 1966171168
        %v1912 = vunpack.c.0.s8 %v1911
        %v1913 = vlaneseq
        %v1914 = vshrl.u32 %v1913, 7
        %v1915 = vsub.s32 %v1912, %v1914
        %v1916 = vrot.slane %v1908, %v1915
        %v1918 = vunpack.c.l.s4 1966171168
        %v1919 = vunpack.c.0.s8 %v1918
        %v1920 = vlaneseq
        %v1921 = vshrl.u32 %v1920, 7
        %v1922 = vsub.s32 %v1919, %v1921
        %v1923 = vrot.slane %v1909, %v1922
        %v1924 = vlaneseq
        %v1925 = vshrl.u32 %v1924, 7
        %v1926 = vsub.s32 0, %v1925
        %v1927 = vrot.slane %v1916, %v1926
        %v1928 = vlaneseq
        %v1929 = vshrl.u32 %v1928, 7
        %v1930 = vsub.s32 0, %v1929
        %v1931 = vrot.slane %v1923, %v1930
        %1932 = vrot.lane.b32.xlu0 %v1927, 96
        %v1933 = vpop.permute.xlu0 %1932
        %1934 = vrot.lane.b32.xlu0 %v1931, 96
        %v1935 = vpop.permute.xlu0 %1934
        %s1938 = scalar_lea.vmem [#allocation4], %s25
        %1939 = vst.msk [vmem:[%s1938] sm:$0x1] %vm656, %v1933
        %1940 = vst.msk [vmem:[%s1938 + $0x10] sm:$0x1] %vm656, %v1935
        %1941 = vrot.lane.b32.xlu0 %v1927, 64
        %v1942 = vpop.permute.xlu0 %1941
        %1943 = vrot.lane.b32.xlu0 %v1931, 64
        %v1944 = vpop.permute.xlu0 %1943
        %s1947 = scalar_lea.vmem [#allocation5], %s25
        %1948 = vst.msk [vmem:[%s1947] sm:$0x1] %vm656, %v1942
        %1949 = vst.msk [vmem:[%s1947 + $0x10] sm:$0x1] %vm656, %v1944
        %v1950 = vld [vmem:[#allocation4] sm:$0xff]
        %v1951 = vld [vmem:[#allocation4 + $0x8] sm:$0xff]
        %v1952 = vld [vmem:[#allocation4 + $0x10] sm:$0xff]
        %v1953 = vld [vmem:[#allocation4 + $0x18] sm:$0xff]
        %v1954 = vld [vmem:[#allocation5] sm:$0xff]
        %v1955 = vld [vmem:[#allocation5 + $0x8] sm:$0xff]
        %v1956 = vld [vmem:[#allocation5 + $0x10] sm:$0xff]
        %v1957 = vld [vmem:[#allocation5 + $0x18] sm:$0xff]
        %v1960 = vmul.f32 %v1927, %v1950
        %v1961 = vmul.f32 %v1927, %v1951
        %v1962 = vmul.f32 %v1931, %v1952
        %v1963 = vmul.f32 %v1931, %v1953
        %v1964 = vsel %vm682, %v1960, 0.0
        %1965 = vadd.xlane.f32.xlu0 %v1964
        %v1966 = vpop.xlane.xlu0 %1965
        %v1967 = vsel %vm682, %v1961, 0.0
        %1968 = vadd.xlane.f32.xlu0 %v1967
        %v1969 = vpop.xlane.xlu0 %1968
        %v1970 = vsel %vm682, %v1962, 0.0
        %1971 = vadd.xlane.f32.xlu0 %v1970
        %v1972 = vpop.xlane.xlu0 %1971
        %v1973 = vsel %vm682, %v1963, 0.0
        %1974 = vadd.xlane.f32.xlu0 %v1973
        %v1975 = vpop.xlane.xlu0 %1974
        %v1976 = vld [vmem:[%s695] sm:$0x1]
        %v1977 = vlaneseq
        %v1978 = vshrl.u32 %v1977, 7
        %v1979 = vsub.s32 0, %v1978
        %v1980 = vrot.slane %v1976, %v1979
        %1983 = vbcast.lane.b32.xlu0 %v1980, 256
        %v1984 = vpop.permute.xlu0 %1983
        %s1986 = sor.u32 256, 8
        %1987 = vbcast.lane.b32.xlu0 %v1980, %s1986
        %v1988 = vpop.permute.xlu0 %1987
        %v1991 = vadd.f32 %v1966, %v1984
        %v1992 = vadd.f32 %v1969, %v1988
        %v1993 = vadd.f32 %v1972, %v1984
        %v1994 = vadd.f32 %v1975, %v1988
        %1999 = vset.pattern.permute.xlu0 0
        %2000 = vperm.xlu0 %1999, %v1991
        %v2001 = vpop.permute.xlu0 %2000
        %2002 = vset.pattern.permute.xlu0 0
        %2003 = vperm.xlu0 %2002, %v1992
        %v2004 = vpop.permute.xlu0 %2003
        %2005 = vset.pattern.permute.xlu0 0
        %2006 = vperm.xlu0 %2005, %v1993
        %v2007 = vpop.permute.xlu0 %2006
        %2008 = vset.pattern.permute.xlu0 0
        %2009 = vperm.xlu0 %2008, %v1994
        %v2010 = vpop.permute.xlu0 %2009
        %v2011 = vlaneseq
        %v2012 = vshrl.u32 %v2011, 7
        %v2013 = vsub.s32 %v433, %v2012
        %v2014 = vrot.slane %v2001, %v2013
        %v2015 = vlaneseq
        %v2016 = vshrl.u32 %v2015, 7
        %v2017 = vsub.s32 %v735, %v2016
        %v2018 = vrot.slane %v2004, %v2017
        %v2019 = vsel %vm740, %v2018, %v2014
        %v2020 = vlaneseq
        %v2021 = vshrl.u32 %v2020, 7
        %v2022 = vsub.s32 %v433, %v2021
        %v2023 = vrot.slane %v2007, %v2022
        %v2024 = vlaneseq
        %v2025 = vshrl.u32 %v2024, 7
        %v2026 = vsub.s32 %v735, %v2025
        %v2027 = vrot.slane %v2010, %v2026
        %v2028 = vsel %vm740, %v2027, %v2023
        %v2029 = vsel %vm751, %v2028, %v2019
        %v2031 = vsel %vm754, %v2029, -inf
        %2032 = vmax.xlane.f32.xlu0 %v2031
        %v2033 = vpop.xlane.xlu0 %2032
        %v2035 = vlaneseq
        %v2036 = vshrl.u32 %v2035, 7
        %v2037 = vsub.s32 0, %v2036
        %v2038 = vrot.slane %v2033, %v2037
        %v2039 = vlaneseq
        %v2040 = vshrl.u32 %v2039, 7
        %v2041 = vsub.s32 1, %v2040
        %v2042 = vrot.slane %v2033, %v2041
        %v2045 = vsub.f32 %v1991, %v2038
        %v2046 = vsub.f32 %v1992, %v2038
        %v2047 = vsub.f32 %v1993, %v2042
        %v2048 = vsub.f32 %v1994, %v2042
        %v2049 = vmul.f32 %v2045, 1.442695
        %v2050 = vpow.pop %v2049
        %v2051 = vmul.f32 %v2046, 1.442695
        %v2052 = vpow.pop %v2051
        %v2053 = vmul.f32 %v2047, 1.442695
        %v2054 = vpow.pop %v2053
        %v2055 = vmul.f32 %v2048, 1.442695
        %v2056 = vpow.pop %v2055
        %2061 = vset.pattern.permute.xlu0 0
        %2062 = vperm.xlu0 %2061, %v2050
        %v2063 = vpop.permute.xlu0 %2062
        %2064 = vset.pattern.permute.xlu0 0
        %2065 = vperm.xlu0 %2064, %v2052
        %v2066 = vpop.permute.xlu0 %2065
        %2067 = vset.pattern.permute.xlu0 0
        %2068 = vperm.xlu0 %2067, %v2054
        %v2069 = vpop.permute.xlu0 %2068
        %2070 = vset.pattern.permute.xlu0 0
        %2071 = vperm.xlu0 %2070, %v2056
        %v2072 = vpop.permute.xlu0 %2071
        %v2073 = vlaneseq
        %v2074 = vshrl.u32 %v2073, 7
        %v2075 = vsub.s32 %v433, %v2074
        %v2076 = vrot.slane %v2063, %v2075
        %v2077 = vlaneseq
        %v2078 = vshrl.u32 %v2077, 7
        %v2079 = vsub.s32 %v735, %v2078
        %v2080 = vrot.slane %v2066, %v2079
        %v2081 = vsel %vm740, %v2080, %v2076
        %v2082 = vlaneseq
        %v2083 = vshrl.u32 %v2082, 7
        %v2084 = vsub.s32 %v433, %v2083
        %v2085 = vrot.slane %v2069, %v2084
        %v2086 = vlaneseq
        %v2087 = vshrl.u32 %v2086, 7
        %v2088 = vsub.s32 %v735, %v2087
        %v2089 = vrot.slane %v2072, %v2088
        %v2090 = vsel %vm740, %v2089, %v2085
        %v2091 = vsel %vm751, %v2090, %v2081
        %v2093 = vsel %vm754, %v2091, 0.0
        %2094 = vadd.xlane.f32.xlu0 %v2093
        %v2095 = vpop.xlane.xlu0 %2094
        %v2097 = vlaneseq
        %v2098 = vshrl.u32 %v2097, 7
        %v2099 = vsub.s32 0, %v2098
        %v2100 = vrot.slane %v2095, %v2099
        %v2101 = vlaneseq
        %v2102 = vshrl.u32 %v2101, 7
        %v2103 = vsub.s32 1, %v2102
        %v2104 = vrot.slane %v2095, %v2103
        %v2107 = vrcp.pop %v2100
        %v2108 = vmul.f32 %v2050, %v2107
        %v2109 = vmul.f32 %v2052, %v2107
        %v2110 = vrcp.pop %v2104
        %v2111 = vmul.f32 %v2054, %v2110
        %v2112 = vmul.f32 %v2056, %v2110
        %2114 = vset.pattern.permute.xlu0 0
        %2115 = vperm.xlu0 %2114, %v2108
        %v2116 = vpop.permute.xlu0 %2115
        %2119 = vset.pattern.permute.xlu0 0
        %2120 = vperm.xlu0 %2119, %v2109
        %v2121 = vpop.permute.xlu0 %2120
        %2124 = vset.pattern.permute.xlu0 0
        %2125 = vperm.xlu0 %2124, %v2111
        %v2126 = vpop.permute.xlu0 %2125
        %2129 = vset.pattern.permute.xlu0 0
        %2130 = vperm.xlu0 %2129, %v2112
        %v2131 = vpop.permute.xlu0 %2130
        %v2133 = vmul.f32 %v2116, %v1954
        %v2134 = vmul.f32 %v2121, %v1955
        %v2135 = vmul.f32 %v2126, %v1956
        %v2136 = vmul.f32 %v2131, %v1957
        %v2137 = vsel %vm682, %v2133, 0.0
        %v2138 = vsel %vm682, %v2134, 0.0
        %v2139 = vadd.f32 %v2137, %v2138
        %v2140 = vrot.slane %v2139, 4
        %v2141 = vadd.f32 %v2139, %v2140
        %v2142 = vrot.slane %v2141, 2
        %v2143 = vadd.f32 %v2141, %v2142
        %v2144 = vrot.slane %v2143, 1
        %v2145 = vadd.f32 %v2143, %v2144
        %v2146 = vsel %vm682, %v2135, 0.0
        %v2147 = vsel %vm682, %v2136, 0.0
        %v2148 = vadd.f32 %v2146, %v2147
        %v2149 = vrot.slane %v2148, 4
        %v2150 = vadd.f32 %v2148, %v2149
        %v2151 = vrot.slane %v2150, 2
        %v2152 = vadd.f32 %v2150, %v2151
        %v2153 = vrot.slane %v2152, 1
        %v2154 = vadd.f32 %v2152, %v2153
        %2159 = vrot.lane.b32.xlu0 %v1960, 112
        %v2160 = vpop.permute.xlu0 %2159
        %2161 = vrot.lane.b32.xlu0 %v1961, 112
        %v2162 = vpop.permute.xlu0 %2161
        %2163 = vrot.lane.b32.xlu0 %v1962, 112
        %v2164 = vpop.permute.xlu0 %2163
        %2165 = vrot.lane.b32.xlu0 %v1963, 112
        %v2166 = vpop.permute.xlu0 %2165
        %v2171 = vsel %vm682, %v2160, 0.0
        %2172 = vadd.xlane.f32.xlu0 %v2171
        %v2173 = vpop.xlane.xlu0 %2172
        %v2174 = vsel %vm682, %v2162, 0.0
        %2175 = vadd.xlane.f32.xlu0 %v2174
        %v2176 = vpop.xlane.xlu0 %2175
        %v2177 = vsel %vm682, %v2164, 0.0
        %2178 = vadd.xlane.f32.xlu0 %v2177
        %v2179 = vpop.xlane.xlu0 %2178
        %v2180 = vsel %vm682, %v2166, 0.0
        %2181 = vadd.xlane.f32.xlu0 %v2180
        %v2182 = vpop.xlane.xlu0 %2181
        %v2183 = vld [vmem:[%s908] sm:$0x1]
        %v2184 = vlaneseq
        %v2185 = vshrl.u32 %v2184, 7
        %v2186 = vsub.s32 0, %v2185
        %v2187 = vrot.slane %v2183, %v2186
        %2190 = vbcast.lane.b32.xlu0 %v2187, 256
        %v2191 = vpop.permute.xlu0 %2190
        %s2193 = sor.u32 256, 8
        %2194 = vbcast.lane.b32.xlu0 %v2187, %s2193
        %v2195 = vpop.permute.xlu0 %2194
        %v2198 = vadd.f32 %v2173, %v2191
        %v2199 = vadd.f32 %v2176, %v2195
        %v2200 = vadd.f32 %v2179, %v2191
        %v2201 = vadd.f32 %v2182, %v2195
        %2206 = vset.pattern.permute.xlu0 0
        %2207 = vperm.xlu0 %2206, %v2198
        %v2208 = vpop.permute.xlu0 %2207
        %2209 = vset.pattern.permute.xlu0 0
        %2210 = vperm.xlu0 %2209, %v2199
        %v2211 = vpop.permute.xlu0 %2210
        %2212 = vset.pattern.permute.xlu0 0
        %2213 = vperm.xlu0 %2212, %v2200
        %v2214 = vpop.permute.xlu0 %2213
        %2215 = vset.pattern.permute.xlu0 0
        %2216 = vperm.xlu0 %2215, %v2201
        %v2217 = vpop.permute.xlu0 %2216
        %v2218 = vlaneseq
        %v2219 = vshrl.u32 %v2218, 7
        %v2220 = vsub.s32 %v433, %v2219
        %v2221 = vrot.slane %v2208, %v2220
        %v2222 = vlaneseq
        %v2223 = vshrl.u32 %v2222, 7
        %v2224 = vsub.s32 %v735, %v2223
        %v2225 = vrot.slane %v2211, %v2224
        %v2226 = vsel %vm740, %v2225, %v2221
        %v2227 = vlaneseq
        %v2228 = vshrl.u32 %v2227, 7
        %v2229 = vsub.s32 %v433, %v2228
        %v2230 = vrot.slane %v2214, %v2229
        %v2231 = vlaneseq
        %v2232 = vshrl.u32 %v2231, 7
        %v2233 = vsub.s32 %v735, %v2232
        %v2234 = vrot.slane %v2217, %v2233
        %v2235 = vsel %vm740, %v2234, %v2230
        %v2236 = vsel %vm751, %v2235, %v2226
        %v2238 = vsel %vm754, %v2236, -inf
        %2239 = vmax.xlane.f32.xlu0 %v2238
        %v2240 = vpop.xlane.xlu0 %2239
        %v2242 = vlaneseq
        %v2243 = vshrl.u32 %v2242, 7
        %v2244 = vsub.s32 0, %v2243
        %v2245 = vrot.slane %v2240, %v2244
        %v2246 = vlaneseq
        %v2247 = vshrl.u32 %v2246, 7
        %v2248 = vsub.s32 1, %v2247
        %v2249 = vrot.slane %v2240, %v2248
        %v2252 = vsub.f32 %v2198, %v2245
        %v2253 = vsub.f32 %v2199, %v2245
        %v2254 = vsub.f32 %v2200, %v2249
        %v2255 = vsub.f32 %v2201, %v2249
        %v2256 = vmul.f32 %v2252, 1.442695
        %v2257 = vpow.pop %v2256
        %v2258 = vmul.f32 %v2253, 1.442695
        %v2259 = vpow.pop %v2258
        %v2260 = vmul.f32 %v2254, 1.442695
        %v2261 = vpow.pop %v2260
        %v2262 = vmul.f32 %v2255, 1.442695
        %v2263 = vpow.pop %v2262
        %2268 = vset.pattern.permute.xlu0 0
        %2269 = vperm.xlu0 %2268, %v2257
        %v2270 = vpop.permute.xlu0 %2269
        %2271 = vset.pattern.permute.xlu0 0
        %2272 = vperm.xlu0 %2271, %v2259
        %v2273 = vpop.permute.xlu0 %2272
        %2274 = vset.pattern.permute.xlu0 0
        %2275 = vperm.xlu0 %2274, %v2261
        %v2276 = vpop.permute.xlu0 %2275
        %2277 = vset.pattern.permute.xlu0 0
        %2278 = vperm.xlu0 %2277, %v2263
        %v2279 = vpop.permute.xlu0 %2278
        %v2280 = vlaneseq
        %v2281 = vshrl.u32 %v2280, 7
        %v2282 = vsub.s32 %v433, %v2281
        %v2283 = vrot.slane %v2270, %v2282
        %v2284 = vlaneseq
        %v2285 = vshrl.u32 %v2284, 7
        %v2286 = vsub.s32 %v735, %v2285
        %v2287 = vrot.slane %v2273, %v2286
        %v2288 = vsel %vm740, %v2287, %v2283
        %v2289 = vlaneseq
        %v2290 = vshrl.u32 %v2289, 7
        %v2291 = vsub.s32 %v433, %v2290
        %v2292 = vrot.slane %v2276, %v2291
        %v2293 = vlaneseq
        %v2294 = vshrl.u32 %v2293, 7
        %v2295 = vsub.s32 %v735, %v2294
        %v2296 = vrot.slane %v2279, %v2295
        %v2297 = vsel %vm740, %v2296, %v2292
        %v2298 = vsel %vm751, %v2297, %v2288
        %v2300 = vsel %vm754, %v2298, 0.0
        %2301 = vadd.xlane.f32.xlu0 %v2300
        %v2302 = vpop.xlane.xlu0 %2301
        %v2304 = vlaneseq
        %v2305 = vshrl.u32 %v2304, 7
        %v2306 = vsub.s32 0, %v2305
        %v2307 = vrot.slane %v2302, %v2306
        %v2308 = vlaneseq
        %v2309 = vshrl.u32 %v2308, 7
        %v2310 = vsub.s32 1, %v2309
        %v2311 = vrot.slane %v2302, %v2310
        %v2314 = vrcp.pop %v2307
        %v2315 = vmul.f32 %v2257, %v2314
        %v2316 = vmul.f32 %v2259, %v2314
        %v2317 = vrcp.pop %v2311
        %v2318 = vmul.f32 %v2261, %v2317
        %v2319 = vmul.f32 %v2263, %v2317
        %2321 = vset.pattern.permute.xlu0 0
        %2322 = vperm.xlu0 %2321, %v2315
        %v2323 = vpop.permute.xlu0 %2322
        %2326 = vset.pattern.permute.xlu0 0
        %2327 = vperm.xlu0 %2326, %v2316
        %v2328 = vpop.permute.xlu0 %2327
        %2331 = vset.pattern.permute.xlu0 0
        %2332 = vperm.xlu0 %2331, %v2318
        %v2333 = vpop.permute.xlu0 %2332
        %2336 = vset.pattern.permute.xlu0 0
        %2337 = vperm.xlu0 %2336, %v2319
        %v2338 = vpop.permute.xlu0 %2337
        %v2340 = vmul.f32 %v2323, %v1954
        %v2341 = vmul.f32 %v2328, %v1955
        %v2342 = vmul.f32 %v2333, %v1956
        %v2343 = vmul.f32 %v2338, %v1957
        %v2344 = vsel %vm1070, %v2340, 0.0
        %v2345 = vsel %vm1070, %v2341, 0.0
        %v2346 = vadd.f32 %v2344, %v2345
        %v2347 = vrot.slane %v2346, 4
        %v2348 = vadd.f32 %v2346, %v2347
        %v2349 = vrot.slane %v2348, 2
        %v2350 = vadd.f32 %v2348, %v2349
        %v2351 = vrot.slane %v2350, 1
        %v2352 = vadd.f32 %v2350, %v2351
        %v2353 = vsel %vm1070, %v2342, 0.0
        %v2354 = vsel %vm1070, %v2343, 0.0
        %v2355 = vadd.f32 %v2353, %v2354
        %v2356 = vrot.slane %v2355, 4
        %v2357 = vadd.f32 %v2355, %v2356
        %v2358 = vrot.slane %v2357, 2
        %v2359 = vadd.f32 %v2357, %v2358
        %v2360 = vrot.slane %v2359, 1
        %v2361 = vadd.f32 %v2359, %v2360
        %v2364 = vsel %vm751, %v2154, %v2145
        %v2368 = vsel %vm751, %v2361, %v2352
        %v2370 = vsel %vm682, %v2364, %v2368
        %s2371 = scalar_lea.vmem %s4, 32
        %v2372 = vld [vmem:[%s2371] sm:$0xff]
        %v2373 = vld [vmem:[%s2371 + $0x8] sm:$0xff]
        %v2374 = vld [vmem:[%s2371 + $0x10] sm:$0xff]
        %v2375 = vld [vmem:[%s2371 + $0x18] sm:$0xff]
        %v2377 = vsel %vm544, %v2370, 0
        %2379 = vmatprep.subr.mxu0 0.0
        %2380 = vmatpush1.msra.mxu0 %v2372
        %2381 = vmatprep.subr.mxu0 0.0
        %2382 = vmatpush1.msra.mxu0 %v2373
        %2383 = vmatprep.subr.mxu0 0.0
        %2384 = vmatpush1.msra.mxu0 %v2374
        %2385 = vmatprep.subr.mxu0 0.0
        %2386 = vmatpush1.msra.mxu0 %v2375
        %2387 = vmatprep.subr.mxu0 0.0
        %2388 = vmatpush1.msra.mxu0 0.0
        %2389 = vmatprep.subr.mxu0 0.0
        %2390 = vmatpush1.msra.mxu0 0.0
        %2391 = vmatprep.subr.mxu0 0.0
        %2392 = vmatpush1.msra.mxu0 0.0
        %2393 = vmatprep.subr.mxu0 0.0
        %2394 = vmatpush1.msra.mxu0 0.0
        %2395 = vmatprep.subr.mxu0 0.0
        %2396 = vmatpush1.msra.mxu0 0.0
        %2397 = vmatprep.subr.mxu0 0.0
        %2398 = vmatpush1.msra.mxu0 0.0
        %2399 = vmatprep.subr.mxu0 0.0
        %2400 = vmatpush1.msra.mxu0 0.0
        %2401 = vmatprep.subr.mxu0 0.0
        %2402 = vmatpush1.msra.mxu0 0.0
        %2403 = vmatprep.subr.mxu0 0.0
        %2404 = vmatpush1.msra.mxu0 0.0
        %2405 = vmatprep.subr.mxu0 0.0
        %2406 = vmatpush1.msra.mxu0 0.0
        %2407 = vmatprep.subr.mxu0 0.0
        %2408 = vmatpush1.msra.mxu0 0.0
        %2409 = vmatprep.subr.mxu0 0.0
        %2410 = vmatpush1.msra.mxu0 0.0
        %2411 = vmatprep.subr.mxu0 0.0
        %2412 = vmatpush1.msra.mxu0 0.0
        %2413 = vmatprep.subr.mxu0 0.0
        %2414 = vmatpush1.msra.mxu0 0.0
        %2415 = vmatprep.subr.mxu0 0.0
        %2416 = vmatpush1.msra.mxu0 0.0
        %2417 = vmatprep.subr.mxu0 0.0
        %2418 = vmatpush1.msra.mxu0 0.0
        %2419 = vmatprep.subr.mxu0 0.0
        %2420 = vmatpush1.msra.mxu0 0.0
        %2421 = vmatprep.subr.mxu0 0.0
        %2422 = vmatpush1.msra.mxu0 0.0
        %2423 = vmatprep.subr.mxu0 0.0
        %2424 = vmatpush1.msra.mxu0 0.0
        %2425 = vmatprep.subr.mxu0 0.0
        %2426 = vmatpush1.msra.mxu0 0.0
        %2427 = vmatprep.subr.mxu0 0.0
        %2428 = vmatpush1.msra.mxu0 0.0
        %2429 = vmatprep.subr.mxu0 0.0
        %2430 = vmatpush1.msra.mxu0 0.0
        %2431 = vmatprep.subr.mxu0 0.0
        %2432 = vmatpush1.msra.mxu0 0.0
        %2433 = vmatprep.subr.mxu0 0.0
        %2434 = vmatpush1.msra.mxu0 0.0
        %2435 = vmatprep.subr.mxu0 0.0
        %2436 = vmatpush1.msra.mxu0 0.0
        %2437 = vmatprep.subr.mxu0 0.0
        %2438 = vmatpush1.msra.mxu0 0.0
        %2439 = vmatprep.subr.mxu0 0.0
        %2440 = vmatpush1.msra.mxu0 0.0
        %2441 = vmatprep.subr.mxu0 0.0
        %2442 = vmatpush1.msra.mxu0 0.0
        %2443 = vmatprep.mubr.f32.mxu0 0.0
        %2444 = vmatmul.mubr.f32.gmra.mrb[0].mxu0 %v2377
        %v2445 = vpop.f32.mrb[0].mxu0
        %v2446 = vadd.f32 0.0, %v2445
        %v2447 = vpop.f32.mrb[0].mxu0
        %2448 = vdwg.mxu0
        %v2449 = vadd.f32 %v1808, %v2446
        %v2450 = vld [vmem:[%s2 + $0x4] sm:$0x1]
        %v2451 = vmul.f32 %v2449, %v2449
        %v2452 = vsel %vm526, %v2451, 0.0
        %2453 = vadd.xlane.f32.xlu0 %v2452
        %v2454 = vpop.xlane.xlu0 %2453
        %v2455 = vmul.f32 %v2454, %v530
        %v2456 = vadd.f32 %v2455, 1e-06
        %v2457 = vrsqrt.pop %v2456
        %v2458 = vmul.f32 %v2449, %v2457
        %v2459 = vlaneseq
        %v2460 = vshrl.u32 %v2459, 7
        %v2461 = vsub.s32 0, %v2460
        %v2462 = vrot.slane %v2450, %v2461
        %v2463 = vmul.f32 %v2458, %v2462
        %s2464 = scalar_lea.vmem %s5, 32
        %v2465 = vld [vmem:[%s2464] sm:$0xff]
        %v2466 = vld [vmem:[%s2464 + $0x8] sm:$0xff]
        %v2467 = vld [vmem:[%s2464 + $0x10] sm:$0xff]
        %v2468 = vld [vmem:[%s2464 + $0x18] sm:$0xff]
        %v2470 = vsel %vm544, %v2463, 0
        %2472 = vmatprep.subr.mxu0 0.0
        %2473 = vmatpush1.msra.mxu0 %v2465
        %2474 = vmatprep.subr.mxu0 0.0
        %2475 = vmatpush1.msra.mxu0 %v2466
        %2476 = vmatprep.subr.mxu0 0.0
        %2477 = vmatpush1.msra.mxu0 %v2467
        %2478 = vmatprep.subr.mxu0 0.0
        %2479 = vmatpush1.msra.mxu0 %v2468
        %2480 = vmatprep.subr.mxu0 0.0
        %2481 = vmatpush1.msra.mxu0 0.0
        %2482 = vmatprep.subr.mxu0 0.0
        %2483 = vmatpush1.msra.mxu0 0.0
        %2484 = vmatprep.subr.mxu0 0.0
        %2485 = vmatpush1.msra.mxu0 0.0
        %2486 = vmatprep.subr.mxu0 0.0
        %2487 = vmatpush1.msra.mxu0 0.0
        %2488 = vmatprep.subr.mxu0 0.0
        %2489 = vmatpush1.msra.mxu0 0.0
        %2490 = vmatprep.subr.mxu0 0.0
        %2491 = vmatpush1.msra.mxu0 0.0
        %2492 = vmatprep.subr.mxu0 0.0
        %2493 = vmatpush1.msra.mxu0 0.0
        %2494 = vmatprep.subr.mxu0 0.0
        %2495 = vmatpush1.msra.mxu0 0.0
        %2496 = vmatprep.subr.mxu0 0.0
        %2497 = vmatpush1.msra.mxu0 0.0
        %2498 = vmatprep.subr.mxu0 0.0
        %2499 = vmatpush1.msra.mxu0 0.0
        %2500 = vmatprep.subr.mxu0 0.0
        %2501 = vmatpush1.msra.mxu0 0.0
        %2502 = vmatprep.subr.mxu0 0.0
        %2503 = vmatpush1.msra.mxu0 0.0
        %2504 = vmatprep.subr.mxu0 0.0
        %2505 = vmatpush1.msra.mxu0 0.0
        %2506 = vmatprep.subr.mxu0 0.0
        %2507 = vmatpush1.msra.mxu0 0.0
        %2508 = vmatprep.subr.mxu0 0.0
        %2509 = vmatpush1.msra.mxu0 0.0
        %2510 = vmatprep.subr.mxu0 0.0
        %2511 = vmatpush1.msra.mxu0 0.0
        %2512 = vmatprep.subr.mxu0 0.0
        %2513 = vmatpush1.msra.mxu0 0.0
        %2514 = vmatprep.subr.mxu0 0.0
        %2515 = vmatpush1.msra.mxu0 0.0
        %2516 = vmatprep.subr.mxu0 0.0
        %2517 = vmatpush1.msra.mxu0 0.0
        %2518 = vmatprep.subr.mxu0 0.0
        %2519 = vmatpush1.msra.mxu0 0.0
        %2520 = vmatprep.subr.mxu0 0.0
        %2521 = vmatpush1.msra.mxu0 0.0
        %2522 = vmatprep.subr.mxu0 0.0
        %2523 = vmatpush1.msra.mxu0 0.0
        %2524 = vmatprep.subr.mxu0 0.0
        %2525 = vmatpush1.msra.mxu0 0.0
        %2526 = vmatprep.subr.mxu0 0.0
        %2527 = vmatpush1.msra.mxu0 0.0
        %2528 = vmatprep.subr.mxu0 0.0
        %2529 = vmatpush1.msra.mxu0 0.0
        %2530 = vmatprep.subr.mxu0 0.0
        %2531 = vmatpush1.msra.mxu0 0.0
        %2532 = vmatprep.subr.mxu0 0.0
        %2533 = vmatpush1.msra.mxu0 0.0
        %2534 = vmatprep.subr.mxu0 0.0
        %2535 = vmatpush1.msra.mxu0 0.0
        %2536 = vmatprep.mubr.f32.mxu0 0.0
        %2537 = vmatmul.mubr.f32.gmra.mrb[0].mxu0 %v2470
        %v2538 = vpop.f32.mrb[0].mxu0
        %v2539 = vadd.f32 0.0, %v2538
        %v2540 = vpop.f32.mrb[0].mxu0
        %2541 = vdwg.mxu0
        %s2542 = scalar_lea.vmem %s11, 16
        %v2543 = vld [vmem:[%s2542] sm:$0xff]
        %v2544 = vld [vmem:[%s2542 + $0x8] sm:$0xff]
        %s2545 = scalar_lea.vmem %s12, 16
        %v2546 = vld [vmem:[%s2545] sm:$0xff]
        %v2547 = vld [vmem:[%s2545 + $0x8] sm:$0xff]
        %v2550 = vunpack.c.l.s4 1966171168
        %v2551 = vunpack.c.0.s8 %v2550
        %v2552 = vlaneseq
        %v2553 = vshrl.u32 %v2552, 7
        %v2554 = vsub.s32 %v2551, %v2553
        %v2555 = vrot.slane %v2539, %v2554
        %v2556 = vcombine.high %v2555, %v2555
        %v2558 = vunpack.c.l.s4 1966171168
        %v2559 = vunpack.c.0.s8 %v2558
        %v2560 = vlaneseq
        %v2561 = vshrl.u32 %v2560, 7
        %v2562 = vsub.s32 %v2559, %v2561
        %v2563 = vrot.slane %v2555, %v2562
        %v2565 = vunpack.c.l.s4 1966171168
        %v2566 = vunpack.c.0.s8 %v2565
        %v2567 = vlaneseq
        %v2568 = vshrl.u32 %v2567, 7
        %v2569 = vsub.s32 %v2566, %v2568
        %v2570 = vrot.slane %v2556, %v2569
        %v2571 = vlaneseq
        %v2572 = vshrl.u32 %v2571, 7
        %v2573 = vsub.s32 0, %v2572
        %v2574 = vrot.slane %v2563, %v2573
        %v2575 = vlaneseq
        %v2576 = vshrl.u32 %v2575, 7
        %v2577 = vsub.s32 0, %v2576
        %v2578 = vrot.slane %v2570, %v2577
        %v2581 = vmul.f32 %v2574, %v2543
        %v2582 = vmul.f32 %v2578, %v2544
        %v2583 = vsel %vm682, %v2581, 0.0
        %2584 = vadd.xlane.f32.xlu0 %v2583
        %v2585 = vpop.xlane.xlu0 %2584
        %v2586 = vsel %vm682, %v2582, 0.0
        %2587 = vadd.xlane.f32.xlu0 %v2586
        %v2588 = vpop.xlane.xlu0 %2587
        %v2589 = vadd.f32 %v2585, %v1319
        %v2590 = vadd.f32 %v2588, %v1326
        %2593 = vset.pattern.permute.xlu0 0
        %2594 = vperm.xlu0 %2593, %v2589
        %v2595 = vpop.permute.xlu0 %2594
        %2596 = vset.pattern.permute.xlu0 0
        %2597 = vperm.xlu0 %2596, %v2590
        %v2598 = vpop.permute.xlu0 %2597
        %v2599 = vlaneseq
        %v2600 = vshrl.u32 %v2599, 7
        %v2601 = vsub.s32 %v433, %v2600
        %v2602 = vrot.slane %v2595, %v2601
        %v2603 = vlaneseq
        %v2604 = vshrl.u32 %v2603, 7
        %v2605 = vsub.s32 %v433, %v2604
        %v2606 = vrot.slane %v2598, %v2605
        %v2607 = vsel %vm751, %v2606, %v2602
        %v2609 = vsel %vm1349, %v2607, -inf
        %2610 = vmax.xlane.f32.xlu0 %v2609
        %v2611 = vpop.xlane.xlu0 %2610
        %v2613 = vlaneseq
        %v2614 = vshrl.u32 %v2613, 7
        %v2615 = vsub.s32 0, %v2614
        %v2616 = vrot.slane %v2611, %v2615
        %v2617 = vlaneseq
        %v2618 = vshrl.u32 %v2617, 7
        %v2619 = vsub.s32 1, %v2618
        %v2620 = vrot.slane %v2611, %v2619
        %v2623 = vsub.f32 %v2589, %v2616
        %v2624 = vsub.f32 %v2590, %v2620
        %v2625 = vmul.f32 %v2623, 1.442695
        %v2626 = vpow.pop %v2625
        %v2627 = vmul.f32 %v2624, 1.442695
        %v2628 = vpow.pop %v2627
        %2631 = vset.pattern.permute.xlu0 0
        %2632 = vperm.xlu0 %2631, %v2626
        %v2633 = vpop.permute.xlu0 %2632
        %2634 = vset.pattern.permute.xlu0 0
        %2635 = vperm.xlu0 %2634, %v2628
        %v2636 = vpop.permute.xlu0 %2635
        %v2637 = vlaneseq
        %v2638 = vshrl.u32 %v2637, 7
        %v2639 = vsub.s32 %v433, %v2638
        %v2640 = vrot.slane %v2633, %v2639
        %v2641 = vlaneseq
        %v2642 = vshrl.u32 %v2641, 7
        %v2643 = vsub.s32 %v433, %v2642
        %v2644 = vrot.slane %v2636, %v2643
        %v2645 = vsel %vm751, %v2644, %v2640
        %v2647 = vsel %vm1349, %v2645, 0.0
        %2648 = vadd.xlane.f32.xlu0 %v2647
        %v2649 = vpop.xlane.xlu0 %2648
        %v2651 = vlaneseq
        %v2652 = vshrl.u32 %v2651, 7
        %v2653 = vsub.s32 0, %v2652
        %v2654 = vrot.slane %v2649, %v2653
        %v2655 = vlaneseq
        %v2656 = vshrl.u32 %v2655, 7
        %v2657 = vsub.s32 1, %v2656
        %v2658 = vrot.slane %v2649, %v2657
        %v2661 = vrcp.pop %v2654
        %v2662 = vmul.f32 %v2626, %v2661
        %v2663 = vrcp.pop %v2658
        %v2664 = vmul.f32 %v2628, %v2663
        %2666 = vset.pattern.permute.xlu0 0
        %2667 = vperm.xlu0 %2666, %v2662
        %v2668 = vpop.permute.xlu0 %2667
        %2671 = vset.pattern.permute.xlu0 0
        %2672 = vperm.xlu0 %2671, %v2664
        %v2673 = vpop.permute.xlu0 %2672
        %v2675 = vmul.f32 %v2668, %v2546
        %v2676 = vmul.f32 %v2673, %v2547
        %v2677 = vsel %vm682, %v2675, 0.0
        %v2678 = vrot.slane %v2677, 4
        %v2679 = vadd.f32 %v2677, %v2678
        %v2680 = vrot.slane %v2679, 2
        %v2681 = vadd.f32 %v2679, %v2680
        %v2682 = vrot.slane %v2681, 1
        %v2683 = vadd.f32 %v2681, %v2682
        %v2684 = vsel %vm682, %v2676, 0.0
        %v2685 = vrot.slane %v2684, 4
        %v2686 = vadd.f32 %v2684, %v2685
        %v2687 = vrot.slane %v2686, 2
        %v2688 = vadd.f32 %v2686, %v2687
        %v2689 = vrot.slane %v2688, 1
        %v2690 = vadd.f32 %v2688, %v2689
        %2693 = vrot.lane.b32.xlu0 %v2581, 112
        %v2694 = vpop.permute.xlu0 %2693
        %2695 = vrot.lane.b32.xlu0 %v2582, 112
        %v2696 = vpop.permute.xlu0 %2695
        %v2699 = vsel %vm682, %v2694, 0.0
        %2700 = vadd.xlane.f32.xlu0 %v2699
        %v2701 = vpop.xlane.xlu0 %2700
        %v2702 = vsel %vm682, %v2696, 0.0
        %2703 = vadd.xlane.f32.xlu0 %v2702
        %v2704 = vpop.xlane.xlu0 %2703
        %v2705 = vadd.f32 %v2701, %v1319
        %v2706 = vadd.f32 %v2704, %v1326
        %2709 = vset.pattern.permute.xlu0 0
        %2710 = vperm.xlu0 %2709, %v2705
        %v2711 = vpop.permute.xlu0 %2710
        %2712 = vset.pattern.permute.xlu0 0
        %2713 = vperm.xlu0 %2712, %v2706
        %v2714 = vpop.permute.xlu0 %2713
        %v2715 = vlaneseq
        %v2716 = vshrl.u32 %v2715, 7
        %v2717 = vsub.s32 %v433, %v2716
        %v2718 = vrot.slane %v2711, %v2717
        %v2719 = vlaneseq
        %v2720 = vshrl.u32 %v2719, 7
        %v2721 = vsub.s32 %v433, %v2720
        %v2722 = vrot.slane %v2714, %v2721
        %v2723 = vsel %vm751, %v2722, %v2718
        %v2725 = vsel %vm1349, %v2723, -inf
        %2726 = vmax.xlane.f32.xlu0 %v2725
        %v2727 = vpop.xlane.xlu0 %2726
        %v2729 = vlaneseq
        %v2730 = vshrl.u32 %v2729, 7
        %v2731 = vsub.s32 0, %v2730
        %v2732 = vrot.slane %v2727, %v2731
        %v2733 = vlaneseq
        %v2734 = vshrl.u32 %v2733, 7
        %v2735 = vsub.s32 1, %v2734
        %v2736 = vrot.slane %v2727, %v2735
        %v2739 = vsub.f32 %v2705, %v2732
        %v2740 = vsub.f32 %v2706, %v2736
        %v2741 = vmul.f32 %v2739, 1.442695
        %v2742 = vpow.pop %v2741
        %v2743 = vmul.f32 %v2740, 1.442695
        %v2744 = vpow.pop %v2743
        %2747 = vset.pattern.permute.xlu0 0
        %2748 = vperm.xlu0 %2747, %v2742
        %v2749 = vpop.permute.xlu0 %2748
        %2750 = vset.pattern.permute.xlu0 0
        %2751 = vperm.xlu0 %2750, %v2744
        %v2752 = vpop.permute.xlu0 %2751
        %v2753 = vlaneseq
        %v2754 = vshrl.u32 %v2753, 7
        %v2755 = vsub.s32 %v433, %v2754
        %v2756 = vrot.slane %v2749, %v2755
        %v2757 = vlaneseq
        %v2758 = vshrl.u32 %v2757, 7
        %v2759 = vsub.s32 %v433, %v2758
        %v2760 = vrot.slane %v2752, %v2759
        %v2761 = vsel %vm751, %v2760, %v2756
        %v2763 = vsel %vm1349, %v2761, 0.0
        %2764 = vadd.xlane.f32.xlu0 %v2763
        %v2765 = vpop.xlane.xlu0 %2764
        %v2767 = vlaneseq
        %v2768 = vshrl.u32 %v2767, 7
        %v2769 = vsub.s32 0, %v2768
        %v2770 = vrot.slane %v2765, %v2769
        %v2771 = vlaneseq
        %v2772 = vshrl.u32 %v2771, 7
        %v2773 = vsub.s32 1, %v2772
        %v2774 = vrot.slane %v2765, %v2773
        %v2777 = vrcp.pop %v2770
        %v2778 = vmul.f32 %v2742, %v2777
        %v2779 = vrcp.pop %v2774
        %v2780 = vmul.f32 %v2744, %v2779
        %2782 = vset.pattern.permute.xlu0 0
        %2783 = vperm.xlu0 %2782, %v2778
        %v2784 = vpop.permute.xlu0 %2783
        %2787 = vset.pattern.permute.xlu0 0
        %2788 = vperm.xlu0 %2787, %v2780
        %v2789 = vpop.permute.xlu0 %2788
        %v2791 = vmul.f32 %v2784, %v2546
        %v2792 = vmul.f32 %v2789, %v2547
        %v2793 = vsel %vm1070, %v2791, 0.0
        %v2794 = vrot.slane %v2793, 4
        %v2795 = vadd.f32 %v2793, %v2794
        %v2796 = vrot.slane %v2795, 2
        %v2797 = vadd.f32 %v2795, %v2796
        %v2798 = vrot.slane %v2797, 1
        %v2799 = vadd.f32 %v2797, %v2798
        %v2800 = vsel %vm1070, %v2792, 0.0
        %v2801 = vrot.slane %v2800, 4
        %v2802 = vadd.f32 %v2800, %v2801
        %v2803 = vrot.slane %v2802, 2
        %v2804 = vadd.f32 %v2802, %v2803
        %v2805 = vrot.slane %v2804, 1
        %v2806 = vadd.f32 %v2804, %v2805
        %v2809 = vsel %vm751, %v2690, %v2683
        %v2813 = vsel %vm751, %v2806, %v2799
        %v2815 = vsel %vm682, %v2809, %v2813
        %s2816 = scalar_lea.vmem %s6, 32
        %v2817 = vld [vmem:[%s2816] sm:$0xff]
        %v2818 = vld [vmem:[%s2816 + $0x8] sm:$0xff]
        %v2819 = vld [vmem:[%s2816 + $0x10] sm:$0xff]
        %v2820 = vld [vmem:[%s2816 + $0x18] sm:$0xff]
        %v2822 = vsel %vm544, %v2815, 0
        %2824 = vmatprep.subr.mxu0 0.0
        %2825 = vmatpush1.msra.mxu0 %v2817
        %2826 = vmatprep.subr.mxu0 0.0
        %2827 = vmatpush1.msra.mxu0 %v2818
        %2828 = vmatprep.subr.mxu0 0.0
        %2829 = vmatpush1.msra.mxu0 %v2819
        %2830 = vmatprep.subr.mxu0 0.0
        %2831 = vmatpush1.msra.mxu0 %v2820
        %2832 = vmatprep.subr.mxu0 0.0
        %2833 = vmatpush1.msra.mxu0 0.0
        %2834 = vmatprep.subr.mxu0 0.0
        %2835 = vmatpush1.msra.mxu0 0.0
        %2836 = vmatprep.subr.mxu0 0.0
        %2837 = vmatpush1.msra.mxu0 0.0
        %2838 = vmatprep.subr.mxu0 0.0
        %2839 = vmatpush1.msra.mxu0 0.0
        %2840 = vmatprep.subr.mxu0 0.0
        %2841 = vmatpush1.msra.mxu0 0.0
        %2842 = vmatprep.subr.mxu0 0.0
        %2843 = vmatpush1.msra.mxu0 0.0
        %2844 = vmatprep.subr.mxu0 0.0
        %2845 = vmatpush1.msra.mxu0 0.0
        %2846 = vmatprep.subr.mxu0 0.0
        %2847 = vmatpush1.msra.mxu0 0.0
        %2848 = vmatprep.subr.mxu0 0.0
        %2849 = vmatpush1.msra.mxu0 0.0
        %2850 = vmatprep.subr.mxu0 0.0
        %2851 = vmatpush1.msra.mxu0 0.0
        %2852 = vmatprep.subr.mxu0 0.0
        %2853 = vmatpush1.msra.mxu0 0.0
        %2854 = vmatprep.subr.mxu0 0.0
        %2855 = vmatpush1.msra.mxu0 0.0
        %2856 = vmatprep.subr.mxu0 0.0
        %2857 = vmatpush1.msra.mxu0 0.0
        %2858 = vmatprep.subr.mxu0 0.0
        %2859 = vmatpush1.msra.mxu0 0.0
        %2860 = vmatprep.subr.mxu0 0.0
        %2861 = vmatpush1.msra.mxu0 0.0
        %2862 = vmatprep.subr.mxu0 0.0
        %2863 = vmatpush1.msra.mxu0 0.0
        %2864 = vmatprep.subr.mxu0 0.0
        %2865 = vmatpush1.msra.mxu0 0.0
        %2866 = vmatprep.subr.mxu0 0.0
        %2867 = vmatpush1.msra.mxu0 0.0
        %2868 = vmatprep.subr.mxu0 0.0
        %2869 = vmatpush1.msra.mxu0 0.0
        %2870 = vmatprep.subr.mxu0 0.0
        %2871 = vmatpush1.msra.mxu0 0.0
        %2872 = vmatprep.subr.mxu0 0.0
        %2873 = vmatpush1.msra.mxu0 0.0
        %2874 = vmatprep.subr.mxu0 0.0
        %2875 = vmatpush1.msra.mxu0 0.0
        %2876 = vmatprep.subr.mxu0 0.0
        %2877 = vmatpush1.msra.mxu0 0.0
        %2878 = vmatprep.subr.mxu0 0.0
        %2879 = vmatpush1.msra.mxu0 0.0
        %2880 = vmatprep.subr.mxu0 0.0
        %2881 = vmatpush1.msra.mxu0 0.0
        %2882 = vmatprep.subr.mxu0 0.0
        %2883 = vmatpush1.msra.mxu0 0.0
        %2884 = vmatprep.subr.mxu0 0.0
        %2885 = vmatpush1.msra.mxu0 0.0
        %2886 = vmatprep.subr.mxu0 0.0
        %2887 = vmatpush1.msra.mxu0 0.0
        %2888 = vmatprep.mubr.f32.mxu0 0.0
        %2889 = vmatmul.mubr.f32.gmra.mrb[0].mxu0 %v2822
        %v2890 = vpop.f32.mrb[0].mxu0
        %v2891 = vadd.f32 0.0, %v2890
        %v2892 = vpop.f32.mrb[0].mxu0
        %2893 = vdwg.mxu0
        %v2894 = vadd.f32 %v2449, %v2891
        %v2895 = vld [vmem:[%s2 + $0x5] sm:$0x1]
        %v2896 = vmul.f32 %v2894, %v2894
        %v2897 = vsel %vm526, %v2896, 0.0
        %2898 = vadd.xlane.f32.xlu0 %v2897
        %v2899 = vpop.xlane.xlu0 %2898
        %v2900 = vmul.f32 %v2899, %v530
        %v2901 = vadd.f32 %v2900, 1e-06
        %v2902 = vrsqrt.pop %v2901
        %v2903 = vmul.f32 %v2894, %v2902
        %v2904 = vlaneseq
        %v2905 = vshrl.u32 %v2904, 7
        %v2906 = vsub.s32 0, %v2905
        %v2907 = vrot.slane %v2895, %v2906
        %v2908 = vmul.f32 %v2903, %v2907
        %s2909 = scalar_lea.vmem %s7, 32
        %v2910 = vld [vmem:[%s2909] sm:$0xff]
        %v2911 = vld [vmem:[%s2909 + $0x8] sm:$0xff]
        %v2912 = vld [vmem:[%s2909 + $0x10] sm:$0xff]
        %v2913 = vld [vmem:[%s2909 + $0x18] sm:$0xff]
        %v2915 = vsel %vm544, %v2908, 0
        %2917 = vmatprep.subr.mxu0 0.0
        %2918 = vmatpush1.msra.mxu0 %v2910
        %2919 = vmatprep.subr.mxu0 0.0
        %2920 = vmatpush1.msra.mxu0 %v2911
        %2921 = vmatprep.subr.mxu0 0.0
        %2922 = vmatpush1.msra.mxu0 %v2912
        %2923 = vmatprep.subr.mxu0 0.0
        %2924 = vmatpush1.msra.mxu0 %v2913
        %2925 = vmatprep.subr.mxu0 0.0
        %2926 = vmatpush1.msra.mxu0 0.0
        %2927 = vmatprep.subr.mxu0 0.0
        %2928 = vmatpush1.msra.mxu0 0.0
        %2929 = vmatprep.subr.mxu0 0.0
        %2930 = vmatpush1.msra.mxu0 0.0
        %2931 = vmatprep.subr.mxu0 0.0
        %2932 = vmatpush1.msra.mxu0 0.0
        %2933 = vmatprep.subr.mxu0 0.0
        %2934 = vmatpush1.msra.mxu0 0.0
        %2935 = vmatprep.subr.mxu0 0.0
        %2936 = vmatpush1.msra.mxu0 0.0
        %2937 = vmatprep.subr.mxu0 0.0
        %2938 = vmatpush1.msra.mxu0 0.0
        %2939 = vmatprep.subr.mxu0 0.0
        %2940 = vmatpush1.msra.mxu0 0.0
        %2941 = vmatprep.subr.mxu0 0.0
        %2942 = vmatpush1.msra.mxu0 0.0
        %2943 = vmatprep.subr.mxu0 0.0
        %2944 = vmatpush1.msra.mxu0 0.0
        %2945 = vmatprep.subr.mxu0 0.0
        %2946 = vmatpush1.msra.mxu0 0.0
        %2947 = vmatprep.subr.mxu0 0.0
        %2948 = vmatpush1.msra.mxu0 0.0
        %2949 = vmatprep.subr.mxu0 0.0
        %2950 = vmatpush1.msra.mxu0 0.0
        %2951 = vmatprep.subr.mxu0 0.0
        %2952 = vmatpush1.msra.mxu0 0.0
        %2953 = vmatprep.subr.mxu0 0.0
        %2954 = vmatpush1.msra.mxu0 0.0
        %2955 = vmatprep.subr.mxu0 0.0
        %2956 = vmatpush1.msra.mxu0 0.0
        %2957 = vmatprep.subr.mxu0 0.0
        %2958 = vmatpush1.msra.mxu0 0.0
        %2959 = vmatprep.subr.mxu0 0.0
        %2960 = vmatpush1.msra.mxu0 0.0
        %2961 = vmatprep.subr.mxu0 0.0
        %2962 = vmatpush1.msra.mxu0 0.0
        %2963 = vmatprep.subr.mxu0 0.0
        %2964 = vmatpush1.msra.mxu0 0.0
        %2965 = vmatprep.subr.mxu0 0.0
        %2966 = vmatpush1.msra.mxu0 0.0
        %2967 = vmatprep.subr.mxu0 0.0
        %2968 = vmatpush1.msra.mxu0 0.0
        %2969 = vmatprep.subr.mxu0 0.0
        %2970 = vmatpush1.msra.mxu0 0.0
        %2971 = vmatprep.subr.mxu0 0.0
        %2972 = vmatpush1.msra.mxu0 0.0
        %2973 = vmatprep.subr.mxu0 0.0
        %2974 = vmatpush1.msra.mxu0 0.0
        %2975 = vmatprep.subr.mxu0 0.0
        %2976 = vmatpush1.msra.mxu0 0.0
        %2977 = vmatprep.subr.mxu0 0.0
        %2978 = vmatpush1.msra.mxu0 0.0
        %2979 = vmatprep.subr.mxu0 0.0
        %2980 = vmatpush1.msra.mxu0 0.0
        %2981 = vmatprep.mubr.f32.mxu0 0.0
        %2982 = vmatmul.mubr.f32.gmra.mrb[0].mxu0 %v2915
        %v2983 = vpop.f32.mrb[0].mxu0
        %v2984 = vadd.f32 0.0, %v2983
        %v2985 = vpop.f32.mrb[0].mxu0
        %2986 = vdwg.mxu0
        %v2987 = vmax.f32 %v2984, 0.0
        %s2988 = scalar_lea.vmem %s8, 64
        %v2989 = vld [vmem:[%s2988] sm:$0xff]
        %v2990 = vld [vmem:[%s2988 + $0x8] sm:$0xff]
        %v2991 = vld [vmem:[%s2988 + $0x10] sm:$0xff]
        %v2992 = vld [vmem:[%s2988 + $0x18] sm:$0xff]
        %v2993 = vld [vmem:[%s2988 + $0x20] sm:$0xff]
        %v2994 = vld [vmem:[%s2988 + $0x28] sm:$0xff]
        %v2995 = vld [vmem:[%s2988 + $0x30] sm:$0xff]
        %v2996 = vld [vmem:[%s2988 + $0x38] sm:$0xff]
        %v2998 = vsel %vm449, %v2987, 0
        %3000 = vmatprep.subr.mxu0 0.0
        %3001 = vmatpush1.msra.mxu0 %v2989
        %3002 = vmatprep.subr.mxu0 0.0
        %3003 = vmatpush1.msra.mxu0 %v2990
        %3004 = vmatprep.subr.mxu0 0.0
        %3005 = vmatpush1.msra.mxu0 %v2991
        %3006 = vmatprep.subr.mxu0 0.0
        %3007 = vmatpush1.msra.mxu0 %v2992
        %3008 = vmatprep.subr.mxu0 0.0
        %3009 = vmatpush1.msra.mxu0 %v2993
        %3010 = vmatprep.subr.mxu0 0.0
        %3011 = vmatpush1.msra.mxu0 %v2994
        %3012 = vmatprep.subr.mxu0 0.0
        %3013 = vmatpush1.msra.mxu0 %v2995
        %3014 = vmatprep.subr.mxu0 0.0
        %3015 = vmatpush1.msra.mxu0 %v2996
        %3016 = vmatprep.subr.mxu0 0.0
        %3017 = vmatpush1.msra.mxu0 0.0
        %3018 = vmatprep.subr.mxu0 0.0
        %3019 = vmatpush1.msra.mxu0 0.0
        %3020 = vmatprep.subr.mxu0 0.0
        %3021 = vmatpush1.msra.mxu0 0.0
        %3022 = vmatprep.subr.mxu0 0.0
        %3023 = vmatpush1.msra.mxu0 0.0
        %3024 = vmatprep.subr.mxu0 0.0
        %3025 = vmatpush1.msra.mxu0 0.0
        %3026 = vmatprep.subr.mxu0 0.0
        %3027 = vmatpush1.msra.mxu0 0.0
        %3028 = vmatprep.subr.mxu0 0.0
        %3029 = vmatpush1.msra.mxu0 0.0
        %3030 = vmatprep.subr.mxu0 0.0
        %3031 = vmatpush1.msra.mxu0 0.0
        %3032 = vmatprep.subr.mxu0 0.0
        %3033 = vmatpush1.msra.mxu0 0.0
        %3034 = vmatprep.subr.mxu0 0.0
        %3035 = vmatpush1.msra.mxu0 0.0
        %3036 = vmatprep.subr.mxu0 0.0
        %3037 = vmatpush1.msra.mxu0 0.0
        %3038 = vmatprep.subr.mxu0 0.0
        %3039 = vmatpush1.msra.mxu0 0.0
        %3040 = vmatprep.subr.mxu0 0.0
        %3041 = vmatpush1.msra.mxu0 0.0
        %3042 = vmatprep.subr.mxu0 0.0
        %3043 = vmatpush1.msra.mxu0 0.0
        %3044 = vmatprep.subr.mxu0 0.0
        %3045 = vmatpush1.msra.mxu0 0.0
        %3046 = vmatprep.subr.mxu0 0.0
        %3047 = vmatpush1.msra.mxu0 0.0
        %3048 = vmatprep.subr.mxu0 0.0
        %3049 = vmatpush1.msra.mxu0 0.0
        %3050 = vmatprep.subr.mxu0 0.0
        %3051 = vmatpush1.msra.mxu0 0.0
        %3052 = vmatprep.subr.mxu0 0.0
        %3053 = vmatpush1.msra.mxu0 0.0
        %3054 = vmatprep.subr.mxu0 0.0
        %3055 = vmatpush1.msra.mxu0 0.0
        %3056 = vmatprep.subr.mxu0 0.0
        %3057 = vmatpush1.msra.mxu0 0.0
        %3058 = vmatprep.subr.mxu0 0.0
        %3059 = vmatpush1.msra.mxu0 0.0
        %3060 = vmatprep.subr.mxu0 0.0
        %3061 = vmatpush1.msra.mxu0 0.0
        %3062 = vmatprep.subr.mxu0 0.0
        %3063 = vmatpush1.msra.mxu0 0.0
        %3064 = vmatprep.mubr.f32.mxu0 0.0
        %3065 = vmatmul.mubr.f32.gmra.mrb[0].mxu0 %v2998
        %v3066 = vpop.f32.mrb[0].mxu0
        %v3067 = vadd.f32 0.0, %v3066
        %v3068 = vpop.f32.mrb[0].mxu0
        %3069 = vdwg.mxu0
        %v3070 = vadd.f32 %v2894, %v3067
        %v3071 = vld [vmem:[%s2 + $0x6] sm:$0x1]
        %v3072 = vmul.f32 %v3070, %v3070
        %v3073 = vsel %vm526, %v3072, 0.0
        %3074 = vadd.xlane.f32.xlu0 %v3073
        %v3075 = vpop.xlane.xlu0 %3074
        %v3076 = vmul.f32 %v3075, %v530
        %v3077 = vadd.f32 %v3076, 1e-06
        %v3078 = vrsqrt.pop %v3077
        %v3079 = vmul.f32 %v3070, %v3078
        %v3080 = vlaneseq
        %v3081 = vshrl.u32 %v3080, 7
        %v3082 = vsub.s32 0, %v3081
        %v3083 = vrot.slane %v3071, %v3082
        %v3084 = vmul.f32 %v3079, %v3083
        %v3085 = vmul.f32 %v3084, 0.17677669
        %v3086 = vld [vmem:[%s1] sm:$0xff]
        %v3087 = vld [vmem:[%s1 + $0x8] sm:$0xff]
        %v3088 = vld [vmem:[%s1 + $0x10] sm:$0xff]
        %v3089 = vld [vmem:[%s1 + $0x18] sm:$0xff]
        %v3091 = vsel %vm544, %v3085, 0
        %3093 = vmatprep.subr.mxu0 0.0
        %3094 = vmatpush1.msra.mxu0 %v3086
        %3095 = vmatprep.subr.mxu0 0.0
        %3096 = vmatpush1.msra.mxu0 %v3087
        %3097 = vmatprep.subr.mxu0 0.0
        %3098 = vmatpush1.msra.mxu0 %v3088
        %3099 = vmatprep.subr.mxu0 0.0
        %3100 = vmatpush1.msra.mxu0 %v3089
        %3101 = vmatprep.subr.mxu0 0.0
        %3102 = vmatpush1.msra.mxu0 0.0
        %3103 = vmatprep.subr.mxu0 0.0
        %3104 = vmatpush1.msra.mxu0 0.0
        %3105 = vmatprep.subr.mxu0 0.0
        %3106 = vmatpush1.msra.mxu0 0.0
        %3107 = vmatprep.subr.mxu0 0.0
        %3108 = vmatpush1.msra.mxu0 0.0
        %3109 = vmatprep.subr.mxu0 0.0
        %3110 = vmatpush1.msra.mxu0 0.0
        %3111 = vmatprep.subr.mxu0 0.0
        %3112 = vmatpush1.msra.mxu0 0.0
        %3113 = vmatprep.subr.mxu0 0.0
        %3114 = vmatpush1.msra.mxu0 0.0
        %3115 = vmatprep.subr.mxu0 0.0
        %3116 = vmatpush1.msra.mxu0 0.0
        %3117 = vmatprep.subr.mxu0 0.0
        %3118 = vmatpush1.msra.mxu0 0.0
        %3119 = vmatprep.subr.mxu0 0.0
        %3120 = vmatpush1.msra.mxu0 0.0
        %3121 = vmatprep.subr.mxu0 0.0
        %3122 = vmatpush1.msra.mxu0 0.0
        %3123 = vmatprep.subr.mxu0 0.0
        %3124 = vmatpush1.msra.mxu0 0.0
        %3125 = vmatprep.subr.mxu0 0.0
        %3126 = vmatpush1.msra.mxu0 0.0
        %3127 = vmatprep.subr.mxu0 0.0
        %3128 = vmatpush1.msra.mxu0 0.0
        %3129 = vmatprep.subr.mxu0 0.0
        %3130 = vmatpush1.msra.mxu0 0.0
        %3131 = vmatprep.subr.mxu0 0.0
        %3132 = vmatpush1.msra.mxu0 0.0
        %3133 = vmatprep.subr.mxu0 0.0
        %3134 = vmatpush1.msra.mxu0 0.0
        %3135 = vmatprep.subr.mxu0 0.0
        %3136 = vmatpush1.msra.mxu0 0.0
        %3137 = vmatprep.subr.mxu0 0.0
        %3138 = vmatpush1.msra.mxu0 0.0
        %3139 = vmatprep.subr.mxu0 0.0
        %3140 = vmatpush1.msra.mxu0 0.0
        %3141 = vmatprep.subr.mxu0 0.0
        %3142 = vmatpush1.msra.mxu0 0.0
        %3143 = vmatprep.subr.mxu0 0.0
        %3144 = vmatpush1.msra.mxu0 0.0
        %3145 = vmatprep.subr.mxu0 0.0
        %3146 = vmatpush1.msra.mxu0 0.0
        %3147 = vmatprep.subr.mxu0 0.0
        %3148 = vmatpush1.msra.mxu0 0.0
        %3149 = vmatprep.subr.mxu0 0.0
        %3150 = vmatpush1.msra.mxu0 0.0
        %3151 = vmatprep.subr.mxu0 0.0
        %3152 = vmatpush1.msra.mxu0 0.0
        %3153 = vmatprep.subr.mxu0 0.0
        %3154 = vmatpush1.msra.mxu0 0.0
        %3155 = vmatprep.subr.mxu0 0.0
        %3156 = vmatpush1.msra.mxu0 0.0
        %3157 = vmatprep.mubr.f32.mxu0 0.0
        %3158 = vmatmul.mubr.f32.gmra.mrb[0].mxu0 %v3091
        %v3159 = vpop.f32.mrb[0].mxu0
        %v3160 = vadd.f32 0.0, %v3159
        %v3161 = vpop.f32.mrb[0].mxu0
        %3162 = vdwg.mxu0
        %vm3163 = vcmask 517120
        %v3164 = vsel %vm3163, %v3160, -inf
        %3165 = vmax.xlane.f32.xlu0 %v3164
        %v3166 = vpop.xlane.xlu0 %3165
        %vm3167 = vcmp.eq.f32.partialorder %v3160, %v3166
        %v3168 = vsel %vm3167, %v433, 64
        %v3169 = vsel %vm3163, %v3168, 2147483647
        %v3170 = vand.u32 %v3169, 65535
        %v3171 = vshra.s32 %v3169, 16
        %v3172 = vcvt.s32.f32 %v3170
        %v3173 = vcvt.s32.f32 %v3171
        %3174 = vmin.xlane.f32.xlu0 %v3173
        %v3175 = vpop.xlane.xlu0 %3174
        %vm3176 = vcmp.eq.f32.partialorder %v3173, %v3175
        %v3177 = vsel %vm3176, %v3172, inf
        %3178 = vmin.xlane.f32.xlu0 %v3177
        %v3179 = vpop.xlane.xlu0 %3178
        %v3180 = vcvt.f32.s32 %v3179
        %v3181 = vcvt.f32.s32 %v3175
        %v3182 = vshll.u32 %v3181, 16
        %v3183 = vadd.s32 %v3182, %v3180
        %vm3184 = vcmask 1024
        %3185 = vst.msk [vmem:[#allocation6] sm:$0x3] %vm3184, %v3183
        %s3186 = sadd.s32 %s25, 1
        %v3187 = vstv %s3186
        %vm3188 = vcmp.eq.s32.totalorder %v433, %v3187
        %v3189 = vld [vmem:[#allocation7] sm:$0x3]
        %v3190 = vsel %vm3188, %v3183, %v3189
        %3191 = vst.msk [vmem:[#allocation7] sm:$0x3] %vm754, %v3190
        // Predicated region
        $region77: #{generate.3} parent=71 // pred_check
          %p3192 = pneg %p311
        $region78: #{generate.3} parent=71 // pred_check_branch
          %3194 = sbr.rel (%p3192) target = $region80
        $region79: #{generate.3} parent=71 // pred_region
          %s3196 = ssub.s32 32, 32
          %3197 = vsyncadd [#allocation8], %s3196
          %s3199 = sshll.u32 [#allocation7], 4
          %s3200 = int_to_ptr.vmem [resolvable:$true] %s3199
          %3202 = dma.vmem_to_hbm [thread:$0]  %s3200, 32, %s13, [#allocation8]
        $region80: #{generate.3} parent=71 // pred_fallthru
          _
        // Predicated region
        $region81: #{generate.3} parent=71 // pred_check
          %p3203 = pneg %p311
        $region82: #{generate.3} parent=71 // pred_check_branch
          %3205 = sbr.rel (%p3203) target = $region84
        $region83: #{generate.3} parent=71 // pred_region
          %3206 = dma.done [#allocation8], 32
        $region84: #{generate.3} parent=71 // pred_fallthru
          _
      $region72: #{generate.3} parent=5 // pred_fallthru
        _
      %p3207 = scmp.le.s32.totalorder 2, %s20
      // Predicated region
      $region85: #{generate.3} parent=5 // pred_check
        %p3208 = pneg %p3207
      $region86: #{generate.3} parent=5 // pred_check_branch
        %3210 = sbr.rel (%p3208) target = $region88
      $region87: #{generate.3} parent=5 // pred_region
        %s3211 = ssub.s32 %s20, 2
      $region88: #{generate.3} parent=5 // pred_fallthru
        _
    $region6: #{generate.3} parent=1 // loop_footer
      %s24 = sadd.s32 1, %s20
    $region7: #{generate.3} parent=1 // loop_footer_branch
      %19 = sbr.rel target = $region3
    $region8: #{generate.3} parent=1 // loop_exit
      _
    %3212 = vsyncpa [#allocation8], 1
    %s3213 = scalar_lea.sflag [#allocation8], 1
    %3214 = vsyncpa %s3213, 1

</llo_original>
